<compile_context>
chip_gen: v7x
topology: tpu7x:2x2x1
jax: 0.10.0
libtpu: 0.0.40
codegen_flags: <defaults>
</compile_context>

<pallas_src>
import numpy as np
import jax
import jax.numpy as jnp
from jax.experimental import pallas as pl
from jax.experimental.pallas import tpu as pltpu


def _round_up(x, m):
    return (x + m - 1) // m * m


# ----------------------------------------------------------------------------
# Pallas kernel: one batch tile of the full MetaMF forward
# ----------------------------------------------------------------------------
def metamf_kernel(
    ue_ref,                                        # (TB, user_emb)   bf16
    we1s_ref,                                      # (TB, M*hidden)   bf16 (gathered emb_layer_1 rows)
    be1s_ref,                                      # (TB, M)          f32  (gathered emb_layer_1 bias)
    whf_ref, bhall_ref,                            # fused hypernet layer 1
    whd1_ref, bhd1_ref, whd2_ref, bhd2_ref,        # per-branch heads
    we2_ref, be2_ref,                              # emb_layer_2
    foldm_ref, folde_ref,                          # 0/1 fold matrices (bf16)
    out_ref,                                       # (TB, 1) f32
):
    f32 = jnp.float32
    bf16 = jnp.bfloat16
    HID = whd1_ref.shape[0]                         # hidden_size (512)
    M = be1s_ref.shape[1]                           # item_mem_num (8)
    E = foldm_ref.shape[1]                          # item_emb_size (32)
    O = folde_ref.shape[1]                          # item_emb_size // 4 (8)

    def dot(a, b):
        return jnp.dot(a, b, preferred_element_type=f32)

    # ---- MetaRecommender hypernetwork (bf16 MXU, f32 accumulation) ----------
    # user-memory matmul folded into whf at pack time: hid = relu(ue @ (memory @ Wh) + bh)
    hid_all = jnp.maximum(dot(ue_ref[...], whf_ref[...]) + bhall_ref[...], 0.0)   # (TB, 3*HID) f32
    hid1 = hid_all[:, 0 * HID:1 * HID].astype(bf16)
    hid2 = hid_all[:, 1 * HID:2 * HID].astype(bf16)
    hid3 = hid_all[:, 2 * HID:3 * HID]                                   # keep f32 for VPU contraction

    h1 = dot(hid1, whd1_ref[...]) + bhd1_ref[...]                        # (TB, E*O + O)
    w1f = h1[:, :E * O]                                                  # [b, o*E + i] = W1[b, i, o]
    b1 = h1[:, E * O:E * O + O]                                          # (TB, O)

    h2 = dot(hid2, whd2_ref[...]) + bhd2_ref[...]                        # (TB, O + 1)
    w2f = h2[:, :O]                                                      # (TB, O) = W2[b, :, 0]
    b2 = h2[:, O:O + 1]                                                  # (TB, 1)

    erf = dot(hid3.astype(bf16), we2_ref[...]) + be2_ref[...]            # (TB, E*M), [b, e*M+m] = ER[b,m,e]

    # ---- MF head -------------------------------------------------------------
    # sel_left[b, m] = sum_h hid3[b, h] * we1[item_b][m, h] + be1[item_b][m]
    # (we1 rows arrive lane-contiguous: slice at m*HID is vreg-aligned, free)
    cols = [jnp.sum(hid3 * we1s_ref[:, m * HID:(m + 1) * HID].astype(f32),
                    axis=-1, keepdims=True) for m in range(M)]
    sel_left = jnp.concatenate(cols, axis=-1) + be1s_ref[...]            # (TB, M)

    # item_emb[b, e] = sum_m sel_left[b, m] * ER[b, m, e]
    # (replication via lane concat on the VPU; the fold is a real reduction -> bf16 MXU)
    sel_rep = jnp.concatenate([sel_left] * E, axis=-1)                   # (TB, E*M)
    item_emb = dot((sel_rep * erf).astype(bf16), foldm_ref[...])         # (TB, E)

    # z1 = relu(item_emb @ W1_b + b1)
    item_rep = jnp.concatenate([item_emb] * O, axis=-1)                  # (TB, O*E)
    z1 = jnp.maximum(dot((item_rep * w1f).astype(bf16), folde_ref[...]) + b1, 0.0)  # (TB, O)

    # z2 = z1 @ W2_b + b2   (W2_b is (O,1): elementwise mul + lane reduce)
    out_ref[...] = jnp.sum(z1 * w2f, axis=-1, keepdims=True) + b2        # (TB, 1)


# ----------------------------------------------------------------------------
# Parameter init (weights rounded to bf16-representable values so the bf16
# kernel and the f32 reference see identical weights)
# ----------------------------------------------------------------------------
def init_params(key, user_num, item_num, item_emb_size=32, item_mem_num=8,
                user_emb_size=32, mem_size=128, hidden_size=512):
    keys = iter(jax.random.split(key, 32))

    def _bf16_exact(x):
        return x.astype(jnp.bfloat16).astype(jnp.float32)

    def lin(in_f, out_f):
        bound = 1.0 / np.sqrt(in_f)
        w = jax.random.uniform(next(keys), (in_f, out_f), jnp.float32, -bound, bound)
        b = jax.random.uniform(next(keys), (1, out_f), jnp.float32, -bound, bound)
        return _bf16_exact(w), b

    p = {}
    p["user_embedding"] = _bf16_exact(
        jax.random.normal(next(keys), (user_num, user_emb_size), jnp.float32))
    p["memory"] = _bf16_exact(
        jax.random.normal(next(keys), (user_emb_size, mem_size), jnp.float32)
        * np.sqrt(2.0 / (user_emb_size + mem_size)))
    p["h1"] = lin(mem_size, hidden_size)
    p["w1"] = lin(hidden_size, item_emb_size * (item_emb_size // 4))
    p["b1"] = lin(hidden_size, item_emb_size // 4)
    p["h2"] = lin(mem_size, hidden_size)
    p["w2"] = lin(hidden_size, (item_emb_size // 4) * 1)
    p["b2"] = lin(hidden_size, 1)
    p["h3"] = lin(mem_size, hidden_size)
    p["e1"] = lin(hidden_size, item_num * item_mem_num)
    p["e2"] = lin(hidden_size, item_mem_num * item_emb_size)
    return p


# ----------------------------------------------------------------------------
# Host-side packing: branch fusion, memory-folding, lane reordering, bf16 casts
# ----------------------------------------------------------------------------
def pack_params(p, *, item_num, item_emb_size=32, item_mem_num=8):
    bf16 = jnp.bfloat16
    hi = jax.lax.Precision.HIGHEST
    E, M, O = item_emb_size, item_mem_num, item_emb_size // 4
    hidden = p["h1"][0].shape[1]

    # fused hypernetwork first layer, with the user-memory matmul folded in:
    #   relu(ue @ memory @ [wh1|wh2|wh3] + [bh1|bh2|bh3])
    wh_all = jnp.concatenate([p["h1"][0], p["h2"][0], p["h3"][0]], axis=1)   # (mem, 3*hidden) f32
    bh_all = jnp.concatenate([p["h1"][1], p["h2"][1], p["h3"][1]], axis=1)
    whf = jnp.matmul(p["memory"], wh_all, precision=hi).astype(bf16)          # (user_emb, 3*hidden)

    # branch-1 head, columns reordered so w1f[b, o*E + i] = W1[b, i, o]
    ww1 = p["w1"][0].reshape(hidden, E, O).transpose(0, 2, 1).reshape(hidden, E * O)
    bw1 = p["w1"][1].reshape(1, E, O).transpose(0, 2, 1).reshape(1, E * O)
    whd1 = jnp.concatenate([ww1, p["b1"][0]], axis=1).astype(bf16)       # (hidden, E*O+O)
    bhd1 = jnp.concatenate([bw1, p["b1"][1]], axis=1)

    # branch-2 head: [ww2 | wb2]
    whd2 = jnp.concatenate([p["w2"][0], p["b2"][0]], axis=1).astype(bf16)  # (hidden, O+1)
    bhd2 = jnp.concatenate([p["w2"][1], p["b2"][1]], axis=1)

    # emb_layer_2 reordered so erf[b, e*M + m] = ER[b, m, e]
    we2 = p["e2"][0].reshape(hidden, M, E).transpose(0, 2, 1).reshape(hidden, M * E).astype(bf16)
    be2 = p["e2"][1].reshape(1, M, E).transpose(0, 2, 1).reshape(1, M * E)

    # emb_layer_1 as a lane-contiguous (item_num, M*hidden) bf16 table; rows are
    # gathered by item_id in the wrapper (XLA gather) and row-tiled into the kernel
    we1 = (p["e1"][0].reshape(hidden, item_num, M).transpose(1, 2, 0)
           .reshape(item_num, M * hidden).astype(bf16))
    be1 = p["e1"][1].reshape(item_num, M)                                 # f32 (8 floats/item)

    # constant 0/1 fold matrices (exact in bf16; real reductions, kept on the MXU)
    c_m = np.arange(E * M)
    fold_m = jnp.asarray((c_m[:, None] // M) == np.arange(E)[None, :], jnp.bfloat16)
    c_e = np.arange(O * E)
    fold_e = jnp.asarray((c_e[:, None] // E) == np.arange(O)[None, :], jnp.bfloat16)

    return dict(user_embedding=p["user_embedding"].astype(bf16),
                whf=whf, bh_all=bh_all, whd1=whd1, bhd1=bhd1,
                whd2=whd2, bhd2=bhd2, we2=we2, be2=be2,
                we1=we1, be1=be1, fold_m=fold_m, fold_e=fold_e)


# ----------------------------------------------------------------------------
# pallas_call wrapper
# ----------------------------------------------------------------------------
def metamf_forward(packed, user_id, item_id, *, item_num,
                   item_emb_size=32, item_mem_num=8, batch_tile=256):
    B = int(user_id.shape[0])
    M = item_mem_num
    hidden = packed["whd1"].shape[0]

    TB = min(batch_tile, _round_up(B, 8))
    B_pad = _round_up(B, TB)

    # XLA gathers (lane-dense rows); the kernel streams them via row BlockSpecs.
    ue = packed["user_embedding"][user_id]                               # (B, user_emb) bf16
    we1_sel = packed["we1"][item_id]                                     # (B, M*hidden) bf16
    be1_sel = packed["be1"][item_id]                                     # (B, M) f32

    def pad_rows(x):
        return jnp.pad(x, ((0, B_pad - B), (0, 0)))

    ue_p = pad_rows(ue)
    we1_p = pad_rows(we1_sel)
    be1_p = pad_rows(be1_sel)

    def row_spec(cols):
        return pl.BlockSpec((TB, cols), lambda i: (i, 0))

    def full_spec(shp):
        return pl.BlockSpec(shp, lambda i: (0, 0))

    in_specs = [
        row_spec(ue_p.shape[1]),                     # user embedding rows
        row_spec(M * hidden),                        # selected emb_layer_1 weight rows
        row_spec(M),                                 # selected emb_layer_1 bias rows
        full_spec(packed["whf"].shape),
        full_spec(packed["bh_all"].shape),
        full_spec(packed["whd1"].shape),
        full_spec(packed["bhd1"].shape),
        full_spec(packed["whd2"].shape),
        full_spec(packed["bhd2"].shape),
        full_spec(packed["we2"].shape),
        full_spec(packed["be2"].shape),
        full_spec(packed["fold_m"].shape),
        full_spec(packed["fold_e"].shape),
    ]

    out = pl.pallas_call(
        metamf_kernel,
        out_shape=jax.ShapeDtypeStruct((B_pad, 1), jnp.float32),
        grid_spec=pltpu.PrefetchScalarGridSpec(
            num_scalar_prefetch=0,
            grid=(B_pad // TB,),
            in_specs=in_specs,
            out_specs=pl.BlockSpec((TB, 1), lambda i: (i, 0)),
        ),
        compiler_params=pltpu.CompilerParams(
            dimension_semantics=("parallel",),
            vmem_limit_bytes=32 * 1024 * 1024),
    )(ue_p, we1_p, be1_p,
      packed["whf"], packed["bh_all"],
      packed["whd1"], packed["bhd1"], packed["whd2"], packed["bhd2"],
      packed["we2"], packed["be2"], packed["fold_m"], packed["fold_e"])
    return out[:B, 0]


# ----------------------------------------------------------------------------
# Pure-JAX f32 reference (mirrors the PyTorch forward exactly)
# ----------------------------------------------------------------------------
def metamf_reference(params, user_id, item_id, *, item_num,
                     item_emb_size=32, item_mem_num=8):
    hi = jax.lax.Precision.HIGHEST
    ue = params["user_embedding"][user_id]
    cf = jnp.matmul(ue, params["memory"], precision=hi)

    def one_layer(h, w, b, int_size, out_size):
        hid = jax.nn.relu(jnp.matmul(cf, h[0], precision=hi) + h[1])
        weight = (jnp.matmul(hid, w[0], precision=hi) + w[1]).reshape(-1, int_size, out_size)
        bias = (jnp.matmul(hid, b[0], precision=hi) + b[1]).reshape(-1, 1, out_size)
        return weight, bias

    w1, b1 = one_layer(params["h1"], params["w1"], params["b1"],
                       item_emb_size, item_emb_size // 4)
    w2, b2 = one_layer(params["h2"], params["w2"], params["b2"],
                       item_emb_size // 4, 1)

    hid3 = jax.nn.relu(jnp.matmul(cf, params["h3"][0], precision=hi) + params["h3"][1])
    el = (jnp.matmul(hid3, params["e1"][0], precision=hi) + params["e1"][1]
          ).reshape(-1, item_num, item_mem_num)
    er = (jnp.matmul(hid3, params["e2"][0], precision=hi) + params["e2"][1]
          ).reshape(-1, item_mem_num, item_emb_size)
    item_embedding = jnp.matmul(el, er, precision=hi)                    # (B, N, E)

    oh = jax.nn.one_hot(item_id, item_num, dtype=jnp.float32)[:, None, :]
    item_emb = jnp.matmul(oh, item_embedding, precision=hi)              # (B, 1, E)
    out = jnp.matmul(item_emb, w1, precision=hi) + b1
    out = jax.nn.relu(out)
    out = jnp.matmul(out, w2, precision=hi) + b2                         # (B, 1, 1)
    return jnp.squeeze(out)


# ----------------------------------------------------------------------------
if __name__ == "__main__":
    user_num, item_num = 64, 64
    batch = 200                                # with batch_tile=128: pads to 256 -> 2 grid steps

    key = jax.random.PRNGKey(0)
    kp, ku, ki = jax.random.split(key, 3)
    params = init_params(kp, user_num, item_num)
    user_id = jax.random.randint(ku, (batch,), 0, user_num)
    item_id = jax.random.randint(ki, (batch,), 0, item_num)

    packed = pack_params(params, item_num=item_num)

    # batch_tile=128 here so the tiny test exercises the multi-step grid + row
    # padding path; production default is 256.
    out = metamf_forward(packed, user_id, item_id, item_num=item_num, batch_tile=128)
    out = jax.block_until_ready(out)

    ref = metamf_reference(params, user_id, item_id, item_num=item_num)
    ref = jax.block_until_ready(ref)

    assert out.shape == ref.shape, (out.shape, ref.shape)
    np.testing.assert_allclose(np.asarray(out), np.asarray(ref), rtol=5e-2, atol=1e-2)
    print("KERNEL_OK")
</pallas_src>

<mosaic_0001>
module attributes {stable_mosaic.version = 11 : i64} {
  func.func @metamf_kernel(%arg0: i32, %arg1: memref<128x32xbf16, #tpu.memory_space<vmem>>, %arg2: memref<128x4096xbf16, #tpu.memory_space<vmem>>, %arg3: memref<128x8xf32, #tpu.memory_space<vmem>>, %arg4: memref<32x1536xbf16, #tpu.memory_space<vmem>>, %arg5: memref<1x1536xf32, #tpu.memory_space<vmem>>, %arg6: memref<512x264xbf16, #tpu.memory_space<vmem>>, %arg7: memref<1x264xf32, #tpu.memory_space<vmem>>, %arg8: memref<512x9xbf16, #tpu.memory_space<vmem>>, %arg9: memref<1x9xf32, #tpu.memory_space<vmem>>, %arg10: memref<512x256xbf16, #tpu.memory_space<vmem>>, %arg11: memref<1x256xf32, #tpu.memory_space<vmem>>, %arg12: memref<256x32xbf16, #tpu.memory_space<vmem>>, %arg13: memref<256x8xbf16, #tpu.memory_space<vmem>>, %arg14: memref<128x1xf32, #tpu.memory_space<vmem>>) attributes {dimension_semantics = [#tpu.dimension_semantics<parallel>], iteration_bounds = array<i64: 2>, scalar_prefetch = 0 : i64, scratch_operands = 0 : i64, tpu.core_type = #tpu.core_type<tc>, window_params = [{transform_indices = @transform_0, window_bounds = array<i64: 128, 32>}, {transform_indices = @transform_1, window_bounds = array<i64: 128, 4096>}, {transform_indices = @transform_2, window_bounds = array<i64: 128, 8>}, {pipeline_mode = #tpu.pipeline_mode<synchronous>, transform_indices = @transform_3, window_bounds = array<i64: 32, 1536>}, {pipeline_mode = #tpu.pipeline_mode<synchronous>, transform_indices = @transform_4, window_bounds = array<i64: 1, 1536>}, {pipeline_mode = #tpu.pipeline_mode<synchronous>, transform_indices = @transform_5, window_bounds = array<i64: 512, 264>}, {pipeline_mode = #tpu.pipeline_mode<synchronous>, transform_indices = @transform_6, window_bounds = array<i64: 1, 264>}, {pipeline_mode = #tpu.pipeline_mode<synchronous>, transform_indices = @transform_7, window_bounds = array<i64: 512, 9>}, {pipeline_mode = #tpu.pipeline_mode<synchronous>, transform_indices = @transform_8, window_bounds = array<i64: 1, 9>}, {pipeline_mode = #tpu.pipeline_mode<synchronous>, transform_indices = @transform_9, window_bounds = array<i64: 512, 256>}, {pipeline_mode = #tpu.pipeline_mode<synchronous>, transform_indices = @transform_10, window_bounds = array<i64: 1, 256>}, {pipeline_mode = #tpu.pipeline_mode<synchronous>, transform_indices = @transform_11, window_bounds = array<i64: 256, 32>}, {pipeline_mode = #tpu.pipeline_mode<synchronous>, transform_indices = @transform_12, window_bounds = array<i64: 256, 8>}, {transform_indices = @transform_13, window_bounds = array<i64: 128, 1>}]} {
    %c0 = arith.constant 0 : index
    %c0_0 = arith.constant 0 : index
    %0 = vector.load %arg1[%c0, %c0_0] : memref<128x32xbf16, #tpu.memory_space<vmem>>, vector<128x32xbf16>
    %c0_1 = arith.constant 0 : index
    %c0_2 = arith.constant 0 : index
    %1 = vector.load %arg4[%c0_1, %c0_2] : memref<32x1536xbf16, #tpu.memory_space<vmem>>, vector<32x1536xbf16>
    %cst = arith.constant dense<0.000000e+00> : vector<128x1536xf32>
    %2 = tpu.matmul %0, %1, %cst {dimension_numbers = #tpu.dot_dimension_numbers<[1], [0], [0], [1], [0, 0, 1, 1], [], []>} : vector<128x32xbf16>, vector<32x1536xbf16>, vector<128x1536xf32> -> vector<128x1536xf32>
    %c0_3 = arith.constant 0 : index
    %c0_4 = arith.constant 0 : index
    %3 = vector.load %arg5[%c0_3, %c0_4] : memref<1x1536xf32, #tpu.memory_space<vmem>>, vector<1x1536xf32>
    %4 = vector.broadcast %3 : vector<1x1536xf32> to vector<128x1536xf32>
    %5 = arith.addf %2, %4 : vector<128x1536xf32>
    %cst_5 = arith.constant 0.000000e+00 : f32
    %6 = vector.broadcast %cst_5 : f32 to vector<128x1536xf32>
    %7 = arith.maximumf %5, %6 : vector<128x1536xf32>
    %8 = vector.extract_strided_slice %7 {offsets = [0, 0], sizes = [128, 512], strides = [1, 1]} : vector<128x1536xf32> to vector<128x512xf32>
    %9 = arith.truncf %8 : vector<128x512xf32> to vector<128x512xbf16>
    %10 = vector.extract_strided_slice %7 {offsets = [0, 512], sizes = [128, 512], strides = [1, 1]} : vector<128x1536xf32> to vector<128x512xf32>
    %11 = arith.truncf %10 : vector<128x512xf32> to vector<128x512xbf16>
    %12 = vector.extract_strided_slice %7 {offsets = [0, 1024], sizes = [128, 512], strides = [1, 1]} : vector<128x1536xf32> to vector<128x512xf32>
    %c0_6 = arith.constant 0 : index
    %c0_7 = arith.constant 0 : index
    %13 = vector.load %arg6[%c0_6, %c0_7] : memref<512x264xbf16, #tpu.memory_space<vmem>>, vector<512x264xbf16>
    %cst_8 = arith.constant dense<0.000000e+00> : vector<128x264xf32>
    %14 = tpu.matmul %9, %13, %cst_8 {dimension_numbers = #tpu.dot_dimension_numbers<[1], [0], [0], [1], [0, 0, 1, 1], [], []>} : vector<128x512xbf16>, vector<512x264xbf16>, vector<128x264xf32> -> vector<128x264xf32>
    %c0_9 = arith.constant 0 : index
    %c0_10 = arith.constant 0 : index
    %15 = vector.load %arg7[%c0_9, %c0_10] : memref<1x264xf32, #tpu.memory_space<vmem>>, vector<1x264xf32>
    %16 = vector.broadcast %15 : vector<1x264xf32> to vector<128x264xf32>
    %17 = arith.addf %14, %16 : vector<128x264xf32>
    %18 = vector.extract_strided_slice %17 {offsets = [0, 0], sizes = [128, 256], strides = [1, 1]} : vector<128x264xf32> to vector<128x256xf32>
    %19 = vector.extract_strided_slice %17 {offsets = [0, 256], sizes = [128, 8], strides = [1, 1]} : vector<128x264xf32> to vector<128x8xf32>
    %c0_11 = arith.constant 0 : index
    %c0_12 = arith.constant 0 : index
    %20 = vector.load %arg8[%c0_11, %c0_12] : memref<512x9xbf16, #tpu.memory_space<vmem>>, vector<512x9xbf16>
    %cst_13 = arith.constant dense<0.000000e+00> : vector<128x9xf32>
    %21 = tpu.matmul %11, %20, %cst_13 {dimension_numbers = #tpu.dot_dimension_numbers<[1], [0], [0], [1], [0, 0, 1, 1], [], []>} : vector<128x512xbf16>, vector<512x9xbf16>, vector<128x9xf32> -> vector<128x9xf32>
    %c0_14 = arith.constant 0 : index
    %c0_15 = arith.constant 0 : index
    %22 = vector.load %arg9[%c0_14, %c0_15] : memref<1x9xf32, #tpu.memory_space<vmem>>, vector<1x9xf32>
    %23 = vector.broadcast %22 : vector<1x9xf32> to vector<128x9xf32>
    %24 = arith.addf %21, %23 : vector<128x9xf32>
    %25 = vector.extract_strided_slice %24 {offsets = [0, 0], sizes = [128, 8], strides = [1, 1]} : vector<128x9xf32> to vector<128x8xf32>
    %26 = vector.extract_strided_slice %24 {offsets = [0, 8], sizes = [128, 1], strides = [1, 1]} : vector<128x9xf32> to vector<128x1xf32>
    %27 = arith.truncf %12 : vector<128x512xf32> to vector<128x512xbf16>
    %c0_16 = arith.constant 0 : index
    %c0_17 = arith.constant 0 : index
    %28 = vector.load %arg10[%c0_16, %c0_17] : memref<512x256xbf16, #tpu.memory_space<vmem>>, vector<512x256xbf16>
    %cst_18 = arith.constant dense<0.000000e+00> : vector<128x256xf32>
    %29 = tpu.matmul %27, %28, %cst_18 {dimension_numbers = #tpu.dot_dimension_numbers<[1], [0], [0], [1], [0, 0, 1, 1], [], []>} : vector<128x512xbf16>, vector<512x256xbf16>, vector<128x256xf32> -> vector<128x256xf32>
    %c0_19 = arith.constant 0 : index
    %c0_20 = arith.constant 0 : index
    %30 = vector.load %arg11[%c0_19, %c0_20] : memref<1x256xf32, #tpu.memory_space<vmem>>, vector<1x256xf32>
    %31 = vector.broadcast %30 : vector<1x256xf32> to vector<128x256xf32>
    %32 = arith.addf %29, %31 : vector<128x256xf32>
    %c0_21 = arith.constant 0 : index
    %c0_22 = arith.constant 0 : index
    %33 = vector.load %arg2[%c0_21, %c0_22] : memref<128x4096xbf16, #tpu.memory_space<vmem>>, vector<128x512xbf16>
    %34 = arith.extf %33 : vector<128x512xbf16> to vector<128x512xf32>
    %35 = arith.mulf %12, %34 : vector<128x512xf32>
    %cst_23 = arith.constant dense<0.000000e+00> : vector<128xf32>
    %36 = vector.multi_reduction <add>, %35, %cst_23 [1] : vector<128x512xf32> to vector<128xf32>
    %37 = vector.shape_cast %36 : vector<128xf32> to vector<128x1xf32>
    %c0_24 = arith.constant 0 : index
    %c512 = arith.constant 512 : index
    %38 = vector.load %arg2[%c0_24, %c512] : memref<128x4096xbf16, #tpu.memory_space<vmem>>, vector<128x512xbf16>
    %39 = arith.extf %38 : vector<128x512xbf16> to vector<128x512xf32>
    %40 = arith.mulf %12, %39 : vector<128x512xf32>
    %cst_25 = arith.constant dense<0.000000e+00> : vector<128xf32>
    %41 = vector.multi_reduction <add>, %40, %cst_25 [1] : vector<128x512xf32> to vector<128xf32>
    %42 = vector.shape_cast %41 : vector<128xf32> to vector<128x1xf32>
    %c0_26 = arith.constant 0 : index
    %c1024 = arith.constant 1024 : index
    %43 = vector.load %arg2[%c0_26, %c1024] : memref<128x4096xbf16, #tpu.memory_space<vmem>>, vector<128x512xbf16>
    %44 = arith.extf %43 : vector<128x512xbf16> to vector<128x512xf32>
    %45 = arith.mulf %12, %44 : vector<128x512xf32>
    %cst_27 = arith.constant dense<0.000000e+00> : vector<128xf32>
    %46 = vector.multi_reduction <add>, %45, %cst_27 [1] : vector<128x512xf32> to vector<128xf32>
    %47 = vector.shape_cast %46 : vector<128xf32> to vector<128x1xf32>
    %c0_28 = arith.constant 0 : index
    %c1536 = arith.constant 1536 : index
    %48 = vector.load %arg2[%c0_28, %c1536] : memref<128x4096xbf16, #tpu.memory_space<vmem>>, vector<128x512xbf16>
    %49 = arith.extf %48 : vector<128x512xbf16> to vector<128x512xf32>
    %50 = arith.mulf %12, %49 : vector<128x512xf32>
    %cst_29 = arith.constant dense<0.000000e+00> : vector<128xf32>
    %51 = vector.multi_reduction <add>, %50, %cst_29 [1] : vector<128x512xf32> to vector<128xf32>
    %52 = vector.shape_cast %51 : vector<128xf32> to vector<128x1xf32>
    %c0_30 = arith.constant 0 : index
    %c2048 = arith.constant 2048 : index
    %53 = vector.load %arg2[%c0_30, %c2048] : memref<128x4096xbf16, #tpu.memory_space<vmem>>, vector<128x512xbf16>
    %54 = arith.extf %53 : vector<128x512xbf16> to vector<128x512xf32>
    %55 = arith.mulf %12, %54 : vector<128x512xf32>
    %cst_31 = arith.constant dense<0.000000e+00> : vector<128xf32>
    %56 = vector.multi_reduction <add>, %55, %cst_31 [1] : vector<128x512xf32> to vector<128xf32>
    %57 = vector.shape_cast %56 : vector<128xf32> to vector<128x1xf32>
    %c0_32 = arith.constant 0 : index
    %c2560 = arith.constant 2560 : index
    %58 = vector.load %arg2[%c0_32, %c2560] : memref<128x4096xbf16, #tpu.memory_space<vmem>>, vector<128x512xbf16>
    %59 = arith.extf %58 : vector<128x512xbf16> to vector<128x512xf32>
    %60 = arith.mulf %12, %59 : vector<128x512xf32>
    %cst_33 = arith.constant dense<0.000000e+00> : vector<128xf32>
    %61 = vector.multi_reduction <add>, %60, %cst_33 [1] : vector<128x512xf32> to vector<128xf32>
    %62 = vector.shape_cast %61 : vector<128xf32> to vector<128x1xf32>
    %c0_34 = arith.constant 0 : index
    %c3072 = arith.constant 3072 : index
    %63 = vector.load %arg2[%c0_34, %c3072] : memref<128x4096xbf16, #tpu.memory_space<vmem>>, vector<128x512xbf16>
    %64 = arith.extf %63 : vector<128x512xbf16> to vector<128x512xf32>
    %65 = arith.mulf %12, %64 : vector<128x512xf32>
    %cst_35 = arith.constant dense<0.000000e+00> : vector<128xf32>
    %66 = vector.multi_reduction <add>, %65, %cst_35 [1] : vector<128x512xf32> to vector<128xf32>
    %67 = vector.shape_cast %66 : vector<128xf32> to vector<128x1xf32>
    %c0_36 = arith.constant 0 : index
    %c3584 = arith.constant 3584 : index
    %68 = vector.load %arg2[%c0_36, %c3584] : memref<128x4096xbf16, #tpu.memory_space<vmem>>, vector<128x512xbf16>
    %69 = arith.extf %68 : vector<128x512xbf16> to vector<128x512xf32>
    %70 = arith.mulf %12, %69 : vector<128x512xf32>
    %cst_37 = arith.constant dense<0.000000e+00> : vector<128xf32>
    %71 = vector.multi_reduction <add>, %70, %cst_37 [1] : vector<128x512xf32> to vector<128xf32>
    %72 = vector.shape_cast %71 : vector<128xf32> to vector<128x1xf32>
    %73 = tpu.concatenate %37, %42, %47, %52, %57, %62, %67, %72 in 1 : vector<128x1xf32>, vector<128x1xf32>, vector<128x1xf32>, vector<128x1xf32>, vector<128x1xf32>, vector<128x1xf32>, vector<128x1xf32>, vector<128x1xf32> -> vector<128x8xf32>
    %c0_38 = arith.constant 0 : index
    %c0_39 = arith.constant 0 : index
    %74 = vector.load %arg3[%c0_38, %c0_39] : memref<128x8xf32, #tpu.memory_space<vmem>>, vector<128x8xf32>
    %75 = arith.addf %73, %74 : vector<128x8xf32>
    %76 = tpu.concatenate %75, %75, %75, %75, %75, %75, %75, %75, %75, %75, %75, %75, %75, %75, %75, %75 in 1 : vector<128x8xf32>, vector<128x8xf32>, vector<128x8xf32>, vector<128x8xf32>, vector<128x8xf32>, vector<128x8xf32>, vector<128x8xf32>, vector<128x8xf32>, vector<128x8xf32>, vector<128x8xf32>, vector<128x8xf32>, vector<128x8xf32>, vector<128x8xf32>, vector<128x8xf32>, vector<128x8xf32>, vector<128x8xf32> -> vector<128x128xf32>
    %77 = tpu.concatenate %75, %75, %75, %75, %75, %75, %75, %75, %75, %75, %75, %75, %75, %75, %75, %75 in 1 : vector<128x8xf32>, vector<128x8xf32>, vector<128x8xf32>, vector<128x8xf32>, vector<128x8xf32>, vector<128x8xf32>, vector<128x8xf32>, vector<128x8xf32>, vector<128x8xf32>, vector<128x8xf32>, vector<128x8xf32>, vector<128x8xf32>, vector<128x8xf32>, vector<128x8xf32>, vector<128x8xf32>, vector<128x8xf32> -> vector<128x128xf32>
    %78 = tpu.concatenate %76, %77 in 1 : vector<128x128xf32>, vector<128x128xf32> -> vector<128x256xf32>
    %79 = arith.mulf %78, %32 : vector<128x256xf32>
    %80 = arith.truncf %79 : vector<128x256xf32> to vector<128x256xbf16>
    %c0_40 = arith.constant 0 : index
    %c0_41 = arith.constant 0 : index
    %81 = vector.load %arg12[%c0_40, %c0_41] : memref<256x32xbf16, #tpu.memory_space<vmem>>, vector<256x32xbf16>
    %cst_42 = arith.constant dense<0.000000e+00> : vector<128x32xf32>
    %82 = tpu.matmul %80, %81, %cst_42 {dimension_numbers = #tpu.dot_dimension_numbers<[1], [0], [0], [1], [0, 0, 1, 1], [], []>} : vector<128x256xbf16>, vector<256x32xbf16>, vector<128x32xf32> -> vector<128x32xf32>
    %83 = tpu.concatenate %82, %82, %82, %82, %82, %82, %82, %82 in 1 : vector<128x32xf32>, vector<128x32xf32>, vector<128x32xf32>, vector<128x32xf32>, vector<128x32xf32>, vector<128x32xf32>, vector<128x32xf32>, vector<128x32xf32> -> vector<128x256xf32>
    %84 = arith.mulf %83, %18 : vector<128x256xf32>
    %85 = arith.truncf %84 : vector<128x256xf32> to vector<128x256xbf16>
    %c0_43 = arith.constant 0 : index
    %c0_44 = arith.constant 0 : index
    %86 = vector.load %arg13[%c0_43, %c0_44] : memref<256x8xbf16, #tpu.memory_space<vmem>>, vector<256x8xbf16>
    %cst_45 = arith.constant dense<0.000000e+00> : vector<128x8xf32>
    %87 = tpu.matmul %85, %86, %cst_45 {dimension_numbers = #tpu.dot_dimension_numbers<[1], [0], [0], [1], [0, 0, 1, 1], [], []>} : vector<128x256xbf16>, vector<256x8xbf16>, vector<128x8xf32> -> vector<128x8xf32>
    %88 = arith.addf %87, %19 : vector<128x8xf32>
    %cst_46 = arith.constant 0.000000e+00 : f32
    %89 = vector.broadcast %cst_46 : f32 to vector<128x8xf32>
    %90 = arith.maximumf %88, %89 : vector<128x8xf32>
    %91 = arith.mulf %90, %25 : vector<128x8xf32>
    %cst_47 = arith.constant dense<0.000000e+00> : vector<128xf32>
    %92 = vector.multi_reduction <add>, %91, %cst_47 [1] : vector<128x8xf32> to vector<128xf32>
    %93 = vector.shape_cast %92 : vector<128xf32> to vector<128x1xf32>
    %94 = arith.addf %93, %26 : vector<128x1xf32>
    %c0_48 = arith.constant 0 : index
    %c0_49 = arith.constant 0 : index
    %95 = vector.load %arg14[%c0_48, %c0_49] : memref<128x1xf32, #tpu.memory_space<vmem>>, vector<128x1xf32>
    tpu.vector_store %arg14[%c0_48, %c0_49], %94 {strides = array<i32>} : memref<128x1xf32, #tpu.memory_space<vmem>>, vector<128x1xf32>,
    return
  }
  func.func @transform_0(%arg0: i32) -> (i32, i32) {
    %c0_i32 = arith.constant 0 : i32
    %c0_i32_0 = arith.constant 0 : i32
    return %arg0, %c0_i32 : i32, i32
  }
  func.func @transform_1(%arg0: i32) -> (i32, i32) {
    %c0_i32 = arith.constant 0 : i32
    %c0_i32_0 = arith.constant 0 : i32
    return %arg0, %c0_i32 : i32, i32
  }
  func.func @transform_2(%arg0: i32) -> (i32, i32) {
    %c0_i32 = arith.constant 0 : i32
    %c0_i32_0 = arith.constant 0 : i32
    return %arg0, %c0_i32 : i32, i32
  }
  func.func @transform_3(%arg0: i32) -> (i32, i32) {
    %c0_i32 = arith.constant 0 : i32
    %c0_i32_0 = arith.constant 0 : i32
    %c0_i32_1 = arith.constant 0 : i32
    return %c0_i32, %c0_i32_0 : i32, i32
  }
  func.func @transform_4(%arg0: i32) -> (i32, i32) {
    %c0_i32 = arith.constant 0 : i32
    %c0_i32_0 = arith.constant 0 : i32
    %c0_i32_1 = arith.constant 0 : i32
    return %c0_i32, %c0_i32_0 : i32, i32
  }
  func.func @transform_5(%arg0: i32) -> (i32, i32) {
    %c0_i32 = arith.constant 0 : i32
    %c0_i32_0 = arith.constant 0 : i32
    %c0_i32_1 = arith.constant 0 : i32
    return %c0_i32, %c0_i32_0 : i32, i32
  }
  func.func @transform_6(%arg0: i32) -> (i32, i32) {
    %c0_i32 = arith.constant 0 : i32
    %c0_i32_0 = arith.constant 0 : i32
    %c0_i32_1 = arith.constant 0 : i32
    return %c0_i32, %c0_i32_0 : i32, i32
  }
  func.func @transform_7(%arg0: i32) -> (i32, i32) {
    %c0_i32 = arith.constant 0 : i32
    %c0_i32_0 = arith.constant 0 : i32
    %c0_i32_1 = arith.constant 0 : i32
    return %c0_i32, %c0_i32_0 : i32, i32
  }
  func.func @transform_8(%arg0: i32) -> (i32, i32) {
    %c0_i32 = arith.constant 0 : i32
    %c0_i32_0 = arith.constant 0 : i32
    %c0_i32_1 = arith.constant 0 : i32
    return %c0_i32, %c0_i32_0 : i32, i32
  }
  func.func @transform_9(%arg0: i32) -> (i32, i32) {
    %c0_i32 = arith.constant 0 : i32
    %c0_i32_0 = arith.constant 0 : i32
    %c0_i32_1 = arith.constant 0 : i32
    return %c0_i32, %c0_i32_0 : i32, i32
  }
  func.func @transform_10(%arg0: i32) -> (i32, i32) {
    %c0_i32 = arith.constant 0 : i32
    %c0_i32_0 = arith.constant 0 : i32
    %c0_i32_1 = arith.constant 0 : i32
    return %c0_i32, %c0_i32_0 : i32, i32
  }
  func.func @transform_11(%arg0: i32) -> (i32, i32) {
    %c0_i32 = arith.constant 0 : i32
    %c0_i32_0 = arith.constant 0 : i32
    %c0_i32_1 = arith.constant 0 : i32
    return %c0_i32, %c0_i32_0 : i32, i32
  }
  func.func @transform_12(%arg0: i32) -> (i32, i32) {
    %c0_i32 = arith.constant 0 : i32
    %c0_i32_0 = arith.constant 0 : i32
    %c0_i32_1 = arith.constant 0 : i32
    return %c0_i32, %c0_i32_0 : i32, i32
  }
  func.func @transform_13(%arg0: i32) -> (i32, i32) {
    %c0_i32 = arith.constant 0 : i32
    %c0_i32_0 = arith.constant 0 : i32
    return %arg0, %c0_i32 : i32, i32
  }
}

</mosaic_0001>

<llo_original>
// kernel: tpu_custom_call.1
$region0: #{tpu_custom_call.1}
  #allocation0 [shape = 'u32[]', space=smem, size = 0x4, offset = 0x4, fixed_abs, tag = 'smem constant byte address 0x4 - core index']
  #allocation1 [shape = 'u32[144,128]{1,0:T(1,128)}', space=vmem, size = 0x12000, scoped, tag = 'internal scratch']
  %s0 = inlined_call_operand.vmem [shape: bf16[256,32], index: 0, kind: input, shape index: {}]
  %s1 = inlined_call_operand.hbm [shape: bf16[256,4096], index: 1, kind: input, shape index: {}]
  %s2 = inlined_call_operand.vmem [shape: f32[256,8], index: 2, kind: input, shape index: {}]
  %s3 = inlined_call_operand.hbm [shape: bf16[32,1536], index: 3, kind: input, shape index: {}]
  %s4 = inlined_call_operand.hbm [shape: f32[1,1536], index: 4, kind: input, shape index: {}]
  %s5 = inlined_call_operand.vmem [shape: bf16[512,264], index: 5, kind: input, shape index: {}]
  %s6 = inlined_call_operand.hbm [shape: f32[1,264], index: 6, kind: input, shape index: {}]
  %s7 = inlined_call_operand.vmem [shape: bf16[512,9], index: 7, kind: input, shape index: {}]
  %s8 = inlined_call_operand.hbm [shape: f32[1,9], index: 8, kind: input, shape index: {}]
  %s9 = inlined_call_operand.hbm [shape: bf16[512,256], index: 9, kind: input, shape index: {}]
  %s10 = inlined_call_operand.hbm [shape: f32[1,256], index: 10, kind: input, shape index: {}]
  %s11 = inlined_call_operand.vmem [shape: bf16[256,32], index: 11, kind: input, shape index: {}]
  %s12 = inlined_call_operand.vmem [shape: bf16[256,8], index: 12, kind: input, shape index: {}]
  %s13 = inlined_call_operand.vmem [shape: f32[256,1], index: 13, kind: output, shape index: {}]
  %s14 = sld [smem:[#allocation0]]
  $region113: #{tpu_custom_call.1} parent=0
    _
  %s16 = ssub.s32 1, %s14
  %s17 = scalar_select 0, %s16, %s14
  $region1: #{tpu_custom_call.1} parent=0
    #allocation2 [shape = 'u8[2097152]{0}', space=vmem, size = 0x200000, scoped, tag = 'input window, operand 1']
    #allocation3 [shape = 's32[2]{0}', space=sflag, size = 0x8, scoped, tag = 'scoped memory for tpu_custom_call.1']
    #allocation4 [shape = 'u8[98304]{0}', space=vmem, size = 0x18000, scoped, tag = 'input window, operand 3, single buffered']
    #allocation5 [shape = 's32[1]{0}', space=sflag, size = 0x4, scoped, tag = 'scoped memory for tpu_custom_call.1']
    #allocation6 [shape = 'u8[6144]{0}', space=vmem, size = 0x1800, scoped, tag = 'input window, operand 4, single buffered']
    #allocation7 [shape = 'u8[1536]{0}', space=vmem, size = 0x800, scoped, tag = 'input window, operand 6, single buffered']
    #allocation8 [shape = 's32[1]{0}', space=sflag, size = 0x4, scoped, tag = 'scoped memory for tpu_custom_call.1']
    #allocation9 [shape = 'u8[512]{0}', space=vmem, size = 0x400, scoped, tag = 'input window, operand 8, single buffered']
    #allocation10 [shape = 'u8[262144]{0}', space=vmem, size = 0x40000, scoped, tag = 'input window, operand 9, single buffered']
    #allocation11 [shape = 's32[1]{0}', space=sflag, size = 0x4, scoped, tag = 'scoped memory for tpu_custom_call.1']
    #allocation12 [shape = 'u8[1024]{0}', space=vmem, size = 0x400, scoped, tag = 'input window, operand 10, single buffered']
    %18 = vsyncpa [#allocation3], 0
    %s19 = scalar_lea.sflag [#allocation3], 1
    %20 = vsyncpa %s19, 0
    %21 = vsyncpa [#allocation5], 0
    %22 = vsyncpa [#allocation8], 0
    %23 = vsyncpa [#allocation11], 0
    loop: start=0, step=1, limit=4
    $region2: #{tpu_custom_call.1} parent=1 // loop_pre_header
      _
    $region3: #{tpu_custom_call.1} parent=1 // loop_header
      %s25 = sphi 0, %s29
      %p26 = scmp.ge.s32.totalorder %s25, 4
      %s35 = sphi 0, %s37
      %s38 = sphi 0, %s35
      %s39 = sphi 0, %s38
      %s55 = sphi 0, %s39
      %s61 = sphi 0, %s63
      %s64 = sphi 0, %s61
      %s65 = sphi 0, %s64
      %s81 = sphi 0, %s65
      %s87 = sphi 0, %s89
      %s90 = sphi 0, %s87
      %s91 = sphi 0, %s90
      %s107 = sphi 0, %s91
      %s111 = sphi 0, %s111
      %s113 = sphi 0, %s111
      %s114 = sphi 0, %s113
      %s128 = sphi 0, %s114
      %s132 = sphi 0, %s132
      %s134 = sphi 0, %s132
      %s135 = sphi 0, %s134
      %s149 = sphi 0, %s135
      %s153 = sphi 0, %s153
      %s155 = sphi 0, %s153
      %s156 = sphi 0, %s155
      %s170 = sphi 0, %s156
      %s174 = sphi 0, %s174
      %s176 = sphi 0, %s174
      %s177 = sphi 0, %s176
      %s191 = sphi 0, %s177
      %s195 = sphi 0, %s195
      %s197 = sphi 0, %s195
      %s198 = sphi 0, %s197
      %s212 = sphi 0, %s198
      %s216 = sphi 0, %s216
      %s218 = sphi 0, %s216
      %s219 = sphi 0, %s218
      %s233 = sphi 0, %s219
      %s237 = sphi 0, %s237
      %s239 = sphi 0, %s237
      %s240 = sphi 0, %s239
      %s254 = sphi 0, %s240
      %s258 = sphi 0, %s258
      %s260 = sphi 0, %s258
      %s261 = sphi 0, %s260
      %s275 = sphi 0, %s261
      %s279 = sphi 0, %s279
      %s281 = sphi 0, %s279
      %s282 = sphi 0, %s281
      %s296 = sphi 0, %s282
      %s300 = sphi 0, %s300
      %s302 = sphi 0, %s300
      %s303 = sphi 0, %s302
      %s317 = sphi 0, %s303
      %s323 = sphi 0, %s325
      %s326 = sphi 0, %s323
      %s327 = sphi 0, %s326
      %s343 = sphi 0, %s327
    $region4: #{tpu_custom_call.1} parent=1 // loop_header_branch
      %28 = sbr.rel (%p26) target = $region8
    $region5: #{tpu_custom_call.1} parent=1 // loop_body
      %s30 = ssub.s32 %s25, 1
      %s31 = ssub.s32 %s25, 2
      %s32 = sadd.s32 %s25, 1
      %s33 = ssub.s32 %s25, %s32
      %p34 = scmp.eq.s32.totalorder %s33, 0
      %s36 = sadd.s32 %s35, 1
      %s37 = scalar_select %p34, %s35, %s36
      %p40 = pneg %p34
      %p41 = scmp.eq.s32.totalorder %s25, 1
      %p42 = por %p40, %p41
      %p43 = scmp.ne.s32.totalorder %s35, %s38
      %p44 = scmp.eq.s32.totalorder %s25, 0
      %p45 = por %p43, %p44
      %p46 = scmp.ne.s32.totalorder %s35, %s38
      %p47 = scmp.eq.s32.totalorder %s30, 1
      %p48 = por %p46, %p47
      %p49 = scmp.ne.s32.totalorder %s38, %s39
      %p50 = scmp.eq.s32.totalorder %s30, 0
      %p51 = por %p49, %p50
      %p52 = scmp.ne.s32.totalorder %s38, %s39
      %p53 = scmp.eq.s32.totalorder %s31, 1
      %p54 = por %p52, %p53
      %p56 = scmp.ne.s32.totalorder %s39, %s55
      %p57 = scmp.eq.s32.totalorder %s31, 0
      %p58 = por %p56, %p57
      %s59 = ssub.s32 %s25, %s32
      %p60 = scmp.eq.s32.totalorder %s59, 0
      %s62 = sadd.s32 %s61, 1
      %s63 = scalar_select %p60, %s61, %s62
      %p66 = pneg %p60
      %p67 = scmp.eq.s32.totalorder %s25, 1
      %p68 = por %p66, %p67
      %p69 = scmp.ne.s32.totalorder %s61, %s64
      %p70 = scmp.eq.s32.totalorder %s25, 0
      %p71 = por %p69, %p70
      %p72 = scmp.ne.s32.totalorder %s61, %s64
      %p73 = scmp.eq.s32.totalorder %s30, 1
      %p74 = por %p72, %p73
      %p75 = scmp.ne.s32.totalorder %s64, %s65
      %p76 = scmp.eq.s32.totalorder %s30, 0
      %p77 = por %p75, %p76
      %p78 = scmp.ne.s32.totalorder %s64, %s65
      %p79 = scmp.eq.s32.totalorder %s31, 1
      %p80 = por %p78, %p79
      %p82 = scmp.ne.s32.totalorder %s65, %s81
      %p83 = scmp.eq.s32.totalorder %s31, 0
      %p84 = por %p82, %p83
      %s85 = ssub.s32 %s25, %s32
      %p86 = scmp.eq.s32.totalorder %s85, 0
      %s88 = sadd.s32 %s87, 1
      %s89 = scalar_select %p86, %s87, %s88
      %p92 = pneg %p86
      %p93 = scmp.eq.s32.totalorder %s25, 1
      %p94 = por %p92, %p93
      %p95 = scmp.ne.s32.totalorder %s87, %s90
      %p96 = scmp.eq.s32.totalorder %s25, 0
      %p97 = por %p95, %p96
      %p98 = scmp.ne.s32.totalorder %s87, %s90
      %p99 = scmp.eq.s32.totalorder %s30, 1
      %p100 = por %p98, %p99
      %p101 = scmp.ne.s32.totalorder %s90, %s91
      %p102 = scmp.eq.s32.totalorder %s30, 0
      %p103 = por %p101, %p102
      %p104 = scmp.ne.s32.totalorder %s90, %s91
      %p105 = scmp.eq.s32.totalorder %s31, 1
      %p106 = por %p104, %p105
      %p108 = scmp.ne.s32.totalorder %s91, %s107
      %p109 = scmp.eq.s32.totalorder %s31, 0
      %p110 = por %p108, %p109
      %s112 = sadd.s32 %s111, 1
      %p115 = scmp.eq.s32.totalorder %s25, 1
      %p116 = scmp.ne.s32.totalorder %s111, %s113
      %p117 = scmp.eq.s32.totalorder %s25, 0
      %p118 = por %p116, %p117
      %p119 = scmp.ne.s32.totalorder %s111, %s113
      %p120 = scmp.eq.s32.totalorder %s30, 1
      %p121 = por %p119, %p120
      %p122 = scmp.ne.s32.totalorder %s113, %s114
      %p123 = scmp.eq.s32.totalorder %s30, 0
      %p124 = por %p122, %p123
      %p125 = scmp.ne.s32.totalorder %s113, %s114
      %p126 = scmp.eq.s32.totalorder %s31, 1
      %p127 = por %p125, %p126
      %p129 = scmp.ne.s32.totalorder %s114, %s128
      %p130 = scmp.eq.s32.totalorder %s31, 0
      %p131 = por %p129, %p130
      %s133 = sadd.s32 %s132, 1
      %p136 = scmp.eq.s32.totalorder %s25, 1
      %p137 = scmp.ne.s32.totalorder %s132, %s134
      %p138 = scmp.eq.s32.totalorder %s25, 0
      %p139 = por %p137, %p138
      %p140 = scmp.ne.s32.totalorder %s132, %s134
      %p141 = scmp.eq.s32.totalorder %s30, 1
      %p142 = por %p140, %p141
      %p143 = scmp.ne.s32.totalorder %s134, %s135
      %p144 = scmp.eq.s32.totalorder %s30, 0
      %p145 = por %p143, %p144
      %p146 = scmp.ne.s32.totalorder %s134, %s135
      %p147 = scmp.eq.s32.totalorder %s31, 1
      %p148 = por %p146, %p147
      %p150 = scmp.ne.s32.totalorder %s135, %s149
      %p151 = scmp.eq.s32.totalorder %s31, 0
      %p152 = por %p150, %p151
      %s154 = sadd.s32 %s153, 1
      %p157 = scmp.eq.s32.totalorder %s25, 1
      %p158 = scmp.ne.s32.totalorder %s153, %s155
      %p159 = scmp.eq.s32.totalorder %s25, 0
      %p160 = por %p158, %p159
      %p161 = scmp.ne.s32.totalorder %s153, %s155
      %p162 = scmp.eq.s32.totalorder %s30, 1
      %p163 = por %p161, %p162
      %p164 = scmp.ne.s32.totalorder %s155, %s156
      %p165 = scmp.eq.s32.totalorder %s30, 0
      %p166 = por %p164, %p165
      %p167 = scmp.ne.s32.totalorder %s155, %s156
      %p168 = scmp.eq.s32.totalorder %s31, 1
      %p169 = por %p167, %p168
      %p171 = scmp.ne.s32.totalorder %s156, %s170
      %p172 = scmp.eq.s32.totalorder %s31, 0
      %p173 = por %p171, %p172
      %s175 = sadd.s32 %s174, 1
      %p178 = scmp.eq.s32.totalorder %s25, 1
      %p179 = scmp.ne.s32.totalorder %s174, %s176
      %p180 = scmp.eq.s32.totalorder %s25, 0
      %p181 = por %p179, %p180
      %p182 = scmp.ne.s32.totalorder %s174, %s176
      %p183 = scmp.eq.s32.totalorder %s30, 1
      %p184 = por %p182, %p183
      %p185 = scmp.ne.s32.totalorder %s176, %s177
      %p186 = scmp.eq.s32.totalorder %s30, 0
      %p187 = por %p185, %p186
      %p188 = scmp.ne.s32.totalorder %s176, %s177
      %p189 = scmp.eq.s32.totalorder %s31, 1
      %p190 = por %p188, %p189
      %p192 = scmp.ne.s32.totalorder %s177, %s191
      %p193 = scmp.eq.s32.totalorder %s31, 0
      %p194 = por %p192, %p193
      %s196 = sadd.s32 %s195, 1
      %p199 = scmp.eq.s32.totalorder %s25, 1
      %p200 = scmp.ne.s32.totalorder %s195, %s197
      %p201 = scmp.eq.s32.totalorder %s25, 0
      %p202 = por %p200, %p201
      %p203 = scmp.ne.s32.totalorder %s195, %s197
      %p204 = scmp.eq.s32.totalorder %s30, 1
      %p205 = por %p203, %p204
      %p206 = scmp.ne.s32.totalorder %s197, %s198
      %p207 = scmp.eq.s32.totalorder %s30, 0
      %p208 = por %p206, %p207
      %p209 = scmp.ne.s32.totalorder %s197, %s198
      %p210 = scmp.eq.s32.totalorder %s31, 1
      %p211 = por %p209, %p210
      %p213 = scmp.ne.s32.totalorder %s198, %s212
      %p214 = scmp.eq.s32.totalorder %s31, 0
      %p215 = por %p213, %p214
      %s217 = sadd.s32 %s216, 1
      %p220 = scmp.eq.s32.totalorder %s25, 1
      %p221 = scmp.ne.s32.totalorder %s216, %s218
      %p222 = scmp.eq.s32.totalorder %s25, 0
      %p223 = por %p221, %p222
      %p224 = scmp.ne.s32.totalorder %s216, %s218
      %p225 = scmp.eq.s32.totalorder %s30, 1
      %p226 = por %p224, %p225
      %p227 = scmp.ne.s32.totalorder %s218, %s219
      %p228 = scmp.eq.s32.totalorder %s30, 0
      %p229 = por %p227, %p228
      %p230 = scmp.ne.s32.totalorder %s218, %s219
      %p231 = scmp.eq.s32.totalorder %s31, 1
      %p232 = por %p230, %p231
      %p234 = scmp.ne.s32.totalorder %s219, %s233
      %p235 = scmp.eq.s32.totalorder %s31, 0
      %p236 = por %p234, %p235
      %s238 = sadd.s32 %s237, 1
      %p241 = scmp.eq.s32.totalorder %s25, 1
      %p242 = scmp.ne.s32.totalorder %s237, %s239
      %p243 = scmp.eq.s32.totalorder %s25, 0
      %p244 = por %p242, %p243
      %p245 = scmp.ne.s32.totalorder %s237, %s239
      %p246 = scmp.eq.s32.totalorder %s30, 1
      %p247 = por %p245, %p246
      %p248 = scmp.ne.s32.totalorder %s239, %s240
      %p249 = scmp.eq.s32.totalorder %s30, 0
      %p250 = por %p248, %p249
      %p251 = scmp.ne.s32.totalorder %s239, %s240
      %p252 = scmp.eq.s32.totalorder %s31, 1
      %p253 = por %p251, %p252
      %p255 = scmp.ne.s32.totalorder %s240, %s254
      %p256 = scmp.eq.s32.totalorder %s31, 0
      %p257 = por %p255, %p256
      %s259 = sadd.s32 %s258, 1
      %p262 = scmp.eq.s32.totalorder %s25, 1
      %p263 = scmp.ne.s32.totalorder %s258, %s260
      %p264 = scmp.eq.s32.totalorder %s25, 0
      %p265 = por %p263, %p264
      %p266 = scmp.ne.s32.totalorder %s258, %s260
      %p267 = scmp.eq.s32.totalorder %s30, 1
      %p268 = por %p266, %p267
      %p269 = scmp.ne.s32.totalorder %s260, %s261
      %p270 = scmp.eq.s32.totalorder %s30, 0
      %p271 = por %p269, %p270
      %p272 = scmp.ne.s32.totalorder %s260, %s261
      %p273 = scmp.eq.s32.totalorder %s31, 1
      %p274 = por %p272, %p273
      %p276 = scmp.ne.s32.totalorder %s261, %s275
      %p277 = scmp.eq.s32.totalorder %s31, 0
      %p278 = por %p276, %p277
      %s280 = sadd.s32 %s279, 1
      %p283 = scmp.eq.s32.totalorder %s25, 1
      %p284 = scmp.ne.s32.totalorder %s279, %s281
      %p285 = scmp.eq.s32.totalorder %s25, 0
      %p286 = por %p284, %p285
      %p287 = scmp.ne.s32.totalorder %s279, %s281
      %p288 = scmp.eq.s32.totalorder %s30, 1
      %p289 = por %p287, %p288
      %p290 = scmp.ne.s32.totalorder %s281, %s282
      %p291 = scmp.eq.s32.totalorder %s30, 0
      %p292 = por %p290, %p291
      %p293 = scmp.ne.s32.totalorder %s281, %s282
      %p294 = scmp.eq.s32.totalorder %s31, 1
      %p295 = por %p293, %p294
      %p297 = scmp.ne.s32.totalorder %s282, %s296
      %p298 = scmp.eq.s32.totalorder %s31, 0
      %p299 = por %p297, %p298
      %s301 = sadd.s32 %s300, 1
      %p304 = scmp.eq.s32.totalorder %s25, 1
      %p305 = scmp.ne.s32.totalorder %s300, %s302
      %p306 = scmp.eq.s32.totalorder %s25, 0
      %p307 = por %p305, %p306
      %p308 = scmp.ne.s32.totalorder %s300, %s302
      %p309 = scmp.eq.s32.totalorder %s30, 1
      %p310 = por %p308, %p309
      %p311 = scmp.ne.s32.totalorder %s302, %s303
      %p312 = scmp.eq.s32.totalorder %s30, 0
      %p313 = por %p311, %p312
      %p314 = scmp.ne.s32.totalorder %s302, %s303
      %p315 = scmp.eq.s32.totalorder %s31, 1
      %p316 = por %p314, %p315
      %p318 = scmp.ne.s32.totalorder %s303, %s317
      %p319 = scmp.eq.s32.totalorder %s31, 0
      %p320 = por %p318, %p319
      %s321 = ssub.s32 %s25, %s32
      %p322 = scmp.eq.s32.totalorder %s321, 0
      %s324 = sadd.s32 %s323, 1
      %s325 = scalar_select %p322, %s323, %s324
      %p328 = pneg %p322
      %p329 = scmp.eq.s32.totalorder %s25, 1
      %p330 = por %p328, %p329
      %p331 = scmp.ne.s32.totalorder %s323, %s326
      %p332 = scmp.eq.s32.totalorder %s25, 0
      %p333 = por %p331, %p332
      %p334 = scmp.ne.s32.totalorder %s323, %s326
      %p335 = scmp.eq.s32.totalorder %s30, 1
      %p336 = por %p334, %p335
      %p337 = scmp.ne.s32.totalorder %s326, %s327
      %p338 = scmp.eq.s32.totalorder %s30, 0
      %p339 = por %p337, %p338
      %p340 = scmp.ne.s32.totalorder %s326, %s327
      %p341 = scmp.eq.s32.totalorder %s31, 1
      %p342 = por %p340, %p341
      %p344 = scmp.ne.s32.totalorder %s327, %s343
      %p345 = scmp.eq.s32.totalorder %s31, 0
      %p346 = por %p344, %p345
      %p347 = scmp.le.s32.totalorder 1, %s25
      %p348 = scmp.lt.s32.totalorder %s25, 3
      %p349 = pnand %p347, %p348
      %p350 = pneg %p349
      // Predicated region
      $region9: #{tpu_custom_call.1} parent=5 // pred_check
        _
      $region10: #{tpu_custom_call.1} parent=5 // pred_check_branch
        %352 = sbr.rel (%p349) target = $region12
      $region11: #{tpu_custom_call.1} parent=5 // pred_region
        %s353 = ssub.s32 %s25, 1
        // Predicated region
        $region13: #{tpu_custom_call.1} parent=11 // pred_check
          %p354 = pneg %p124
        $region14: #{tpu_custom_call.1} parent=11 // pred_check_branch
          %356 = sbr.rel (%p354) target = $region16
        $region15: #{tpu_custom_call.1} parent=11 // pred_region
          %s358 = ssub.s32 3072, 3072
          %359 = vsyncadd [#allocation5], %s358
          %s360 = sshll.u32 [#allocation4], 4
          %s361 = int_to_ptr.vmem [resolvable:$true] %s360
          %366 = dma.hbm_to_vmem [thread:$0]  %s3, 3072, %s361, [#allocation5], 768, 768, 48
        $region16: #{tpu_custom_call.1} parent=11 // pred_fallthru
          _
        // Predicated region
        $region17: #{tpu_custom_call.1} parent=11 // pred_check
          %p367 = pneg %p145
        $region18: #{tpu_custom_call.1} parent=11 // pred_check_branch
          %369 = sbr.rel (%p367) target = $region20
        $region19: #{tpu_custom_call.1} parent=11 // pred_region
          %s371 = ssub.s32 192, 192
          %372 = vsyncadd [#allocation5], %s371
          %s374 = sshll.u32 [#allocation6], 4
          %s375 = int_to_ptr.vmem [resolvable:$true] %s374
          %377 = dma.hbm_to_vmem [thread:$0]  %s4, 192, %s375, [#allocation5]
        $region20: #{tpu_custom_call.1} parent=11 // pred_fallthru
          _
        // Predicated region
        $region21: #{tpu_custom_call.1} parent=11 // pred_check
          %p378 = pneg %p166
        $region22: #{tpu_custom_call.1} parent=11 // pred_check_branch
          %380 = sbr.rel (%p378) target = $region24
        $region23: #{tpu_custom_call.1} parent=11 // pred_region
          _
        $region24: #{tpu_custom_call.1} parent=11 // pred_fallthru
          _
        // Predicated region
        $region25: #{tpu_custom_call.1} parent=11 // pred_check
          %p381 = pneg %p187
        $region26: #{tpu_custom_call.1} parent=11 // pred_check_branch
          %383 = sbr.rel (%p381) target = $region28
        $region27: #{tpu_custom_call.1} parent=11 // pred_region
          %s385 = ssub.s32 48, 48
          %386 = vsyncadd [#allocation8], %s385
          %s388 = sshll.u32 [#allocation7], 4
          %s389 = int_to_ptr.vmem [resolvable:$true] %s388
          %391 = dma.hbm_to_vmem [thread:$0]  %s6, 48, %s389, [#allocation8]
        $region28: #{tpu_custom_call.1} parent=11 // pred_fallthru
          _
        // Predicated region
        $region29: #{tpu_custom_call.1} parent=11 // pred_check
          %p392 = pneg %p208
        $region30: #{tpu_custom_call.1} parent=11 // pred_check_branch
          %394 = sbr.rel (%p392) target = $region32
        $region31: #{tpu_custom_call.1} parent=11 // pred_region
          _
        $region32: #{tpu_custom_call.1} parent=11 // pred_fallthru
          _
        // Predicated region
        $region33: #{tpu_custom_call.1} parent=11 // pred_check
          %p395 = pneg %p229
        $region34: #{tpu_custom_call.1} parent=11 // pred_check_branch
          %397 = sbr.rel (%p395) target = $region36
        $region35: #{tpu_custom_call.1} parent=11 // pred_region
          %s399 = ssub.s32 16, 16
          %400 = vsyncadd [#allocation8], %s399
          %s402 = sshll.u32 [#allocation9], 4
          %s403 = int_to_ptr.vmem [resolvable:$true] %s402
          %405 = dma.hbm_to_vmem [thread:$0]  %s8, 16, %s403, [#allocation8]
        $region36: #{tpu_custom_call.1} parent=11 // pred_fallthru
          _
        // Predicated region
        $region37: #{tpu_custom_call.1} parent=11 // pred_check
          %p406 = pneg %p250
        $region38: #{tpu_custom_call.1} parent=11 // pred_check_branch
          %408 = sbr.rel (%p406) target = $region40
        $region39: #{tpu_custom_call.1} parent=11 // pred_region
          %s410 = ssub.s32 8192, 8192
          %411 = vsyncadd [#allocation11], %s410
          %s412 = sshll.u32 [#allocation10], 4
          %s413 = int_to_ptr.vmem [resolvable:$true] %s412
          %418 = dma.hbm_to_vmem [thread:$0]  %s9, 8192, %s413, [#allocation11], 128, 128, 8
        $region40: #{tpu_custom_call.1} parent=11 // pred_fallthru
          _
        // Predicated region
        $region41: #{tpu_custom_call.1} parent=11 // pred_check
          %p419 = pneg %p271
        $region42: #{tpu_custom_call.1} parent=11 // pred_check_branch
          %421 = sbr.rel (%p419) target = $region44
        $region43: #{tpu_custom_call.1} parent=11 // pred_region
          %s423 = ssub.s32 32, 32
          %424 = vsyncadd [#allocation11], %s423
          %s426 = sshll.u32 [#allocation12], 4
          %s427 = int_to_ptr.vmem [resolvable:$true] %s426
          %429 = dma.hbm_to_vmem [thread:$0]  %s10, 32, %s427, [#allocation11]
        $region44: #{tpu_custom_call.1} parent=11 // pred_fallthru
          _
        // Predicated region
        $region45: #{tpu_custom_call.1} parent=11 // pred_check
          %p430 = pneg %p292
        $region46: #{tpu_custom_call.1} parent=11 // pred_check_branch
          %432 = sbr.rel (%p430) target = $region48
        $region47: #{tpu_custom_call.1} parent=11 // pred_region
          _
        $region48: #{tpu_custom_call.1} parent=11 // pred_fallthru
          _
        // Predicated region
        $region49: #{tpu_custom_call.1} parent=11 // pred_check
          %p433 = pneg %p313
        $region50: #{tpu_custom_call.1} parent=11 // pred_check_branch
          %435 = sbr.rel (%p433) target = $region52
        $region51: #{tpu_custom_call.1} parent=11 // pred_region
          _
        $region52: #{tpu_custom_call.1} parent=11 // pred_fallthru
          _
      $region12: #{tpu_custom_call.1} parent=5 // pred_fallthru
        _
      %p436 = scmp.lt.s32.totalorder %s25, 2
      // Predicated region
      $region53: #{tpu_custom_call.1} parent=5 // pred_check
        %p437 = pneg %p436
      $region54: #{tpu_custom_call.1} parent=5 // pred_check_branch
        %439 = sbr.rel (%p437) target = $region56
      $region55: #{tpu_custom_call.1} parent=5 // pred_region
        // Predicated region
        $region57: #{tpu_custom_call.1} parent=55 // pred_check
          %p440 = pneg %p45
        $region58: #{tpu_custom_call.1} parent=55 // pred_check_branch
          %442 = sbr.rel (%p440) target = $region60
        $region59: #{tpu_custom_call.1} parent=55 // pred_region
          %s443 = smul.u32 16, %s25
          %p444 = scmp.lt.s32.totalorder %s443, 31
          %s445 = scalar_select %p444, %s443, 31
          %s446 = smul.addr %s445, 4
          %s447 = scalar_lea.vmem %s0, %s446
          %s448 = smul.u32 16, %s25
        $region60: #{tpu_custom_call.1} parent=55 // pred_fallthru
          _
        // Predicated region
        $region61: #{tpu_custom_call.1} parent=55 // pred_check
          %p449 = pneg %p71
        $region62: #{tpu_custom_call.1} parent=55 // pred_check_branch
          %451 = sbr.rel (%p449) target = $region64
        $region63: #{tpu_custom_call.1} parent=55 // pred_region
          %s452 = sand.u32 %s61, 1
          %s453 = scalar_lea.sflag [#allocation3], %s452
          %s454 = sand.u32 %s61, 1
          %s455 = smul.addr %s454, 2048
          %s456 = scalar_lea.vmem [#allocation2], %s455
          %s457 = smul.u32 16, %s25
          %s459 = ssub.s32 32768, 32768
          %460 = vsyncadd %s453, %s459
          %s461 = smul.addr %s457, 32
          %s462 = smul.addr %s461, 64
          %s463 = scalar_lea.hbm %s1, %s462
          %s464 = sshll.u32 %s456, 4
          %s465 = int_to_ptr.vmem [resolvable:$true] %s464
          %470 = dma.hbm_to_vmem [thread:$0]  %s463, 32768, %s465, %s453, 2048, 2048, 128
        $region64: #{tpu_custom_call.1} parent=55 // pred_fallthru
          _
        // Predicated region
        $region65: #{tpu_custom_call.1} parent=55 // pred_check
          %p471 = pneg %p97
        $region66: #{tpu_custom_call.1} parent=55 // pred_check_branch
          %473 = sbr.rel (%p471) target = $region68
        $region67: #{tpu_custom_call.1} parent=55 // pred_region
          %s474 = smul.u32 16, %s25
          %p475 = scmp.lt.s32.totalorder %s474, 31
          %s476 = scalar_select %p475, %s474, 31
          %s477 = smul.addr %s476, 8
          %s478 = scalar_lea.vmem %s2, %s477
          %s479 = smul.u32 16, %s25
        $region68: #{tpu_custom_call.1} parent=55 // pred_fallthru
          _
      $region56: #{tpu_custom_call.1} parent=5 // pred_fallthru
        _
      %p480 = scmp.le.s32.totalorder 1, %s25
      %p481 = scmp.lt.s32.totalorder %s25, 3
      %p482 = pnand %p480, %p481
      %p483 = pneg %p482
      // Predicated region
      $region69: #{tpu_custom_call.1} parent=5 // pred_check
        _
      $region70: #{tpu_custom_call.1} parent=5 // pred_check_branch
        %485 = sbr.rel (%p482) target = $region72
      $region71: #{tpu_custom_call.1} parent=5 // pred_region
        %s486 = ssub.s32 %s25, 1
        %s487 = sand.u32 %s64, 1
        %s488 = scalar_lea.sflag [#allocation3], %s487
        %s489 = sand.u32 %s64, 1
        %s490 = smul.addr %s489, 2048
        %s491 = scalar_lea.vmem [#allocation2], %s490
        // Predicated region
        $region73: #{tpu_custom_call.1} parent=71 // pred_check
          %p492 = pneg %p77
        $region74: #{tpu_custom_call.1} parent=71 // pred_check_branch
          %494 = sbr.rel (%p492) target = $region76
        $region75: #{tpu_custom_call.1} parent=71 // pred_region
          %495 = dma.done %s488, 32768
        $region76: #{tpu_custom_call.1} parent=71 // pred_fallthru
          _
        // Predicated region
        $region77: #{tpu_custom_call.1} parent=71 // pred_check
          %p496 = pneg %p124
        $region78: #{tpu_custom_call.1} parent=71 // pred_check_branch
          %498 = sbr.rel (%p496) target = $region80
        $region79: #{tpu_custom_call.1} parent=71 // pred_region
          %499 = dma.done [#allocation5], 3072
        $region80: #{tpu_custom_call.1} parent=71 // pred_fallthru
          _
        // Predicated region
        $region81: #{tpu_custom_call.1} parent=71 // pred_check
          %p500 = pneg %p145
        $region82: #{tpu_custom_call.1} parent=71 // pred_check_branch
          %502 = sbr.rel (%p500) target = $region84
        $region83: #{tpu_custom_call.1} parent=71 // pred_region
          %503 = dma.done [#allocation5], 192
        $region84: #{tpu_custom_call.1} parent=71 // pred_fallthru
          _
        // Predicated region
        $region85: #{tpu_custom_call.1} parent=71 // pred_check
          %p504 = pneg %p187
        $region86: #{tpu_custom_call.1} parent=71 // pred_check_branch
          %506 = sbr.rel (%p504) target = $region88
        $region87: #{tpu_custom_call.1} parent=71 // pred_region
          %507 = dma.done [#allocation8], 48
        $region88: #{tpu_custom_call.1} parent=71 // pred_fallthru
          _
        // Predicated region
        $region89: #{tpu_custom_call.1} parent=71 // pred_check
          %p508 = pneg %p229
        $region90: #{tpu_custom_call.1} parent=71 // pred_check_branch
          %510 = sbr.rel (%p508) target = $region92
        $region91: #{tpu_custom_call.1} parent=71 // pred_region
          %511 = dma.done [#allocation8], 16
        $region92: #{tpu_custom_call.1} parent=71 // pred_fallthru
          _
        // Predicated region
        $region93: #{tpu_custom_call.1} parent=71 // pred_check
          %p512 = pneg %p250
        $region94: #{tpu_custom_call.1} parent=71 // pred_check_branch
          %514 = sbr.rel (%p512) target = $region96
        $region95: #{tpu_custom_call.1} parent=71 // pred_region
          %515 = dma.done [#allocation11], 8192
        $region96: #{tpu_custom_call.1} parent=71 // pred_fallthru
          _
        // Predicated region
        $region97: #{tpu_custom_call.1} parent=71 // pred_check
          %p516 = pneg %p271
        $region98: #{tpu_custom_call.1} parent=71 // pred_check_branch
          %518 = sbr.rel (%p516) target = $region100
        $region99: #{tpu_custom_call.1} parent=71 // pred_region
          %519 = dma.done [#allocation11], 32
        $region100: #{tpu_custom_call.1} parent=71 // pred_fallthru
          _
        %s520 = smul.u32 16, %s30
        %p521 = scmp.lt.s32.totalorder %s520, 31
        %s522 = scalar_select %p521, %s520, 31
        %s523 = smul.addr %s522, 4
        %s524 = scalar_lea.vmem %s0, %s523
        %p525 = pneg %p51
        %p526 = pneg %p48
        %s527 = sand.u32 %s64, 1
        %s528 = scalar_lea.sflag [#allocation3], %s527
        %s529 = sand.u32 %s64, 1
        %s530 = smul.addr %s529, 2048
        %s531 = scalar_lea.vmem [#allocation2], %s530
        %p532 = pneg %p77
        %p533 = pneg %p74
        %s534 = smul.u32 16, %s30
        %p535 = scmp.lt.s32.totalorder %s534, 31
        %s536 = scalar_select %p535, %s534, 31
        %s537 = smul.addr %s536, 8
        %s538 = scalar_lea.vmem %s2, %s537
        %p539 = pneg %p103
        %p540 = pneg %p100
        %p541 = pneg %p124
        %p542 = pneg %p121
        %p543 = pneg %p145
        %p544 = pneg %p142
        %p545 = pneg %p166
        %p546 = pneg %p163
        %p547 = pneg %p187
        %p548 = pneg %p184
        %p549 = pneg %p208
        %p550 = pneg %p205
        %p551 = pneg %p229
        %p552 = pneg %p226
        %p553 = pneg %p250
        %p554 = pneg %p247
        %p555 = pneg %p271
        %p556 = pneg %p268
        %p557 = pneg %p292
        %p558 = pneg %p289
        %p559 = pneg %p313
        %p560 = pneg %p310
        %p561 = pneg %p339
        %p562 = pneg %p336
        %s563 = smul.u32 16, %s30
        %p564 = scmp.lt.s32.totalorder %s563, 31
        %s565 = scalar_select %p564, %s563, 31
        %s566 = smul.addr %s565, 8
        %s567 = scalar_lea.vmem %s13, %s566
        %s568 = smul.u32 16, %s30
        %p569 = scmp.lt.s32.totalorder %s568, 31
        %s570 = scalar_select %p569, %s568, 31
        %s571 = smul.addr %s570, 4
        %s572 = scalar_lea.vmem %s0, %s571
        %s573 = smul.u32 16, %s30
        %s574 = smul.u32 16, %s30
        %s575 = smul.u32 16, %s30
        %p576 = scmp.lt.s32.totalorder %s575, 31
        %s577 = scalar_select %p576, %s575, 31
        %s578 = smul.addr %s577, 8
        %s579 = scalar_lea.vmem %s2, %s578
        %s580 = smul.u32 16, %s30
        %s581 = smul.u32 16, %s30
        %p582 = scmp.lt.s32.totalorder %s581, 31
        %s583 = scalar_select %p582, %s581, 31
        %s584 = smul.addr %s583, 8
        %s585 = scalar_lea.vmem %s13, %s584
        %s586 = smul.u32 16, %s30
        %v588 = vld [vmem:[%s572] sm:$0xf]
        %v589 = vld [vmem:[%s572 + $0x4] sm:$0xf]
        %v590 = vld [vmem:[%s572 + $0x8] sm:$0xf]
        %v591 = vld [vmem:[%s572 + $0xc] sm:$0xf]
        %v592 = vld [vmem:[%s572 + $0x10] sm:$0xf]
        %v593 = vld [vmem:[%s572 + $0x14] sm:$0xf]
        %v594 = vld [vmem:[%s572 + $0x18] sm:$0xf]
        %v595 = vld [vmem:[%s572 + $0x1c] sm:$0xf]
        %v596 = vld [vmem:[%s572 + $0x20] sm:$0xf]
        %v597 = vld [vmem:[%s572 + $0x24] sm:$0xf]
        %v598 = vld [vmem:[%s572 + $0x28] sm:$0xf]
        %v599 = vld [vmem:[%s572 + $0x2c] sm:$0xf]
        %v600 = vld [vmem:[%s572 + $0x30] sm:$0xf]
        %v601 = vld [vmem:[%s572 + $0x34] sm:$0xf]
        %v602 = vld [vmem:[%s572 + $0x38] sm:$0xf]
        %v603 = vld [vmem:[%s572 + $0x3c] sm:$0xf]
        %v604 = vld [vmem:[#allocation4] sm:$0xff]
        %v605 = vld [vmem:[#allocation4 + $0x8] sm:$0xff]
        %v606 = vld [vmem:[#allocation4 + $0x10] sm:$0xff]
        %v607 = vld [vmem:[#allocation4 + $0x18] sm:$0xff]
        %v608 = vld [vmem:[#allocation4 + $0x20] sm:$0xff]
        %v609 = vld [vmem:[#allocation4 + $0x28] sm:$0xff]
        %v610 = vld [vmem:[#allocation4 + $0x30] sm:$0xff]
        %v611 = vld [vmem:[#allocation4 + $0x38] sm:$0xff]
        %v612 = vld [vmem:[#allocation4 + $0x40] sm:$0xff]
        %v613 = vld [vmem:[#allocation4 + $0x48] sm:$0xff]
        %v614 = vld [vmem:[#allocation4 + $0x50] sm:$0xff]
        %v615 = vld [vmem:[#allocation4 + $0x58] sm:$0xff]
        %v616 = vld [vmem:[#allocation4 + $0x60] sm:$0xff]
        %v617 = vld [vmem:[#allocation4 + $0x68] sm:$0xff]
        %v618 = vld [vmem:[#allocation4 + $0x70] sm:$0xff]
        %v619 = vld [vmem:[#allocation4 + $0x78] sm:$0xff]
        %v620 = vld [vmem:[#allocation4 + $0x80] sm:$0xff]
        %v621 = vld [vmem:[#allocation4 + $0x88] sm:$0xff]
        %v622 = vld [vmem:[#allocation4 + $0x90] sm:$0xff]
        %v623 = vld [vmem:[#allocation4 + $0x98] sm:$0xff]
        %v624 = vld [vmem:[#allocation4 + $0xa0] sm:$0xff]
        %v625 = vld [vmem:[#allocation4 + $0xa8] sm:$0xff]
        %v626 = vld [vmem:[#allocation4 + $0xb0] sm:$0xff]
        %v627 = vld [vmem:[#allocation4 + $0xb8] sm:$0xff]
        %v628 = vld [vmem:[#allocation6] sm:$0xff]
        %v629 = vld [vmem:[#allocation6 + $0x8] sm:$0xf]
        %v632 = vlaneseq
        %v633 = vshrl.u32 %v632, 7
        %v634 = vsub.s32 0, %v633
        %v635 = vrot.slane %v628, %v634
        %v636 = vlaneseq
        %v637 = vshrl.u32 %v636, 7
        %v638 = vsub.s32 1, %v637
        %v639 = vrot.slane %v628, %v638
        %v640 = vlaneseq
        %v641 = vshrl.u32 %v640, 7
        %v642 = vsub.s32 2, %v641
        %v643 = vrot.slane %v628, %v642
        %v644 = vlaneseq
        %v645 = vshrl.u32 %v644, 7
        %v646 = vsub.s32 3, %v645
        %v647 = vrot.slane %v628, %v646
        %v648 = vlaneseq
        %v649 = vshrl.u32 %v648, 7
        %v650 = vsub.s32 4, %v649
        %v651 = vrot.slane %v628, %v650
        %v652 = vlaneseq
        %v653 = vshrl.u32 %v652, 7
        %v654 = vsub.s32 5, %v653
        %v655 = vrot.slane %v628, %v654
        %v656 = vlaneseq
        %v657 = vshrl.u32 %v656, 7
        %v658 = vsub.s32 6, %v657
        %v659 = vrot.slane %v628, %v658
        %v660 = vlaneseq
        %v661 = vshrl.u32 %v660, 7
        %v662 = vsub.s32 7, %v661
        %v663 = vrot.slane %v628, %v662
        %v664 = vlaneseq
        %v665 = vshrl.u32 %v664, 7
        %v666 = vsub.s32 0, %v665
        %v667 = vrot.slane %v629, %v666
        %v668 = vlaneseq
        %v669 = vshrl.u32 %v668, 7
        %v670 = vsub.s32 1, %v669
        %v671 = vrot.slane %v629, %v670
        %v672 = vlaneseq
        %v673 = vshrl.u32 %v672, 7
        %v674 = vsub.s32 2, %v673
        %v675 = vrot.slane %v629, %v674
        %v676 = vlaneseq
        %v677 = vshrl.u32 %v676, 7
        %v678 = vsub.s32 3, %v677
        %v679 = vrot.slane %v629, %v678
        %v708 = vunpack.c.l.b16 %v588
        %v709 = vunpack.c.l.b16 %v589
        %v710 = vunpack.c.l.b16 %v590
        %v711 = vunpack.c.l.b16 %v591
        %v712 = vunpack.c.l.b16 %v592
        %v713 = vunpack.c.l.b16 %v593
        %v714 = vunpack.c.l.b16 %v594
        %v715 = vunpack.c.l.b16 %v595
        %v716 = vunpack.c.l.b16 %v596
        %v717 = vunpack.c.l.b16 %v597
        %v718 = vunpack.c.l.b16 %v598
        %v719 = vunpack.c.l.b16 %v599
        %v720 = vunpack.c.l.b16 %v600
        %v721 = vunpack.c.l.b16 %v601
        %v722 = vunpack.c.l.b16 %v602
        %v723 = vunpack.c.l.b16 %v603
        %v724 = vpack.c.b16 %v709, %v708
        %v725 = vpack.c.b16 %v711, %v710
        %v726 = vpack.c.b16 %v713, %v712
        %v727 = vpack.c.b16 %v715, %v714
        %v728 = vpack.c.b16 %v717, %v716
        %v729 = vpack.c.b16 %v719, %v718
        %v730 = vpack.c.b16 %v721, %v720
        %v731 = vpack.c.b16 %v723, %v722
        %v756 = vunpack.c.l.b16 %v604
        %v757 = vunpack.c.h.b16 %v604
        %v758 = vunpack.c.l.b16 %v605
        %v759 = vunpack.c.h.b16 %v605
        %v760 = vunpack.c.l.b16 %v606
        %v761 = vunpack.c.h.b16 %v606
        %v762 = vunpack.c.l.b16 %v607
        %v763 = vunpack.c.h.b16 %v607
        %v764 = vunpack.c.l.b16 %v608
        %v765 = vunpack.c.h.b16 %v608
        %v766 = vunpack.c.l.b16 %v609
        %v767 = vunpack.c.h.b16 %v609
        %v768 = vunpack.c.l.b16 %v610
        %v769 = vunpack.c.h.b16 %v610
        %v770 = vunpack.c.l.b16 %v611
        %v771 = vunpack.c.h.b16 %v611
        %v772 = vunpack.c.l.b16 %v612
        %v773 = vunpack.c.h.b16 %v612
        %v774 = vunpack.c.l.b16 %v613
        %v775 = vunpack.c.h.b16 %v613
        %v776 = vunpack.c.l.b16 %v614
        %v777 = vunpack.c.h.b16 %v614
        %v778 = vunpack.c.l.b16 %v615
        %v779 = vunpack.c.h.b16 %v615
        %v780 = vunpack.c.l.b16 %v616
        %v781 = vunpack.c.h.b16 %v616
        %v782 = vunpack.c.l.b16 %v617
        %v783 = vunpack.c.h.b16 %v617
        %v784 = vunpack.c.l.b16 %v618
        %v785 = vunpack.c.h.b16 %v618
        %v786 = vunpack.c.l.b16 %v619
        %v787 = vunpack.c.h.b16 %v619
        %v788 = vunpack.c.l.b16 %v620
        %v789 = vunpack.c.h.b16 %v620
        %v790 = vunpack.c.l.b16 %v621
        %v791 = vunpack.c.h.b16 %v621
        %v792 = vunpack.c.l.b16 %v622
        %v793 = vunpack.c.h.b16 %v622
        %v794 = vunpack.c.l.b16 %v623
        %v795 = vunpack.c.h.b16 %v623
        %v796 = vunpack.c.l.b16 %v624
        %v797 = vunpack.c.h.b16 %v624
        %v798 = vunpack.c.l.b16 %v625
        %v799 = vunpack.c.h.b16 %v625
        %v800 = vunpack.c.l.b16 %v626
        %v801 = vunpack.c.h.b16 %v626
        %v802 = vunpack.c.l.b16 %v627
        %v803 = vunpack.c.h.b16 %v627
        %v804 = vpack.c.b16 %v768, %v756
        %v805 = vpack.c.b16 %v769, %v757
        %v806 = vpack.c.b16 %v770, %v758
        %v807 = vpack.c.b16 %v771, %v759
        %v808 = vpack.c.b16 %v772, %v760
        %v809 = vpack.c.b16 %v773, %v761
        %v810 = vpack.c.b16 %v774, %v762
        %v811 = vpack.c.b16 %v775, %v763
        %v812 = vpack.c.b16 %v776, %v764
        %v813 = vpack.c.b16 %v777, %v765
        %v814 = vpack.c.b16 %v778, %v766
        %v815 = vpack.c.b16 %v779, %v767
        %v816 = vpack.c.b16 %v792, %v780
        %v817 = vpack.c.b16 %v793, %v781
        %v818 = vpack.c.b16 %v794, %v782
        %v819 = vpack.c.b16 %v795, %v783
        %v820 = vpack.c.b16 %v796, %v784
        %v821 = vpack.c.b16 %v797, %v785
        %v822 = vpack.c.b16 %v798, %v786
        %v823 = vpack.c.b16 %v799, %v787
        %v824 = vpack.c.b16 %v800, %v788
        %v825 = vpack.c.b16 %v801, %v789
        %v826 = vpack.c.b16 %v802, %v790
        %v827 = vpack.c.b16 %v803, %v791
        %vm852 = vcmask 261120
        %v854 = vsel %vm852, %v724, 0
        %v857 = vsel %vm852, %v725, 0
        %v860 = vsel %vm852, %v726, 0
        %v863 = vsel %vm852, %v727, 0
        %v866 = vsel %vm852, %v728, 0
        %v869 = vsel %vm852, %v729, 0
        %v872 = vsel %vm852, %v730, 0
        %v875 = vsel %vm852, %v731, 0
        %877 = vmatprep.subr.bf16.mxu0 %v805
        %878 = vmatpush1.bf16.msra.mxu0 %v804
        %879 = vmatprep.subr.bf16.mxu0 %v817
        %880 = vmatpush1.bf16.msra.mxu0 %v816
        %881 = vmatprep.subr.bf16.mxu0 0
        %882 = vmatpush1.bf16.msra.mxu0 0
        %883 = vmatprep.subr.bf16.mxu0 0
        %884 = vmatpush1.bf16.msra.mxu0 0
        %885 = vmatprep.subr.bf16.mxu0 0
        %886 = vmatpush1.bf16.msra.mxu0 0
        %887 = vmatprep.subr.bf16.mxu0 0
        %888 = vmatpush1.bf16.msra.mxu0 0
        %889 = vmatprep.subr.bf16.mxu0 0
        %890 = vmatpush1.bf16.msra.mxu0 0
        %891 = vmatprep.subr.bf16.mxu0 0
        %892 = vmatpush1.bf16.msra.mxu0 0
        %893 = vmatprep.subr.bf16.mxu0 0
        %894 = vmatpush1.bf16.msra.mxu0 0
        %895 = vmatprep.subr.bf16.mxu0 0
        %896 = vmatpush1.bf16.msra.mxu0 0
        %897 = vmatprep.subr.bf16.mxu0 0
        %898 = vmatpush1.bf16.msra.mxu0 0
        %899 = vmatprep.subr.bf16.mxu0 0
        %900 = vmatpush1.bf16.msra.mxu0 0
        %901 = vmatprep.subr.bf16.mxu0 0
        %902 = vmatpush1.bf16.msra.mxu0 0
        %903 = vmatprep.subr.bf16.mxu0 0
        %904 = vmatpush1.bf16.msra.mxu0 0
        %905 = vmatprep.subr.bf16.mxu0 0
        %906 = vmatpush1.bf16.msra.mxu0 0
        %907 = vmatprep.subr.bf16.mxu0 0
        %908 = vmatpush1.bf16.msra.mxu0 0
        %909 = vmatprep.mubr.bf16.mxu0 0
        %910 = vmatmul.mubr.bf16.gmra.mrb[0].mxu0 %v854
        %v911 = vpop.f32.mrb[0].mxu0
        %v912 = vadd.f32 %v635, %v911
        %v913 = vpop.f32.mrb[0].mxu0
        %v914 = vadd.f32 %v639, %v913
        %v915 = vpop.f32.mrb[0].mxu0
        %v916 = vadd.f32 %v635, %v915
        %v917 = vpop.f32.mrb[0].mxu0
        %v918 = vadd.f32 %v639, %v917
        %919 = vmatprep.mubr.bf16.mxu0 0
        %920 = vmatmul.mubr.bf16.gmra.mrb[0].mxu0 %v857
        %v921 = vpop.f32.mrb[0].mxu0
        %v922 = vadd.f32 %v635, %v921
        %v923 = vpop.f32.mrb[0].mxu0
        %v924 = vadd.f32 %v639, %v923
        %v925 = vpop.f32.mrb[0].mxu0
        %v926 = vadd.f32 %v635, %v925
        %v927 = vpop.f32.mrb[0].mxu0
        %v928 = vadd.f32 %v639, %v927
        %929 = vmatprep.mubr.bf16.mxu0 0
        %930 = vmatmul.mubr.bf16.gmra.mrb[0].mxu0 %v860
        %v931 = vpop.f32.mrb[0].mxu0
        %v932 = vadd.f32 %v635, %v931
        %v933 = vpop.f32.mrb[0].mxu0
        %v934 = vadd.f32 %v639, %v933
        %v935 = vpop.f32.mrb[0].mxu0
        %v936 = vadd.f32 %v635, %v935
        %v937 = vpop.f32.mrb[0].mxu0
        %v938 = vadd.f32 %v639, %v937
        %939 = vmatprep.mubr.bf16.mxu0 0
        %940 = vmatmul.mubr.bf16.gmra.mrb[0].mxu0 %v863
        %v941 = vpop.f32.mrb[0].mxu0
        %v942 = vadd.f32 %v635, %v941
        %v943 = vpop.f32.mrb[0].mxu0
        %v944 = vadd.f32 %v639, %v943
        %v945 = vpop.f32.mrb[0].mxu0
        %v946 = vadd.f32 %v635, %v945
        %v947 = vpop.f32.mrb[0].mxu0
        %v948 = vadd.f32 %v639, %v947
        %949 = vmatprep.mubr.bf16.mxu0 0
        %950 = vmatmul.mubr.bf16.gmra.mrb[0].mxu0 %v866
        %v951 = vpop.f32.mrb[0].mxu0
        %v952 = vadd.f32 %v635, %v951
        %v953 = vpop.f32.mrb[0].mxu0
        %v954 = vadd.f32 %v639, %v953
        %v955 = vpop.f32.mrb[0].mxu0
        %v956 = vadd.f32 %v635, %v955
        %v957 = vpop.f32.mrb[0].mxu0
        %v958 = vadd.f32 %v639, %v957
        %959 = vmatprep.mubr.bf16.mxu0 0
        %960 = vmatmul.mubr.bf16.gmra.mrb[0].mxu0 %v869
        %v961 = vpop.f32.mrb[0].mxu0
        %v962 = vadd.f32 %v635, %v961
        %v963 = vpop.f32.mrb[0].mxu0
        %v964 = vadd.f32 %v639, %v963
        %v965 = vpop.f32.mrb[0].mxu0
        %v966 = vadd.f32 %v635, %v965
        %v967 = vpop.f32.mrb[0].mxu0
        %v968 = vadd.f32 %v639, %v967
        %969 = vmatprep.mubr.bf16.mxu0 0
        %970 = vmatmul.mubr.bf16.gmra.mrb[0].mxu0 %v872
        %v971 = vpop.f32.mrb[0].mxu0
        %v972 = vadd.f32 %v635, %v971
        %v973 = vpop.f32.mrb[0].mxu0
        %v974 = vadd.f32 %v639, %v973
        %v975 = vpop.f32.mrb[0].mxu0
        %v976 = vadd.f32 %v635, %v975
        %v977 = vpop.f32.mrb[0].mxu0
        %v978 = vadd.f32 %v639, %v977
        %979 = vmatprep.mubr.bf16.mxu0 0
        %980 = vmatmul.mubr.bf16.gmra.mrb[0].mxu0 %v875
        %v981 = vpop.f32.mrb[0].mxu0
        %v982 = vadd.f32 %v635, %v981
        %v983 = vpop.f32.mrb[0].mxu0
        %v984 = vadd.f32 %v639, %v983
        %v985 = vpop.f32.mrb[0].mxu0
        %v986 = vadd.f32 %v635, %v985
        %v987 = vpop.f32.mrb[0].mxu0
        %v988 = vadd.f32 %v639, %v987
        %989 = vdwg.mxu0
        %990 = vmatprep.subr.bf16.mxu0 %v807
        %991 = vmatpush1.bf16.msra.mxu0 %v806
        %992 = vmatprep.subr.bf16.mxu0 %v819
        %993 = vmatpush1.bf16.msra.mxu0 %v818
        %994 = vmatprep.subr.bf16.mxu0 0
        %995 = vmatpush1.bf16.msra.mxu0 0
        %996 = vmatprep.subr.bf16.mxu0 0
        %997 = vmatpush1.bf16.msra.mxu0 0
        %998 = vmatprep.subr.bf16.mxu0 0
        %999 = vmatpush1.bf16.msra.mxu0 0
        %1000 = vmatprep.subr.bf16.mxu0 0
        %1001 = vmatpush1.bf16.msra.mxu0 0
        %1002 = vmatprep.subr.bf16.mxu0 0
        %1003 = vmatpush1.bf16.msra.mxu0 0
        %1004 = vmatprep.subr.bf16.mxu0 0
        %1005 = vmatpush1.bf16.msra.mxu0 0
        %1006 = vmatprep.subr.bf16.mxu0 0
        %1007 = vmatpush1.bf16.msra.mxu0 0
        %1008 = vmatprep.subr.bf16.mxu0 0
        %1009 = vmatpush1.bf16.msra.mxu0 0
        %1010 = vmatprep.subr.bf16.mxu0 0
        %1011 = vmatpush1.bf16.msra.mxu0 0
        %1012 = vmatprep.subr.bf16.mxu0 0
        %1013 = vmatpush1.bf16.msra.mxu0 0
        %1014 = vmatprep.subr.bf16.mxu0 0
        %1015 = vmatpush1.bf16.msra.mxu0 0
        %1016 = vmatprep.subr.bf16.mxu0 0
        %1017 = vmatpush1.bf16.msra.mxu0 0
        %1018 = vmatprep.subr.bf16.mxu0 0
        %1019 = vmatpush1.bf16.msra.mxu0 0
        %1020 = vmatprep.subr.bf16.mxu0 0
        %1021 = vmatpush1.bf16.msra.mxu0 0
        %1022 = vmatprep.mubr.bf16.mxu0 0
        %1023 = vmatmul.mubr.bf16.gmra.mrb[0].mxu0 %v854
        %v1024 = vpop.f32.mrb[0].mxu0
        %v1025 = vadd.f32 %v643, %v1024
        %v1026 = vpop.f32.mrb[0].mxu0
        %v1027 = vadd.f32 %v647, %v1026
        %v1028 = vpop.f32.mrb[0].mxu0
        %v1029 = vadd.f32 %v643, %v1028
        %v1030 = vpop.f32.mrb[0].mxu0
        %v1031 = vadd.f32 %v647, %v1030
        %1032 = vmatprep.mubr.bf16.mxu0 0
        %1033 = vmatmul.mubr.bf16.gmra.mrb[0].mxu0 %v857
        %v1034 = vpop.f32.mrb[0].mxu0
        %v1035 = vadd.f32 %v643, %v1034
        %v1036 = vpop.f32.mrb[0].mxu0
        %v1037 = vadd.f32 %v647, %v1036
        %v1038 = vpop.f32.mrb[0].mxu0
        %v1039 = vadd.f32 %v643, %v1038
        %v1040 = vpop.f32.mrb[0].mxu0
        %v1041 = vadd.f32 %v647, %v1040
        %1042 = vmatprep.mubr.bf16.mxu0 0
        %1043 = vmatmul.mubr.bf16.gmra.mrb[0].mxu0 %v860
        %v1044 = vpop.f32.mrb[0].mxu0
        %v1045 = vadd.f32 %v643, %v1044
        %v1046 = vpop.f32.mrb[0].mxu0
        %v1047 = vadd.f32 %v647, %v1046
        %v1048 = vpop.f32.mrb[0].mxu0
        %v1049 = vadd.f32 %v643, %v1048
        %v1050 = vpop.f32.mrb[0].mxu0
        %v1051 = vadd.f32 %v647, %v1050
        %1052 = vmatprep.mubr.bf16.mxu0 0
        %1053 = vmatmul.mubr.bf16.gmra.mrb[0].mxu0 %v863
        %v1054 = vpop.f32.mrb[0].mxu0
        %v1055 = vadd.f32 %v643, %v1054
        %v1056 = vpop.f32.mrb[0].mxu0
        %v1057 = vadd.f32 %v647, %v1056
        %v1058 = vpop.f32.mrb[0].mxu0
        %v1059 = vadd.f32 %v643, %v1058
        %v1060 = vpop.f32.mrb[0].mxu0
        %v1061 = vadd.f32 %v647, %v1060
        %1062 = vmatprep.mubr.bf16.mxu0 0
        %1063 = vmatmul.mubr.bf16.gmra.mrb[0].mxu0 %v866
        %v1064 = vpop.f32.mrb[0].mxu0
        %v1065 = vadd.f32 %v643, %v1064
        %v1066 = vpop.f32.mrb[0].mxu0
        %v1067 = vadd.f32 %v647, %v1066
        %v1068 = vpop.f32.mrb[0].mxu0
        %v1069 = vadd.f32 %v643, %v1068
        %v1070 = vpop.f32.mrb[0].mxu0
        %v1071 = vadd.f32 %v647, %v1070
        %1072 = vmatprep.mubr.bf16.mxu0 0
        %1073 = vmatmul.mubr.bf16.gmra.mrb[0].mxu0 %v869
        %v1074 = vpop.f32.mrb[0].mxu0
        %v1075 = vadd.f32 %v643, %v1074
        %v1076 = vpop.f32.mrb[0].mxu0
        %v1077 = vadd.f32 %v647, %v1076
        %v1078 = vpop.f32.mrb[0].mxu0
        %v1079 = vadd.f32 %v643, %v1078
        %v1080 = vpop.f32.mrb[0].mxu0
        %v1081 = vadd.f32 %v647, %v1080
        %1082 = vmatprep.mubr.bf16.mxu0 0
        %1083 = vmatmul.mubr.bf16.gmra.mrb[0].mxu0 %v872
        %v1084 = vpop.f32.mrb[0].mxu0
        %v1085 = vadd.f32 %v643, %v1084
        %v1086 = vpop.f32.mrb[0].mxu0
        %v1087 = vadd.f32 %v647, %v1086
        %v1088 = vpop.f32.mrb[0].mxu0
        %v1089 = vadd.f32 %v643, %v1088
        %v1090 = vpop.f32.mrb[0].mxu0
        %v1091 = vadd.f32 %v647, %v1090
        %1092 = vmatprep.mubr.bf16.mxu0 0
        %1093 = vmatmul.mubr.bf16.gmra.mrb[0].mxu0 %v875
        %v1094 = vpop.f32.mrb[0].mxu0
        %v1095 = vadd.f32 %v643, %v1094
        %v1096 = vpop.f32.mrb[0].mxu0
        %v1097 = vadd.f32 %v647, %v1096
        %v1098 = vpop.f32.mrb[0].mxu0
        %v1099 = vadd.f32 %v643, %v1098
        %v1100 = vpop.f32.mrb[0].mxu0
        %v1101 = vadd.f32 %v647, %v1100
        %1102 = vdwg.mxu0
        %1103 = vmatprep.subr.bf16.mxu0 %v809
        %1104 = vmatpush1.bf16.msra.mxu0 %v808
        %1105 = vmatprep.subr.bf16.mxu0 %v821
        %1106 = vmatpush1.bf16.msra.mxu0 %v820
        %1107 = vmatprep.subr.bf16.mxu0 0
        %1108 = vmatpush1.bf16.msra.mxu0 0
        %1109 = vmatprep.subr.bf16.mxu0 0
        %1110 = vmatpush1.bf16.msra.mxu0 0
        %1111 = vmatprep.subr.bf16.mxu0 0
        %1112 = vmatpush1.bf16.msra.mxu0 0
        %1113 = vmatprep.subr.bf16.mxu0 0
        %1114 = vmatpush1.bf16.msra.mxu0 0
        %1115 = vmatprep.subr.bf16.mxu0 0
        %1116 = vmatpush1.bf16.msra.mxu0 0
        %1117 = vmatprep.subr.bf16.mxu0 0
        %1118 = vmatpush1.bf16.msra.mxu0 0
        %1119 = vmatprep.subr.bf16.mxu0 0
        %1120 = vmatpush1.bf16.msra.mxu0 0
        %1121 = vmatprep.subr.bf16.mxu0 0
        %1122 = vmatpush1.bf16.msra.mxu0 0
        %1123 = vmatprep.subr.bf16.mxu0 0
        %1124 = vmatpush1.bf16.msra.mxu0 0
        %1125 = vmatprep.subr.bf16.mxu0 0
        %1126 = vmatpush1.bf16.msra.mxu0 0
        %1127 = vmatprep.subr.bf16.mxu0 0
        %1128 = vmatpush1.bf16.msra.mxu0 0
        %1129 = vmatprep.subr.bf16.mxu0 0
        %1130 = vmatpush1.bf16.msra.mxu0 0
        %1131 = vmatprep.subr.bf16.mxu0 0
        %1132 = vmatpush1.bf16.msra.mxu0 0
        %1133 = vmatprep.subr.bf16.mxu0 0
        %1134 = vmatpush1.bf16.msra.mxu0 0
        %1135 = vmatprep.mubr.bf16.mxu0 0
        %1136 = vmatmul.mubr.bf16.gmra.mrb[0].mxu0 %v854
        %v1137 = vpop.f32.mrb[0].mxu0
        %v1138 = vadd.f32 %v651, %v1137
        %v1139 = vpop.f32.mrb[0].mxu0
        %v1140 = vadd.f32 %v655, %v1139
        %v1141 = vpop.f32.mrb[0].mxu0
        %v1142 = vadd.f32 %v651, %v1141
        %v1143 = vpop.f32.mrb[0].mxu0
        %v1144 = vadd.f32 %v655, %v1143
        %1145 = vmatprep.mubr.bf16.mxu0 0
        %1146 = vmatmul.mubr.bf16.gmra.mrb[0].mxu0 %v857
        %v1147 = vpop.f32.mrb[0].mxu0
        %v1148 = vadd.f32 %v651, %v1147
        %v1149 = vpop.f32.mrb[0].mxu0
        %v1150 = vadd.f32 %v655, %v1149
        %v1151 = vpop.f32.mrb[0].mxu0
        %v1152 = vadd.f32 %v651, %v1151
        %v1153 = vpop.f32.mrb[0].mxu0
        %v1154 = vadd.f32 %v655, %v1153
        %1155 = vmatprep.mubr.bf16.mxu0 0
        %1156 = vmatmul.mubr.bf16.gmra.mrb[0].mxu0 %v860
        %v1157 = vpop.f32.mrb[0].mxu0
        %v1158 = vadd.f32 %v651, %v1157
        %v1159 = vpop.f32.mrb[0].mxu0
        %v1160 = vadd.f32 %v655, %v1159
        %v1161 = vpop.f32.mrb[0].mxu0
        %v1162 = vadd.f32 %v651, %v1161
        %v1163 = vpop.f32.mrb[0].mxu0
        %v1164 = vadd.f32 %v655, %v1163
        %1165 = vmatprep.mubr.bf16.mxu0 0
        %1166 = vmatmul.mubr.bf16.gmra.mrb[0].mxu0 %v863
        %v1167 = vpop.f32.mrb[0].mxu0
        %v1168 = vadd.f32 %v651, %v1167
        %v1169 = vpop.f32.mrb[0].mxu0
        %v1170 = vadd.f32 %v655, %v1169
        %v1171 = vpop.f32.mrb[0].mxu0
        %v1172 = vadd.f32 %v651, %v1171
        %v1173 = vpop.f32.mrb[0].mxu0
        %v1174 = vadd.f32 %v655, %v1173
        %1175 = vmatprep.mubr.bf16.mxu0 0
        %1176 = vmatmul.mubr.bf16.gmra.mrb[0].mxu0 %v866
        %v1177 = vpop.f32.mrb[0].mxu0
        %v1178 = vadd.f32 %v651, %v1177
        %v1179 = vpop.f32.mrb[0].mxu0
        %v1180 = vadd.f32 %v655, %v1179
        %v1181 = vpop.f32.mrb[0].mxu0
        %v1182 = vadd.f32 %v651, %v1181
        %v1183 = vpop.f32.mrb[0].mxu0
        %v1184 = vadd.f32 %v655, %v1183
        %1185 = vmatprep.mubr.bf16.mxu0 0
        %1186 = vmatmul.mubr.bf16.gmra.mrb[0].mxu0 %v869
        %v1187 = vpop.f32.mrb[0].mxu0
        %v1188 = vadd.f32 %v651, %v1187
        %v1189 = vpop.f32.mrb[0].mxu0
        %v1190 = vadd.f32 %v655, %v1189
        %v1191 = vpop.f32.mrb[0].mxu0
        %v1192 = vadd.f32 %v651, %v1191
        %v1193 = vpop.f32.mrb[0].mxu0
        %v1194 = vadd.f32 %v655, %v1193
        %1195 = vmatprep.mubr.bf16.mxu0 0
        %1196 = vmatmul.mubr.bf16.gmra.mrb[0].mxu0 %v872
        %v1197 = vpop.f32.mrb[0].mxu0
        %v1198 = vadd.f32 %v651, %v1197
        %v1199 = vpop.f32.mrb[0].mxu0
        %v1200 = vadd.f32 %v655, %v1199
        %v1201 = vpop.f32.mrb[0].mxu0
        %v1202 = vadd.f32 %v651, %v1201
        %v1203 = vpop.f32.mrb[0].mxu0
        %v1204 = vadd.f32 %v655, %v1203
        %1205 = vmatprep.mubr.bf16.mxu0 0
        %1206 = vmatmul.mubr.bf16.gmra.mrb[0].mxu0 %v875
        %v1207 = vpop.f32.mrb[0].mxu0
        %v1208 = vadd.f32 %v651, %v1207
        %v1209 = vpop.f32.mrb[0].mxu0
        %v1210 = vadd.f32 %v655, %v1209
        %v1211 = vpop.f32.mrb[0].mxu0
        %v1212 = vadd.f32 %v651, %v1211
        %v1213 = vpop.f32.mrb[0].mxu0
        %v1214 = vadd.f32 %v655, %v1213
        %1215 = vdwg.mxu0
        %1216 = vmatprep.subr.bf16.mxu0 %v811
        %1217 = vmatpush1.bf16.msra.mxu0 %v810
        %1218 = vmatprep.subr.bf16.mxu0 %v823
        %1219 = vmatpush1.bf16.msra.mxu0 %v822
        %1220 = vmatprep.subr.bf16.mxu0 0
        %1221 = vmatpush1.bf16.msra.mxu0 0
        %1222 = vmatprep.subr.bf16.mxu0 0
        %1223 = vmatpush1.bf16.msra.mxu0 0
        %1224 = vmatprep.subr.bf16.mxu0 0
        %1225 = vmatpush1.bf16.msra.mxu0 0
        %1226 = vmatprep.subr.bf16.mxu0 0
        %1227 = vmatpush1.bf16.msra.mxu0 0
        %1228 = vmatprep.subr.bf16.mxu0 0
        %1229 = vmatpush1.bf16.msra.mxu0 0
        %1230 = vmatprep.subr.bf16.mxu0 0
        %1231 = vmatpush1.bf16.msra.mxu0 0
        %1232 = vmatprep.subr.bf16.mxu0 0
        %1233 = vmatpush1.bf16.msra.mxu0 0
        %1234 = vmatprep.subr.bf16.mxu0 0
        %1235 = vmatpush1.bf16.msra.mxu0 0
        %1236 = vmatprep.subr.bf16.mxu0 0
        %1237 = vmatpush1.bf16.msra.mxu0 0
        %1238 = vmatprep.subr.bf16.mxu0 0
        %1239 = vmatpush1.bf16.msra.mxu0 0
        %1240 = vmatprep.subr.bf16.mxu0 0
        %1241 = vmatpush1.bf16.msra.mxu0 0
        %1242 = vmatprep.subr.bf16.mxu0 0
        %1243 = vmatpush1.bf16.msra.mxu0 0
        %1244 = vmatprep.subr.bf16.mxu0 0
        %1245 = vmatpush1.bf16.msra.mxu0 0
        %1246 = vmatprep.subr.bf16.mxu0 0
        %1247 = vmatpush1.bf16.msra.mxu0 0
        %1248 = vmatprep.mubr.bf16.mxu0 0
        %1249 = vmatmul.mubr.bf16.gmra.mrb[0].mxu0 %v854
        %v1250 = vpop.f32.mrb[0].mxu0
        %v1251 = vadd.f32 %v659, %v1250
        %v1252 = vpop.f32.mrb[0].mxu0
        %v1253 = vadd.f32 %v663, %v1252
        %v1254 = vpop.f32.mrb[0].mxu0
        %v1255 = vadd.f32 %v659, %v1254
        %v1256 = vpop.f32.mrb[0].mxu0
        %v1257 = vadd.f32 %v663, %v1256
        %1258 = vmatprep.mubr.bf16.mxu0 0
        %1259 = vmatmul.mubr.bf16.gmra.mrb[0].mxu0 %v857
        %v1260 = vpop.f32.mrb[0].mxu0
        %v1261 = vadd.f32 %v659, %v1260
        %v1262 = vpop.f32.mrb[0].mxu0
        %v1263 = vadd.f32 %v663, %v1262
        %v1264 = vpop.f32.mrb[0].mxu0
        %v1265 = vadd.f32 %v659, %v1264
        %v1266 = vpop.f32.mrb[0].mxu0
        %v1267 = vadd.f32 %v663, %v1266
        %1268 = vmatprep.mubr.bf16.mxu0 0
        %1269 = vmatmul.mubr.bf16.gmra.mrb[0].mxu0 %v860
        %v1270 = vpop.f32.mrb[0].mxu0
        %v1271 = vadd.f32 %v659, %v1270
        %v1272 = vpop.f32.mrb[0].mxu0
        %v1273 = vadd.f32 %v663, %v1272
        %v1274 = vpop.f32.mrb[0].mxu0
        %v1275 = vadd.f32 %v659, %v1274
        %v1276 = vpop.f32.mrb[0].mxu0
        %v1277 = vadd.f32 %v663, %v1276
        %1278 = vmatprep.mubr.bf16.mxu0 0
        %1279 = vmatmul.mubr.bf16.gmra.mrb[0].mxu0 %v863
        %v1280 = vpop.f32.mrb[0].mxu0
        %v1281 = vadd.f32 %v659, %v1280
        %v1282 = vpop.f32.mrb[0].mxu0
        %v1283 = vadd.f32 %v663, %v1282
        %v1284 = vpop.f32.mrb[0].mxu0
        %v1285 = vadd.f32 %v659, %v1284
        %v1286 = vpop.f32.mrb[0].mxu0
        %v1287 = vadd.f32 %v663, %v1286
        %1288 = vmatprep.mubr.bf16.mxu0 0
        %1289 = vmatmul.mubr.bf16.gmra.mrb[0].mxu0 %v866
        %v1290 = vpop.f32.mrb[0].mxu0
        %v1291 = vadd.f32 %v659, %v1290
        %v1292 = vpop.f32.mrb[0].mxu0
        %v1293 = vadd.f32 %v663, %v1292
        %v1294 = vpop.f32.mrb[0].mxu0
        %v1295 = vadd.f32 %v659, %v1294
        %v1296 = vpop.f32.mrb[0].mxu0
        %v1297 = vadd.f32 %v663, %v1296
        %1298 = vmatprep.mubr.bf16.mxu0 0
        %1299 = vmatmul.mubr.bf16.gmra.mrb[0].mxu0 %v869
        %v1300 = vpop.f32.mrb[0].mxu0
        %v1301 = vadd.f32 %v659, %v1300
        %v1302 = vpop.f32.mrb[0].mxu0
        %v1303 = vadd.f32 %v663, %v1302
        %v1304 = vpop.f32.mrb[0].mxu0
        %v1305 = vadd.f32 %v659, %v1304
        %v1306 = vpop.f32.mrb[0].mxu0
        %v1307 = vadd.f32 %v663, %v1306
        %1308 = vmatprep.mubr.bf16.mxu0 0
        %1309 = vmatmul.mubr.bf16.gmra.mrb[0].mxu0 %v872
        %v1310 = vpop.f32.mrb[0].mxu0
        %v1311 = vadd.f32 %v659, %v1310
        %v1312 = vpop.f32.mrb[0].mxu0
        %v1313 = vadd.f32 %v663, %v1312
        %v1314 = vpop.f32.mrb[0].mxu0
        %v1315 = vadd.f32 %v659, %v1314
        %v1316 = vpop.f32.mrb[0].mxu0
        %v1317 = vadd.f32 %v663, %v1316
        %1318 = vmatprep.mubr.bf16.mxu0 0
        %1319 = vmatmul.mubr.bf16.gmra.mrb[0].mxu0 %v875
        %v1320 = vpop.f32.mrb[0].mxu0
        %v1321 = vadd.f32 %v659, %v1320
        %v1322 = vpop.f32.mrb[0].mxu0
        %v1323 = vadd.f32 %v663, %v1322
        %v1324 = vpop.f32.mrb[0].mxu0
        %v1325 = vadd.f32 %v659, %v1324
        %v1326 = vpop.f32.mrb[0].mxu0
        %v1327 = vadd.f32 %v663, %v1326
        %1328 = vdwg.mxu0
        %1329 = vmatprep.subr.bf16.mxu0 %v813
        %1330 = vmatpush1.bf16.msra.mxu0 %v812
        %1331 = vmatprep.subr.bf16.mxu0 %v825
        %1332 = vmatpush1.bf16.msra.mxu0 %v824
        %1333 = vmatprep.subr.bf16.mxu0 0
        %1334 = vmatpush1.bf16.msra.mxu0 0
        %1335 = vmatprep.subr.bf16.mxu0 0
        %1336 = vmatpush1.bf16.msra.mxu0 0
        %1337 = vmatprep.subr.bf16.mxu0 0
        %1338 = vmatpush1.bf16.msra.mxu0 0
        %1339 = vmatprep.subr.bf16.mxu0 0
        %1340 = vmatpush1.bf16.msra.mxu0 0
        %1341 = vmatprep.subr.bf16.mxu0 0
        %1342 = vmatpush1.bf16.msra.mxu0 0
        %1343 = vmatprep.subr.bf16.mxu0 0
        %1344 = vmatpush1.bf16.msra.mxu0 0
        %1345 = vmatprep.subr.bf16.mxu0 0
        %1346 = vmatpush1.bf16.msra.mxu0 0
        %1347 = vmatprep.subr.bf16.mxu0 0
        %1348 = vmatpush1.bf16.msra.mxu0 0
        %1349 = vmatprep.subr.bf16.mxu0 0
        %1350 = vmatpush1.bf16.msra.mxu0 0
        %1351 = vmatprep.subr.bf16.mxu0 0
        %1352 = vmatpush1.bf16.msra.mxu0 0
        %1353 = vmatprep.subr.bf16.mxu0 0
        %1354 = vmatpush1.bf16.msra.mxu0 0
        %1355 = vmatprep.subr.bf16.mxu0 0
        %1356 = vmatpush1.bf16.msra.mxu0 0
        %1357 = vmatprep.subr.bf16.mxu0 0
        %1358 = vmatpush1.bf16.msra.mxu0 0
        %1359 = vmatprep.subr.bf16.mxu0 0
        %1360 = vmatpush1.bf16.msra.mxu0 0
        %1361 = vmatprep.mubr.bf16.mxu0 0
        %1362 = vmatmul.mubr.bf16.gmra.mrb[0].mxu0 %v854
        %v1363 = vpop.f32.mrb[0].mxu0
        %v1364 = vadd.f32 %v667, %v1363
        %v1365 = vpop.f32.mrb[0].mxu0
        %v1366 = vadd.f32 %v671, %v1365
        %v1367 = vpop.f32.mrb[0].mxu0
        %v1368 = vadd.f32 %v667, %v1367
        %v1369 = vpop.f32.mrb[0].mxu0
        %v1370 = vadd.f32 %v671, %v1369
        %1371 = vmatprep.mubr.bf16.mxu0 0
        %1372 = vmatmul.mubr.bf16.gmra.mrb[0].mxu0 %v857
        %v1373 = vpop.f32.mrb[0].mxu0
        %v1374 = vadd.f32 %v667, %v1373
        %v1375 = vpop.f32.mrb[0].mxu0
        %v1376 = vadd.f32 %v671, %v1375
        %v1377 = vpop.f32.mrb[0].mxu0
        %v1378 = vadd.f32 %v667, %v1377
        %v1379 = vpop.f32.mrb[0].mxu0
        %v1380 = vadd.f32 %v671, %v1379
        %1381 = vmatprep.mubr.bf16.mxu0 0
        %1382 = vmatmul.mubr.bf16.gmra.mrb[0].mxu0 %v860
        %v1383 = vpop.f32.mrb[0].mxu0
        %v1384 = vadd.f32 %v667, %v1383
        %v1385 = vpop.f32.mrb[0].mxu0
        %v1386 = vadd.f32 %v671, %v1385
        %v1387 = vpop.f32.mrb[0].mxu0
        %v1388 = vadd.f32 %v667, %v1387
        %v1389 = vpop.f32.mrb[0].mxu0
        %v1390 = vadd.f32 %v671, %v1389
        %1391 = vmatprep.mubr.bf16.mxu0 0
        %1392 = vmatmul.mubr.bf16.gmra.mrb[0].mxu0 %v863
        %v1393 = vpop.f32.mrb[0].mxu0
        %v1394 = vadd.f32 %v667, %v1393
        %v1395 = vpop.f32.mrb[0].mxu0
        %v1396 = vadd.f32 %v671, %v1395
        %v1397 = vpop.f32.mrb[0].mxu0
        %v1398 = vadd.f32 %v667, %v1397
        %v1399 = vpop.f32.mrb[0].mxu0
        %v1400 = vadd.f32 %v671, %v1399
        %1401 = vmatprep.mubr.bf16.mxu0 0
        %1402 = vmatmul.mubr.bf16.gmra.mrb[0].mxu0 %v866
        %v1403 = vpop.f32.mrb[0].mxu0
        %v1404 = vadd.f32 %v667, %v1403
        %v1405 = vpop.f32.mrb[0].mxu0
        %v1406 = vadd.f32 %v671, %v1405
        %v1407 = vpop.f32.mrb[0].mxu0
        %v1408 = vadd.f32 %v667, %v1407
        %v1409 = vpop.f32.mrb[0].mxu0
        %v1410 = vadd.f32 %v671, %v1409
        %1411 = vmatprep.mubr.bf16.mxu0 0
        %1412 = vmatmul.mubr.bf16.gmra.mrb[0].mxu0 %v869
        %v1413 = vpop.f32.mrb[0].mxu0
        %v1414 = vadd.f32 %v667, %v1413
        %v1415 = vpop.f32.mrb[0].mxu0
        %v1416 = vadd.f32 %v671, %v1415
        %v1417 = vpop.f32.mrb[0].mxu0
        %v1418 = vadd.f32 %v667, %v1417
        %v1419 = vpop.f32.mrb[0].mxu0
        %v1420 = vadd.f32 %v671, %v1419
        %1421 = vmatprep.mubr.bf16.mxu0 0
        %1422 = vmatmul.mubr.bf16.gmra.mrb[0].mxu0 %v872
        %v1423 = vpop.f32.mrb[0].mxu0
        %v1424 = vadd.f32 %v667, %v1423
        %v1425 = vpop.f32.mrb[0].mxu0
        %v1426 = vadd.f32 %v671, %v1425
        %v1427 = vpop.f32.mrb[0].mxu0
        %v1428 = vadd.f32 %v667, %v1427
        %v1429 = vpop.f32.mrb[0].mxu0
        %v1430 = vadd.f32 %v671, %v1429
        %1431 = vmatprep.mubr.bf16.mxu0 0
        %1432 = vmatmul.mubr.bf16.gmra.mrb[0].mxu0 %v875
        %v1433 = vpop.f32.mrb[0].mxu0
        %v1434 = vadd.f32 %v667, %v1433
        %v1435 = vpop.f32.mrb[0].mxu0
        %v1436 = vadd.f32 %v671, %v1435
        %v1437 = vpop.f32.mrb[0].mxu0
        %v1438 = vadd.f32 %v667, %v1437
        %v1439 = vpop.f32.mrb[0].mxu0
        %v1440 = vadd.f32 %v671, %v1439
        %1441 = vdwg.mxu0
        %1442 = vmatprep.subr.bf16.mxu0 %v815
        %1443 = vmatpush1.bf16.msra.mxu0 %v814
        %1444 = vmatprep.subr.bf16.mxu0 %v827
        %1445 = vmatpush1.bf16.msra.mxu0 %v826
        %1446 = vmatprep.subr.bf16.mxu0 0
        %1447 = vmatpush1.bf16.msra.mxu0 0
        %1448 = vmatprep.subr.bf16.mxu0 0
        %1449 = vmatpush1.bf16.msra.mxu0 0
        %1450 = vmatprep.subr.bf16.mxu0 0
        %1451 = vmatpush1.bf16.msra.mxu0 0
        %1452 = vmatprep.subr.bf16.mxu0 0
        %1453 = vmatpush1.bf16.msra.mxu0 0
        %1454 = vmatprep.subr.bf16.mxu0 0
        %1455 = vmatpush1.bf16.msra.mxu0 0
        %1456 = vmatprep.subr.bf16.mxu0 0
        %1457 = vmatpush1.bf16.msra.mxu0 0
        %1458 = vmatprep.subr.bf16.mxu0 0
        %1459 = vmatpush1.bf16.msra.mxu0 0
        %1460 = vmatprep.subr.bf16.mxu0 0
        %1461 = vmatpush1.bf16.msra.mxu0 0
        %1462 = vmatprep.subr.bf16.mxu0 0
        %1463 = vmatpush1.bf16.msra.mxu0 0
        %1464 = vmatprep.subr.bf16.mxu0 0
        %1465 = vmatpush1.bf16.msra.mxu0 0
        %1466 = vmatprep.subr.bf16.mxu0 0
        %1467 = vmatpush1.bf16.msra.mxu0 0
        %1468 = vmatprep.subr.bf16.mxu0 0
        %1469 = vmatpush1.bf16.msra.mxu0 0
        %1470 = vmatprep.subr.bf16.mxu0 0
        %1471 = vmatpush1.bf16.msra.mxu0 0
        %1472 = vmatprep.subr.bf16.mxu0 0
        %1473 = vmatpush1.bf16.msra.mxu0 0
        %1474 = vmatprep.mubr.bf16.mxu0 0
        %1475 = vmatmul.mubr.bf16.gmra.mrb[0].mxu0 %v854
        %v1476 = vpop.f32.mrb[0].mxu0
        %v1477 = vadd.f32 %v675, %v1476
        %v1478 = vpop.f32.mrb[0].mxu0
        %v1479 = vadd.f32 %v679, %v1478
        %v1480 = vpop.f32.mrb[0].mxu0
        %v1481 = vadd.f32 %v675, %v1480
        %v1482 = vpop.f32.mrb[0].mxu0
        %v1483 = vadd.f32 %v679, %v1482
        %1484 = vmatprep.mubr.bf16.mxu0 0
        %1485 = vmatmul.mubr.bf16.gmra.mrb[0].mxu0 %v857
        %v1486 = vpop.f32.mrb[0].mxu0
        %v1487 = vadd.f32 %v675, %v1486
        %v1488 = vpop.f32.mrb[0].mxu0
        %v1489 = vadd.f32 %v679, %v1488
        %v1490 = vpop.f32.mrb[0].mxu0
        %v1491 = vadd.f32 %v675, %v1490
        %v1492 = vpop.f32.mrb[0].mxu0
        %v1493 = vadd.f32 %v679, %v1492
        %1494 = vmatprep.mubr.bf16.mxu0 0
        %1495 = vmatmul.mubr.bf16.gmra.mrb[0].mxu0 %v860
        %v1496 = vpop.f32.mrb[0].mxu0
        %v1497 = vadd.f32 %v675, %v1496
        %v1498 = vpop.f32.mrb[0].mxu0
        %v1499 = vadd.f32 %v679, %v1498
        %v1500 = vpop.f32.mrb[0].mxu0
        %v1501 = vadd.f32 %v675, %v1500
        %v1502 = vpop.f32.mrb[0].mxu0
        %v1503 = vadd.f32 %v679, %v1502
        %1504 = vmatprep.mubr.bf16.mxu0 0
        %1505 = vmatmul.mubr.bf16.gmra.mrb[0].mxu0 %v863
        %v1506 = vpop.f32.mrb[0].mxu0
        %v1507 = vadd.f32 %v675, %v1506
        %v1508 = vpop.f32.mrb[0].mxu0
        %v1509 = vadd.f32 %v679, %v1508
        %v1510 = vpop.f32.mrb[0].mxu0
        %v1511 = vadd.f32 %v675, %v1510
        %v1512 = vpop.f32.mrb[0].mxu0
        %v1513 = vadd.f32 %v679, %v1512
        %1514 = vmatprep.mubr.bf16.mxu0 0
        %1515 = vmatmul.mubr.bf16.gmra.mrb[0].mxu0 %v866
        %v1516 = vpop.f32.mrb[0].mxu0
        %v1517 = vadd.f32 %v675, %v1516
        %v1518 = vpop.f32.mrb[0].mxu0
        %v1519 = vadd.f32 %v679, %v1518
        %v1520 = vpop.f32.mrb[0].mxu0
        %v1521 = vadd.f32 %v675, %v1520
        %v1522 = vpop.f32.mrb[0].mxu0
        %v1523 = vadd.f32 %v679, %v1522
        %1524 = vmatprep.mubr.bf16.mxu0 0
        %1525 = vmatmul.mubr.bf16.gmra.mrb[0].mxu0 %v869
        %v1526 = vpop.f32.mrb[0].mxu0
        %v1527 = vadd.f32 %v675, %v1526
        %v1528 = vpop.f32.mrb[0].mxu0
        %v1529 = vadd.f32 %v679, %v1528
        %v1530 = vpop.f32.mrb[0].mxu0
        %v1531 = vadd.f32 %v675, %v1530
        %v1532 = vpop.f32.mrb[0].mxu0
        %v1533 = vadd.f32 %v679, %v1532
        %1534 = vmatprep.mubr.bf16.mxu0 0
        %1535 = vmatmul.mubr.bf16.gmra.mrb[0].mxu0 %v872
        %v1536 = vpop.f32.mrb[0].mxu0
        %v1537 = vadd.f32 %v675, %v1536
        %v1538 = vpop.f32.mrb[0].mxu0
        %v1539 = vadd.f32 %v679, %v1538
        %v1540 = vpop.f32.mrb[0].mxu0
        %v1541 = vadd.f32 %v675, %v1540
        %v1542 = vpop.f32.mrb[0].mxu0
        %v1543 = vadd.f32 %v679, %v1542
        %1544 = vmatprep.mubr.bf16.mxu0 0
        %1545 = vmatmul.mubr.bf16.gmra.mrb[0].mxu0 %v875
        %v1546 = vpop.f32.mrb[0].mxu0
        %v1547 = vadd.f32 %v675, %v1546
        %v1548 = vpop.f32.mrb[0].mxu0
        %v1549 = vadd.f32 %v679, %v1548
        %v1550 = vpop.f32.mrb[0].mxu0
        %v1551 = vadd.f32 %v675, %v1550
        %v1552 = vpop.f32.mrb[0].mxu0
        %v1553 = vadd.f32 %v679, %v1552
        %1554 = vdwg.mxu0
        %v1555 = vmax.f32 %v912, 0.0
        %v1556 = vmax.f32 %v914, 0.0
        %v1557 = vmax.f32 %v1025, 0.0
        %v1558 = vmax.f32 %v1027, 0.0
        %v1559 = vmax.f32 %v1138, 0.0
        %v1560 = vmax.f32 %v1140, 0.0
        %v1561 = vmax.f32 %v1251, 0.0
        %v1562 = vmax.f32 %v1253, 0.0
        %v1563 = vmax.f32 %v1364, 0.0
        %v1564 = vmax.f32 %v1366, 0.0
        %v1565 = vmax.f32 %v1477, 0.0
        %v1566 = vmax.f32 %v1479, 0.0
        %v1567 = vmax.f32 %v916, 0.0
        %v1568 = vmax.f32 %v918, 0.0
        %v1569 = vmax.f32 %v1029, 0.0
        %v1570 = vmax.f32 %v1031, 0.0
        %v1571 = vmax.f32 %v1142, 0.0
        %v1572 = vmax.f32 %v1144, 0.0
        %v1573 = vmax.f32 %v1255, 0.0
        %v1574 = vmax.f32 %v1257, 0.0
        %v1575 = vmax.f32 %v1368, 0.0
        %v1576 = vmax.f32 %v1370, 0.0
        %v1577 = vmax.f32 %v1481, 0.0
        %v1578 = vmax.f32 %v1483, 0.0
        %v1579 = vmax.f32 %v922, 0.0
        %v1580 = vmax.f32 %v924, 0.0
        %v1581 = vmax.f32 %v1035, 0.0
        %v1582 = vmax.f32 %v1037, 0.0
        %v1583 = vmax.f32 %v1148, 0.0
        %v1584 = vmax.f32 %v1150, 0.0
        %v1585 = vmax.f32 %v1261, 0.0
        %v1586 = vmax.f32 %v1263, 0.0
        %v1587 = vmax.f32 %v1374, 0.0
        %v1588 = vmax.f32 %v1376, 0.0
        %v1589 = vmax.f32 %v1487, 0.0
        %v1590 = vmax.f32 %v1489, 0.0
        %v1591 = vmax.f32 %v926, 0.0
        %v1592 = vmax.f32 %v928, 0.0
        %v1593 = vmax.f32 %v1039, 0.0
        %v1594 = vmax.f32 %v1041, 0.0
        %v1595 = vmax.f32 %v1152, 0.0
        %v1596 = vmax.f32 %v1154, 0.0
        %v1597 = vmax.f32 %v1265, 0.0
        %v1598 = vmax.f32 %v1267, 0.0
        %v1599 = vmax.f32 %v1378, 0.0
        %v1600 = vmax.f32 %v1380, 0.0
        %v1601 = vmax.f32 %v1491, 0.0
        %v1602 = vmax.f32 %v1493, 0.0
        %v1603 = vmax.f32 %v932, 0.0
        %v1604 = vmax.f32 %v934, 0.0
        %v1605 = vmax.f32 %v1045, 0.0
        %v1606 = vmax.f32 %v1047, 0.0
        %v1607 = vmax.f32 %v1158, 0.0
        %v1608 = vmax.f32 %v1160, 0.0
        %v1609 = vmax.f32 %v1271, 0.0
        %v1610 = vmax.f32 %v1273, 0.0
        %v1611 = vmax.f32 %v1384, 0.0
        %v1612 = vmax.f32 %v1386, 0.0
        %v1613 = vmax.f32 %v1497, 0.0
        %v1614 = vmax.f32 %v1499, 0.0
        %v1615 = vmax.f32 %v936, 0.0
        %v1616 = vmax.f32 %v938, 0.0
        %v1617 = vmax.f32 %v1049, 0.0
        %v1618 = vmax.f32 %v1051, 0.0
        %v1619 = vmax.f32 %v1162, 0.0
        %v1620 = vmax.f32 %v1164, 0.0
        %v1621 = vmax.f32 %v1275, 0.0
        %v1622 = vmax.f32 %v1277, 0.0
        %v1623 = vmax.f32 %v1388, 0.0
        %v1624 = vmax.f32 %v1390, 0.0
        %v1625 = vmax.f32 %v1501, 0.0
        %v1626 = vmax.f32 %v1503, 0.0
        %v1627 = vmax.f32 %v942, 0.0
        %v1628 = vmax.f32 %v944, 0.0
        %v1629 = vmax.f32 %v1055, 0.0
        %v1630 = vmax.f32 %v1057, 0.0
        %v1631 = vmax.f32 %v1168, 0.0
        %v1632 = vmax.f32 %v1170, 0.0
        %v1633 = vmax.f32 %v1281, 0.0
        %v1634 = vmax.f32 %v1283, 0.0
        %v1635 = vmax.f32 %v1394, 0.0
        %v1636 = vmax.f32 %v1396, 0.0
        %v1637 = vmax.f32 %v1507, 0.0
        %v1638 = vmax.f32 %v1509, 0.0
        %v1639 = vmax.f32 %v946, 0.0
        %v1640 = vmax.f32 %v948, 0.0
        %v1641 = vmax.f32 %v1059, 0.0
        %v1642 = vmax.f32 %v1061, 0.0
        %v1643 = vmax.f32 %v1172, 0.0
        %v1644 = vmax.f32 %v1174, 0.0
        %v1645 = vmax.f32 %v1285, 0.0
        %v1646 = vmax.f32 %v1287, 0.0
        %v1647 = vmax.f32 %v1398, 0.0
        %v1648 = vmax.f32 %v1400, 0.0
        %v1649 = vmax.f32 %v1511, 0.0
        %v1650 = vmax.f32 %v1513, 0.0
        %v1651 = vmax.f32 %v952, 0.0
        %v1652 = vmax.f32 %v954, 0.0
        %v1653 = vmax.f32 %v1065, 0.0
        %v1654 = vmax.f32 %v1067, 0.0
        %v1655 = vmax.f32 %v1178, 0.0
        %v1656 = vmax.f32 %v1180, 0.0
        %v1657 = vmax.f32 %v1291, 0.0
        %v1658 = vmax.f32 %v1293, 0.0
        %v1659 = vmax.f32 %v1404, 0.0
        %v1660 = vmax.f32 %v1406, 0.0
        %v1661 = vmax.f32 %v1517, 0.0
        %v1662 = vmax.f32 %v1519, 0.0
        %v1663 = vmax.f32 %v956, 0.0
        %v1664 = vmax.f32 %v958, 0.0
        %v1665 = vmax.f32 %v1069, 0.0
        %v1666 = vmax.f32 %v1071, 0.0
        %v1667 = vmax.f32 %v1182, 0.0
        %v1668 = vmax.f32 %v1184, 0.0
        %v1669 = vmax.f32 %v1295, 0.0
        %v1670 = vmax.f32 %v1297, 0.0
        %v1671 = vmax.f32 %v1408, 0.0
        %v1672 = vmax.f32 %v1410, 0.0
        %v1673 = vmax.f32 %v1521, 0.0
        %v1674 = vmax.f32 %v1523, 0.0
        %v1675 = vmax.f32 %v962, 0.0
        %v1676 = vmax.f32 %v964, 0.0
        %v1677 = vmax.f32 %v1075, 0.0
        %v1678 = vmax.f32 %v1077, 0.0
        %v1679 = vmax.f32 %v1188, 0.0
        %v1680 = vmax.f32 %v1190, 0.0
        %v1681 = vmax.f32 %v1301, 0.0
        %v1682 = vmax.f32 %v1303, 0.0
        %v1683 = vmax.f32 %v1414, 0.0
        %v1684 = vmax.f32 %v1416, 0.0
        %v1685 = vmax.f32 %v1527, 0.0
        %v1686 = vmax.f32 %v1529, 0.0
        %v1687 = vmax.f32 %v966, 0.0
        %v1688 = vmax.f32 %v968, 0.0
        %v1689 = vmax.f32 %v1079, 0.0
        %v1690 = vmax.f32 %v1081, 0.0
        %v1691 = vmax.f32 %v1192, 0.0
        %v1692 = vmax.f32 %v1194, 0.0
        %v1693 = vmax.f32 %v1305, 0.0
        %v1694 = vmax.f32 %v1307, 0.0
        %v1695 = vmax.f32 %v1418, 0.0
        %v1696 = vmax.f32 %v1420, 0.0
        %v1697 = vmax.f32 %v1531, 0.0
        %v1698 = vmax.f32 %v1533, 0.0
        %v1699 = vmax.f32 %v972, 0.0
        %v1700 = vmax.f32 %v974, 0.0
        %v1701 = vmax.f32 %v1085, 0.0
        %v1702 = vmax.f32 %v1087, 0.0
        %v1703 = vmax.f32 %v1198, 0.0
        %v1704 = vmax.f32 %v1200, 0.0
        %v1705 = vmax.f32 %v1311, 0.0
        %v1706 = vmax.f32 %v1313, 0.0
        %v1707 = vmax.f32 %v1424, 0.0
        %v1708 = vmax.f32 %v1426, 0.0
        %v1709 = vmax.f32 %v1537, 0.0
        %v1710 = vmax.f32 %v1539, 0.0
        %v1711 = vmax.f32 %v976, 0.0
        %v1712 = vmax.f32 %v978, 0.0
        %v1713 = vmax.f32 %v1089, 0.0
        %v1714 = vmax.f32 %v1091, 0.0
        %v1715 = vmax.f32 %v1202, 0.0
        %v1716 = vmax.f32 %v1204, 0.0
        %v1717 = vmax.f32 %v1315, 0.0
        %v1718 = vmax.f32 %v1317, 0.0
        %v1719 = vmax.f32 %v1428, 0.0
        %v1720 = vmax.f32 %v1430, 0.0
        %v1721 = vmax.f32 %v1541, 0.0
        %v1722 = vmax.f32 %v1543, 0.0
        %v1723 = vmax.f32 %v982, 0.0
        %v1724 = vmax.f32 %v984, 0.0
        %v1725 = vmax.f32 %v1095, 0.0
        %v1726 = vmax.f32 %v1097, 0.0
        %v1727 = vmax.f32 %v1208, 0.0
        %v1728 = vmax.f32 %v1210, 0.0
        %v1729 = vmax.f32 %v1321, 0.0
        %v1730 = vmax.f32 %v1323, 0.0
        %v1731 = vmax.f32 %v1434, 0.0
        %v1732 = vmax.f32 %v1436, 0.0
        %v1733 = vmax.f32 %v1547, 0.0
        %v1734 = vmax.f32 %v1549, 0.0
        %v1735 = vmax.f32 %v986, 0.0
        %v1736 = vmax.f32 %v988, 0.0
        %v1737 = vmax.f32 %v1099, 0.0
        %v1738 = vmax.f32 %v1101, 0.0
        %v1739 = vmax.f32 %v1212, 0.0
        %v1740 = vmax.f32 %v1214, 0.0
        %v1741 = vmax.f32 %v1325, 0.0
        %v1742 = vmax.f32 %v1327, 0.0
        %v1743 = vmax.f32 %v1438, 0.0
        %v1744 = vmax.f32 %v1440, 0.0
        %v1745 = vmax.f32 %v1551, 0.0
        %v1746 = vmax.f32 %v1553, 0.0
        %v1747 = vpack.c.bf16 %v1567, %v1555
        %v1748 = vpack.c.bf16 %v1568, %v1556
        %v1749 = vpack.c.bf16 %v1569, %v1557
        %v1750 = vpack.c.bf16 %v1570, %v1558
        %v1751 = vpack.c.bf16 %v1591, %v1579
        %v1752 = vpack.c.bf16 %v1592, %v1580
        %v1753 = vpack.c.bf16 %v1593, %v1581
        %v1754 = vpack.c.bf16 %v1594, %v1582
        %v1755 = vpack.c.bf16 %v1615, %v1603
        %v1756 = vpack.c.bf16 %v1616, %v1604
        %v1757 = vpack.c.bf16 %v1617, %v1605
        %v1758 = vpack.c.bf16 %v1618, %v1606
        %v1759 = vpack.c.bf16 %v1639, %v1627
        %v1760 = vpack.c.bf16 %v1640, %v1628
        %v1761 = vpack.c.bf16 %v1641, %v1629
        %v1762 = vpack.c.bf16 %v1642, %v1630
        %v1763 = vpack.c.bf16 %v1663, %v1651
        %v1764 = vpack.c.bf16 %v1664, %v1652
        %v1765 = vpack.c.bf16 %v1665, %v1653
        %v1766 = vpack.c.bf16 %v1666, %v1654
        %v1767 = vpack.c.bf16 %v1687, %v1675
        %v1768 = vpack.c.bf16 %v1688, %v1676
        %v1769 = vpack.c.bf16 %v1689, %v1677
        %v1770 = vpack.c.bf16 %v1690, %v1678
        %v1771 = vpack.c.bf16 %v1711, %v1699
        %v1772 = vpack.c.bf16 %v1712, %v1700
        %v1773 = vpack.c.bf16 %v1713, %v1701
        %v1774 = vpack.c.bf16 %v1714, %v1702
        %v1775 = vpack.c.bf16 %v1735, %v1723
        %v1776 = vpack.c.bf16 %v1736, %v1724
        %v1777 = vpack.c.bf16 %v1737, %v1725
        %v1778 = vpack.c.bf16 %v1738, %v1726
        %v1779 = vpack.c.bf16 %v1571, %v1559
        %v1780 = vpack.c.bf16 %v1572, %v1560
        %v1781 = vpack.c.bf16 %v1573, %v1561
        %v1782 = vpack.c.bf16 %v1574, %v1562
        %v1783 = vpack.c.bf16 %v1595, %v1583
        %v1784 = vpack.c.bf16 %v1596, %v1584
        %v1785 = vpack.c.bf16 %v1597, %v1585
        %v1786 = vpack.c.bf16 %v1598, %v1586
        %v1787 = vpack.c.bf16 %v1619, %v1607
        %v1788 = vpack.c.bf16 %v1620, %v1608
        %v1789 = vpack.c.bf16 %v1621, %v1609
        %v1790 = vpack.c.bf16 %v1622, %v1610
        %v1791 = vpack.c.bf16 %v1643, %v1631
        %v1792 = vpack.c.bf16 %v1644, %v1632
        %v1793 = vpack.c.bf16 %v1645, %v1633
        %v1794 = vpack.c.bf16 %v1646, %v1634
        %v1795 = vpack.c.bf16 %v1667, %v1655
        %v1796 = vpack.c.bf16 %v1668, %v1656
        %v1797 = vpack.c.bf16 %v1669, %v1657
        %v1798 = vpack.c.bf16 %v1670, %v1658
        %v1799 = vpack.c.bf16 %v1691, %v1679
        %v1800 = vpack.c.bf16 %v1692, %v1680
        %v1801 = vpack.c.bf16 %v1693, %v1681
        %v1802 = vpack.c.bf16 %v1694, %v1682
        %v1803 = vpack.c.bf16 %v1715, %v1703
        %v1804 = vpack.c.bf16 %v1716, %v1704
        %v1805 = vpack.c.bf16 %v1717, %v1705
        %v1806 = vpack.c.bf16 %v1718, %v1706
        %v1807 = vpack.c.bf16 %v1739, %v1727
        %v1808 = vpack.c.bf16 %v1740, %v1728
        %v1809 = vpack.c.bf16 %v1741, %v1729
        %v1810 = vpack.c.bf16 %v1742, %v1730
        %v1811 = vld [vmem:[%s5] sm:$0xff]
        %v1812 = vld [vmem:[%s5 + $0x8] sm:$0xf]
        %v1813 = vld [vmem:[%s5 + $0xc] sm:$0xff]
        %v1814 = vld [vmem:[%s5 + $0x14] sm:$0xf]
        %v1815 = vld [vmem:[%s5 + $0x18] sm:$0xff]
        %v1816 = vld [vmem:[%s5 + $0x20] sm:$0xf]
        %v1817 = vld [vmem:[%s5 + $0x24] sm:$0xff]
        %v1818 = vld [vmem:[%s5 + $0x2c] sm:$0xf]
        %v1819 = vld [vmem:[%s5 + $0x30] sm:$0xff]
        %v1820 = vld [vmem:[%s5 + $0x38] sm:$0xf]
        %v1821 = vld [vmem:[%s5 + $0x3c] sm:$0xff]
        %v1822 = vld [vmem:[%s5 + $0x44] sm:$0xf]
        %v1823 = vld [vmem:[%s5 + $0x48] sm:$0xff]
        %v1824 = vld [vmem:[%s5 + $0x50] sm:$0xf]
        %v1825 = vld [vmem:[%s5 + $0x54] sm:$0xff]
        %v1826 = vld [vmem:[%s5 + $0x5c] sm:$0xf]
        %v1827 = vld [vmem:[%s5 + $0x60] sm:$0xff]
        %v1828 = vld [vmem:[%s5 + $0x68] sm:$0xf]
        %v1829 = vld [vmem:[%s5 + $0x6c] sm:$0xff]
        %v1830 = vld [vmem:[%s5 + $0x74] sm:$0xf]
        %v1831 = vld [vmem:[%s5 + $0x78] sm:$0xff]
        %v1832 = vld [vmem:[%s5 + $0x80] sm:$0xf]
        %v1833 = vld [vmem:[%s5 + $0x84] sm:$0xff]
        %v1834 = vld [vmem:[%s5 + $0x8c] sm:$0xf]
        %v1835 = vld [vmem:[%s5 + $0x90] sm:$0xff]
        %v1836 = vld [vmem:[%s5 + $0x98] sm:$0xf]
        %v1837 = vld [vmem:[%s5 + $0x9c] sm:$0xff]
        %v1838 = vld [vmem:[%s5 + $0xa4] sm:$0xf]
        %v1839 = vld [vmem:[%s5 + $0xa8] sm:$0xff]
        %v1840 = vld [vmem:[%s5 + $0xb0] sm:$0xf]
        %v1841 = vld [vmem:[%s5 + $0xb4] sm:$0xff]
        %v1842 = vld [vmem:[%s5 + $0xbc] sm:$0xf]
        %v1843 = vld [vmem:[%s5 + $0xc0] sm:$0xff]
        %v1844 = vld [vmem:[%s5 + $0xc8] sm:$0xf]
        %v1845 = vld [vmem:[%s5 + $0xcc] sm:$0xff]
        %v1846 = vld [vmem:[%s5 + $0xd4] sm:$0xf]
        %v1847 = vld [vmem:[%s5 + $0xd8] sm:$0xff]
        %v1848 = vld [vmem:[%s5 + $0xe0] sm:$0xf]
        %v1849 = vld [vmem:[%s5 + $0xe4] sm:$0xff]
        %v1850 = vld [vmem:[%s5 + $0xec] sm:$0xf]
        %v1851 = vld [vmem:[%s5 + $0xf0] sm:$0xff]
        %v1852 = vld [vmem:[%s5 + $0xf8] sm:$0xf]
        %v1853 = vld [vmem:[%s5 + $0xfc] sm:$0xff]
        %v1854 = vld [vmem:[%s5 + $0x104] sm:$0xf]
        %v1855 = vld [vmem:[%s5 + $0x108] sm:$0xff]
        %v1856 = vld [vmem:[%s5 + $0x110] sm:$0xf]
        %v1857 = vld [vmem:[%s5 + $0x114] sm:$0xff]
        %v1858 = vld [vmem:[%s5 + $0x11c] sm:$0xf]
        %v1859 = vld [vmem:[%s5 + $0x120] sm:$0xff]
        %v1860 = vld [vmem:[%s5 + $0x128] sm:$0xf]
        %v1861 = vld [vmem:[%s5 + $0x12c] sm:$0xff]
        %v1862 = vld [vmem:[%s5 + $0x134] sm:$0xf]
        %v1863 = vld [vmem:[%s5 + $0x138] sm:$0xff]
        %v1864 = vld [vmem:[%s5 + $0x140] sm:$0xf]
        %v1865 = vld [vmem:[%s5 + $0x144] sm:$0xff]
        %v1866 = vld [vmem:[%s5 + $0x14c] sm:$0xf]
        %v1867 = vld [vmem:[%s5 + $0x150] sm:$0xff]
        %v1868 = vld [vmem:[%s5 + $0x158] sm:$0xf]
        %v1869 = vld [vmem:[%s5 + $0x15c] sm:$0xff]
        %v1870 = vld [vmem:[%s5 + $0x164] sm:$0xf]
        %v1871 = vld [vmem:[%s5 + $0x168] sm:$0xff]
        %v1872 = vld [vmem:[%s5 + $0x170] sm:$0xf]
        %v1873 = vld [vmem:[%s5 + $0x174] sm:$0xff]
        %v1874 = vld [vmem:[%s5 + $0x17c] sm:$0xf]
        %v1875 = vld [vmem:[%s5 + $0x180] sm:$0xff]
        %v1876 = vld [vmem:[%s5 + $0x188] sm:$0xf]
        %v1877 = vld [vmem:[%s5 + $0x18c] sm:$0xff]
        %v1878 = vld [vmem:[%s5 + $0x194] sm:$0xf]
        %v1879 = vld [vmem:[%s5 + $0x198] sm:$0xff]
        %v1880 = vld [vmem:[%s5 + $0x1a0] sm:$0xf]
        %v1881 = vld [vmem:[%s5 + $0x1a4] sm:$0xff]
        %v1882 = vld [vmem:[%s5 + $0x1ac] sm:$0xf]
        %v1883 = vld [vmem:[%s5 + $0x1b0] sm:$0xff]
        %v1884 = vld [vmem:[%s5 + $0x1b8] sm:$0xf]
        %v1885 = vld [vmem:[%s5 + $0x1bc] sm:$0xff]
        %v1886 = vld [vmem:[%s5 + $0x1c4] sm:$0xf]
        %v1887 = vld [vmem:[%s5 + $0x1c8] sm:$0xff]
        %v1888 = vld [vmem:[%s5 + $0x1d0] sm:$0xf]
        %v1889 = vld [vmem:[%s5 + $0x1d4] sm:$0xff]
        %v1890 = vld [vmem:[%s5 + $0x1dc] sm:$0xf]
        %v1891 = vld [vmem:[%s5 + $0x1e0] sm:$0xff]
        %v1892 = vld [vmem:[%s5 + $0x1e8] sm:$0xf]
        %v1893 = vld [vmem:[%s5 + $0x1ec] sm:$0xff]
        %v1894 = vld [vmem:[%s5 + $0x1f4] sm:$0xf]
        %v1895 = vld [vmem:[%s5 + $0x1f8] sm:$0xff]
        %v1896 = vld [vmem:[%s5 + $0x200] sm:$0xf]
        %v1897 = vld [vmem:[%s5 + $0x204] sm:$0xff]
        %v1898 = vld [vmem:[%s5 + $0x20c] sm:$0xf]
        %v1899 = vld [vmem:[%s5 + $0x210] sm:$0xff]
        %v1900 = vld [vmem:[%s5 + $0x218] sm:$0xf]
        %v1901 = vld [vmem:[%s5 + $0x21c] sm:$0xff]
        %v1902 = vld [vmem:[%s5 + $0x224] sm:$0xf]
        %v1903 = vld [vmem:[%s5 + $0x228] sm:$0xff]
        %v1904 = vld [vmem:[%s5 + $0x230] sm:$0xf]
        %v1905 = vld [vmem:[%s5 + $0x234] sm:$0xff]
        %v1906 = vld [vmem:[%s5 + $0x23c] sm:$0xf]
        %v1907 = vld [vmem:[%s5 + $0x240] sm:$0xff]
        %v1908 = vld [vmem:[%s5 + $0x248] sm:$0xf]
        %v1909 = vld [vmem:[%s5 + $0x24c] sm:$0xff]
        %v1910 = vld [vmem:[%s5 + $0x254] sm:$0xf]
        %v1911 = vld [vmem:[%s5 + $0x258] sm:$0xff]
        %v1912 = vld [vmem:[%s5 + $0x260] sm:$0xf]
        %v1913 = vld [vmem:[%s5 + $0x264] sm:$0xff]
        %v1914 = vld [vmem:[%s5 + $0x26c] sm:$0xf]
        %v1915 = vld [vmem:[%s5 + $0x270] sm:$0xff]
        %v1916 = vld [vmem:[%s5 + $0x278] sm:$0xf]
        %v1917 = vld [vmem:[%s5 + $0x27c] sm:$0xff]
        %v1918 = vld [vmem:[%s5 + $0x284] sm:$0xf]
        %v1919 = vld [vmem:[%s5 + $0x288] sm:$0xff]
        %v1920 = vld [vmem:[%s5 + $0x290] sm:$0xf]
        %v1921 = vld [vmem:[%s5 + $0x294] sm:$0xff]
        %v1922 = vld [vmem:[%s5 + $0x29c] sm:$0xf]
        %v1923 = vld [vmem:[%s5 + $0x2a0] sm:$0xff]
        %v1924 = vld [vmem:[%s5 + $0x2a8] sm:$0xf]
        %v1925 = vld [vmem:[%s5 + $0x2ac] sm:$0xff]
        %v1926 = vld [vmem:[%s5 + $0x2b4] sm:$0xf]
        %v1927 = vld [vmem:[%s5 + $0x2b8] sm:$0xff]
        %v1928 = vld [vmem:[%s5 + $0x2c0] sm:$0xf]
        %v1929 = vld [vmem:[%s5 + $0x2c4] sm:$0xff]
        %v1930 = vld [vmem:[%s5 + $0x2cc] sm:$0xf]
        %v1931 = vld [vmem:[%s5 + $0x2d0] sm:$0xff]
        %v1932 = vld [vmem:[%s5 + $0x2d8] sm:$0xf]
        %v1933 = vld [vmem:[%s5 + $0x2dc] sm:$0xff]
        %v1934 = vld [vmem:[%s5 + $0x2e4] sm:$0xf]
        %v1935 = vld [vmem:[%s5 + $0x2e8] sm:$0xff]
        %v1936 = vld [vmem:[%s5 + $0x2f0] sm:$0xf]
        %v1937 = vld [vmem:[%s5 + $0x2f4] sm:$0xff]
        %v1938 = vld [vmem:[%s5 + $0x2fc] sm:$0xf]
        %v1939 = vld [vmem:[#allocation7] sm:$0x7]
        %v1941 = vlaneseq
        %v1942 = vshrl.u32 %v1941, 7
        %v1943 = vsub.s32 0, %v1942
        %v1944 = vrot.slane %v1939, %v1943
        %v1945 = vlaneseq
        %v1946 = vshrl.u32 %v1945, 7
        %v1947 = vsub.s32 1, %v1946
        %v1948 = vrot.slane %v1939, %v1947
        %v1949 = vlaneseq
        %v1950 = vshrl.u32 %v1949, 7
        %v1951 = vsub.s32 2, %v1950
        %v1952 = vrot.slane %v1939, %v1951
        %v2084 = vunpack.c.l.b16 %v1811
        %v2085 = vunpack.c.h.b16 %v1811
        %v2086 = vunpack.c.l.b16 %v1812
        %v2087 = vunpack.c.l.b16 %v1813
        %v2088 = vunpack.c.h.b16 %v1813
        %v2089 = vunpack.c.l.b16 %v1814
        %v2090 = vunpack.c.l.b16 %v1815
        %v2091 = vunpack.c.h.b16 %v1815
        %v2092 = vunpack.c.l.b16 %v1816
        %v2093 = vunpack.c.l.b16 %v1817
        %v2094 = vunpack.c.h.b16 %v1817
        %v2095 = vunpack.c.l.b16 %v1818
        %v2096 = vunpack.c.l.b16 %v1819
        %v2097 = vunpack.c.h.b16 %v1819
        %v2098 = vunpack.c.l.b16 %v1820
        %v2099 = vunpack.c.l.b16 %v1821
        %v2100 = vunpack.c.h.b16 %v1821
        %v2101 = vunpack.c.l.b16 %v1822
        %v2102 = vunpack.c.l.b16 %v1823
        %v2103 = vunpack.c.h.b16 %v1823
        %v2104 = vunpack.c.l.b16 %v1824
        %v2105 = vunpack.c.l.b16 %v1825
        %v2106 = vunpack.c.h.b16 %v1825
        %v2107 = vunpack.c.l.b16 %v1826
        %v2108 = vunpack.c.l.b16 %v1827
        %v2109 = vunpack.c.h.b16 %v1827
        %v2110 = vunpack.c.l.b16 %v1828
        %v2111 = vunpack.c.l.b16 %v1829
        %v2112 = vunpack.c.h.b16 %v1829
        %v2113 = vunpack.c.l.b16 %v1830
        %v2114 = vunpack.c.l.b16 %v1831
        %v2115 = vunpack.c.h.b16 %v1831
        %v2116 = vunpack.c.l.b16 %v1832
        %v2117 = vunpack.c.l.b16 %v1833
        %v2118 = vunpack.c.h.b16 %v1833
        %v2119 = vunpack.c.l.b16 %v1834
        %v2120 = vunpack.c.l.b16 %v1835
        %v2121 = vunpack.c.h.b16 %v1835
        %v2122 = vunpack.c.l.b16 %v1836
        %v2123 = vunpack.c.l.b16 %v1837
        %v2124 = vunpack.c.h.b16 %v1837
        %v2125 = vunpack.c.l.b16 %v1838
        %v2126 = vunpack.c.l.b16 %v1839
        %v2127 = vunpack.c.h.b16 %v1839
        %v2128 = vunpack.c.l.b16 %v1840
        %v2129 = vunpack.c.l.b16 %v1841
        %v2130 = vunpack.c.h.b16 %v1841
        %v2131 = vunpack.c.l.b16 %v1842
        %v2132 = vunpack.c.l.b16 %v1843
        %v2133 = vunpack.c.h.b16 %v1843
        %v2134 = vunpack.c.l.b16 %v1844
        %v2135 = vunpack.c.l.b16 %v1845
        %v2136 = vunpack.c.h.b16 %v1845
        %v2137 = vunpack.c.l.b16 %v1846
        %v2138 = vunpack.c.l.b16 %v1847
        %v2139 = vunpack.c.h.b16 %v1847
        %v2140 = vunpack.c.l.b16 %v1848
        %v2141 = vunpack.c.l.b16 %v1849
        %v2142 = vunpack.c.h.b16 %v1849
        %v2143 = vunpack.c.l.b16 %v1850
        %v2144 = vunpack.c.l.b16 %v1851
        %v2145 = vunpack.c.h.b16 %v1851
        %v2146 = vunpack.c.l.b16 %v1852
        %v2147 = vunpack.c.l.b16 %v1853
        %v2148 = vunpack.c.h.b16 %v1853
        %v2149 = vunpack.c.l.b16 %v1854
        %v2150 = vunpack.c.l.b16 %v1855
        %v2151 = vunpack.c.h.b16 %v1855
        %v2152 = vunpack.c.l.b16 %v1856
        %v2153 = vunpack.c.l.b16 %v1857
        %v2154 = vunpack.c.h.b16 %v1857
        %v2155 = vunpack.c.l.b16 %v1858
        %v2156 = vunpack.c.l.b16 %v1859
        %v2157 = vunpack.c.h.b16 %v1859
        %v2158 = vunpack.c.l.b16 %v1860
        %v2159 = vunpack.c.l.b16 %v1861
        %v2160 = vunpack.c.h.b16 %v1861
        %v2161 = vunpack.c.l.b16 %v1862
        %v2162 = vunpack.c.l.b16 %v1863
        %v2163 = vunpack.c.h.b16 %v1863
        %v2164 = vunpack.c.l.b16 %v1864
        %v2165 = vunpack.c.l.b16 %v1865
        %v2166 = vunpack.c.h.b16 %v1865
        %v2167 = vunpack.c.l.b16 %v1866
        %v2168 = vunpack.c.l.b16 %v1867
        %v2169 = vunpack.c.h.b16 %v1867
        %v2170 = vunpack.c.l.b16 %v1868
        %v2171 = vunpack.c.l.b16 %v1869
        %v2172 = vunpack.c.h.b16 %v1869
        %v2173 = vunpack.c.l.b16 %v1870
        %v2174 = vunpack.c.l.b16 %v1871
        %v2175 = vunpack.c.h.b16 %v1871
        %v2176 = vunpack.c.l.b16 %v1872
        %v2177 = vunpack.c.l.b16 %v1873
        %v2178 = vunpack.c.h.b16 %v1873
        %v2179 = vunpack.c.l.b16 %v1874
        %v2180 = vunpack.c.l.b16 %v1875
        %v2181 = vunpack.c.h.b16 %v1875
        %v2182 = vunpack.c.l.b16 %v1876
        %v2183 = vunpack.c.l.b16 %v1877
        %v2184 = vunpack.c.h.b16 %v1877
        %v2185 = vunpack.c.l.b16 %v1878
        %v2186 = vunpack.c.l.b16 %v1879
        %v2187 = vunpack.c.h.b16 %v1879
        %v2188 = vunpack.c.l.b16 %v1880
        %v2189 = vunpack.c.l.b16 %v1881
        %v2190 = vunpack.c.h.b16 %v1881
        %v2191 = vunpack.c.l.b16 %v1882
        %v2192 = vunpack.c.l.b16 %v1883
        %v2193 = vunpack.c.h.b16 %v1883
        %v2194 = vunpack.c.l.b16 %v1884
        %v2195 = vunpack.c.l.b16 %v1885
        %v2196 = vunpack.c.h.b16 %v1885
        %v2197 = vunpack.c.l.b16 %v1886
        %v2198 = vunpack.c.l.b16 %v1887
        %v2199 = vunpack.c.h.b16 %v1887
        %v2200 = vunpack.c.l.b16 %v1888
        %v2201 = vunpack.c.l.b16 %v1889
        %v2202 = vunpack.c.h.b16 %v1889
        %v2203 = vunpack.c.l.b16 %v1890
        %v2204 = vunpack.c.l.b16 %v1891
        %v2205 = vunpack.c.h.b16 %v1891
        %v2206 = vunpack.c.l.b16 %v1892
        %v2207 = vunpack.c.l.b16 %v1893
        %v2208 = vunpack.c.h.b16 %v1893
        %v2209 = vunpack.c.l.b16 %v1894
        %v2210 = vunpack.c.l.b16 %v1895
        %v2211 = vunpack.c.h.b16 %v1895
        %v2212 = vunpack.c.l.b16 %v1896
        %v2213 = vunpack.c.l.b16 %v1897
        %v2214 = vunpack.c.h.b16 %v1897
        %v2215 = vunpack.c.l.b16 %v1898
        %v2216 = vunpack.c.l.b16 %v1899
        %v2217 = vunpack.c.h.b16 %v1899
        %v2218 = vunpack.c.l.b16 %v1900
        %v2219 = vunpack.c.l.b16 %v1901
        %v2220 = vunpack.c.h.b16 %v1901
        %v2221 = vunpack.c.l.b16 %v1902
        %v2222 = vunpack.c.l.b16 %v1903
        %v2223 = vunpack.c.h.b16 %v1903
        %v2224 = vunpack.c.l.b16 %v1904
        %v2225 = vunpack.c.l.b16 %v1905
        %v2226 = vunpack.c.h.b16 %v1905
        %v2227 = vunpack.c.l.b16 %v1906
        %v2228 = vunpack.c.l.b16 %v1907
        %v2229 = vunpack.c.h.b16 %v1907
        %v2230 = vunpack.c.l.b16 %v1908
        %v2231 = vunpack.c.l.b16 %v1909
        %v2232 = vunpack.c.h.b16 %v1909
        %v2233 = vunpack.c.l.b16 %v1910
        %v2234 = vunpack.c.l.b16 %v1911
        %v2235 = vunpack.c.h.b16 %v1911
        %v2236 = vunpack.c.l.b16 %v1912
        %v2237 = vunpack.c.l.b16 %v1913
        %v2238 = vunpack.c.h.b16 %v1913
        %v2239 = vunpack.c.l.b16 %v1914
        %v2240 = vunpack.c.l.b16 %v1915
        %v2241 = vunpack.c.h.b16 %v1915
        %v2242 = vunpack.c.l.b16 %v1916
        %v2243 = vunpack.c.l.b16 %v1917
        %v2244 = vunpack.c.h.b16 %v1917
        %v2245 = vunpack.c.l.b16 %v1918
        %v2246 = vunpack.c.l.b16 %v1919
        %v2247 = vunpack.c.h.b16 %v1919
        %v2248 = vunpack.c.l.b16 %v1920
        %v2249 = vunpack.c.l.b16 %v1921
        %v2250 = vunpack.c.h.b16 %v1921
        %v2251 = vunpack.c.l.b16 %v1922
        %v2252 = vunpack.c.l.b16 %v1923
        %v2253 = vunpack.c.h.b16 %v1923
        %v2254 = vunpack.c.l.b16 %v1924
        %v2255 = vunpack.c.l.b16 %v1925
        %v2256 = vunpack.c.h.b16 %v1925
        %v2257 = vunpack.c.l.b16 %v1926
        %v2258 = vunpack.c.l.b16 %v1927
        %v2259 = vunpack.c.h.b16 %v1927
        %v2260 = vunpack.c.l.b16 %v1928
        %v2261 = vunpack.c.l.b16 %v1929
        %v2262 = vunpack.c.h.b16 %v1929
        %v2263 = vunpack.c.l.b16 %v1930
        %v2264 = vunpack.c.l.b16 %v1931
        %v2265 = vunpack.c.h.b16 %v1931
        %v2266 = vunpack.c.l.b16 %v1932
        %v2267 = vunpack.c.l.b16 %v1933
        %v2268 = vunpack.c.h.b16 %v1933
        %v2269 = vunpack.c.l.b16 %v1934
        %v2270 = vunpack.c.l.b16 %v1935
        %v2271 = vunpack.c.h.b16 %v1935
        %v2272 = vunpack.c.l.b16 %v1936
        %v2273 = vunpack.c.l.b16 %v1937
        %v2274 = vunpack.c.h.b16 %v1937
        %v2275 = vunpack.c.l.b16 %v1938
        %v2276 = vpack.c.b16 %v2087, %v2084
        %v2277 = vpack.c.b16 %v2088, %v2085
        %v2278 = vpack.c.b16 %v2089, %v2086
        %v2279 = vpack.c.b16 %v2093, %v2090
        %v2280 = vpack.c.b16 %v2094, %v2091
        %v2281 = vpack.c.b16 %v2095, %v2092
        %v2282 = vpack.c.b16 %v2099, %v2096
        %v2283 = vpack.c.b16 %v2100, %v2097
        %v2284 = vpack.c.b16 %v2101, %v2098
        %v2285 = vpack.c.b16 %v2105, %v2102
        %v2286 = vpack.c.b16 %v2106, %v2103
        %v2287 = vpack.c.b16 %v2107, %v2104
        %v2288 = vpack.c.b16 %v2111, %v2108
        %v2289 = vpack.c.b16 %v2112, %v2109
        %v2290 = vpack.c.b16 %v2113, %v2110
        %v2291 = vpack.c.b16 %v2117, %v2114
        %v2292 = vpack.c.b16 %v2118, %v2115
        %v2293 = vpack.c.b16 %v2119, %v2116
        %v2294 = vpack.c.b16 %v2123, %v2120
        %v2295 = vpack.c.b16 %v2124, %v2121
        %v2296 = vpack.c.b16 %v2125, %v2122
        %v2297 = vpack.c.b16 %v2129, %v2126
        %v2298 = vpack.c.b16 %v2130, %v2127
        %v2299 = vpack.c.b16 %v2131, %v2128
        %v2300 = vpack.c.b16 %v2135, %v2132
        %v2301 = vpack.c.b16 %v2136, %v2133
        %v2302 = vpack.c.b16 %v2137, %v2134
        %v2303 = vpack.c.b16 %v2141, %v2138
        %v2304 = vpack.c.b16 %v2142, %v2139
        %v2305 = vpack.c.b16 %v2143, %v2140
        %v2306 = vpack.c.b16 %v2147, %v2144
        %v2307 = vpack.c.b16 %v2148, %v2145
        %v2308 = vpack.c.b16 %v2149, %v2146
        %v2309 = vpack.c.b16 %v2153, %v2150
        %v2310 = vpack.c.b16 %v2154, %v2151
        %v2311 = vpack.c.b16 %v2155, %v2152
        %v2312 = vpack.c.b16 %v2159, %v2156
        %v2313 = vpack.c.b16 %v2160, %v2157
        %v2314 = vpack.c.b16 %v2161, %v2158
        %v2315 = vpack.c.b16 %v2165, %v2162
        %v2316 = vpack.c.b16 %v2166, %v2163
        %v2317 = vpack.c.b16 %v2167, %v2164
        %v2318 = vpack.c.b16 %v2171, %v2168
        %v2319 = vpack.c.b16 %v2172, %v2169
        %v2320 = vpack.c.b16 %v2173, %v2170
        %v2321 = vpack.c.b16 %v2177, %v2174
        %v2322 = vpack.c.b16 %v2178, %v2175
        %v2323 = vpack.c.b16 %v2179, %v2176
        %v2324 = vpack.c.b16 %v2183, %v2180
        %v2325 = vpack.c.b16 %v2184, %v2181
        %v2326 = vpack.c.b16 %v2185, %v2182
        %v2327 = vpack.c.b16 %v2189, %v2186
        %v2328 = vpack.c.b16 %v2190, %v2187
        %v2329 = vpack.c.b16 %v2191, %v2188
        %v2330 = vpack.c.b16 %v2195, %v2192
        %v2331 = vpack.c.b16 %v2196, %v2193
        %v2332 = vpack.c.b16 %v2197, %v2194
        %v2333 = vpack.c.b16 %v2201, %v2198
        %v2334 = vpack.c.b16 %v2202, %v2199
        %v2335 = vpack.c.b16 %v2203, %v2200
        %v2336 = vpack.c.b16 %v2207, %v2204
        %v2337 = vpack.c.b16 %v2208, %v2205
        %v2338 = vpack.c.b16 %v2209, %v2206
        %v2339 = vpack.c.b16 %v2213, %v2210
        %v2340 = vpack.c.b16 %v2214, %v2211
        %v2341 = vpack.c.b16 %v2215, %v2212
        %v2342 = vpack.c.b16 %v2219, %v2216
        %v2343 = vpack.c.b16 %v2220, %v2217
        %v2344 = vpack.c.b16 %v2221, %v2218
        %v2345 = vpack.c.b16 %v2225, %v2222
        %v2346 = vpack.c.b16 %v2226, %v2223
        %v2347 = vpack.c.b16 %v2227, %v2224
        %v2348 = vpack.c.b16 %v2231, %v2228
        %v2349 = vpack.c.b16 %v2232, %v2229
        %v2350 = vpack.c.b16 %v2233, %v2230
        %v2351 = vpack.c.b16 %v2237, %v2234
        %v2352 = vpack.c.b16 %v2238, %v2235
        %v2353 = vpack.c.b16 %v2239, %v2236
        %v2354 = vpack.c.b16 %v2243, %v2240
        %v2355 = vpack.c.b16 %v2244, %v2241
        %v2356 = vpack.c.b16 %v2245, %v2242
        %v2357 = vpack.c.b16 %v2249, %v2246
        %v2358 = vpack.c.b16 %v2250, %v2247
        %v2359 = vpack.c.b16 %v2251, %v2248
        %v2360 = vpack.c.b16 %v2255, %v2252
        %v2361 = vpack.c.b16 %v2256, %v2253
        %v2362 = vpack.c.b16 %v2257, %v2254
        %v2363 = vpack.c.b16 %v2261, %v2258
        %v2364 = vpack.c.b16 %v2262, %v2259
        %v2365 = vpack.c.b16 %v2263, %v2260
        %v2366 = vpack.c.b16 %v2267, %v2264
        %v2367 = vpack.c.b16 %v2268, %v2265
        %v2368 = vpack.c.b16 %v2269, %v2266
        %v2369 = vpack.c.b16 %v2273, %v2270
        %v2370 = vpack.c.b16 %v2274, %v2271
        %v2371 = vpack.c.b16 %v2275, %v2272
        %2468 = vmatprep.subr.bf16.mxu0 %v2277
        %2469 = vmatpush1.bf16.msra.mxu0 %v2276
        %2470 = vmatprep.subr.bf16.mxu0 %v2280
        %2471 = vmatpush1.bf16.msra.mxu0 %v2279
        %2472 = vmatprep.subr.bf16.mxu0 %v2283
        %2473 = vmatpush1.bf16.msra.mxu0 %v2282
        %2474 = vmatprep.subr.bf16.mxu0 %v2286
        %2475 = vmatpush1.bf16.msra.mxu0 %v2285
        %2476 = vmatprep.subr.bf16.mxu0 %v2289
        %2477 = vmatpush1.bf16.msra.mxu0 %v2288
        %2478 = vmatprep.subr.bf16.mxu0 %v2292
        %2479 = vmatpush1.bf16.msra.mxu0 %v2291
        %2480 = vmatprep.subr.bf16.mxu0 %v2295
        %2481 = vmatpush1.bf16.msra.mxu0 %v2294
        %2482 = vmatprep.subr.bf16.mxu0 %v2298
        %2483 = vmatpush1.bf16.msra.mxu0 %v2297
        %2484 = vmatprep.subr.bf16.mxu0 %v2301
        %2485 = vmatpush1.bf16.msra.mxu0 %v2300
        %2486 = vmatprep.subr.bf16.mxu0 %v2304
        %2487 = vmatpush1.bf16.msra.mxu0 %v2303
        %2488 = vmatprep.subr.bf16.mxu0 %v2307
        %2489 = vmatpush1.bf16.msra.mxu0 %v2306
        %2490 = vmatprep.subr.bf16.mxu0 %v2310
        %2491 = vmatpush1.bf16.msra.mxu0 %v2309
        %2492 = vmatprep.subr.bf16.mxu0 %v2313
        %2493 = vmatpush1.bf16.msra.mxu0 %v2312
        %2494 = vmatprep.subr.bf16.mxu0 %v2316
        %2495 = vmatpush1.bf16.msra.mxu0 %v2315
        %2496 = vmatprep.subr.bf16.mxu0 %v2319
        %2497 = vmatpush1.bf16.msra.mxu0 %v2318
        %2498 = vmatprep.subr.bf16.mxu0 %v2322
        %2499 = vmatpush1.bf16.msra.mxu0 %v2321
        %2500 = vmatprep.mubr.bf16.mxu0 %v1748
        %2501 = vmatmul.mubr.bf16.gmra.mrb[0].mxu0 %v1747
        %v2502 = vpop.f32.mrb[0].mxu0
        %v2503 = vadd.f32 %v1944, %v2502
        %v2504 = vpop.f32.mrb[0].mxu0
        %v2505 = vadd.f32 %v1948, %v2504
        %v2506 = vpop.f32.mrb[0].mxu0
        %v2507 = vadd.f32 %v1944, %v2506
        %v2508 = vpop.f32.mrb[0].mxu0
        %v2509 = vadd.f32 %v1948, %v2508
        %2510 = vmatprep.mubr.bf16.mxu0 %v1752
        %2511 = vmatmul.mubr.bf16.gmra.mrb[0].mxu0 %v1751
        %v2512 = vpop.f32.mrb[0].mxu0
        %v2513 = vadd.f32 %v1944, %v2512
        %v2514 = vpop.f32.mrb[0].mxu0
        %v2515 = vadd.f32 %v1948, %v2514
        %v2516 = vpop.f32.mrb[0].mxu0
        %v2517 = vadd.f32 %v1944, %v2516
        %v2518 = vpop.f32.mrb[0].mxu0
        %v2519 = vadd.f32 %v1948, %v2518
        %2520 = vmatprep.mubr.bf16.mxu0 %v1756
        %2521 = vmatmul.mubr.bf16.gmra.mrb[0].mxu0 %v1755
        %v2522 = vpop.f32.mrb[0].mxu0
        %v2523 = vadd.f32 %v1944, %v2522
        %v2524 = vpop.f32.mrb[0].mxu0
        %v2525 = vadd.f32 %v1948, %v2524
        %v2526 = vpop.f32.mrb[0].mxu0
        %v2527 = vadd.f32 %v1944, %v2526
        %v2528 = vpop.f32.mrb[0].mxu0
        %v2529 = vadd.f32 %v1948, %v2528
        %2530 = vmatprep.mubr.bf16.mxu0 %v1760
        %2531 = vmatmul.mubr.bf16.gmra.mrb[0].mxu0 %v1759
        %v2532 = vpop.f32.mrb[0].mxu0
        %v2533 = vadd.f32 %v1944, %v2532
        %v2534 = vpop.f32.mrb[0].mxu0
        %v2535 = vadd.f32 %v1948, %v2534
        %v2536 = vpop.f32.mrb[0].mxu0
        %v2537 = vadd.f32 %v1944, %v2536
        %v2538 = vpop.f32.mrb[0].mxu0
        %v2539 = vadd.f32 %v1948, %v2538
        %2540 = vmatprep.mubr.bf16.mxu0 %v1764
        %2541 = vmatmul.mubr.bf16.gmra.mrb[0].mxu0 %v1763
        %v2542 = vpop.f32.mrb[0].mxu0
        %v2543 = vadd.f32 %v1944, %v2542
        %v2544 = vpop.f32.mrb[0].mxu0
        %v2545 = vadd.f32 %v1948, %v2544
        %v2546 = vpop.f32.mrb[0].mxu0
        %v2547 = vadd.f32 %v1944, %v2546
        %v2548 = vpop.f32.mrb[0].mxu0
        %v2549 = vadd.f32 %v1948, %v2548
        %2550 = vmatprep.mubr.bf16.mxu0 %v1768
        %2551 = vmatmul.mubr.bf16.gmra.mrb[0].mxu0 %v1767
        %v2552 = vpop.f32.mrb[0].mxu0
        %v2553 = vadd.f32 %v1944, %v2552
        %v2554 = vpop.f32.mrb[0].mxu0
        %v2555 = vadd.f32 %v1948, %v2554
        %v2556 = vpop.f32.mrb[0].mxu0
        %v2557 = vadd.f32 %v1944, %v2556
        %v2558 = vpop.f32.mrb[0].mxu0
        %v2559 = vadd.f32 %v1948, %v2558
        %2560 = vmatprep.mubr.bf16.mxu0 %v1772
        %2561 = vmatmul.mubr.bf16.gmra.mrb[0].mxu0 %v1771
        %v2562 = vpop.f32.mrb[0].mxu0
        %v2563 = vadd.f32 %v1944, %v2562
        %v2564 = vpop.f32.mrb[0].mxu0
        %v2565 = vadd.f32 %v1948, %v2564
        %v2566 = vpop.f32.mrb[0].mxu0
        %v2567 = vadd.f32 %v1944, %v2566
        %v2568 = vpop.f32.mrb[0].mxu0
        %v2569 = vadd.f32 %v1948, %v2568
        %2570 = vmatprep.mubr.bf16.mxu0 %v1776
        %2571 = vmatmul.mubr.bf16.gmra.mrb[0].mxu0 %v1775
        %v2572 = vpop.f32.mrb[0].mxu0
        %v2573 = vadd.f32 %v1944, %v2572
        %v2574 = vpop.f32.mrb[0].mxu0
        %v2575 = vadd.f32 %v1948, %v2574
        %v2576 = vpop.f32.mrb[0].mxu0
        %v2577 = vadd.f32 %v1944, %v2576
        %v2578 = vpop.f32.mrb[0].mxu0
        %v2579 = vadd.f32 %v1948, %v2578
        %2580 = vdwg.mxu0
        %2581 = vmatprep.subr.bf16.mxu0 %v2325
        %2582 = vmatpush1.bf16.msra.mxu0 %v2324
        %2583 = vmatprep.subr.bf16.mxu0 %v2328
        %2584 = vmatpush1.bf16.msra.mxu0 %v2327
        %2585 = vmatprep.subr.bf16.mxu0 %v2331
        %2586 = vmatpush1.bf16.msra.mxu0 %v2330
        %2587 = vmatprep.subr.bf16.mxu0 %v2334
        %2588 = vmatpush1.bf16.msra.mxu0 %v2333
        %2589 = vmatprep.subr.bf16.mxu0 %v2337
        %2590 = vmatpush1.bf16.msra.mxu0 %v2336
        %2591 = vmatprep.subr.bf16.mxu0 %v2340
        %2592 = vmatpush1.bf16.msra.mxu0 %v2339
        %2593 = vmatprep.subr.bf16.mxu0 %v2343
        %2594 = vmatpush1.bf16.msra.mxu0 %v2342
        %2595 = vmatprep.subr.bf16.mxu0 %v2346
        %2596 = vmatpush1.bf16.msra.mxu0 %v2345
        %2597 = vmatprep.subr.bf16.mxu0 %v2349
        %2598 = vmatpush1.bf16.msra.mxu0 %v2348
        %2599 = vmatprep.subr.bf16.mxu0 %v2352
        %2600 = vmatpush1.bf16.msra.mxu0 %v2351
        %2601 = vmatprep.subr.bf16.mxu0 %v2355
        %2602 = vmatpush1.bf16.msra.mxu0 %v2354
        %2603 = vmatprep.subr.bf16.mxu0 %v2358
        %2604 = vmatpush1.bf16.msra.mxu0 %v2357
        %2605 = vmatprep.subr.bf16.mxu0 %v2361
        %2606 = vmatpush1.bf16.msra.mxu0 %v2360
        %2607 = vmatprep.subr.bf16.mxu0 %v2364
        %2608 = vmatpush1.bf16.msra.mxu0 %v2363
        %2609 = vmatprep.subr.bf16.mxu0 %v2367
        %2610 = vmatpush1.bf16.msra.mxu0 %v2366
        %2611 = vmatprep.subr.bf16.mxu0 %v2370
        %2612 = vmatpush1.bf16.msra.mxu0 %v2369
        %2613 = vmatprep.mubr.bf16.mxu0 %v1750
        %2614 = vmatmul.mubr.bf16.gmra.mrb[0].mxu0 %v1749
        %v2615 = vpop.f32.mrb[0].mxu0
        %v2616 = vadd.f32 %v2503, %v2615
        %v2617 = vpop.f32.mrb[0].mxu0
        %v2618 = vadd.f32 %v2505, %v2617
        %v2619 = vpop.f32.mrb[0].mxu0
        %v2620 = vadd.f32 %v2507, %v2619
        %v2621 = vpop.f32.mrb[0].mxu0
        %v2622 = vadd.f32 %v2509, %v2621
        %2623 = vmatprep.mubr.bf16.mxu0 %v1754
        %2624 = vmatmul.mubr.bf16.gmra.mrb[0].mxu0 %v1753
        %v2625 = vpop.f32.mrb[0].mxu0
        %v2626 = vadd.f32 %v2513, %v2625
        %v2627 = vpop.f32.mrb[0].mxu0
        %v2628 = vadd.f32 %v2515, %v2627
        %v2629 = vpop.f32.mrb[0].mxu0
        %v2630 = vadd.f32 %v2517, %v2629
        %v2631 = vpop.f32.mrb[0].mxu0
        %v2632 = vadd.f32 %v2519, %v2631
        %2633 = vmatprep.mubr.bf16.mxu0 %v1758
        %2634 = vmatmul.mubr.bf16.gmra.mrb[0].mxu0 %v1757
        %v2635 = vpop.f32.mrb[0].mxu0
        %v2636 = vadd.f32 %v2523, %v2635
        %v2637 = vpop.f32.mrb[0].mxu0
        %v2638 = vadd.f32 %v2525, %v2637
        %v2639 = vpop.f32.mrb[0].mxu0
        %v2640 = vadd.f32 %v2527, %v2639
        %v2641 = vpop.f32.mrb[0].mxu0
        %v2642 = vadd.f32 %v2529, %v2641
        %2643 = vmatprep.mubr.bf16.mxu0 %v1762
        %2644 = vmatmul.mubr.bf16.gmra.mrb[0].mxu0 %v1761
        %v2645 = vpop.f32.mrb[0].mxu0
        %v2646 = vadd.f32 %v2533, %v2645
        %v2647 = vpop.f32.mrb[0].mxu0
        %v2648 = vadd.f32 %v2535, %v2647
        %v2649 = vpop.f32.mrb[0].mxu0
        %v2650 = vadd.f32 %v2537, %v2649
        %v2651 = vpop.f32.mrb[0].mxu0
        %v2652 = vadd.f32 %v2539, %v2651
        %2653 = vmatprep.mubr.bf16.mxu0 %v1766
        %2654 = vmatmul.mubr.bf16.gmra.mrb[0].mxu0 %v1765
        %v2655 = vpop.f32.mrb[0].mxu0
        %v2656 = vadd.f32 %v2543, %v2655
        %v2657 = vpop.f32.mrb[0].mxu0
        %v2658 = vadd.f32 %v2545, %v2657
        %v2659 = vpop.f32.mrb[0].mxu0
        %v2660 = vadd.f32 %v2547, %v2659
        %v2661 = vpop.f32.mrb[0].mxu0
        %v2662 = vadd.f32 %v2549, %v2661
        %2663 = vmatprep.mubr.bf16.mxu0 %v1770
        %2664 = vmatmul.mubr.bf16.gmra.mrb[0].mxu0 %v1769
        %v2665 = vpop.f32.mrb[0].mxu0
        %v2666 = vadd.f32 %v2553, %v2665
        %v2667 = vpop.f32.mrb[0].mxu0
        %v2668 = vadd.f32 %v2555, %v2667
        %v2669 = vpop.f32.mrb[0].mxu0
        %v2670 = vadd.f32 %v2557, %v2669
        %v2671 = vpop.f32.mrb[0].mxu0
        %v2672 = vadd.f32 %v2559, %v2671
        %2673 = vmatprep.mubr.bf16.mxu0 %v1774
        %2674 = vmatmul.mubr.bf16.gmra.mrb[0].mxu0 %v1773
        %v2675 = vpop.f32.mrb[0].mxu0
        %v2676 = vadd.f32 %v2563, %v2675
        %v2677 = vpop.f32.mrb[0].mxu0
        %v2678 = vadd.f32 %v2565, %v2677
        %v2679 = vpop.f32.mrb[0].mxu0
        %v2680 = vadd.f32 %v2567, %v2679
        %v2681 = vpop.f32.mrb[0].mxu0
        %v2682 = vadd.f32 %v2569, %v2681
        %2683 = vmatprep.mubr.bf16.mxu0 %v1778
        %2684 = vmatmul.mubr.bf16.gmra.mrb[0].mxu0 %v1777
        %v2685 = vpop.f32.mrb[0].mxu0
        %v2686 = vadd.f32 %v2573, %v2685
        %v2687 = vpop.f32.mrb[0].mxu0
        %v2688 = vadd.f32 %v2575, %v2687
        %v2689 = vpop.f32.mrb[0].mxu0
        %v2690 = vadd.f32 %v2577, %v2689
        %v2691 = vpop.f32.mrb[0].mxu0
        %v2692 = vadd.f32 %v2579, %v2691
        %2693 = vdwg.mxu0
        %2694 = vmatprep.subr.bf16.mxu0 0
        %2695 = vmatpush1.bf16.msra.mxu0 %v2278
        %2696 = vmatprep.subr.bf16.mxu0 0
        %2697 = vmatpush1.bf16.msra.mxu0 %v2281
        %2698 = vmatprep.subr.bf16.mxu0 0
        %2699 = vmatpush1.bf16.msra.mxu0 %v2284
        %2700 = vmatprep.subr.bf16.mxu0 0
        %2701 = vmatpush1.bf16.msra.mxu0 %v2287
        %2702 = vmatprep.subr.bf16.mxu0 0
        %2703 = vmatpush1.bf16.msra.mxu0 %v2290
        %2704 = vmatprep.subr.bf16.mxu0 0
        %2705 = vmatpush1.bf16.msra.mxu0 %v2293
        %2706 = vmatprep.subr.bf16.mxu0 0
        %2707 = vmatpush1.bf16.msra.mxu0 %v2296
        %2708 = vmatprep.subr.bf16.mxu0 0
        %2709 = vmatpush1.bf16.msra.mxu0 %v2299
        %2710 = vmatprep.subr.bf16.mxu0 0
        %2711 = vmatpush1.bf16.msra.mxu0 %v2302
        %2712 = vmatprep.subr.bf16.mxu0 0
        %2713 = vmatpush1.bf16.msra.mxu0 %v2305
        %2714 = vmatprep.subr.bf16.mxu0 0
        %2715 = vmatpush1.bf16.msra.mxu0 %v2308
        %2716 = vmatprep.subr.bf16.mxu0 0
        %2717 = vmatpush1.bf16.msra.mxu0 %v2311
        %2718 = vmatprep.subr.bf16.mxu0 0
        %2719 = vmatpush1.bf16.msra.mxu0 %v2314
        %2720 = vmatprep.subr.bf16.mxu0 0
        %2721 = vmatpush1.bf16.msra.mxu0 %v2317
        %2722 = vmatprep.subr.bf16.mxu0 0
        %2723 = vmatpush1.bf16.msra.mxu0 %v2320
        %2724 = vmatprep.subr.bf16.mxu0 0
        %2725 = vmatpush1.bf16.msra.mxu0 %v2323
        %2726 = vmatprep.mubr.bf16.mxu0 %v1748
        %2727 = vmatmul.mubr.bf16.gmra.mrb[0].mxu0 %v1747
        %v2728 = vpop.f32.mrb[0].mxu0
        %v2729 = vadd.f32 %v1952, %v2728
        %v2730 = vpop.f32.mrb[0].mxu0
        %v2731 = vpop.f32.mrb[0].mxu0
        %v2732 = vadd.f32 %v1952, %v2731
        %v2733 = vpop.f32.mrb[0].mxu0
        %2734 = vmatprep.mubr.bf16.mxu0 %v1752
        %2735 = vmatmul.mubr.bf16.gmra.mrb[0].mxu0 %v1751
        %v2736 = vpop.f32.mrb[0].mxu0
        %v2737 = vadd.f32 %v1952, %v2736
        %v2738 = vpop.f32.mrb[0].mxu0
        %v2739 = vpop.f32.mrb[0].mxu0
        %v2740 = vadd.f32 %v1952, %v2739
        %v2741 = vpop.f32.mrb[0].mxu0
        %2742 = vmatprep.mubr.bf16.mxu0 %v1756
        %2743 = vmatmul.mubr.bf16.gmra.mrb[0].mxu0 %v1755
        %v2744 = vpop.f32.mrb[0].mxu0
        %v2745 = vadd.f32 %v1952, %v2744
        %v2746 = vpop.f32.mrb[0].mxu0
        %v2747 = vpop.f32.mrb[0].mxu0
        %v2748 = vadd.f32 %v1952, %v2747
        %v2749 = vpop.f32.mrb[0].mxu0
        %2750 = vmatprep.mubr.bf16.mxu0 %v1760
        %2751 = vmatmul.mubr.bf16.gmra.mrb[0].mxu0 %v1759
        %v2752 = vpop.f32.mrb[0].mxu0
        %v2753 = vadd.f32 %v1952, %v2752
        %v2754 = vpop.f32.mrb[0].mxu0
        %v2755 = vpop.f32.mrb[0].mxu0
        %v2756 = vadd.f32 %v1952, %v2755
        %v2757 = vpop.f32.mrb[0].mxu0
        %2758 = vmatprep.mubr.bf16.mxu0 %v1764
        %2759 = vmatmul.mubr.bf16.gmra.mrb[0].mxu0 %v1763
        %v2760 = vpop.f32.mrb[0].mxu0
        %v2761 = vadd.f32 %v1952, %v2760
        %v2762 = vpop.f32.mrb[0].mxu0
        %v2763 = vpop.f32.mrb[0].mxu0
        %v2764 = vadd.f32 %v1952, %v2763
        %v2765 = vpop.f32.mrb[0].mxu0
        %2766 = vmatprep.mubr.bf16.mxu0 %v1768
        %2767 = vmatmul.mubr.bf16.gmra.mrb[0].mxu0 %v1767
        %v2768 = vpop.f32.mrb[0].mxu0
        %v2769 = vadd.f32 %v1952, %v2768
        %v2770 = vpop.f32.mrb[0].mxu0
        %v2771 = vpop.f32.mrb[0].mxu0
        %v2772 = vadd.f32 %v1952, %v2771
        %v2773 = vpop.f32.mrb[0].mxu0
        %2774 = vmatprep.mubr.bf16.mxu0 %v1772
        %2775 = vmatmul.mubr.bf16.gmra.mrb[0].mxu0 %v1771
        %v2776 = vpop.f32.mrb[0].mxu0
        %v2777 = vadd.f32 %v1952, %v2776
        %v2778 = vpop.f32.mrb[0].mxu0
        %v2779 = vpop.f32.mrb[0].mxu0
        %v2780 = vadd.f32 %v1952, %v2779
        %v2781 = vpop.f32.mrb[0].mxu0
        %2782 = vmatprep.mubr.bf16.mxu0 %v1776
        %2783 = vmatmul.mubr.bf16.gmra.mrb[0].mxu0 %v1775
        %v2784 = vpop.f32.mrb[0].mxu0
        %v2785 = vadd.f32 %v1952, %v2784
        %v2786 = vpop.f32.mrb[0].mxu0
        %v2787 = vpop.f32.mrb[0].mxu0
        %v2788 = vadd.f32 %v1952, %v2787
        %v2789 = vpop.f32.mrb[0].mxu0
        %2790 = vdwg.mxu0
        %2791 = vmatprep.subr.bf16.mxu0 0
        %2792 = vmatpush1.bf16.msra.mxu0 %v2326
        %2793 = vmatprep.subr.bf16.mxu0 0
        %2794 = vmatpush1.bf16.msra.mxu0 %v2329
        %2795 = vmatprep.subr.bf16.mxu0 0
        %2796 = vmatpush1.bf16.msra.mxu0 %v2332
        %2797 = vmatprep.subr.bf16.mxu0 0
        %2798 = vmatpush1.bf16.msra.mxu0 %v2335
        %2799 = vmatprep.subr.bf16.mxu0 0
        %2800 = vmatpush1.bf16.msra.mxu0 %v2338
        %2801 = vmatprep.subr.bf16.mxu0 0
        %2802 = vmatpush1.bf16.msra.mxu0 %v2341
        %2803 = vmatprep.subr.bf16.mxu0 0
        %2804 = vmatpush1.bf16.msra.mxu0 %v2344
        %2805 = vmatprep.subr.bf16.mxu0 0
        %2806 = vmatpush1.bf16.msra.mxu0 %v2347
        %2807 = vmatprep.subr.bf16.mxu0 0
        %2808 = vmatpush1.bf16.msra.mxu0 %v2350
        %2809 = vmatprep.subr.bf16.mxu0 0
        %2810 = vmatpush1.bf16.msra.mxu0 %v2353
        %2811 = vmatprep.subr.bf16.mxu0 0
        %2812 = vmatpush1.bf16.msra.mxu0 %v2356
        %2813 = vmatprep.subr.bf16.mxu0 0
        %2814 = vmatpush1.bf16.msra.mxu0 %v2359
        %2815 = vmatprep.subr.bf16.mxu0 0
        %2816 = vmatpush1.bf16.msra.mxu0 %v2362
        %2817 = vmatprep.subr.bf16.mxu0 0
        %2818 = vmatpush1.bf16.msra.mxu0 %v2365
        %2819 = vmatprep.subr.bf16.mxu0 0
        %2820 = vmatpush1.bf16.msra.mxu0 %v2368
        %2821 = vmatprep.subr.bf16.mxu0 0
        %2822 = vmatpush1.bf16.msra.mxu0 %v2371
        %2823 = vmatprep.mubr.bf16.mxu0 %v1750
        %2824 = vmatmul.mubr.bf16.gmra.mrb[0].mxu0 %v1749
        %v2825 = vpop.f32.mrb[0].mxu0
        %v2826 = vadd.f32 %v2729, %v2825
        %v2827 = vpop.f32.mrb[0].mxu0
        %v2828 = vpop.f32.mrb[0].mxu0
        %v2829 = vadd.f32 %v2732, %v2828
        %v2830 = vpop.f32.mrb[0].mxu0
        %2831 = vmatprep.mubr.bf16.mxu0 %v1754
        %2832 = vmatmul.mubr.bf16.gmra.mrb[0].mxu0 %v1753
        %v2833 = vpop.f32.mrb[0].mxu0
        %v2834 = vadd.f32 %v2737, %v2833
        %v2835 = vpop.f32.mrb[0].mxu0
        %v2836 = vpop.f32.mrb[0].mxu0
        %v2837 = vadd.f32 %v2740, %v2836
        %v2838 = vpop.f32.mrb[0].mxu0
        %2839 = vmatprep.mubr.bf16.mxu0 %v1758
        %2840 = vmatmul.mubr.bf16.gmra.mrb[0].mxu0 %v1757
        %v2841 = vpop.f32.mrb[0].mxu0
        %v2842 = vadd.f32 %v2745, %v2841
        %v2843 = vpop.f32.mrb[0].mxu0
        %v2844 = vpop.f32.mrb[0].mxu0
        %v2845 = vadd.f32 %v2748, %v2844
        %v2846 = vpop.f32.mrb[0].mxu0
        %2847 = vmatprep.mubr.bf16.mxu0 %v1762
        %2848 = vmatmul.mubr.bf16.gmra.mrb[0].mxu0 %v1761
        %v2849 = vpop.f32.mrb[0].mxu0
        %v2850 = vadd.f32 %v2753, %v2849
        %v2851 = vpop.f32.mrb[0].mxu0
        %v2852 = vpop.f32.mrb[0].mxu0
        %v2853 = vadd.f32 %v2756, %v2852
        %v2854 = vpop.f32.mrb[0].mxu0
        %2855 = vmatprep.mubr.bf16.mxu0 %v1766
        %2856 = vmatmul.mubr.bf16.gmra.mrb[0].mxu0 %v1765
        %v2857 = vpop.f32.mrb[0].mxu0
        %v2858 = vadd.f32 %v2761, %v2857
        %v2859 = vpop.f32.mrb[0].mxu0
        %v2860 = vpop.f32.mrb[0].mxu0
        %v2861 = vadd.f32 %v2764, %v2860
        %v2862 = vpop.f32.mrb[0].mxu0
        %2863 = vmatprep.mubr.bf16.mxu0 %v1770
        %2864 = vmatmul.mubr.bf16.gmra.mrb[0].mxu0 %v1769
        %v2865 = vpop.f32.mrb[0].mxu0
        %v2866 = vadd.f32 %v2769, %v2865
        %v2867 = vpop.f32.mrb[0].mxu0
        %v2868 = vpop.f32.mrb[0].mxu0
        %v2869 = vadd.f32 %v2772, %v2868
        %v2870 = vpop.f32.mrb[0].mxu0
        %2871 = vmatprep.mubr.bf16.mxu0 %v1774
        %2872 = vmatmul.mubr.bf16.gmra.mrb[0].mxu0 %v1773
        %v2873 = vpop.f32.mrb[0].mxu0
        %v2874 = vadd.f32 %v2777, %v2873
        %v2875 = vpop.f32.mrb[0].mxu0
        %v2876 = vpop.f32.mrb[0].mxu0
        %v2877 = vadd.f32 %v2780, %v2876
        %v2878 = vpop.f32.mrb[0].mxu0
        %2879 = vmatprep.mubr.bf16.mxu0 %v1778
        %2880 = vmatmul.mubr.bf16.gmra.mrb[0].mxu0 %v1777
        %v2881 = vpop.f32.mrb[0].mxu0
        %v2882 = vadd.f32 %v2785, %v2881
        %v2883 = vpop.f32.mrb[0].mxu0
        %v2884 = vpop.f32.mrb[0].mxu0
        %v2885 = vadd.f32 %v2788, %v2884
        %v2886 = vpop.f32.mrb[0].mxu0
        %2887 = vdwg.mxu0
        %v2888 = vld [vmem:[%s7] sm:$0xf]
        %v2889 = vld [vmem:[%s7 + $0x4] sm:$0xf]
        %v2890 = vld [vmem:[%s7 + $0x8] sm:$0xf]
        %v2891 = vld [vmem:[%s7 + $0xc] sm:$0xf]
        %v2892 = vld [vmem:[%s7 + $0x10] sm:$0xf]
        %v2893 = vld [vmem:[%s7 + $0x14] sm:$0xf]
        %v2894 = vld [vmem:[%s7 + $0x18] sm:$0xf]
        %v2895 = vld [vmem:[%s7 + $0x1c] sm:$0xf]
        %v2896 = vld [vmem:[%s7 + $0x20] sm:$0xf]
        %v2897 = vld [vmem:[%s7 + $0x24] sm:$0xf]
        %v2898 = vld [vmem:[%s7 + $0x28] sm:$0xf]
        %v2899 = vld [vmem:[%s7 + $0x2c] sm:$0xf]
        %v2900 = vld [vmem:[%s7 + $0x30] sm:$0xf]
        %v2901 = vld [vmem:[%s7 + $0x34] sm:$0xf]
        %v2902 = vld [vmem:[%s7 + $0x38] sm:$0xf]
        %v2903 = vld [vmem:[%s7 + $0x3c] sm:$0xf]
        %v2904 = vld [vmem:[%s7 + $0x40] sm:$0xf]
        %v2905 = vld [vmem:[%s7 + $0x44] sm:$0xf]
        %v2906 = vld [vmem:[%s7 + $0x48] sm:$0xf]
        %v2907 = vld [vmem:[%s7 + $0x4c] sm:$0xf]
        %v2908 = vld [vmem:[%s7 + $0x50] sm:$0xf]
        %v2909 = vld [vmem:[%s7 + $0x54] sm:$0xf]
        %v2910 = vld [vmem:[%s7 + $0x58] sm:$0xf]
        %v2911 = vld [vmem:[%s7 + $0x5c] sm:$0xf]
        %v2912 = vld [vmem:[%s7 + $0x60] sm:$0xf]
        %v2913 = vld [vmem:[%s7 + $0x64] sm:$0xf]
        %v2914 = vld [vmem:[%s7 + $0x68] sm:$0xf]
        %v2915 = vld [vmem:[%s7 + $0x6c] sm:$0xf]
        %v2916 = vld [vmem:[%s7 + $0x70] sm:$0xf]
        %v2917 = vld [vmem:[%s7 + $0x74] sm:$0xf]
        %v2918 = vld [vmem:[%s7 + $0x78] sm:$0xf]
        %v2919 = vld [vmem:[%s7 + $0x7c] sm:$0xf]
        %v2920 = vld [vmem:[%s7 + $0x80] sm:$0xf]
        %v2921 = vld [vmem:[%s7 + $0x84] sm:$0xf]
        %v2922 = vld [vmem:[%s7 + $0x88] sm:$0xf]
        %v2923 = vld [vmem:[%s7 + $0x8c] sm:$0xf]
        %v2924 = vld [vmem:[%s7 + $0x90] sm:$0xf]
        %v2925 = vld [vmem:[%s7 + $0x94] sm:$0xf]
        %v2926 = vld [vmem:[%s7 + $0x98] sm:$0xf]
        %v2927 = vld [vmem:[%s7 + $0x9c] sm:$0xf]
        %v2928 = vld [vmem:[%s7 + $0xa0] sm:$0xf]
        %v2929 = vld [vmem:[%s7 + $0xa4] sm:$0xf]
        %v2930 = vld [vmem:[%s7 + $0xa8] sm:$0xf]
        %v2931 = vld [vmem:[%s7 + $0xac] sm:$0xf]
        %v2932 = vld [vmem:[%s7 + $0xb0] sm:$0xf]
        %v2933 = vld [vmem:[%s7 + $0xb4] sm:$0xf]
        %v2934 = vld [vmem:[%s7 + $0xb8] sm:$0xf]
        %v2935 = vld [vmem:[%s7 + $0xbc] sm:$0xf]
        %v2936 = vld [vmem:[%s7 + $0xc0] sm:$0xf]
        %v2937 = vld [vmem:[%s7 + $0xc4] sm:$0xf]
        %v2938 = vld [vmem:[%s7 + $0xc8] sm:$0xf]
        %v2939 = vld [vmem:[%s7 + $0xcc] sm:$0xf]
        %v2940 = vld [vmem:[%s7 + $0xd0] sm:$0xf]
        %v2941 = vld [vmem:[%s7 + $0xd4] sm:$0xf]
        %v2942 = vld [vmem:[%s7 + $0xd8] sm:$0xf]
        %v2943 = vld [vmem:[%s7 + $0xdc] sm:$0xf]
        %v2944 = vld [vmem:[%s7 + $0xe0] sm:$0xf]
        %v2945 = vld [vmem:[%s7 + $0xe4] sm:$0xf]
        %v2946 = vld [vmem:[%s7 + $0xe8] sm:$0xf]
        %v2947 = vld [vmem:[%s7 + $0xec] sm:$0xf]
        %v2948 = vld [vmem:[%s7 + $0xf0] sm:$0xf]
        %v2949 = vld [vmem:[%s7 + $0xf4] sm:$0xf]
        %v2950 = vld [vmem:[%s7 + $0xf8] sm:$0xf]
        %v2951 = vld [vmem:[%s7 + $0xfc] sm:$0xf]
        %v2952 = vld [vmem:[#allocation9] sm:$0x1]
        %v2954 = vlaneseq
        %v2955 = vshrl.u32 %v2954, 7
        %v2956 = vsub.s32 0, %v2955
        %v2957 = vrot.slane %v2952, %v2956
        %v3023 = vunpack.c.l.b16 %v2888
        %v3024 = vunpack.c.l.b16 %v2889
        %v3025 = vunpack.c.l.b16 %v2890
        %v3026 = vunpack.c.l.b16 %v2891
        %v3027 = vunpack.c.l.b16 %v2892
        %v3028 = vunpack.c.l.b16 %v2893
        %v3029 = vunpack.c.l.b16 %v2894
        %v3030 = vunpack.c.l.b16 %v2895
        %v3031 = vunpack.c.l.b16 %v2896
        %v3032 = vunpack.c.l.b16 %v2897
        %v3033 = vunpack.c.l.b16 %v2898
        %v3034 = vunpack.c.l.b16 %v2899
        %v3035 = vunpack.c.l.b16 %v2900
        %v3036 = vunpack.c.l.b16 %v2901
        %v3037 = vunpack.c.l.b16 %v2902
        %v3038 = vunpack.c.l.b16 %v2903
        %v3039 = vunpack.c.l.b16 %v2904
        %v3040 = vunpack.c.l.b16 %v2905
        %v3041 = vunpack.c.l.b16 %v2906
        %v3042 = vunpack.c.l.b16 %v2907
        %v3043 = vunpack.c.l.b16 %v2908
        %v3044 = vunpack.c.l.b16 %v2909
        %v3045 = vunpack.c.l.b16 %v2910
        %v3046 = vunpack.c.l.b16 %v2911
        %v3047 = vunpack.c.l.b16 %v2912
        %v3048 = vunpack.c.l.b16 %v2913
        %v3049 = vunpack.c.l.b16 %v2914
        %v3050 = vunpack.c.l.b16 %v2915
        %v3051 = vunpack.c.l.b16 %v2916
        %v3052 = vunpack.c.l.b16 %v2917
        %v3053 = vunpack.c.l.b16 %v2918
        %v3054 = vunpack.c.l.b16 %v2919
        %v3055 = vunpack.c.l.b16 %v2920
        %v3056 = vunpack.c.l.b16 %v2921
        %v3057 = vunpack.c.l.b16 %v2922
        %v3058 = vunpack.c.l.b16 %v2923
        %v3059 = vunpack.c.l.b16 %v2924
        %v3060 = vunpack.c.l.b16 %v2925
        %v3061 = vunpack.c.l.b16 %v2926
        %v3062 = vunpack.c.l.b16 %v2927
        %v3063 = vunpack.c.l.b16 %v2928
        %v3064 = vunpack.c.l.b16 %v2929
        %v3065 = vunpack.c.l.b16 %v2930
        %v3066 = vunpack.c.l.b16 %v2931
        %v3067 = vunpack.c.l.b16 %v2932
        %v3068 = vunpack.c.l.b16 %v2933
        %v3069 = vunpack.c.l.b16 %v2934
        %v3070 = vunpack.c.l.b16 %v2935
        %v3071 = vunpack.c.l.b16 %v2936
        %v3072 = vunpack.c.l.b16 %v2937
        %v3073 = vunpack.c.l.b16 %v2938
        %v3074 = vunpack.c.l.b16 %v2939
        %v3075 = vunpack.c.l.b16 %v2940
        %v3076 = vunpack.c.l.b16 %v2941
        %v3077 = vunpack.c.l.b16 %v2942
        %v3078 = vunpack.c.l.b16 %v2943
        %v3079 = vunpack.c.l.b16 %v2944
        %v3080 = vunpack.c.l.b16 %v2945
        %v3081 = vunpack.c.l.b16 %v2946
        %v3082 = vunpack.c.l.b16 %v2947
        %v3083 = vunpack.c.l.b16 %v2948
        %v3084 = vunpack.c.l.b16 %v2949
        %v3085 = vunpack.c.l.b16 %v2950
        %v3086 = vunpack.c.l.b16 %v2951
        %v3087 = vpack.c.b16 %v3024, %v3023
        %v3088 = vpack.c.b16 %v3026, %v3025
        %v3089 = vpack.c.b16 %v3028, %v3027
        %v3090 = vpack.c.b16 %v3030, %v3029
        %v3091 = vpack.c.b16 %v3032, %v3031
        %v3092 = vpack.c.b16 %v3034, %v3033
        %v3093 = vpack.c.b16 %v3036, %v3035
        %v3094 = vpack.c.b16 %v3038, %v3037
        %v3095 = vpack.c.b16 %v3040, %v3039
        %v3096 = vpack.c.b16 %v3042, %v3041
        %v3097 = vpack.c.b16 %v3044, %v3043
        %v3098 = vpack.c.b16 %v3046, %v3045
        %v3099 = vpack.c.b16 %v3048, %v3047
        %v3100 = vpack.c.b16 %v3050, %v3049
        %v3101 = vpack.c.b16 %v3052, %v3051
        %v3102 = vpack.c.b16 %v3054, %v3053
        %v3103 = vpack.c.b16 %v3056, %v3055
        %v3104 = vpack.c.b16 %v3058, %v3057
        %v3105 = vpack.c.b16 %v3060, %v3059
        %v3106 = vpack.c.b16 %v3062, %v3061
        %v3107 = vpack.c.b16 %v3064, %v3063
        %v3108 = vpack.c.b16 %v3066, %v3065
        %v3109 = vpack.c.b16 %v3068, %v3067
        %v3110 = vpack.c.b16 %v3070, %v3069
        %v3111 = vpack.c.b16 %v3072, %v3071
        %v3112 = vpack.c.b16 %v3074, %v3073
        %v3113 = vpack.c.b16 %v3076, %v3075
        %v3114 = vpack.c.b16 %v3078, %v3077
        %v3115 = vpack.c.b16 %v3080, %v3079
        %v3116 = vpack.c.b16 %v3082, %v3081
        %v3117 = vpack.c.b16 %v3084, %v3083
        %v3118 = vpack.c.b16 %v3086, %v3085
        %3151 = vmatprep.subr.bf16.mxu0 0
        %3152 = vmatpush1.bf16.msra.mxu0 %v3087
        %3153 = vmatprep.subr.bf16.mxu0 0
        %3154 = vmatpush1.bf16.msra.mxu0 %v3088
        %3155 = vmatprep.subr.bf16.mxu0 0
        %3156 = vmatpush1.bf16.msra.mxu0 %v3089
        %3157 = vmatprep.subr.bf16.mxu0 0
        %3158 = vmatpush1.bf16.msra.mxu0 %v3090
        %3159 = vmatprep.subr.bf16.mxu0 0
        %3160 = vmatpush1.bf16.msra.mxu0 %v3091
        %3161 = vmatprep.subr.bf16.mxu0 0
        %3162 = vmatpush1.bf16.msra.mxu0 %v3092
        %3163 = vmatprep.subr.bf16.mxu0 0
        %3164 = vmatpush1.bf16.msra.mxu0 %v3093
        %3165 = vmatprep.subr.bf16.mxu0 0
        %3166 = vmatpush1.bf16.msra.mxu0 %v3094
        %3167 = vmatprep.subr.bf16.mxu0 0
        %3168 = vmatpush1.bf16.msra.mxu0 %v3095
        %3169 = vmatprep.subr.bf16.mxu0 0
        %3170 = vmatpush1.bf16.msra.mxu0 %v3096
        %3171 = vmatprep.subr.bf16.mxu0 0
        %3172 = vmatpush1.bf16.msra.mxu0 %v3097
        %3173 = vmatprep.subr.bf16.mxu0 0
        %3174 = vmatpush1.bf16.msra.mxu0 %v3098
        %3175 = vmatprep.subr.bf16.mxu0 0
        %3176 = vmatpush1.bf16.msra.mxu0 %v3099
        %3177 = vmatprep.subr.bf16.mxu0 0
        %3178 = vmatpush1.bf16.msra.mxu0 %v3100
        %3179 = vmatprep.subr.bf16.mxu0 0
        %3180 = vmatpush1.bf16.msra.mxu0 %v3101
        %3181 = vmatprep.subr.bf16.mxu0 0
        %3182 = vmatpush1.bf16.msra.mxu0 %v3102
        %3183 = vmatprep.mubr.bf16.mxu0 %v1780
        %3184 = vmatmul.mubr.bf16.gmra.mrb[0].mxu0 %v1779
        %v3185 = vpop.f32.mrb[0].mxu0
        %v3186 = vadd.f32 %v2957, %v3185
        %v3187 = vpop.f32.mrb[0].mxu0
        %v3188 = vpop.f32.mrb[0].mxu0
        %v3189 = vadd.f32 %v2957, %v3188
        %v3190 = vpop.f32.mrb[0].mxu0
        %3191 = vmatprep.mubr.bf16.mxu0 %v1784
        %3192 = vmatmul.mubr.bf16.gmra.mrb[0].mxu0 %v1783
        %v3193 = vpop.f32.mrb[0].mxu0
        %v3194 = vadd.f32 %v2957, %v3193
        %v3195 = vpop.f32.mrb[0].mxu0
        %v3196 = vpop.f32.mrb[0].mxu0
        %v3197 = vadd.f32 %v2957, %v3196
        %v3198 = vpop.f32.mrb[0].mxu0
        %3199 = vmatprep.mubr.bf16.mxu0 %v1788
        %3200 = vmatmul.mubr.bf16.gmra.mrb[0].mxu0 %v1787
        %v3201 = vpop.f32.mrb[0].mxu0
        %v3202 = vadd.f32 %v2957, %v3201
        %v3203 = vpop.f32.mrb[0].mxu0
        %v3204 = vpop.f32.mrb[0].mxu0
        %v3205 = vadd.f32 %v2957, %v3204
        %v3206 = vpop.f32.mrb[0].mxu0
        %3207 = vmatprep.mubr.bf16.mxu0 %v1792
        %3208 = vmatmul.mubr.bf16.gmra.mrb[0].mxu0 %v1791
        %v3209 = vpop.f32.mrb[0].mxu0
        %v3210 = vadd.f32 %v2957, %v3209
        %v3211 = vpop.f32.mrb[0].mxu0
        %v3212 = vpop.f32.mrb[0].mxu0
        %v3213 = vadd.f32 %v2957, %v3212
        %v3214 = vpop.f32.mrb[0].mxu0
        %3215 = vmatprep.mubr.bf16.mxu0 %v1796
        %3216 = vmatmul.mubr.bf16.gmra.mrb[0].mxu0 %v1795
        %v3217 = vpop.f32.mrb[0].mxu0
        %v3218 = vadd.f32 %v2957, %v3217
        %v3219 = vpop.f32.mrb[0].mxu0
        %v3220 = vpop.f32.mrb[0].mxu0
        %v3221 = vadd.f32 %v2957, %v3220
        %v3222 = vpop.f32.mrb[0].mxu0
        %3223 = vmatprep.mubr.bf16.mxu0 %v1800
        %3224 = vmatmul.mubr.bf16.gmra.mrb[0].mxu0 %v1799
        %v3225 = vpop.f32.mrb[0].mxu0
        %v3226 = vadd.f32 %v2957, %v3225
        %v3227 = vpop.f32.mrb[0].mxu0
        %v3228 = vpop.f32.mrb[0].mxu0
        %v3229 = vadd.f32 %v2957, %v3228
        %v3230 = vpop.f32.mrb[0].mxu0
        %3231 = vmatprep.mubr.bf16.mxu0 %v1804
        %3232 = vmatmul.mubr.bf16.gmra.mrb[0].mxu0 %v1803
        %v3233 = vpop.f32.mrb[0].mxu0
        %v3234 = vadd.f32 %v2957, %v3233
        %v3235 = vpop.f32.mrb[0].mxu0
        %v3236 = vpop.f32.mrb[0].mxu0
        %v3237 = vadd.f32 %v2957, %v3236
        %v3238 = vpop.f32.mrb[0].mxu0
        %3239 = vmatprep.mubr.bf16.mxu0 %v1808
        %3240 = vmatmul.mubr.bf16.gmra.mrb[0].mxu0 %v1807
        %v3241 = vpop.f32.mrb[0].mxu0
        %v3242 = vadd.f32 %v2957, %v3241
        %v3243 = vpop.f32.mrb[0].mxu0
        %v3244 = vpop.f32.mrb[0].mxu0
        %v3245 = vadd.f32 %v2957, %v3244
        %v3246 = vpop.f32.mrb[0].mxu0
        %3247 = vdwg.mxu0
        %3248 = vmatprep.subr.bf16.mxu0 0
        %3249 = vmatpush1.bf16.msra.mxu0 %v3103
        %3250 = vmatprep.subr.bf16.mxu0 0
        %3251 = vmatpush1.bf16.msra.mxu0 %v3104
        %3252 = vmatprep.subr.bf16.mxu0 0
        %3253 = vmatpush1.bf16.msra.mxu0 %v3105
        %3254 = vmatprep.subr.bf16.mxu0 0
        %3255 = vmatpush1.bf16.msra.mxu0 %v3106
        %3256 = vmatprep.subr.bf16.mxu0 0
        %3257 = vmatpush1.bf16.msra.mxu0 %v3107
        %3258 = vmatprep.subr.bf16.mxu0 0
        %3259 = vmatpush1.bf16.msra.mxu0 %v3108
        %3260 = vmatprep.subr.bf16.mxu0 0
        %3261 = vmatpush1.bf16.msra.mxu0 %v3109
        %3262 = vmatprep.subr.bf16.mxu0 0
        %3263 = vmatpush1.bf16.msra.mxu0 %v3110
        %3264 = vmatprep.subr.bf16.mxu0 0
        %3265 = vmatpush1.bf16.msra.mxu0 %v3111
        %3266 = vmatprep.subr.bf16.mxu0 0
        %3267 = vmatpush1.bf16.msra.mxu0 %v3112
        %3268 = vmatprep.subr.bf16.mxu0 0
        %3269 = vmatpush1.bf16.msra.mxu0 %v3113
        %3270 = vmatprep.subr.bf16.mxu0 0
        %3271 = vmatpush1.bf16.msra.mxu0 %v3114
        %3272 = vmatprep.subr.bf16.mxu0 0
        %3273 = vmatpush1.bf16.msra.mxu0 %v3115
        %3274 = vmatprep.subr.bf16.mxu0 0
        %3275 = vmatpush1.bf16.msra.mxu0 %v3116
        %3276 = vmatprep.subr.bf16.mxu0 0
        %3277 = vmatpush1.bf16.msra.mxu0 %v3117
        %3278 = vmatprep.subr.bf16.mxu0 0
        %3279 = vmatpush1.bf16.msra.mxu0 %v3118
        %3280 = vmatprep.mubr.bf16.mxu0 %v1782
        %3281 = vmatmul.mubr.bf16.gmra.mrb[0].mxu0 %v1781
        %v3282 = vpop.f32.mrb[0].mxu0
        %v3283 = vadd.f32 %v3186, %v3282
        %v3284 = vpop.f32.mrb[0].mxu0
        %v3285 = vpop.f32.mrb[0].mxu0
        %v3286 = vadd.f32 %v3189, %v3285
        %v3287 = vpop.f32.mrb[0].mxu0
        %3288 = vmatprep.mubr.bf16.mxu0 %v1786
        %3289 = vmatmul.mubr.bf16.gmra.mrb[0].mxu0 %v1785
        %v3290 = vpop.f32.mrb[0].mxu0
        %v3291 = vadd.f32 %v3194, %v3290
        %v3292 = vpop.f32.mrb[0].mxu0
        %v3293 = vpop.f32.mrb[0].mxu0
        %v3294 = vadd.f32 %v3197, %v3293
        %v3295 = vpop.f32.mrb[0].mxu0
        %3296 = vmatprep.mubr.bf16.mxu0 %v1790
        %3297 = vmatmul.mubr.bf16.gmra.mrb[0].mxu0 %v1789
        %v3298 = vpop.f32.mrb[0].mxu0
        %v3299 = vadd.f32 %v3202, %v3298
        %v3300 = vpop.f32.mrb[0].mxu0
        %v3301 = vpop.f32.mrb[0].mxu0
        %v3302 = vadd.f32 %v3205, %v3301
        %v3303 = vpop.f32.mrb[0].mxu0
        %3304 = vmatprep.mubr.bf16.mxu0 %v1794
        %3305 = vmatmul.mubr.bf16.gmra.mrb[0].mxu0 %v1793
        %v3306 = vpop.f32.mrb[0].mxu0
        %v3307 = vadd.f32 %v3210, %v3306
        %v3308 = vpop.f32.mrb[0].mxu0
        %v3309 = vpop.f32.mrb[0].mxu0
        %v3310 = vadd.f32 %v3213, %v3309
        %v3311 = vpop.f32.mrb[0].mxu0
        %3312 = vmatprep.mubr.bf16.mxu0 %v1798
        %3313 = vmatmul.mubr.bf16.gmra.mrb[0].mxu0 %v1797
        %v3314 = vpop.f32.mrb[0].mxu0
        %v3315 = vadd.f32 %v3218, %v3314
        %v3316 = vpop.f32.mrb[0].mxu0
        %v3317 = vpop.f32.mrb[0].mxu0
        %v3318 = vadd.f32 %v3221, %v3317
        %v3319 = vpop.f32.mrb[0].mxu0
        %3320 = vmatprep.mubr.bf16.mxu0 %v1802
        %3321 = vmatmul.mubr.bf16.gmra.mrb[0].mxu0 %v1801
        %v3322 = vpop.f32.mrb[0].mxu0
        %v3323 = vadd.f32 %v3226, %v3322
        %v3324 = vpop.f32.mrb[0].mxu0
        %v3325 = vpop.f32.mrb[0].mxu0
        %v3326 = vadd.f32 %v3229, %v3325
        %v3327 = vpop.f32.mrb[0].mxu0
        %3328 = vmatprep.mubr.bf16.mxu0 %v1806
        %3329 = vmatmul.mubr.bf16.gmra.mrb[0].mxu0 %v1805
        %v3330 = vpop.f32.mrb[0].mxu0
        %v3331 = vadd.f32 %v3234, %v3330
        %v3332 = vpop.f32.mrb[0].mxu0
        %v3333 = vpop.f32.mrb[0].mxu0
        %v3334 = vadd.f32 %v3237, %v3333
        %v3335 = vpop.f32.mrb[0].mxu0
        %3336 = vmatprep.mubr.bf16.mxu0 %v1810
        %3337 = vmatmul.mubr.bf16.gmra.mrb[0].mxu0 %v1809
        %v3338 = vpop.f32.mrb[0].mxu0
        %v3339 = vadd.f32 %v3242, %v3338
        %v3340 = vpop.f32.mrb[0].mxu0
        %v3341 = vpop.f32.mrb[0].mxu0
        %v3342 = vadd.f32 %v3245, %v3341
        %v3343 = vpop.f32.mrb[0].mxu0
        %3344 = vdwg.mxu0
        %v3345 = vpack.c.bf16 %v1575, %v1563
        %v3346 = vpack.c.bf16 %v1576, %v1564
        %v3347 = vpack.c.bf16 %v1577, %v1565
        %v3348 = vpack.c.bf16 %v1578, %v1566
        %v3349 = vpack.c.bf16 %v1599, %v1587
        %v3350 = vpack.c.bf16 %v1600, %v1588
        %v3351 = vpack.c.bf16 %v1601, %v1589
        %v3352 = vpack.c.bf16 %v1602, %v1590
        %v3353 = vpack.c.bf16 %v1623, %v1611
        %v3354 = vpack.c.bf16 %v1624, %v1612
        %v3355 = vpack.c.bf16 %v1625, %v1613
        %v3356 = vpack.c.bf16 %v1626, %v1614
        %v3357 = vpack.c.bf16 %v1647, %v1635
        %v3358 = vpack.c.bf16 %v1648, %v1636
        %v3359 = vpack.c.bf16 %v1649, %v1637
        %v3360 = vpack.c.bf16 %v1650, %v1638
        %v3361 = vpack.c.bf16 %v1671, %v1659
        %v3362 = vpack.c.bf16 %v1672, %v1660
        %v3363 = vpack.c.bf16 %v1673, %v1661
        %v3364 = vpack.c.bf16 %v1674, %v1662
        %v3365 = vpack.c.bf16 %v1695, %v1683
        %v3366 = vpack.c.bf16 %v1696, %v1684
        %v3367 = vpack.c.bf16 %v1697, %v1685
        %v3368 = vpack.c.bf16 %v1698, %v1686
        %v3369 = vpack.c.bf16 %v1719, %v1707
        %v3370 = vpack.c.bf16 %v1720, %v1708
        %v3371 = vpack.c.bf16 %v1721, %v1709
        %v3372 = vpack.c.bf16 %v1722, %v1710
        %v3373 = vpack.c.bf16 %v1743, %v1731
        %v3374 = vpack.c.bf16 %v1744, %v1732
        %v3375 = vpack.c.bf16 %v1745, %v1733
        %v3376 = vpack.c.bf16 %v1746, %v1734
        %v3377 = vld [vmem:[#allocation10] sm:$0xff]
        %v3378 = vld [vmem:[#allocation10 + $0x8] sm:$0xff]
        %v3379 = vld [vmem:[#allocation10 + $0x10] sm:$0xff]
        %v3380 = vld [vmem:[#allocation10 + $0x18] sm:$0xff]
        %v3381 = vld [vmem:[#allocation10 + $0x20] sm:$0xff]
        %v3382 = vld [vmem:[#allocation10 + $0x28] sm:$0xff]
        %v3383 = vld [vmem:[#allocation10 + $0x30] sm:$0xff]
        %v3384 = vld [vmem:[#allocation10 + $0x38] sm:$0xff]
        %v3385 = vld [vmem:[#allocation10 + $0x40] sm:$0xff]
        %v3386 = vld [vmem:[#allocation10 + $0x48] sm:$0xff]
        %v3387 = vld [vmem:[#allocation10 + $0x50] sm:$0xff]
        %v3388 = vld [vmem:[#allocation10 + $0x58] sm:$0xff]
        %v3389 = vld [vmem:[#allocation10 + $0x60] sm:$0xff]
        %v3390 = vld [vmem:[#allocation10 + $0x68] sm:$0xff]
        %v3391 = vld [vmem:[#allocation10 + $0x70] sm:$0xff]
        %v3392 = vld [vmem:[#allocation10 + $0x78] sm:$0xff]
        %v3393 = vld [vmem:[#allocation10 + $0x80] sm:$0xff]
        %v3394 = vld [vmem:[#allocation10 + $0x88] sm:$0xff]
        %v3395 = vld [vmem:[#allocation10 + $0x90] sm:$0xff]
        %v3396 = vld [vmem:[#allocation10 + $0x98] sm:$0xff]
        %v3397 = vld [vmem:[#allocation10 + $0xa0] sm:$0xff]
        %v3398 = vld [vmem:[#allocation10 + $0xa8] sm:$0xff]
        %v3399 = vld [vmem:[#allocation10 + $0xb0] sm:$0xff]
        %v3400 = vld [vmem:[#allocation10 + $0xb8] sm:$0xff]
        %v3401 = vld [vmem:[#allocation10 + $0xc0] sm:$0xff]
        %v3402 = vld [vmem:[#allocation10 + $0xc8] sm:$0xff]
        %v3403 = vld [vmem:[#allocation10 + $0xd0] sm:$0xff]
        %v3404 = vld [vmem:[#allocation10 + $0xd8] sm:$0xff]
        %v3405 = vld [vmem:[#allocation10 + $0xe0] sm:$0xff]
        %v3406 = vld [vmem:[#allocation10 + $0xe8] sm:$0xff]
        %v3407 = vld [vmem:[#allocation10 + $0xf0] sm:$0xff]
        %v3408 = vld [vmem:[#allocation10 + $0xf8] sm:$0xff]
        %v3409 = vld [vmem:[#allocation10 + $0x100] sm:$0xff]
        %v3410 = vld [vmem:[#allocation10 + $0x108] sm:$0xff]
        %v3411 = vld [vmem:[#allocation10 + $0x110] sm:$0xff]
        %v3412 = vld [vmem:[#allocation10 + $0x118] sm:$0xff]
        %v3413 = vld [vmem:[#allocation10 + $0x120] sm:$0xff]
        %v3414 = vld [vmem:[#allocation10 + $0x128] sm:$0xff]
        %v3415 = vld [vmem:[#allocation10 + $0x130] sm:$0xff]
        %v3416 = vld [vmem:[#allocation10 + $0x138] sm:$0xff]
        %v3417 = vld [vmem:[#allocation10 + $0x140] sm:$0xff]
        %v3418 = vld [vmem:[#allocation10 + $0x148] sm:$0xff]
        %v3419 = vld [vmem:[#allocation10 + $0x150] sm:$0xff]
        %v3420 = vld [vmem:[#allocation10 + $0x158] sm:$0xff]
        %v3421 = vld [vmem:[#allocation10 + $0x160] sm:$0xff]
        %v3422 = vld [vmem:[#allocation10 + $0x168] sm:$0xff]
        %v3423 = vld [vmem:[#allocation10 + $0x170] sm:$0xff]
        %v3424 = vld [vmem:[#allocation10 + $0x178] sm:$0xff]
        %v3425 = vld [vmem:[#allocation10 + $0x180] sm:$0xff]
        %v3426 = vld [vmem:[#allocation10 + $0x188] sm:$0xff]
        %v3427 = vld [vmem:[#allocation10 + $0x190] sm:$0xff]
        %v3428 = vld [vmem:[#allocation10 + $0x198] sm:$0xff]
        %v3429 = vld [vmem:[#allocation10 + $0x1a0] sm:$0xff]
        %v3430 = vld [vmem:[#allocation10 + $0x1a8] sm:$0xff]
        %v3431 = vld [vmem:[#allocation10 + $0x1b0] sm:$0xff]
        %v3432 = vld [vmem:[#allocation10 + $0x1b8] sm:$0xff]
        %v3433 = vld [vmem:[#allocation10 + $0x1c0] sm:$0xff]
        %v3434 = vld [vmem:[#allocation10 + $0x1c8] sm:$0xff]
        %v3435 = vld [vmem:[#allocation10 + $0x1d0] sm:$0xff]
        %v3436 = vld [vmem:[#allocation10 + $0x1d8] sm:$0xff]
        %v3437 = vld [vmem:[#allocation10 + $0x1e0] sm:$0xff]
        %v3438 = vld [vmem:[#allocation10 + $0x1e8] sm:$0xff]
        %v3439 = vld [vmem:[#allocation10 + $0x1f0] sm:$0xff]
        %v3440 = vld [vmem:[#allocation10 + $0x1f8] sm:$0xff]
        %v3441 = vld [vmem:[#allocation12] sm:$0x3]
        %v3443 = vlaneseq
        %v3444 = vshrl.u32 %v3443, 7
        %v3445 = vsub.s32 0, %v3444
        %v3446 = vrot.slane %v3441, %v3445
        %v3447 = vlaneseq
        %v3448 = vshrl.u32 %v3447, 7
        %v3449 = vsub.s32 1, %v3448
        %v3450 = vrot.slane %v3441, %v3449
        %v3517 = vunpack.c.l.b16 %v3377
        %v3518 = vunpack.c.h.b16 %v3377
        %v3519 = vunpack.c.l.b16 %v3378
        %v3520 = vunpack.c.h.b16 %v3378
        %v3521 = vunpack.c.l.b16 %v3379
        %v3522 = vunpack.c.h.b16 %v3379
        %v3523 = vunpack.c.l.b16 %v3380
        %v3524 = vunpack.c.h.b16 %v3380
        %v3525 = vunpack.c.l.b16 %v3381
        %v3526 = vunpack.c.h.b16 %v3381
        %v3527 = vunpack.c.l.b16 %v3382
        %v3528 = vunpack.c.h.b16 %v3382
        %v3529 = vunpack.c.l.b16 %v3383
        %v3530 = vunpack.c.h.b16 %v3383
        %v3531 = vunpack.c.l.b16 %v3384
        %v3532 = vunpack.c.h.b16 %v3384
        %v3533 = vunpack.c.l.b16 %v3385
        %v3534 = vunpack.c.h.b16 %v3385
        %v3535 = vunpack.c.l.b16 %v3386
        %v3536 = vunpack.c.h.b16 %v3386
        %v3537 = vunpack.c.l.b16 %v3387
        %v3538 = vunpack.c.h.b16 %v3387
        %v3539 = vunpack.c.l.b16 %v3388
        %v3540 = vunpack.c.h.b16 %v3388
        %v3541 = vunpack.c.l.b16 %v3389
        %v3542 = vunpack.c.h.b16 %v3389
        %v3543 = vunpack.c.l.b16 %v3390
        %v3544 = vunpack.c.h.b16 %v3390
        %v3545 = vunpack.c.l.b16 %v3391
        %v3546 = vunpack.c.h.b16 %v3391
        %v3547 = vunpack.c.l.b16 %v3392
        %v3548 = vunpack.c.h.b16 %v3392
        %v3549 = vunpack.c.l.b16 %v3393
        %v3550 = vunpack.c.h.b16 %v3393
        %v3551 = vunpack.c.l.b16 %v3394
        %v3552 = vunpack.c.h.b16 %v3394
        %v3553 = vunpack.c.l.b16 %v3395
        %v3554 = vunpack.c.h.b16 %v3395
        %v3555 = vunpack.c.l.b16 %v3396
        %v3556 = vunpack.c.h.b16 %v3396
        %v3557 = vunpack.c.l.b16 %v3397
        %v3558 = vunpack.c.h.b16 %v3397
        %v3559 = vunpack.c.l.b16 %v3398
        %v3560 = vunpack.c.h.b16 %v3398
        %v3561 = vunpack.c.l.b16 %v3399
        %v3562 = vunpack.c.h.b16 %v3399
        %v3563 = vunpack.c.l.b16 %v3400
        %v3564 = vunpack.c.h.b16 %v3400
        %v3565 = vunpack.c.l.b16 %v3401
        %v3566 = vunpack.c.h.b16 %v3401
        %v3567 = vunpack.c.l.b16 %v3402
        %v3568 = vunpack.c.h.b16 %v3402
        %v3569 = vunpack.c.l.b16 %v3403
        %v3570 = vunpack.c.h.b16 %v3403
        %v3571 = vunpack.c.l.b16 %v3404
        %v3572 = vunpack.c.h.b16 %v3404
        %v3573 = vunpack.c.l.b16 %v3405
        %v3574 = vunpack.c.h.b16 %v3405
        %v3575 = vunpack.c.l.b16 %v3406
        %v3576 = vunpack.c.h.b16 %v3406
        %v3577 = vunpack.c.l.b16 %v3407
        %v3578 = vunpack.c.h.b16 %v3407
        %v3579 = vunpack.c.l.b16 %v3408
        %v3580 = vunpack.c.h.b16 %v3408
        %v3581 = vunpack.c.l.b16 %v3409
        %v3582 = vunpack.c.h.b16 %v3409
        %v3583 = vunpack.c.l.b16 %v3410
        %v3584 = vunpack.c.h.b16 %v3410
        %v3585 = vunpack.c.l.b16 %v3411
        %v3586 = vunpack.c.h.b16 %v3411
        %v3587 = vunpack.c.l.b16 %v3412
        %v3588 = vunpack.c.h.b16 %v3412
        %v3589 = vunpack.c.l.b16 %v3413
        %v3590 = vunpack.c.h.b16 %v3413
        %v3591 = vunpack.c.l.b16 %v3414
        %v3592 = vunpack.c.h.b16 %v3414
        %v3593 = vunpack.c.l.b16 %v3415
        %v3594 = vunpack.c.h.b16 %v3415
        %v3595 = vunpack.c.l.b16 %v3416
        %v3596 = vunpack.c.h.b16 %v3416
        %v3597 = vunpack.c.l.b16 %v3417
        %v3598 = vunpack.c.h.b16 %v3417
        %v3599 = vunpack.c.l.b16 %v3418
        %v3600 = vunpack.c.h.b16 %v3418
        %v3601 = vunpack.c.l.b16 %v3419
        %v3602 = vunpack.c.h.b16 %v3419
        %v3603 = vunpack.c.l.b16 %v3420
        %v3604 = vunpack.c.h.b16 %v3420
        %v3605 = vunpack.c.l.b16 %v3421
        %v3606 = vunpack.c.h.b16 %v3421
        %v3607 = vunpack.c.l.b16 %v3422
        %v3608 = vunpack.c.h.b16 %v3422
        %v3609 = vunpack.c.l.b16 %v3423
        %v3610 = vunpack.c.h.b16 %v3423
        %v3611 = vunpack.c.l.b16 %v3424
        %v3612 = vunpack.c.h.b16 %v3424
        %v3613 = vunpack.c.l.b16 %v3425
        %v3614 = vunpack.c.h.b16 %v3425
        %v3615 = vunpack.c.l.b16 %v3426
        %v3616 = vunpack.c.h.b16 %v3426
        %v3617 = vunpack.c.l.b16 %v3427
        %v3618 = vunpack.c.h.b16 %v3427
        %v3619 = vunpack.c.l.b16 %v3428
        %v3620 = vunpack.c.h.b16 %v3428
        %v3621 = vunpack.c.l.b16 %v3429
        %v3622 = vunpack.c.h.b16 %v3429
        %v3623 = vunpack.c.l.b16 %v3430
        %v3624 = vunpack.c.h.b16 %v3430
        %v3625 = vunpack.c.l.b16 %v3431
        %v3626 = vunpack.c.h.b16 %v3431
        %v3627 = vunpack.c.l.b16 %v3432
        %v3628 = vunpack.c.h.b16 %v3432
        %v3629 = vunpack.c.l.b16 %v3433
        %v3630 = vunpack.c.h.b16 %v3433
        %v3631 = vunpack.c.l.b16 %v3434
        %v3632 = vunpack.c.h.b16 %v3434
        %v3633 = vunpack.c.l.b16 %v3435
        %v3634 = vunpack.c.h.b16 %v3435
        %v3635 = vunpack.c.l.b16 %v3436
        %v3636 = vunpack.c.h.b16 %v3436
        %v3637 = vunpack.c.l.b16 %v3437
        %v3638 = vunpack.c.h.b16 %v3437
        %v3639 = vunpack.c.l.b16 %v3438
        %v3640 = vunpack.c.h.b16 %v3438
        %v3641 = vunpack.c.l.b16 %v3439
        %v3642 = vunpack.c.h.b16 %v3439
        %v3643 = vunpack.c.l.b16 %v3440
        %v3644 = vunpack.c.h.b16 %v3440
        %v3645 = vpack.c.b16 %v3519, %v3517
        %v3646 = vpack.c.b16 %v3520, %v3518
        %v3647 = vpack.c.b16 %v3523, %v3521
        %v3648 = vpack.c.b16 %v3524, %v3522
        %v3649 = vpack.c.b16 %v3527, %v3525
        %v3650 = vpack.c.b16 %v3528, %v3526
        %v3651 = vpack.c.b16 %v3531, %v3529
        %v3652 = vpack.c.b16 %v3532, %v3530
        %v3653 = vpack.c.b16 %v3535, %v3533
        %v3654 = vpack.c.b16 %v3536, %v3534
        %v3655 = vpack.c.b16 %v3539, %v3537
        %v3656 = vpack.c.b16 %v3540, %v3538
        %v3657 = vpack.c.b16 %v3543, %v3541
        %v3658 = vpack.c.b16 %v3544, %v3542
        %v3659 = vpack.c.b16 %v3547, %v3545
        %v3660 = vpack.c.b16 %v3548, %v3546
        %v3661 = vpack.c.b16 %v3551, %v3549
        %v3662 = vpack.c.b16 %v3552, %v3550
        %v3663 = vpack.c.b16 %v3555, %v3553
        %v3664 = vpack.c.b16 %v3556, %v3554
        %v3665 = vpack.c.b16 %v3559, %v3557
        %v3666 = vpack.c.b16 %v3560, %v3558
        %v3667 = vpack.c.b16 %v3563, %v3561
        %v3668 = vpack.c.b16 %v3564, %v3562
        %v3669 = vpack.c.b16 %v3567, %v3565
        %v3670 = vpack.c.b16 %v3568, %v3566
        %v3671 = vpack.c.b16 %v3571, %v3569
        %v3672 = vpack.c.b16 %v3572, %v3570
        %v3673 = vpack.c.b16 %v3575, %v3573
        %v3674 = vpack.c.b16 %v3576, %v3574
        %v3675 = vpack.c.b16 %v3579, %v3577
        %v3676 = vpack.c.b16 %v3580, %v3578
        %v3677 = vpack.c.b16 %v3583, %v3581
        %v3678 = vpack.c.b16 %v3584, %v3582
        %v3679 = vpack.c.b16 %v3587, %v3585
        %v3680 = vpack.c.b16 %v3588, %v3586
        %v3681 = vpack.c.b16 %v3591, %v3589
        %v3682 = vpack.c.b16 %v3592, %v3590
        %v3683 = vpack.c.b16 %v3595, %v3593
        %v3684 = vpack.c.b16 %v3596, %v3594
        %v3685 = vpack.c.b16 %v3599, %v3597
        %v3686 = vpack.c.b16 %v3600, %v3598
        %v3687 = vpack.c.b16 %v3603, %v3601
        %v3688 = vpack.c.b16 %v3604, %v3602
        %v3689 = vpack.c.b16 %v3607, %v3605
        %v3690 = vpack.c.b16 %v3608, %v3606
        %v3691 = vpack.c.b16 %v3611, %v3609
        %v3692 = vpack.c.b16 %v3612, %v3610
        %v3693 = vpack.c.b16 %v3615, %v3613
        %v3694 = vpack.c.b16 %v3616, %v3614
        %v3695 = vpack.c.b16 %v3619, %v3617
        %v3696 = vpack.c.b16 %v3620, %v3618
        %v3697 = vpack.c.b16 %v3623, %v3621
        %v3698 = vpack.c.b16 %v3624, %v3622
        %v3699 = vpack.c.b16 %v3627, %v3625
        %v3700 = vpack.c.b16 %v3628, %v3626
        %v3701 = vpack.c.b16 %v3631, %v3629
        %v3702 = vpack.c.b16 %v3632, %v3630
        %v3703 = vpack.c.b16 %v3635, %v3633
        %v3704 = vpack.c.b16 %v3636, %v3634
        %v3705 = vpack.c.b16 %v3639, %v3637
        %v3706 = vpack.c.b16 %v3640, %v3638
        %v3707 = vpack.c.b16 %v3643, %v3641
        %v3708 = vpack.c.b16 %v3644, %v3642
        %3773 = vmatprep.subr.bf16.mxu0 %v3646
        %3774 = vmatpush1.bf16.msra.mxu0 %v3645
        %3775 = vmatprep.subr.bf16.mxu0 %v3648
        %3776 = vmatpush1.bf16.msra.mxu0 %v3647
        %3777 = vmatprep.subr.bf16.mxu0 %v3650
        %3778 = vmatpush1.bf16.msra.mxu0 %v3649
        %3779 = vmatprep.subr.bf16.mxu0 %v3652
        %3780 = vmatpush1.bf16.msra.mxu0 %v3651
        %3781 = vmatprep.subr.bf16.mxu0 %v3654
        %3782 = vmatpush1.bf16.msra.mxu0 %v3653
        %3783 = vmatprep.subr.bf16.mxu0 %v3656
        %3784 = vmatpush1.bf16.msra.mxu0 %v3655
        %3785 = vmatprep.subr.bf16.mxu0 %v3658
        %3786 = vmatpush1.bf16.msra.mxu0 %v3657
        %3787 = vmatprep.subr.bf16.mxu0 %v3660
        %3788 = vmatpush1.bf16.msra.mxu0 %v3659
        %3789 = vmatprep.subr.bf16.mxu0 %v3662
        %3790 = vmatpush1.bf16.msra.mxu0 %v3661
        %3791 = vmatprep.subr.bf16.mxu0 %v3664
        %3792 = vmatpush1.bf16.msra.mxu0 %v3663
        %3793 = vmatprep.subr.bf16.mxu0 %v3666
        %3794 = vmatpush1.bf16.msra.mxu0 %v3665
        %3795 = vmatprep.subr.bf16.mxu0 %v3668
        %3796 = vmatpush1.bf16.msra.mxu0 %v3667
        %3797 = vmatprep.subr.bf16.mxu0 %v3670
        %3798 = vmatpush1.bf16.msra.mxu0 %v3669
        %3799 = vmatprep.subr.bf16.mxu0 %v3672
        %3800 = vmatpush1.bf16.msra.mxu0 %v3671
        %3801 = vmatprep.subr.bf16.mxu0 %v3674
        %3802 = vmatpush1.bf16.msra.mxu0 %v3673
        %3803 = vmatprep.subr.bf16.mxu0 %v3676
        %3804 = vmatpush1.bf16.msra.mxu0 %v3675
        %3805 = vmatprep.mubr.bf16.mxu0 %v3346
        %3806 = vmatmul.mubr.bf16.gmra.mrb[0].mxu0 %v3345
        %v3807 = vpop.f32.mrb[0].mxu0
        %v3808 = vadd.f32 %v3446, %v3807
        %v3809 = vpop.f32.mrb[0].mxu0
        %v3810 = vadd.f32 %v3450, %v3809
        %v3811 = vpop.f32.mrb[0].mxu0
        %v3812 = vadd.f32 %v3446, %v3811
        %v3813 = vpop.f32.mrb[0].mxu0
        %v3814 = vadd.f32 %v3450, %v3813
        %3815 = vmatprep.mubr.bf16.mxu0 %v3350
        %3816 = vmatmul.mubr.bf16.gmra.mrb[0].mxu0 %v3349
        %v3817 = vpop.f32.mrb[0].mxu0
        %v3818 = vadd.f32 %v3446, %v3817
        %v3819 = vpop.f32.mrb[0].mxu0
        %v3820 = vadd.f32 %v3450, %v3819
        %v3821 = vpop.f32.mrb[0].mxu0
        %v3822 = vadd.f32 %v3446, %v3821
        %v3823 = vpop.f32.mrb[0].mxu0
        %v3824 = vadd.f32 %v3450, %v3823
        %3825 = vmatprep.mubr.bf16.mxu0 %v3354
        %3826 = vmatmul.mubr.bf16.gmra.mrb[0].mxu0 %v3353
        %v3827 = vpop.f32.mrb[0].mxu0
        %v3828 = vadd.f32 %v3446, %v3827
        %v3829 = vpop.f32.mrb[0].mxu0
        %v3830 = vadd.f32 %v3450, %v3829
        %v3831 = vpop.f32.mrb[0].mxu0
        %v3832 = vadd.f32 %v3446, %v3831
        %v3833 = vpop.f32.mrb[0].mxu0
        %v3834 = vadd.f32 %v3450, %v3833
        %3835 = vmatprep.mubr.bf16.mxu0 %v3358
        %3836 = vmatmul.mubr.bf16.gmra.mrb[0].mxu0 %v3357
        %v3837 = vpop.f32.mrb[0].mxu0
        %v3838 = vadd.f32 %v3446, %v3837
        %v3839 = vpop.f32.mrb[0].mxu0
        %v3840 = vadd.f32 %v3450, %v3839
        %v3841 = vpop.f32.mrb[0].mxu0
        %v3842 = vadd.f32 %v3446, %v3841
        %v3843 = vpop.f32.mrb[0].mxu0
        %v3844 = vadd.f32 %v3450, %v3843
        %3845 = vmatprep.mubr.bf16.mxu0 %v3362
        %3846 = vmatmul.mubr.bf16.gmra.mrb[0].mxu0 %v3361
        %v3847 = vpop.f32.mrb[0].mxu0
        %v3848 = vadd.f32 %v3446, %v3847
        %v3849 = vpop.f32.mrb[0].mxu0
        %v3850 = vadd.f32 %v3450, %v3849
        %v3851 = vpop.f32.mrb[0].mxu0
        %v3852 = vadd.f32 %v3446, %v3851
        %v3853 = vpop.f32.mrb[0].mxu0
        %v3854 = vadd.f32 %v3450, %v3853
        %3855 = vmatprep.mubr.bf16.mxu0 %v3366
        %3856 = vmatmul.mubr.bf16.gmra.mrb[0].mxu0 %v3365
        %v3857 = vpop.f32.mrb[0].mxu0
        %v3858 = vadd.f32 %v3446, %v3857
        %v3859 = vpop.f32.mrb[0].mxu0
        %v3860 = vadd.f32 %v3450, %v3859
        %v3861 = vpop.f32.mrb[0].mxu0
        %v3862 = vadd.f32 %v3446, %v3861
        %v3863 = vpop.f32.mrb[0].mxu0
        %v3864 = vadd.f32 %v3450, %v3863
        %3865 = vmatprep.mubr.bf16.mxu0 %v3370
        %3866 = vmatmul.mubr.bf16.gmra.mrb[0].mxu0 %v3369
        %v3867 = vpop.f32.mrb[0].mxu0
        %v3868 = vadd.f32 %v3446, %v3867
        %v3869 = vpop.f32.mrb[0].mxu0
        %v3870 = vadd.f32 %v3450, %v3869
        %v3871 = vpop.f32.mrb[0].mxu0
        %v3872 = vadd.f32 %v3446, %v3871
        %v3873 = vpop.f32.mrb[0].mxu0
        %v3874 = vadd.f32 %v3450, %v3873
        %3875 = vmatprep.mubr.bf16.mxu0 %v3374
        %3876 = vmatmul.mubr.bf16.gmra.mrb[0].mxu0 %v3373
        %v3877 = vpop.f32.mrb[0].mxu0
        %v3878 = vadd.f32 %v3446, %v3877
        %v3879 = vpop.f32.mrb[0].mxu0
        %v3880 = vadd.f32 %v3450, %v3879
        %v3881 = vpop.f32.mrb[0].mxu0
        %v3882 = vadd.f32 %v3446, %v3881
        %v3883 = vpop.f32.mrb[0].mxu0
        %v3884 = vadd.f32 %v3450, %v3883
        %3885 = vdwg.mxu0
        %3886 = vmatprep.subr.bf16.mxu0 %v3678
        %3887 = vmatpush1.bf16.msra.mxu0 %v3677
        %3888 = vmatprep.subr.bf16.mxu0 %v3680
        %3889 = vmatpush1.bf16.msra.mxu0 %v3679
        %3890 = vmatprep.subr.bf16.mxu0 %v3682
        %3891 = vmatpush1.bf16.msra.mxu0 %v3681
        %3892 = vmatprep.subr.bf16.mxu0 %v3684
        %3893 = vmatpush1.bf16.msra.mxu0 %v3683
        %3894 = vmatprep.subr.bf16.mxu0 %v3686
        %3895 = vmatpush1.bf16.msra.mxu0 %v3685
        %3896 = vmatprep.subr.bf16.mxu0 %v3688
        %3897 = vmatpush1.bf16.msra.mxu0 %v3687
        %3898 = vmatprep.subr.bf16.mxu0 %v3690
        %3899 = vmatpush1.bf16.msra.mxu0 %v3689
        %3900 = vmatprep.subr.bf16.mxu0 %v3692
        %3901 = vmatpush1.bf16.msra.mxu0 %v3691
        %3902 = vmatprep.subr.bf16.mxu0 %v3694
        %3903 = vmatpush1.bf16.msra.mxu0 %v3693
        %3904 = vmatprep.subr.bf16.mxu0 %v3696
        %3905 = vmatpush1.bf16.msra.mxu0 %v3695
        %3906 = vmatprep.subr.bf16.mxu0 %v3698
        %3907 = vmatpush1.bf16.msra.mxu0 %v3697
        %3908 = vmatprep.subr.bf16.mxu0 %v3700
        %3909 = vmatpush1.bf16.msra.mxu0 %v3699
        %3910 = vmatprep.subr.bf16.mxu0 %v3702
        %3911 = vmatpush1.bf16.msra.mxu0 %v3701
        %3912 = vmatprep.subr.bf16.mxu0 %v3704
        %3913 = vmatpush1.bf16.msra.mxu0 %v3703
        %3914 = vmatprep.subr.bf16.mxu0 %v3706
        %3915 = vmatpush1.bf16.msra.mxu0 %v3705
        %3916 = vmatprep.subr.bf16.mxu0 %v3708
        %3917 = vmatpush1.bf16.msra.mxu0 %v3707
        %3918 = vmatprep.mubr.bf16.mxu0 %v3348
        %3919 = vmatmul.mubr.bf16.gmra.mrb[0].mxu0 %v3347
        %v3920 = vpop.f32.mrb[0].mxu0
        %v3921 = vadd.f32 %v3808, %v3920
        %v3922 = vpop.f32.mrb[0].mxu0
        %v3923 = vadd.f32 %v3810, %v3922
        %v3924 = vpop.f32.mrb[0].mxu0
        %v3925 = vadd.f32 %v3812, %v3924
        %v3926 = vpop.f32.mrb[0].mxu0
        %v3927 = vadd.f32 %v3814, %v3926
        %3928 = vmatprep.mubr.bf16.mxu0 %v3352
        %3929 = vmatmul.mubr.bf16.gmra.mrb[0].mxu0 %v3351
        %v3930 = vpop.f32.mrb[0].mxu0
        %v3931 = vadd.f32 %v3818, %v3930
        %v3932 = vpop.f32.mrb[0].mxu0
        %v3933 = vadd.f32 %v3820, %v3932
        %v3934 = vpop.f32.mrb[0].mxu0
        %v3935 = vadd.f32 %v3822, %v3934
        %v3936 = vpop.f32.mrb[0].mxu0
        %v3937 = vadd.f32 %v3824, %v3936
        %3938 = vmatprep.mubr.bf16.mxu0 %v3356
        %3939 = vmatmul.mubr.bf16.gmra.mrb[0].mxu0 %v3355
        %v3940 = vpop.f32.mrb[0].mxu0
        %v3941 = vadd.f32 %v3828, %v3940
        %v3942 = vpop.f32.mrb[0].mxu0
        %v3943 = vadd.f32 %v3830, %v3942
        %v3944 = vpop.f32.mrb[0].mxu0
        %v3945 = vadd.f32 %v3832, %v3944
        %v3946 = vpop.f32.mrb[0].mxu0
        %v3947 = vadd.f32 %v3834, %v3946
        %3948 = vmatprep.mubr.bf16.mxu0 %v3360
        %3949 = vmatmul.mubr.bf16.gmra.mrb[0].mxu0 %v3359
        %v3950 = vpop.f32.mrb[0].mxu0
        %v3951 = vadd.f32 %v3838, %v3950
        %v3952 = vpop.f32.mrb[0].mxu0
        %v3953 = vadd.f32 %v3840, %v3952
        %v3954 = vpop.f32.mrb[0].mxu0
        %v3955 = vadd.f32 %v3842, %v3954
        %v3956 = vpop.f32.mrb[0].mxu0
        %v3957 = vadd.f32 %v3844, %v3956
        %3958 = vmatprep.mubr.bf16.mxu0 %v3364
        %3959 = vmatmul.mubr.bf16.gmra.mrb[0].mxu0 %v3363
        %v3960 = vpop.f32.mrb[0].mxu0
        %v3961 = vadd.f32 %v3848, %v3960
        %v3962 = vpop.f32.mrb[0].mxu0
        %v3963 = vadd.f32 %v3850, %v3962
        %v3964 = vpop.f32.mrb[0].mxu0
        %v3965 = vadd.f32 %v3852, %v3964
        %v3966 = vpop.f32.mrb[0].mxu0
        %v3967 = vadd.f32 %v3854, %v3966
        %3968 = vmatprep.mubr.bf16.mxu0 %v3368
        %3969 = vmatmul.mubr.bf16.gmra.mrb[0].mxu0 %v3367
        %v3970 = vpop.f32.mrb[0].mxu0
        %v3971 = vadd.f32 %v3858, %v3970
        %v3972 = vpop.f32.mrb[0].mxu0
        %v3973 = vadd.f32 %v3860, %v3972
        %v3974 = vpop.f32.mrb[0].mxu0
        %v3975 = vadd.f32 %v3862, %v3974
        %v3976 = vpop.f32.mrb[0].mxu0
        %v3977 = vadd.f32 %v3864, %v3976
        %3978 = vmatprep.mubr.bf16.mxu0 %v3372
        %3979 = vmatmul.mubr.bf16.gmra.mrb[0].mxu0 %v3371
        %v3980 = vpop.f32.mrb[0].mxu0
        %v3981 = vadd.f32 %v3868, %v3980
        %v3982 = vpop.f32.mrb[0].mxu0
        %v3983 = vadd.f32 %v3870, %v3982
        %v3984 = vpop.f32.mrb[0].mxu0
        %v3985 = vadd.f32 %v3872, %v3984
        %v3986 = vpop.f32.mrb[0].mxu0
        %v3987 = vadd.f32 %v3874, %v3986
        %3988 = vmatprep.mubr.bf16.mxu0 %v3376
        %3989 = vmatmul.mubr.bf16.gmra.mrb[0].mxu0 %v3375
        %v3990 = vpop.f32.mrb[0].mxu0
        %v3991 = vadd.f32 %v3878, %v3990
        %v3992 = vpop.f32.mrb[0].mxu0
        %v3993 = vadd.f32 %v3880, %v3992
        %v3994 = vpop.f32.mrb[0].mxu0
        %v3995 = vadd.f32 %v3882, %v3994
        %v3996 = vpop.f32.mrb[0].mxu0
        %v3997 = vadd.f32 %v3884, %v3996
        %3998 = vdwg.mxu0
        %v3999 = vld [vmem:[%s491] sm:$0xff]
        %v4000 = vld [vmem:[%s491 + $0x8] sm:$0xff]
        %v4001 = vld [vmem:[%s491 + $0x80] sm:$0xff]
        %v4002 = vld [vmem:[%s491 + $0x88] sm:$0xff]
        %v4003 = vld [vmem:[%s491 + $0x100] sm:$0xff]
        %v4004 = vld [vmem:[%s491 + $0x108] sm:$0xff]
        %v4005 = vld [vmem:[%s491 + $0x180] sm:$0xff]
        %v4006 = vld [vmem:[%s491 + $0x188] sm:$0xff]
        %v4007 = vld [vmem:[%s491 + $0x200] sm:$0xff]
        %v4008 = vld [vmem:[%s491 + $0x208] sm:$0xff]
        %v4009 = vld [vmem:[%s491 + $0x280] sm:$0xff]
        %v4010 = vld [vmem:[%s491 + $0x288] sm:$0xff]
        %v4011 = vld [vmem:[%s491 + $0x300] sm:$0xff]
        %v4012 = vld [vmem:[%s491 + $0x308] sm:$0xff]
        %v4013 = vld [vmem:[%s491 + $0x380] sm:$0xff]
        %v4014 = vld [vmem:[%s491 + $0x388] sm:$0xff]
        %v4015 = vld [vmem:[%s491 + $0x400] sm:$0xff]
        %v4016 = vld [vmem:[%s491 + $0x408] sm:$0xff]
        %v4017 = vld [vmem:[%s491 + $0x480] sm:$0xff]
        %v4018 = vld [vmem:[%s491 + $0x488] sm:$0xff]
        %v4019 = vld [vmem:[%s491 + $0x500] sm:$0xff]
        %v4020 = vld [vmem:[%s491 + $0x508] sm:$0xff]
        %v4021 = vld [vmem:[%s491 + $0x580] sm:$0xff]
        %v4022 = vld [vmem:[%s491 + $0x588] sm:$0xff]
        %v4023 = vld [vmem:[%s491 + $0x600] sm:$0xff]
        %v4024 = vld [vmem:[%s491 + $0x608] sm:$0xff]
        %v4025 = vld [vmem:[%s491 + $0x680] sm:$0xff]
        %v4026 = vld [vmem:[%s491 + $0x688] sm:$0xff]
        %v4027 = vld [vmem:[%s491 + $0x700] sm:$0xff]
        %v4028 = vld [vmem:[%s491 + $0x708] sm:$0xff]
        %v4029 = vld [vmem:[%s491 + $0x780] sm:$0xff]
        %v4030 = vld [vmem:[%s491 + $0x788] sm:$0xff]
        %v4031 = vunpack.c.l.bf16 %v3999
        %v4032 = vunpack.c.h.bf16 %v3999
        %v4033 = vunpack.c.l.bf16 %v4000
        %v4034 = vunpack.c.h.bf16 %v4000
        %v4035 = vunpack.c.l.bf16 %v4001
        %v4036 = vunpack.c.h.bf16 %v4001
        %v4037 = vunpack.c.l.bf16 %v4002
        %v4038 = vunpack.c.h.bf16 %v4002
        %v4039 = vunpack.c.l.bf16 %v4003
        %v4040 = vunpack.c.h.bf16 %v4003
        %v4041 = vunpack.c.l.bf16 %v4004
        %v4042 = vunpack.c.h.bf16 %v4004
        %v4043 = vunpack.c.l.bf16 %v4005
        %v4044 = vunpack.c.h.bf16 %v4005
        %v4045 = vunpack.c.l.bf16 %v4006
        %v4046 = vunpack.c.h.bf16 %v4006
        %v4047 = vunpack.c.l.bf16 %v4007
        %v4048 = vunpack.c.h.bf16 %v4007
        %v4049 = vunpack.c.l.bf16 %v4008
        %v4050 = vunpack.c.h.bf16 %v4008
        %v4051 = vunpack.c.l.bf16 %v4009
        %v4052 = vunpack.c.h.bf16 %v4009
        %v4053 = vunpack.c.l.bf16 %v4010
        %v4054 = vunpack.c.h.bf16 %v4010
        %v4055 = vunpack.c.l.bf16 %v4011
        %v4056 = vunpack.c.h.bf16 %v4011
        %v4057 = vunpack.c.l.bf16 %v4012
        %v4058 = vunpack.c.h.bf16 %v4012
        %v4059 = vunpack.c.l.bf16 %v4013
        %v4060 = vunpack.c.h.bf16 %v4013
        %v4061 = vunpack.c.l.bf16 %v4014
        %v4062 = vunpack.c.h.bf16 %v4014
        %v4063 = vunpack.c.l.bf16 %v4015
        %v4064 = vunpack.c.h.bf16 %v4015
        %v4065 = vunpack.c.l.bf16 %v4016
        %v4066 = vunpack.c.h.bf16 %v4016
        %v4067 = vunpack.c.l.bf16 %v4017
        %v4068 = vunpack.c.h.bf16 %v4017
        %v4069 = vunpack.c.l.bf16 %v4018
        %v4070 = vunpack.c.h.bf16 %v4018
        %v4071 = vunpack.c.l.bf16 %v4019
        %v4072 = vunpack.c.h.bf16 %v4019
        %v4073 = vunpack.c.l.bf16 %v4020
        %v4074 = vunpack.c.h.bf16 %v4020
        %v4075 = vunpack.c.l.bf16 %v4021
        %v4076 = vunpack.c.h.bf16 %v4021
        %v4077 = vunpack.c.l.bf16 %v4022
        %v4078 = vunpack.c.h.bf16 %v4022
        %v4079 = vunpack.c.l.bf16 %v4023
        %v4080 = vunpack.c.h.bf16 %v4023
        %v4081 = vunpack.c.l.bf16 %v4024
        %v4082 = vunpack.c.h.bf16 %v4024
        %v4083 = vunpack.c.l.bf16 %v4025
        %v4084 = vunpack.c.h.bf16 %v4025
        %v4085 = vunpack.c.l.bf16 %v4026
        %v4086 = vunpack.c.h.bf16 %v4026
        %v4087 = vunpack.c.l.bf16 %v4027
        %v4088 = vunpack.c.h.bf16 %v4027
        %v4089 = vunpack.c.l.bf16 %v4028
        %v4090 = vunpack.c.h.bf16 %v4028
        %v4091 = vunpack.c.l.bf16 %v4029
        %v4092 = vunpack.c.h.bf16 %v4029
        %v4093 = vunpack.c.l.bf16 %v4030
        %v4094 = vunpack.c.h.bf16 %v4030
        %v4095 = vmul.f32 %v1563, %v4031
        %v4096 = vmul.f32 %v1564, %v4032
        %v4097 = vmul.f32 %v1565, %v4033
        %v4098 = vmul.f32 %v1566, %v4034
        %v4099 = vmul.f32 %v1575, %v4035
        %v4100 = vmul.f32 %v1576, %v4036
        %v4101 = vmul.f32 %v1577, %v4037
        %v4102 = vmul.f32 %v1578, %v4038
        %v4103 = vmul.f32 %v1587, %v4039
        %v4104 = vmul.f32 %v1588, %v4040
        %v4105 = vmul.f32 %v1589, %v4041
        %v4106 = vmul.f32 %v1590, %v4042
        %v4107 = vmul.f32 %v1599, %v4043
        %v4108 = vmul.f32 %v1600, %v4044
        %v4109 = vmul.f32 %v1601, %v4045
        %v4110 = vmul.f32 %v1602, %v4046
        %v4111 = vmul.f32 %v1611, %v4047
        %v4112 = vmul.f32 %v1612, %v4048
        %v4113 = vmul.f32 %v1613, %v4049
        %v4114 = vmul.f32 %v1614, %v4050
        %v4115 = vmul.f32 %v1623, %v4051
        %v4116 = vmul.f32 %v1624, %v4052
        %v4117 = vmul.f32 %v1625, %v4053
        %v4118 = vmul.f32 %v1626, %v4054
        %v4119 = vmul.f32 %v1635, %v4055
        %v4120 = vmul.f32 %v1636, %v4056
        %v4121 = vmul.f32 %v1637, %v4057
        %v4122 = vmul.f32 %v1638, %v4058
        %v4123 = vmul.f32 %v1647, %v4059
        %v4124 = vmul.f32 %v1648, %v4060
        %v4125 = vmul.f32 %v1649, %v4061
        %v4126 = vmul.f32 %v1650, %v4062
        %v4127 = vmul.f32 %v1659, %v4063
        %v4128 = vmul.f32 %v1660, %v4064
        %v4129 = vmul.f32 %v1661, %v4065
        %v4130 = vmul.f32 %v1662, %v4066
        %v4131 = vmul.f32 %v1671, %v4067
        %v4132 = vmul.f32 %v1672, %v4068
        %v4133 = vmul.f32 %v1673, %v4069
        %v4134 = vmul.f32 %v1674, %v4070
        %v4135 = vmul.f32 %v1683, %v4071
        %v4136 = vmul.f32 %v1684, %v4072
        %v4137 = vmul.f32 %v1685, %v4073
        %v4138 = vmul.f32 %v1686, %v4074
        %v4139 = vmul.f32 %v1695, %v4075
        %v4140 = vmul.f32 %v1696, %v4076
        %v4141 = vmul.f32 %v1697, %v4077
        %v4142 = vmul.f32 %v1698, %v4078
        %v4143 = vmul.f32 %v1707, %v4079
        %v4144 = vmul.f32 %v1708, %v4080
        %v4145 = vmul.f32 %v1709, %v4081
        %v4146 = vmul.f32 %v1710, %v4082
        %v4147 = vmul.f32 %v1719, %v4083
        %v4148 = vmul.f32 %v1720, %v4084
        %v4149 = vmul.f32 %v1721, %v4085
        %v4150 = vmul.f32 %v1722, %v4086
        %v4151 = vmul.f32 %v1731, %v4087
        %v4152 = vmul.f32 %v1732, %v4088
        %v4153 = vmul.f32 %v1733, %v4089
        %v4154 = vmul.f32 %v1734, %v4090
        %v4155 = vmul.f32 %v1743, %v4091
        %v4156 = vmul.f32 %v1744, %v4092
        %v4157 = vmul.f32 %v1745, %v4093
        %v4158 = vmul.f32 %v1746, %v4094
        %v4159 = vadd.f32 %v4095, %v4096
        %v4160 = vadd.f32 %v4159, %v4097
        %v4161 = vadd.f32 %v4160, %v4098
        %4162 = vadd.xlane.f32.xlu0 %v4161
        %v4163 = vpop.xlane.xlu0 %4162
        %v4164 = vadd.f32 %v4099, %v4100
        %v4165 = vadd.f32 %v4164, %v4101
        %v4166 = vadd.f32 %v4165, %v4102
        %4167 = vadd.xlane.f32.xlu0 %v4166
        %v4168 = vpop.xlane.xlu0 %4167
        %v4169 = vadd.f32 %v4103, %v4104
        %v4170 = vadd.f32 %v4169, %v4105
        %v4171 = vadd.f32 %v4170, %v4106
        %4172 = vadd.xlane.f32.xlu0 %v4171
        %v4173 = vpop.xlane.xlu0 %4172
        %v4174 = vadd.f32 %v4107, %v4108
        %v4175 = vadd.f32 %v4174, %v4109
        %v4176 = vadd.f32 %v4175, %v4110
        %4177 = vadd.xlane.f32.xlu0 %v4176
        %v4178 = vpop.xlane.xlu0 %4177
        %v4179 = vadd.f32 %v4111, %v4112
        %v4180 = vadd.f32 %v4179, %v4113
        %v4181 = vadd.f32 %v4180, %v4114
        %4182 = vadd.xlane.f32.xlu0 %v4181
        %v4183 = vpop.xlane.xlu0 %4182
        %v4184 = vadd.f32 %v4115, %v4116
        %v4185 = vadd.f32 %v4184, %v4117
        %v4186 = vadd.f32 %v4185, %v4118
        %4187 = vadd.xlane.f32.xlu0 %v4186
        %v4188 = vpop.xlane.xlu0 %4187
        %v4189 = vadd.f32 %v4119, %v4120
        %v4190 = vadd.f32 %v4189, %v4121
        %v4191 = vadd.f32 %v4190, %v4122
        %4192 = vadd.xlane.f32.xlu0 %v4191
        %v4193 = vpop.xlane.xlu0 %4192
        %v4194 = vadd.f32 %v4123, %v4124
        %v4195 = vadd.f32 %v4194, %v4125
        %v4196 = vadd.f32 %v4195, %v4126
        %4197 = vadd.xlane.f32.xlu0 %v4196
        %v4198 = vpop.xlane.xlu0 %4197
        %v4199 = vadd.f32 %v4127, %v4128
        %v4200 = vadd.f32 %v4199, %v4129
        %v4201 = vadd.f32 %v4200, %v4130
        %4202 = vadd.xlane.f32.xlu0 %v4201
        %v4203 = vpop.xlane.xlu0 %4202
        %v4204 = vadd.f32 %v4131, %v4132
        %v4205 = vadd.f32 %v4204, %v4133
        %v4206 = vadd.f32 %v4205, %v4134
        %4207 = vadd.xlane.f32.xlu0 %v4206
        %v4208 = vpop.xlane.xlu0 %4207
        %v4209 = vadd.f32 %v4135, %v4136
        %v4210 = vadd.f32 %v4209, %v4137
        %v4211 = vadd.f32 %v4210, %v4138
        %4212 = vadd.xlane.f32.xlu0 %v4211
        %v4213 = vpop.xlane.xlu0 %4212
        %v4214 = vadd.f32 %v4139, %v4140
        %v4215 = vadd.f32 %v4214, %v4141
        %v4216 = vadd.f32 %v4215, %v4142
        %4217 = vadd.xlane.f32.xlu0 %v4216
        %v4218 = vpop.xlane.xlu0 %4217
        %v4219 = vadd.f32 %v4143, %v4144
        %v4220 = vadd.f32 %v4219, %v4145
        %v4221 = vadd.f32 %v4220, %v4146
        %4222 = vadd.xlane.f32.xlu0 %v4221
        %v4223 = vpop.xlane.xlu0 %4222
        %v4224 = vadd.f32 %v4147, %v4148
        %v4225 = vadd.f32 %v4224, %v4149
        %v4226 = vadd.f32 %v4225, %v4150
        %4227 = vadd.xlane.f32.xlu0 %v4226
        %v4228 = vpop.xlane.xlu0 %4227
        %v4229 = vadd.f32 %v4151, %v4152
        %v4230 = vadd.f32 %v4229, %v4153
        %v4231 = vadd.f32 %v4230, %v4154
        %4232 = vadd.xlane.f32.xlu0 %v4231
        %v4233 = vpop.xlane.xlu0 %4232
        %v4234 = vadd.f32 %v4155, %v4156
        %v4235 = vadd.f32 %v4234, %v4157
        %v4236 = vadd.f32 %v4235, %v4158
        %4237 = vadd.xlane.f32.xlu0 %v4236
        %v4238 = vpop.xlane.xlu0 %4237
        %v4239 = vld [vmem:[%s491 + $0x10] sm:$0xff]
        %v4240 = vld [vmem:[%s491 + $0x18] sm:$0xff]
        %v4241 = vld [vmem:[%s491 + $0x90] sm:$0xff]
        %v4242 = vld [vmem:[%s491 + $0x98] sm:$0xff]
        %v4243 = vld [vmem:[%s491 + $0x110] sm:$0xff]
        %v4244 = vld [vmem:[%s491 + $0x118] sm:$0xff]
        %v4245 = vld [vmem:[%s491 + $0x190] sm:$0xff]
        %v4246 = vld [vmem:[%s491 + $0x198] sm:$0xff]
        %v4247 = vld [vmem:[%s491 + $0x210] sm:$0xff]
        %v4248 = vld [vmem:[%s491 + $0x218] sm:$0xff]
        %v4249 = vld [vmem:[%s491 + $0x290] sm:$0xff]
        %v4250 = vld [vmem:[%s491 + $0x298] sm:$0xff]
        %v4251 = vld [vmem:[%s491 + $0x310] sm:$0xff]
        %v4252 = vld [vmem:[%s491 + $0x318] sm:$0xff]
        %v4253 = vld [vmem:[%s491 + $0x390] sm:$0xff]
        %v4254 = vld [vmem:[%s491 + $0x398] sm:$0xff]
        %v4255 = vld [vmem:[%s491 + $0x410] sm:$0xff]
        %v4256 = vld [vmem:[%s491 + $0x418] sm:$0xff]
        %v4257 = vld [vmem:[%s491 + $0x490] sm:$0xff]
        %v4258 = vld [vmem:[%s491 + $0x498] sm:$0xff]
        %v4259 = vld [vmem:[%s491 + $0x510] sm:$0xff]
        %v4260 = vld [vmem:[%s491 + $0x518] sm:$0xff]
        %v4261 = vld [vmem:[%s491 + $0x590] sm:$0xff]
        %v4262 = vld [vmem:[%s491 + $0x598] sm:$0xff]
        %v4263 = vld [vmem:[%s491 + $0x610] sm:$0xff]
        %v4264 = vld [vmem:[%s491 + $0x618] sm:$0xff]
        %v4265 = vld [vmem:[%s491 + $0x690] sm:$0xff]
        %v4266 = vld [vmem:[%s491 + $0x698] sm:$0xff]
        %v4267 = vld [vmem:[%s491 + $0x710] sm:$0xff]
        %v4268 = vld [vmem:[%s491 + $0x718] sm:$0xff]
        %v4269 = vld [vmem:[%s491 + $0x790] sm:$0xff]
        %v4270 = vld [vmem:[%s491 + $0x798] sm:$0xff]
        %v4271 = vunpack.c.l.bf16 %v4239
        %v4272 = vunpack.c.h.bf16 %v4239
        %v4273 = vunpack.c.l.bf16 %v4240
        %v4274 = vunpack.c.h.bf16 %v4240
        %v4275 = vunpack.c.l.bf16 %v4241
        %v4276 = vunpack.c.h.bf16 %v4241
        %v4277 = vunpack.c.l.bf16 %v4242
        %v4278 = vunpack.c.h.bf16 %v4242
        %v4279 = vunpack.c.l.bf16 %v4243
        %v4280 = vunpack.c.h.bf16 %v4243
        %v4281 = vunpack.c.l.bf16 %v4244
        %v4282 = vunpack.c.h.bf16 %v4244
        %v4283 = vunpack.c.l.bf16 %v4245
        %v4284 = vunpack.c.h.bf16 %v4245
        %v4285 = vunpack.c.l.bf16 %v4246
        %v4286 = vunpack.c.h.bf16 %v4246
        %v4287 = vunpack.c.l.bf16 %v4247
        %v4288 = vunpack.c.h.bf16 %v4247
        %v4289 = vunpack.c.l.bf16 %v4248
        %v4290 = vunpack.c.h.bf16 %v4248
        %v4291 = vunpack.c.l.bf16 %v4249
        %v4292 = vunpack.c.h.bf16 %v4249
        %v4293 = vunpack.c.l.bf16 %v4250
        %v4294 = vunpack.c.h.bf16 %v4250
        %v4295 = vunpack.c.l.bf16 %v4251
        %v4296 = vunpack.c.h.bf16 %v4251
        %v4297 = vunpack.c.l.bf16 %v4252
        %v4298 = vunpack.c.h.bf16 %v4252
        %v4299 = vunpack.c.l.bf16 %v4253
        %v4300 = vunpack.c.h.bf16 %v4253
        %v4301 = vunpack.c.l.bf16 %v4254
        %v4302 = vunpack.c.h.bf16 %v4254
        %v4303 = vunpack.c.l.bf16 %v4255
        %v4304 = vunpack.c.h.bf16 %v4255
        %v4305 = vunpack.c.l.bf16 %v4256
        %v4306 = vunpack.c.h.bf16 %v4256
        %v4307 = vunpack.c.l.bf16 %v4257
        %v4308 = vunpack.c.h.bf16 %v4257
        %v4309 = vunpack.c.l.bf16 %v4258
        %v4310 = vunpack.c.h.bf16 %v4258
        %v4311 = vunpack.c.l.bf16 %v4259
        %v4312 = vunpack.c.h.bf16 %v4259
        %v4313 = vunpack.c.l.bf16 %v4260
        %v4314 = vunpack.c.h.bf16 %v4260
        %v4315 = vunpack.c.l.bf16 %v4261
        %v4316 = vunpack.c.h.bf16 %v4261
        %v4317 = vunpack.c.l.bf16 %v4262
        %v4318 = vunpack.c.h.bf16 %v4262
        %v4319 = vunpack.c.l.bf16 %v4263
        %v4320 = vunpack.c.h.bf16 %v4263
        %v4321 = vunpack.c.l.bf16 %v4264
        %v4322 = vunpack.c.h.bf16 %v4264
        %v4323 = vunpack.c.l.bf16 %v4265
        %v4324 = vunpack.c.h.bf16 %v4265
        %v4325 = vunpack.c.l.bf16 %v4266
        %v4326 = vunpack.c.h.bf16 %v4266
        %v4327 = vunpack.c.l.bf16 %v4267
        %v4328 = vunpack.c.h.bf16 %v4267
        %v4329 = vunpack.c.l.bf16 %v4268
        %v4330 = vunpack.c.h.bf16 %v4268
        %v4331 = vunpack.c.l.bf16 %v4269
        %v4332 = vunpack.c.h.bf16 %v4269
        %v4333 = vunpack.c.l.bf16 %v4270
        %v4334 = vunpack.c.h.bf16 %v4270
        %v4335 = vmul.f32 %v1563, %v4271
        %v4336 = vmul.f32 %v1564, %v4272
        %v4337 = vmul.f32 %v1565, %v4273
        %v4338 = vmul.f32 %v1566, %v4274
        %v4339 = vmul.f32 %v1575, %v4275
        %v4340 = vmul.f32 %v1576, %v4276
        %v4341 = vmul.f32 %v1577, %v4277
        %v4342 = vmul.f32 %v1578, %v4278
        %v4343 = vmul.f32 %v1587, %v4279
        %v4344 = vmul.f32 %v1588, %v4280
        %v4345 = vmul.f32 %v1589, %v4281
        %v4346 = vmul.f32 %v1590, %v4282
        %v4347 = vmul.f32 %v1599, %v4283
        %v4348 = vmul.f32 %v1600, %v4284
        %v4349 = vmul.f32 %v1601, %v4285
        %v4350 = vmul.f32 %v1602, %v4286
        %v4351 = vmul.f32 %v1611, %v4287
        %v4352 = vmul.f32 %v1612, %v4288
        %v4353 = vmul.f32 %v1613, %v4289
        %v4354 = vmul.f32 %v1614, %v4290
        %v4355 = vmul.f32 %v1623, %v4291
        %v4356 = vmul.f32 %v1624, %v4292
        %v4357 = vmul.f32 %v1625, %v4293
        %v4358 = vmul.f32 %v1626, %v4294
        %v4359 = vmul.f32 %v1635, %v4295
        %v4360 = vmul.f32 %v1636, %v4296
        %v4361 = vmul.f32 %v1637, %v4297
        %v4362 = vmul.f32 %v1638, %v4298
        %v4363 = vmul.f32 %v1647, %v4299
        %v4364 = vmul.f32 %v1648, %v4300
        %v4365 = vmul.f32 %v1649, %v4301
        %v4366 = vmul.f32 %v1650, %v4302
        %v4367 = vmul.f32 %v1659, %v4303
        %v4368 = vmul.f32 %v1660, %v4304
        %v4369 = vmul.f32 %v1661, %v4305
        %v4370 = vmul.f32 %v1662, %v4306
        %v4371 = vmul.f32 %v1671, %v4307
        %v4372 = vmul.f32 %v1672, %v4308
        %v4373 = vmul.f32 %v1673, %v4309
        %v4374 = vmul.f32 %v1674, %v4310
        %v4375 = vmul.f32 %v1683, %v4311
        %v4376 = vmul.f32 %v1684, %v4312
        %v4377 = vmul.f32 %v1685, %v4313
        %v4378 = vmul.f32 %v1686, %v4314
        %v4379 = vmul.f32 %v1695, %v4315
        %v4380 = vmul.f32 %v1696, %v4316
        %v4381 = vmul.f32 %v1697, %v4317
        %v4382 = vmul.f32 %v1698, %v4318
        %v4383 = vmul.f32 %v1707, %v4319
        %v4384 = vmul.f32 %v1708, %v4320
        %v4385 = vmul.f32 %v1709, %v4321
        %v4386 = vmul.f32 %v1710, %v4322
        %v4387 = vmul.f32 %v1719, %v4323
        %v4388 = vmul.f32 %v1720, %v4324
        %v4389 = vmul.f32 %v1721, %v4325
        %v4390 = vmul.f32 %v1722, %v4326
        %v4391 = vmul.f32 %v1731, %v4327
        %v4392 = vmul.f32 %v1732, %v4328
        %v4393 = vmul.f32 %v1733, %v4329
        %v4394 = vmul.f32 %v1734, %v4330
        %v4395 = vmul.f32 %v1743, %v4331
        %v4396 = vmul.f32 %v1744, %v4332
        %v4397 = vmul.f32 %v1745, %v4333
        %v4398 = vmul.f32 %v1746, %v4334
        %v4399 = vadd.f32 %v4335, %v4336
        %v4400 = vadd.f32 %v4399, %v4337
        %v4401 = vadd.f32 %v4400, %v4338
        %4402 = vadd.xlane.f32.xlu0 %v4401
        %v4403 = vpop.xlane.xlu0 %4402
        %v4404 = vadd.f32 %v4339, %v4340
        %v4405 = vadd.f32 %v4404, %v4341
        %v4406 = vadd.f32 %v4405, %v4342
        %4407 = vadd.xlane.f32.xlu0 %v4406
        %v4408 = vpop.xlane.xlu0 %4407
        %v4409 = vadd.f32 %v4343, %v4344
        %v4410 = vadd.f32 %v4409, %v4345
        %v4411 = vadd.f32 %v4410, %v4346
        %4412 = vadd.xlane.f32.xlu0 %v4411
        %v4413 = vpop.xlane.xlu0 %4412
        %v4414 = vadd.f32 %v4347, %v4348
        %v4415 = vadd.f32 %v4414, %v4349
        %v4416 = vadd.f32 %v4415, %v4350
        %4417 = vadd.xlane.f32.xlu0 %v4416
        %v4418 = vpop.xlane.xlu0 %4417
        %v4419 = vadd.f32 %v4351, %v4352
        %v4420 = vadd.f32 %v4419, %v4353
        %v4421 = vadd.f32 %v4420, %v4354
        %4422 = vadd.xlane.f32.xlu0 %v4421
        %v4423 = vpop.xlane.xlu0 %4422
        %v4424 = vadd.f32 %v4355, %v4356
        %v4425 = vadd.f32 %v4424, %v4357
        %v4426 = vadd.f32 %v4425, %v4358
        %4427 = vadd.xlane.f32.xlu0 %v4426
        %v4428 = vpop.xlane.xlu0 %4427
        %v4429 = vadd.f32 %v4359, %v4360
        %v4430 = vadd.f32 %v4429, %v4361
        %v4431 = vadd.f32 %v4430, %v4362
        %4432 = vadd.xlane.f32.xlu0 %v4431
        %v4433 = vpop.xlane.xlu0 %4432
        %v4434 = vadd.f32 %v4363, %v4364
        %v4435 = vadd.f32 %v4434, %v4365
        %v4436 = vadd.f32 %v4435, %v4366
        %4437 = vadd.xlane.f32.xlu0 %v4436
        %v4438 = vpop.xlane.xlu0 %4437
        %v4439 = vadd.f32 %v4367, %v4368
        %v4440 = vadd.f32 %v4439, %v4369
        %v4441 = vadd.f32 %v4440, %v4370
        %4442 = vadd.xlane.f32.xlu0 %v4441
        %v4443 = vpop.xlane.xlu0 %4442
        %v4444 = vadd.f32 %v4371, %v4372
        %v4445 = vadd.f32 %v4444, %v4373
        %v4446 = vadd.f32 %v4445, %v4374
        %4447 = vadd.xlane.f32.xlu0 %v4446
        %v4448 = vpop.xlane.xlu0 %4447
        %v4449 = vadd.f32 %v4375, %v4376
        %v4450 = vadd.f32 %v4449, %v4377
        %v4451 = vadd.f32 %v4450, %v4378
        %4452 = vadd.xlane.f32.xlu0 %v4451
        %v4453 = vpop.xlane.xlu0 %4452
        %v4454 = vadd.f32 %v4379, %v4380
        %v4455 = vadd.f32 %v4454, %v4381
        %v4456 = vadd.f32 %v4455, %v4382
        %4457 = vadd.xlane.f32.xlu0 %v4456
        %v4458 = vpop.xlane.xlu0 %4457
        %v4459 = vadd.f32 %v4383, %v4384
        %v4460 = vadd.f32 %v4459, %v4385
        %v4461 = vadd.f32 %v4460, %v4386
        %4462 = vadd.xlane.f32.xlu0 %v4461
        %v4463 = vpop.xlane.xlu0 %4462
        %v4464 = vadd.f32 %v4387, %v4388
        %v4465 = vadd.f32 %v4464, %v4389
        %v4466 = vadd.f32 %v4465, %v4390
        %4467 = vadd.xlane.f32.xlu0 %v4466
        %v4468 = vpop.xlane.xlu0 %4467
        %v4469 = vadd.f32 %v4391, %v4392
        %v4470 = vadd.f32 %v4469, %v4393
        %v4471 = vadd.f32 %v4470, %v4394
        %4472 = vadd.xlane.f32.xlu0 %v4471
        %v4473 = vpop.xlane.xlu0 %4472
        %v4474 = vadd.f32 %v4395, %v4396
        %v4475 = vadd.f32 %v4474, %v4397
        %v4476 = vadd.f32 %v4475, %v4398
        %4477 = vadd.xlane.f32.xlu0 %v4476
        %v4478 = vpop.xlane.xlu0 %4477
        %v4479 = vld [vmem:[%s491 + $0x20] sm:$0xff]
        %v4480 = vld [vmem:[%s491 + $0x28] sm:$0xff]
        %v4481 = vld [vmem:[%s491 + $0xa0] sm:$0xff]
        %v4482 = vld [vmem:[%s491 + $0xa8] sm:$0xff]
        %v4483 = vld [vmem:[%s491 + $0x120] sm:$0xff]
        %v4484 = vld [vmem:[%s491 + $0x128] sm:$0xff]
        %v4485 = vld [vmem:[%s491 + $0x1a0] sm:$0xff]
        %v4486 = vld [vmem:[%s491 + $0x1a8] sm:$0xff]
        %v4487 = vld [vmem:[%s491 + $0x220] sm:$0xff]
        %v4488 = vld [vmem:[%s491 + $0x228] sm:$0xff]
        %v4489 = vld [vmem:[%s491 + $0x2a0] sm:$0xff]
        %v4490 = vld [vmem:[%s491 + $0x2a8] sm:$0xff]
        %v4491 = vld [vmem:[%s491 + $0x320] sm:$0xff]
        %v4492 = vld [vmem:[%s491 + $0x328] sm:$0xff]
        %v4493 = vld [vmem:[%s491 + $0x3a0] sm:$0xff]
        %v4494 = vld [vmem:[%s491 + $0x3a8] sm:$0xff]
        %v4495 = vld [vmem:[%s491 + $0x420] sm:$0xff]
        %v4496 = vld [vmem:[%s491 + $0x428] sm:$0xff]
        %v4497 = vld [vmem:[%s491 + $0x4a0] sm:$0xff]
        %v4498 = vld [vmem:[%s491 + $0x4a8] sm:$0xff]
        %v4499 = vld [vmem:[%s491 + $0x520] sm:$0xff]
        %v4500 = vld [vmem:[%s491 + $0x528] sm:$0xff]
        %v4501 = vld [vmem:[%s491 + $0x5a0] sm:$0xff]
        %v4502 = vld [vmem:[%s491 + $0x5a8] sm:$0xff]
        %v4503 = vld [vmem:[%s491 + $0x620] sm:$0xff]
        %v4504 = vld [vmem:[%s491 + $0x628] sm:$0xff]
        %v4505 = vld [vmem:[%s491 + $0x6a0] sm:$0xff]
        %v4506 = vld [vmem:[%s491 + $0x6a8] sm:$0xff]
        %v4507 = vld [vmem:[%s491 + $0x720] sm:$0xff]
        %v4508 = vld [vmem:[%s491 + $0x728] sm:$0xff]
        %v4509 = vld [vmem:[%s491 + $0x7a0] sm:$0xff]
        %v4510 = vld [vmem:[%s491 + $0x7a8] sm:$0xff]
        %v4511 = vunpack.c.l.bf16 %v4479
        %v4512 = vunpack.c.h.bf16 %v4479
        %v4513 = vunpack.c.l.bf16 %v4480
        %v4514 = vunpack.c.h.bf16 %v4480
        %v4515 = vunpack.c.l.bf16 %v4481
        %v4516 = vunpack.c.h.bf16 %v4481
        %v4517 = vunpack.c.l.bf16 %v4482
        %v4518 = vunpack.c.h.bf16 %v4482
        %v4519 = vunpack.c.l.bf16 %v4483
        %v4520 = vunpack.c.h.bf16 %v4483
        %v4521 = vunpack.c.l.bf16 %v4484
        %v4522 = vunpack.c.h.bf16 %v4484
        %v4523 = vunpack.c.l.bf16 %v4485
        %v4524 = vunpack.c.h.bf16 %v4485
        %v4525 = vunpack.c.l.bf16 %v4486
        %v4526 = vunpack.c.h.bf16 %v4486
        %v4527 = vunpack.c.l.bf16 %v4487
        %v4528 = vunpack.c.h.bf16 %v4487
        %v4529 = vunpack.c.l.bf16 %v4488
        %v4530 = vunpack.c.h.bf16 %v4488
        %v4531 = vunpack.c.l.bf16 %v4489
        %v4532 = vunpack.c.h.bf16 %v4489
        %v4533 = vunpack.c.l.bf16 %v4490
        %v4534 = vunpack.c.h.bf16 %v4490
        %v4535 = vunpack.c.l.bf16 %v4491
        %v4536 = vunpack.c.h.bf16 %v4491
        %v4537 = vunpack.c.l.bf16 %v4492
        %v4538 = vunpack.c.h.bf16 %v4492
        %v4539 = vunpack.c.l.bf16 %v4493
        %v4540 = vunpack.c.h.bf16 %v4493
        %v4541 = vunpack.c.l.bf16 %v4494
        %v4542 = vunpack.c.h.bf16 %v4494
        %v4543 = vunpack.c.l.bf16 %v4495
        %v4544 = vunpack.c.h.bf16 %v4495
        %v4545 = vunpack.c.l.bf16 %v4496
        %v4546 = vunpack.c.h.bf16 %v4496
        %v4547 = vunpack.c.l.bf16 %v4497
        %v4548 = vunpack.c.h.bf16 %v4497
        %v4549 = vunpack.c.l.bf16 %v4498
        %v4550 = vunpack.c.h.bf16 %v4498
        %v4551 = vunpack.c.l.bf16 %v4499
        %v4552 = vunpack.c.h.bf16 %v4499
        %v4553 = vunpack.c.l.bf16 %v4500
        %v4554 = vunpack.c.h.bf16 %v4500
        %v4555 = vunpack.c.l.bf16 %v4501
        %v4556 = vunpack.c.h.bf16 %v4501
        %v4557 = vunpack.c.l.bf16 %v4502
        %v4558 = vunpack.c.h.bf16 %v4502
        %v4559 = vunpack.c.l.bf16 %v4503
        %v4560 = vunpack.c.h.bf16 %v4503
        %v4561 = vunpack.c.l.bf16 %v4504
        %v4562 = vunpack.c.h.bf16 %v4504
        %v4563 = vunpack.c.l.bf16 %v4505
        %v4564 = vunpack.c.h.bf16 %v4505
        %v4565 = vunpack.c.l.bf16 %v4506
        %v4566 = vunpack.c.h.bf16 %v4506
        %v4567 = vunpack.c.l.bf16 %v4507
        %v4568 = vunpack.c.h.bf16 %v4507
        %v4569 = vunpack.c.l.bf16 %v4508
        %v4570 = vunpack.c.h.bf16 %v4508
        %v4571 = vunpack.c.l.bf16 %v4509
        %v4572 = vunpack.c.h.bf16 %v4509
        %v4573 = vunpack.c.l.bf16 %v4510
        %v4574 = vunpack.c.h.bf16 %v4510
        %v4575 = vmul.f32 %v1563, %v4511
        %v4576 = vmul.f32 %v1564, %v4512
        %v4577 = vmul.f32 %v1565, %v4513
        %v4578 = vmul.f32 %v1566, %v4514
        %v4579 = vmul.f32 %v1575, %v4515
        %v4580 = vmul.f32 %v1576, %v4516
        %v4581 = vmul.f32 %v1577, %v4517
        %v4582 = vmul.f32 %v1578, %v4518
        %v4583 = vmul.f32 %v1587, %v4519
        %v4584 = vmul.f32 %v1588, %v4520
        %v4585 = vmul.f32 %v1589, %v4521
        %v4586 = vmul.f32 %v1590, %v4522
        %v4587 = vmul.f32 %v1599, %v4523
        %v4588 = vmul.f32 %v1600, %v4524
        %v4589 = vmul.f32 %v1601, %v4525
        %v4590 = vmul.f32 %v1602, %v4526
        %v4591 = vmul.f32 %v1611, %v4527
        %v4592 = vmul.f32 %v1612, %v4528
        %v4593 = vmul.f32 %v1613, %v4529
        %v4594 = vmul.f32 %v1614, %v4530
        %v4595 = vmul.f32 %v1623, %v4531
        %v4596 = vmul.f32 %v1624, %v4532
        %v4597 = vmul.f32 %v1625, %v4533
        %v4598 = vmul.f32 %v1626, %v4534
        %v4599 = vmul.f32 %v1635, %v4535
        %v4600 = vmul.f32 %v1636, %v4536
        %v4601 = vmul.f32 %v1637, %v4537
        %v4602 = vmul.f32 %v1638, %v4538
        %v4603 = vmul.f32 %v1647, %v4539
        %v4604 = vmul.f32 %v1648, %v4540
        %v4605 = vmul.f32 %v1649, %v4541
        %v4606 = vmul.f32 %v1650, %v4542
        %v4607 = vmul.f32 %v1659, %v4543
        %v4608 = vmul.f32 %v1660, %v4544
        %v4609 = vmul.f32 %v1661, %v4545
        %v4610 = vmul.f32 %v1662, %v4546
        %v4611 = vmul.f32 %v1671, %v4547
        %v4612 = vmul.f32 %v1672, %v4548
        %v4613 = vmul.f32 %v1673, %v4549
        %v4614 = vmul.f32 %v1674, %v4550
        %v4615 = vmul.f32 %v1683, %v4551
        %v4616 = vmul.f32 %v1684, %v4552
        %v4617 = vmul.f32 %v1685, %v4553
        %v4618 = vmul.f32 %v1686, %v4554
        %v4619 = vmul.f32 %v1695, %v4555
        %v4620 = vmul.f32 %v1696, %v4556
        %v4621 = vmul.f32 %v1697, %v4557
        %v4622 = vmul.f32 %v1698, %v4558
        %v4623 = vmul.f32 %v1707, %v4559
        %v4624 = vmul.f32 %v1708, %v4560
        %v4625 = vmul.f32 %v1709, %v4561
        %v4626 = vmul.f32 %v1710, %v4562
        %v4627 = vmul.f32 %v1719, %v4563
        %v4628 = vmul.f32 %v1720, %v4564
        %v4629 = vmul.f32 %v1721, %v4565
        %v4630 = vmul.f32 %v1722, %v4566
        %v4631 = vmul.f32 %v1731, %v4567
        %v4632 = vmul.f32 %v1732, %v4568
        %v4633 = vmul.f32 %v1733, %v4569
        %v4634 = vmul.f32 %v1734, %v4570
        %v4635 = vmul.f32 %v1743, %v4571
        %v4636 = vmul.f32 %v1744, %v4572
        %v4637 = vmul.f32 %v1745, %v4573
        %v4638 = vmul.f32 %v1746, %v4574
        %v4639 = vadd.f32 %v4575, %v4576
        %v4640 = vadd.f32 %v4639, %v4577
        %v4641 = vadd.f32 %v4640, %v4578
        %4642 = vadd.xlane.f32.xlu0 %v4641
        %v4643 = vpop.xlane.xlu0 %4642
        %v4644 = vadd.f32 %v4579, %v4580
        %v4645 = vadd.f32 %v4644, %v4581
        %v4646 = vadd.f32 %v4645, %v4582
        %4647 = vadd.xlane.f32.xlu0 %v4646
        %v4648 = vpop.xlane.xlu0 %4647
        %v4649 = vadd.f32 %v4583, %v4584
        %v4650 = vadd.f32 %v4649, %v4585
        %v4651 = vadd.f32 %v4650, %v4586
        %4652 = vadd.xlane.f32.xlu0 %v4651
        %v4653 = vpop.xlane.xlu0 %4652
        %v4654 = vadd.f32 %v4587, %v4588
        %v4655 = vadd.f32 %v4654, %v4589
        %v4656 = vadd.f32 %v4655, %v4590
        %4657 = vadd.xlane.f32.xlu0 %v4656
        %v4658 = vpop.xlane.xlu0 %4657
        %v4659 = vadd.f32 %v4591, %v4592
        %v4660 = vadd.f32 %v4659, %v4593
        %v4661 = vadd.f32 %v4660, %v4594
        %4662 = vadd.xlane.f32.xlu0 %v4661
        %v4663 = vpop.xlane.xlu0 %4662
        %v4664 = vadd.f32 %v4595, %v4596
        %v4665 = vadd.f32 %v4664, %v4597
        %v4666 = vadd.f32 %v4665, %v4598
        %4667 = vadd.xlane.f32.xlu0 %v4666
        %v4668 = vpop.xlane.xlu0 %4667
        %v4669 = vadd.f32 %v4599, %v4600
        %v4670 = vadd.f32 %v4669, %v4601
        %v4671 = vadd.f32 %v4670, %v4602
        %4672 = vadd.xlane.f32.xlu0 %v4671
        %v4673 = vpop.xlane.xlu0 %4672
        %v4674 = vadd.f32 %v4603, %v4604
        %v4675 = vadd.f32 %v4674, %v4605
        %v4676 = vadd.f32 %v4675, %v4606
        %4677 = vadd.xlane.f32.xlu0 %v4676
        %v4678 = vpop.xlane.xlu0 %4677
        %v4679 = vadd.f32 %v4607, %v4608
        %v4680 = vadd.f32 %v4679, %v4609
        %v4681 = vadd.f32 %v4680, %v4610
        %4682 = vadd.xlane.f32.xlu0 %v4681
        %v4683 = vpop.xlane.xlu0 %4682
        %v4684 = vadd.f32 %v4611, %v4612
        %v4685 = vadd.f32 %v4684, %v4613
        %v4686 = vadd.f32 %v4685, %v4614
        %4687 = vadd.xlane.f32.xlu0 %v4686
        %v4688 = vpop.xlane.xlu0 %4687
        %v4689 = vadd.f32 %v4615, %v4616
        %v4690 = vadd.f32 %v4689, %v4617
        %v4691 = vadd.f32 %v4690, %v4618
        %4692 = vadd.xlane.f32.xlu0 %v4691
        %v4693 = vpop.xlane.xlu0 %4692
        %v4694 = vadd.f32 %v4619, %v4620
        %v4695 = vadd.f32 %v4694, %v4621
        %v4696 = vadd.f32 %v4695, %v4622
        %4697 = vadd.xlane.f32.xlu0 %v4696
        %v4698 = vpop.xlane.xlu0 %4697
        %v4699 = vadd.f32 %v4623, %v4624
        %v4700 = vadd.f32 %v4699, %v4625
        %v4701 = vadd.f32 %v4700, %v4626
        %4702 = vadd.xlane.f32.xlu0 %v4701
        %v4703 = vpop.xlane.xlu0 %4702
        %v4704 = vadd.f32 %v4627, %v4628
        %v4705 = vadd.f32 %v4704, %v4629
        %v4706 = vadd.f32 %v4705, %v4630
        %4707 = vadd.xlane.f32.xlu0 %v4706
        %v4708 = vpop.xlane.xlu0 %4707
        %v4709 = vadd.f32 %v4631, %v4632
        %v4710 = vadd.f32 %v4709, %v4633
        %v4711 = vadd.f32 %v4710, %v4634
        %4712 = vadd.xlane.f32.xlu0 %v4711
        %v4713 = vpop.xlane.xlu0 %4712
        %v4714 = vadd.f32 %v4635, %v4636
        %v4715 = vadd.f32 %v4714, %v4637
        %v4716 = vadd.f32 %v4715, %v4638
        %4717 = vadd.xlane.f32.xlu0 %v4716
        %v4718 = vpop.xlane.xlu0 %4717
        %v4719 = vld [vmem:[%s491 + $0x30] sm:$0xff]
        %v4720 = vld [vmem:[%s491 + $0x38] sm:$0xff]
        %v4721 = vld [vmem:[%s491 + $0xb0] sm:$0xff]
        %v4722 = vld [vmem:[%s491 + $0xb8] sm:$0xff]
        %v4723 = vld [vmem:[%s491 + $0x130] sm:$0xff]
        %v4724 = vld [vmem:[%s491 + $0x138] sm:$0xff]
        %v4725 = vld [vmem:[%s491 + $0x1b0] sm:$0xff]
        %v4726 = vld [vmem:[%s491 + $0x1b8] sm:$0xff]
        %v4727 = vld [vmem:[%s491 + $0x230] sm:$0xff]
        %v4728 = vld [vmem:[%s491 + $0x238] sm:$0xff]
        %v4729 = vld [vmem:[%s491 + $0x2b0] sm:$0xff]
        %v4730 = vld [vmem:[%s491 + $0x2b8] sm:$0xff]
        %v4731 = vld [vmem:[%s491 + $0x330] sm:$0xff]
        %v4732 = vld [vmem:[%s491 + $0x338] sm:$0xff]
        %v4733 = vld [vmem:[%s491 + $0x3b0] sm:$0xff]
        %v4734 = vld [vmem:[%s491 + $0x3b8] sm:$0xff]
        %v4735 = vld [vmem:[%s491 + $0x430] sm:$0xff]
        %v4736 = vld [vmem:[%s491 + $0x438] sm:$0xff]
        %v4737 = vld [vmem:[%s491 + $0x4b0] sm:$0xff]
        %v4738 = vld [vmem:[%s491 + $0x4b8] sm:$0xff]
        %v4739 = vld [vmem:[%s491 + $0x530] sm:$0xff]
        %v4740 = vld [vmem:[%s491 + $0x538] sm:$0xff]
        %v4741 = vld [vmem:[%s491 + $0x5b0] sm:$0xff]
        %v4742 = vld [vmem:[%s491 + $0x5b8] sm:$0xff]
        %v4743 = vld [vmem:[%s491 + $0x630] sm:$0xff]
        %v4744 = vld [vmem:[%s491 + $0x638] sm:$0xff]
        %v4745 = vld [vmem:[%s491 + $0x6b0] sm:$0xff]
        %v4746 = vld [vmem:[%s491 + $0x6b8] sm:$0xff]
        %v4747 = vld [vmem:[%s491 + $0x730] sm:$0xff]
        %v4748 = vld [vmem:[%s491 + $0x738] sm:$0xff]
        %v4749 = vld [vmem:[%s491 + $0x7b0] sm:$0xff]
        %v4750 = vld [vmem:[%s491 + $0x7b8] sm:$0xff]
        %v4751 = vunpack.c.l.bf16 %v4719
        %v4752 = vunpack.c.h.bf16 %v4719
        %v4753 = vunpack.c.l.bf16 %v4720
        %v4754 = vunpack.c.h.bf16 %v4720
        %v4755 = vunpack.c.l.bf16 %v4721
        %v4756 = vunpack.c.h.bf16 %v4721
        %v4757 = vunpack.c.l.bf16 %v4722
        %v4758 = vunpack.c.h.bf16 %v4722
        %v4759 = vunpack.c.l.bf16 %v4723
        %v4760 = vunpack.c.h.bf16 %v4723
        %v4761 = vunpack.c.l.bf16 %v4724
        %v4762 = vunpack.c.h.bf16 %v4724
        %v4763 = vunpack.c.l.bf16 %v4725
        %v4764 = vunpack.c.h.bf16 %v4725
        %v4765 = vunpack.c.l.bf16 %v4726
        %v4766 = vunpack.c.h.bf16 %v4726
        %v4767 = vunpack.c.l.bf16 %v4727
        %v4768 = vunpack.c.h.bf16 %v4727
        %v4769 = vunpack.c.l.bf16 %v4728
        %v4770 = vunpack.c.h.bf16 %v4728
        %v4771 = vunpack.c.l.bf16 %v4729
        %v4772 = vunpack.c.h.bf16 %v4729
        %v4773 = vunpack.c.l.bf16 %v4730
        %v4774 = vunpack.c.h.bf16 %v4730
        %v4775 = vunpack.c.l.bf16 %v4731
        %v4776 = vunpack.c.h.bf16 %v4731
        %v4777 = vunpack.c.l.bf16 %v4732
        %v4778 = vunpack.c.h.bf16 %v4732
        %v4779 = vunpack.c.l.bf16 %v4733
        %v4780 = vunpack.c.h.bf16 %v4733
        %v4781 = vunpack.c.l.bf16 %v4734
        %v4782 = vunpack.c.h.bf16 %v4734
        %v4783 = vunpack.c.l.bf16 %v4735
        %v4784 = vunpack.c.h.bf16 %v4735
        %v4785 = vunpack.c.l.bf16 %v4736
        %v4786 = vunpack.c.h.bf16 %v4736
        %v4787 = vunpack.c.l.bf16 %v4737
        %v4788 = vunpack.c.h.bf16 %v4737
        %v4789 = vunpack.c.l.bf16 %v4738
        %v4790 = vunpack.c.h.bf16 %v4738
        %v4791 = vunpack.c.l.bf16 %v4739
        %v4792 = vunpack.c.h.bf16 %v4739
        %v4793 = vunpack.c.l.bf16 %v4740
        %v4794 = vunpack.c.h.bf16 %v4740
        %v4795 = vunpack.c.l.bf16 %v4741
        %v4796 = vunpack.c.h.bf16 %v4741
        %v4797 = vunpack.c.l.bf16 %v4742
        %v4798 = vunpack.c.h.bf16 %v4742
        %v4799 = vunpack.c.l.bf16 %v4743
        %v4800 = vunpack.c.h.bf16 %v4743
        %v4801 = vunpack.c.l.bf16 %v4744
        %v4802 = vunpack.c.h.bf16 %v4744
        %v4803 = vunpack.c.l.bf16 %v4745
        %v4804 = vunpack.c.h.bf16 %v4745
        %v4805 = vunpack.c.l.bf16 %v4746
        %v4806 = vunpack.c.h.bf16 %v4746
        %v4807 = vunpack.c.l.bf16 %v4747
        %v4808 = vunpack.c.h.bf16 %v4747
        %v4809 = vunpack.c.l.bf16 %v4748
        %v4810 = vunpack.c.h.bf16 %v4748
        %v4811 = vunpack.c.l.bf16 %v4749
        %v4812 = vunpack.c.h.bf16 %v4749
        %v4813 = vunpack.c.l.bf16 %v4750
        %v4814 = vunpack.c.h.bf16 %v4750
        %v4815 = vmul.f32 %v1563, %v4751
        %v4816 = vmul.f32 %v1564, %v4752
        %v4817 = vmul.f32 %v1565, %v4753
        %v4818 = vmul.f32 %v1566, %v4754
        %v4819 = vmul.f32 %v1575, %v4755
        %v4820 = vmul.f32 %v1576, %v4756
        %v4821 = vmul.f32 %v1577, %v4757
        %v4822 = vmul.f32 %v1578, %v4758
        %v4823 = vmul.f32 %v1587, %v4759
        %v4824 = vmul.f32 %v1588, %v4760
        %v4825 = vmul.f32 %v1589, %v4761
        %v4826 = vmul.f32 %v1590, %v4762
        %v4827 = vmul.f32 %v1599, %v4763
        %v4828 = vmul.f32 %v1600, %v4764
        %v4829 = vmul.f32 %v1601, %v4765
        %v4830 = vmul.f32 %v1602, %v4766
        %v4831 = vmul.f32 %v1611, %v4767
        %v4832 = vmul.f32 %v1612, %v4768
        %v4833 = vmul.f32 %v1613, %v4769
        %v4834 = vmul.f32 %v1614, %v4770
        %v4835 = vmul.f32 %v1623, %v4771
        %v4836 = vmul.f32 %v1624, %v4772
        %v4837 = vmul.f32 %v1625, %v4773
        %v4838 = vmul.f32 %v1626, %v4774
        %v4839 = vmul.f32 %v1635, %v4775
        %v4840 = vmul.f32 %v1636, %v4776
        %v4841 = vmul.f32 %v1637, %v4777
        %v4842 = vmul.f32 %v1638, %v4778
        %v4843 = vmul.f32 %v1647, %v4779
        %v4844 = vmul.f32 %v1648, %v4780
        %v4845 = vmul.f32 %v1649, %v4781
        %v4846 = vmul.f32 %v1650, %v4782
        %v4847 = vmul.f32 %v1659, %v4783
        %v4848 = vmul.f32 %v1660, %v4784
        %v4849 = vmul.f32 %v1661, %v4785
        %v4850 = vmul.f32 %v1662, %v4786
        %v4851 = vmul.f32 %v1671, %v4787
        %v4852 = vmul.f32 %v1672, %v4788
        %v4853 = vmul.f32 %v1673, %v4789
        %v4854 = vmul.f32 %v1674, %v4790
        %v4855 = vmul.f32 %v1683, %v4791
        %v4856 = vmul.f32 %v1684, %v4792
        %v4857 = vmul.f32 %v1685, %v4793
        %v4858 = vmul.f32 %v1686, %v4794
        %v4859 = vmul.f32 %v1695, %v4795
        %v4860 = vmul.f32 %v1696, %v4796
        %v4861 = vmul.f32 %v1697, %v4797
        %v4862 = vmul.f32 %v1698, %v4798
        %v4863 = vmul.f32 %v1707, %v4799
        %v4864 = vmul.f32 %v1708, %v4800
        %v4865 = vmul.f32 %v1709, %v4801
        %v4866 = vmul.f32 %v1710, %v4802
        %v4867 = vmul.f32 %v1719, %v4803
        %v4868 = vmul.f32 %v1720, %v4804
        %v4869 = vmul.f32 %v1721, %v4805
        %v4870 = vmul.f32 %v1722, %v4806
        %v4871 = vmul.f32 %v1731, %v4807
        %v4872 = vmul.f32 %v1732, %v4808
        %v4873 = vmul.f32 %v1733, %v4809
        %v4874 = vmul.f32 %v1734, %v4810
        %v4875 = vmul.f32 %v1743, %v4811
        %v4876 = vmul.f32 %v1744, %v4812
        %v4877 = vmul.f32 %v1745, %v4813
        %v4878 = vmul.f32 %v1746, %v4814
        %v4879 = vadd.f32 %v4815, %v4816
        %v4880 = vadd.f32 %v4879, %v4817
        %v4881 = vadd.f32 %v4880, %v4818
        %4882 = vadd.xlane.f32.xlu0 %v4881
        %v4883 = vpop.xlane.xlu0 %4882
        %v4884 = vadd.f32 %v4819, %v4820
        %v4885 = vadd.f32 %v4884, %v4821
        %v4886 = vadd.f32 %v4885, %v4822
        %4887 = vadd.xlane.f32.xlu0 %v4886
        %v4888 = vpop.xlane.xlu0 %4887
        %v4889 = vadd.f32 %v4823, %v4824
        %v4890 = vadd.f32 %v4889, %v4825
        %v4891 = vadd.f32 %v4890, %v4826
        %4892 = vadd.xlane.f32.xlu0 %v4891
        %v4893 = vpop.xlane.xlu0 %4892
        %v4894 = vadd.f32 %v4827, %v4828
        %v4895 = vadd.f32 %v4894, %v4829
        %v4896 = vadd.f32 %v4895, %v4830
        %4897 = vadd.xlane.f32.xlu0 %v4896
        %v4898 = vpop.xlane.xlu0 %4897
        %v4899 = vadd.f32 %v4831, %v4832
        %v4900 = vadd.f32 %v4899, %v4833
        %v4901 = vadd.f32 %v4900, %v4834
        %4902 = vadd.xlane.f32.xlu0 %v4901
        %v4903 = vpop.xlane.xlu0 %4902
        %v4904 = vadd.f32 %v4835, %v4836
        %v4905 = vadd.f32 %v4904, %v4837
        %v4906 = vadd.f32 %v4905, %v4838
        %4907 = vadd.xlane.f32.xlu0 %v4906
        %v4908 = vpop.xlane.xlu0 %4907
        %v4909 = vadd.f32 %v4839, %v4840
        %v4910 = vadd.f32 %v4909, %v4841
        %v4911 = vadd.f32 %v4910, %v4842
        %4912 = vadd.xlane.f32.xlu0 %v4911
        %v4913 = vpop.xlane.xlu0 %4912
        %v4914 = vadd.f32 %v4843, %v4844
        %v4915 = vadd.f32 %v4914, %v4845
        %v4916 = vadd.f32 %v4915, %v4846
        %4917 = vadd.xlane.f32.xlu0 %v4916
        %v4918 = vpop.xlane.xlu0 %4917
        %v4919 = vadd.f32 %v4847, %v4848
        %v4920 = vadd.f32 %v4919, %v4849
        %v4921 = vadd.f32 %v4920, %v4850
        %4922 = vadd.xlane.f32.xlu0 %v4921
        %v4923 = vpop.xlane.xlu0 %4922
        %v4924 = vadd.f32 %v4851, %v4852
        %v4925 = vadd.f32 %v4924, %v4853
        %v4926 = vadd.f32 %v4925, %v4854
        %4927 = vadd.xlane.f32.xlu0 %v4926
        %v4928 = vpop.xlane.xlu0 %4927
        %v4929 = vadd.f32 %v4855, %v4856
        %v4930 = vadd.f32 %v4929, %v4857
        %v4931 = vadd.f32 %v4930, %v4858
        %4932 = vadd.xlane.f32.xlu0 %v4931
        %v4933 = vpop.xlane.xlu0 %4932
        %v4934 = vadd.f32 %v4859, %v4860
        %v4935 = vadd.f32 %v4934, %v4861
        %v4936 = vadd.f32 %v4935, %v4862
        %4937 = vadd.xlane.f32.xlu0 %v4936
        %v4938 = vpop.xlane.xlu0 %4937
        %v4939 = vadd.f32 %v4863, %v4864
        %v4940 = vadd.f32 %v4939, %v4865
        %v4941 = vadd.f32 %v4940, %v4866
        %4942 = vadd.xlane.f32.xlu0 %v4941
        %v4943 = vpop.xlane.xlu0 %4942
        %v4944 = vadd.f32 %v4867, %v4868
        %v4945 = vadd.f32 %v4944, %v4869
        %v4946 = vadd.f32 %v4945, %v4870
        %4947 = vadd.xlane.f32.xlu0 %v4946
        %v4948 = vpop.xlane.xlu0 %4947
        %v4949 = vadd.f32 %v4871, %v4872
        %v4950 = vadd.f32 %v4949, %v4873
        %v4951 = vadd.f32 %v4950, %v4874
        %4952 = vadd.xlane.f32.xlu0 %v4951
        %v4953 = vpop.xlane.xlu0 %4952
        %v4954 = vadd.f32 %v4875, %v4876
        %v4955 = vadd.f32 %v4954, %v4877
        %v4956 = vadd.f32 %v4955, %v4878
        %4957 = vadd.xlane.f32.xlu0 %v4956
        %v4958 = vpop.xlane.xlu0 %4957
        %v4959 = vld [vmem:[%s491 + $0x40] sm:$0xff]
        %v4960 = vld [vmem:[%s491 + $0x48] sm:$0xff]
        %v4961 = vld [vmem:[%s491 + $0xc0] sm:$0xff]
        %v4962 = vld [vmem:[%s491 + $0xc8] sm:$0xff]
        %v4963 = vld [vmem:[%s491 + $0x140] sm:$0xff]
        %v4964 = vld [vmem:[%s491 + $0x148] sm:$0xff]
        %v4965 = vld [vmem:[%s491 + $0x1c0] sm:$0xff]
        %v4966 = vld [vmem:[%s491 + $0x1c8] sm:$0xff]
        %v4967 = vld [vmem:[%s491 + $0x240] sm:$0xff]
        %v4968 = vld [vmem:[%s491 + $0x248] sm:$0xff]
        %v4969 = vld [vmem:[%s491 + $0x2c0] sm:$0xff]
        %v4970 = vld [vmem:[%s491 + $0x2c8] sm:$0xff]
        %v4971 = vld [vmem:[%s491 + $0x340] sm:$0xff]
        %v4972 = vld [vmem:[%s491 + $0x348] sm:$0xff]
        %v4973 = vld [vmem:[%s491 + $0x3c0] sm:$0xff]
        %v4974 = vld [vmem:[%s491 + $0x3c8] sm:$0xff]
        %v4975 = vld [vmem:[%s491 + $0x440] sm:$0xff]
        %v4976 = vld [vmem:[%s491 + $0x448] sm:$0xff]
        %v4977 = vld [vmem:[%s491 + $0x4c0] sm:$0xff]
        %v4978 = vld [vmem:[%s491 + $0x4c8] sm:$0xff]
        %v4979 = vld [vmem:[%s491 + $0x540] sm:$0xff]
        %v4980 = vld [vmem:[%s491 + $0x548] sm:$0xff]
        %v4981 = vld [vmem:[%s491 + $0x5c0] sm:$0xff]
        %v4982 = vld [vmem:[%s491 + $0x5c8] sm:$0xff]
        %v4983 = vld [vmem:[%s491 + $0x640] sm:$0xff]
        %v4984 = vld [vmem:[%s491 + $0x648] sm:$0xff]
        %v4985 = vld [vmem:[%s491 + $0x6c0] sm:$0xff]
        %v4986 = vld [vmem:[%s491 + $0x6c8] sm:$0xff]
        %v4987 = vld [vmem:[%s491 + $0x740] sm:$0xff]
        %v4988 = vld [vmem:[%s491 + $0x748] sm:$0xff]
        %v4989 = vld [vmem:[%s491 + $0x7c0] sm:$0xff]
        %v4990 = vld [vmem:[%s491 + $0x7c8] sm:$0xff]
        %v4991 = vunpack.c.l.bf16 %v4959
        %v4992 = vunpack.c.h.bf16 %v4959
        %v4993 = vunpack.c.l.bf16 %v4960
        %v4994 = vunpack.c.h.bf16 %v4960
        %v4995 = vunpack.c.l.bf16 %v4961
        %v4996 = vunpack.c.h.bf16 %v4961
        %v4997 = vunpack.c.l.bf16 %v4962
        %v4998 = vunpack.c.h.bf16 %v4962
        %v4999 = vunpack.c.l.bf16 %v4963
        %v5000 = vunpack.c.h.bf16 %v4963
        %v5001 = vunpack.c.l.bf16 %v4964
        %v5002 = vunpack.c.h.bf16 %v4964
        %v5003 = vunpack.c.l.bf16 %v4965
        %v5004 = vunpack.c.h.bf16 %v4965
        %v5005 = vunpack.c.l.bf16 %v4966
        %v5006 = vunpack.c.h.bf16 %v4966
        %v5007 = vunpack.c.l.bf16 %v4967
        %v5008 = vunpack.c.h.bf16 %v4967
        %v5009 = vunpack.c.l.bf16 %v4968
        %v5010 = vunpack.c.h.bf16 %v4968
        %v5011 = vunpack.c.l.bf16 %v4969
        %v5012 = vunpack.c.h.bf16 %v4969
        %v5013 = vunpack.c.l.bf16 %v4970
        %v5014 = vunpack.c.h.bf16 %v4970
        %v5015 = vunpack.c.l.bf16 %v4971
        %v5016 = vunpack.c.h.bf16 %v4971
        %v5017 = vunpack.c.l.bf16 %v4972
        %v5018 = vunpack.c.h.bf16 %v4972
        %v5019 = vunpack.c.l.bf16 %v4973
        %v5020 = vunpack.c.h.bf16 %v4973
        %v5021 = vunpack.c.l.bf16 %v4974
        %v5022 = vunpack.c.h.bf16 %v4974
        %v5023 = vunpack.c.l.bf16 %v4975
        %v5024 = vunpack.c.h.bf16 %v4975
        %v5025 = vunpack.c.l.bf16 %v4976
        %v5026 = vunpack.c.h.bf16 %v4976
        %v5027 = vunpack.c.l.bf16 %v4977
        %v5028 = vunpack.c.h.bf16 %v4977
        %v5029 = vunpack.c.l.bf16 %v4978
        %v5030 = vunpack.c.h.bf16 %v4978
        %v5031 = vunpack.c.l.bf16 %v4979
        %v5032 = vunpack.c.h.bf16 %v4979
        %v5033 = vunpack.c.l.bf16 %v4980
        %v5034 = vunpack.c.h.bf16 %v4980
        %v5035 = vunpack.c.l.bf16 %v4981
        %v5036 = vunpack.c.h.bf16 %v4981
        %v5037 = vunpack.c.l.bf16 %v4982
        %v5038 = vunpack.c.h.bf16 %v4982
        %v5039 = vunpack.c.l.bf16 %v4983
        %v5040 = vunpack.c.h.bf16 %v4983
        %v5041 = vunpack.c.l.bf16 %v4984
        %v5042 = vunpack.c.h.bf16 %v4984
        %v5043 = vunpack.c.l.bf16 %v4985
        %v5044 = vunpack.c.h.bf16 %v4985
        %v5045 = vunpack.c.l.bf16 %v4986
        %v5046 = vunpack.c.h.bf16 %v4986
        %v5047 = vunpack.c.l.bf16 %v4987
        %v5048 = vunpack.c.h.bf16 %v4987
        %v5049 = vunpack.c.l.bf16 %v4988
        %v5050 = vunpack.c.h.bf16 %v4988
        %v5051 = vunpack.c.l.bf16 %v4989
        %v5052 = vunpack.c.h.bf16 %v4989
        %v5053 = vunpack.c.l.bf16 %v4990
        %v5054 = vunpack.c.h.bf16 %v4990
        %v5055 = vmul.f32 %v1563, %v4991
        %v5056 = vmul.f32 %v1564, %v4992
        %v5057 = vmul.f32 %v1565, %v4993
        %v5058 = vmul.f32 %v1566, %v4994
        %v5059 = vmul.f32 %v1575, %v4995
        %v5060 = vmul.f32 %v1576, %v4996
        %v5061 = vmul.f32 %v1577, %v4997
        %v5062 = vmul.f32 %v1578, %v4998
        %v5063 = vmul.f32 %v1587, %v4999
        %v5064 = vmul.f32 %v1588, %v5000
        %v5065 = vmul.f32 %v1589, %v5001
        %v5066 = vmul.f32 %v1590, %v5002
        %v5067 = vmul.f32 %v1599, %v5003
        %v5068 = vmul.f32 %v1600, %v5004
        %v5069 = vmul.f32 %v1601, %v5005
        %v5070 = vmul.f32 %v1602, %v5006
        %v5071 = vmul.f32 %v1611, %v5007
        %v5072 = vmul.f32 %v1612, %v5008
        %v5073 = vmul.f32 %v1613, %v5009
        %v5074 = vmul.f32 %v1614, %v5010
        %v5075 = vmul.f32 %v1623, %v5011
        %v5076 = vmul.f32 %v1624, %v5012
        %v5077 = vmul.f32 %v1625, %v5013
        %v5078 = vmul.f32 %v1626, %v5014
        %v5079 = vmul.f32 %v1635, %v5015
        %v5080 = vmul.f32 %v1636, %v5016
        %v5081 = vmul.f32 %v1637, %v5017
        %v5082 = vmul.f32 %v1638, %v5018
        %v5083 = vmul.f32 %v1647, %v5019
        %v5084 = vmul.f32 %v1648, %v5020
        %v5085 = vmul.f32 %v1649, %v5021
        %v5086 = vmul.f32 %v1650, %v5022
        %v5087 = vmul.f32 %v1659, %v5023
        %v5088 = vmul.f32 %v1660, %v5024
        %v5089 = vmul.f32 %v1661, %v5025
        %v5090 = vmul.f32 %v1662, %v5026
        %v5091 = vmul.f32 %v1671, %v5027
        %v5092 = vmul.f32 %v1672, %v5028
        %v5093 = vmul.f32 %v1673, %v5029
        %v5094 = vmul.f32 %v1674, %v5030
        %v5095 = vmul.f32 %v1683, %v5031
        %v5096 = vmul.f32 %v1684, %v5032
        %v5097 = vmul.f32 %v1685, %v5033
        %v5098 = vmul.f32 %v1686, %v5034
        %v5099 = vmul.f32 %v1695, %v5035
        %v5100 = vmul.f32 %v1696, %v5036
        %v5101 = vmul.f32 %v1697, %v5037
        %v5102 = vmul.f32 %v1698, %v5038
        %v5103 = vmul.f32 %v1707, %v5039
        %v5104 = vmul.f32 %v1708, %v5040
        %v5105 = vmul.f32 %v1709, %v5041
        %v5106 = vmul.f32 %v1710, %v5042
        %v5107 = vmul.f32 %v1719, %v5043
        %v5108 = vmul.f32 %v1720, %v5044
        %v5109 = vmul.f32 %v1721, %v5045
        %v5110 = vmul.f32 %v1722, %v5046
        %v5111 = vmul.f32 %v1731, %v5047
        %v5112 = vmul.f32 %v1732, %v5048
        %v5113 = vmul.f32 %v1733, %v5049
        %v5114 = vmul.f32 %v1734, %v5050
        %v5115 = vmul.f32 %v1743, %v5051
        %v5116 = vmul.f32 %v1744, %v5052
        %v5117 = vmul.f32 %v1745, %v5053
        %v5118 = vmul.f32 %v1746, %v5054
        %v5119 = vadd.f32 %v5055, %v5056
        %v5120 = vadd.f32 %v5119, %v5057
        %v5121 = vadd.f32 %v5120, %v5058
        %5122 = vadd.xlane.f32.xlu0 %v5121
        %v5123 = vpop.xlane.xlu0 %5122
        %v5124 = vadd.f32 %v5059, %v5060
        %v5125 = vadd.f32 %v5124, %v5061
        %v5126 = vadd.f32 %v5125, %v5062
        %5127 = vadd.xlane.f32.xlu0 %v5126
        %v5128 = vpop.xlane.xlu0 %5127
        %v5129 = vadd.f32 %v5063, %v5064
        %v5130 = vadd.f32 %v5129, %v5065
        %v5131 = vadd.f32 %v5130, %v5066
        %5132 = vadd.xlane.f32.xlu0 %v5131
        %v5133 = vpop.xlane.xlu0 %5132
        %v5134 = vadd.f32 %v5067, %v5068
        %v5135 = vadd.f32 %v5134, %v5069
        %v5136 = vadd.f32 %v5135, %v5070
        %5137 = vadd.xlane.f32.xlu0 %v5136
        %v5138 = vpop.xlane.xlu0 %5137
        %v5139 = vadd.f32 %v5071, %v5072
        %v5140 = vadd.f32 %v5139, %v5073
        %v5141 = vadd.f32 %v5140, %v5074
        %5142 = vadd.xlane.f32.xlu0 %v5141
        %v5143 = vpop.xlane.xlu0 %5142
        %v5144 = vadd.f32 %v5075, %v5076
        %v5145 = vadd.f32 %v5144, %v5077
        %v5146 = vadd.f32 %v5145, %v5078
        %5147 = vadd.xlane.f32.xlu0 %v5146
        %v5148 = vpop.xlane.xlu0 %5147
        %v5149 = vadd.f32 %v5079, %v5080
        %v5150 = vadd.f32 %v5149, %v5081
        %v5151 = vadd.f32 %v5150, %v5082
        %5152 = vadd.xlane.f32.xlu0 %v5151
        %v5153 = vpop.xlane.xlu0 %5152
        %v5154 = vadd.f32 %v5083, %v5084
        %v5155 = vadd.f32 %v5154, %v5085
        %v5156 = vadd.f32 %v5155, %v5086
        %5157 = vadd.xlane.f32.xlu0 %v5156
        %v5158 = vpop.xlane.xlu0 %5157
        %v5159 = vadd.f32 %v5087, %v5088
        %v5160 = vadd.f32 %v5159, %v5089
        %v5161 = vadd.f32 %v5160, %v5090
        %5162 = vadd.xlane.f32.xlu0 %v5161
        %v5163 = vpop.xlane.xlu0 %5162
        %v5164 = vadd.f32 %v5091, %v5092
        %v5165 = vadd.f32 %v5164, %v5093
        %v5166 = vadd.f32 %v5165, %v5094
        %5167 = vadd.xlane.f32.xlu0 %v5166
        %v5168 = vpop.xlane.xlu0 %5167
        %v5169 = vadd.f32 %v5095, %v5096
        %v5170 = vadd.f32 %v5169, %v5097
        %v5171 = vadd.f32 %v5170, %v5098
        %5172 = vadd.xlane.f32.xlu0 %v5171
        %v5173 = vpop.xlane.xlu0 %5172
        %v5174 = vadd.f32 %v5099, %v5100
        %v5175 = vadd.f32 %v5174, %v5101
        %v5176 = vadd.f32 %v5175, %v5102
        %5177 = vadd.xlane.f32.xlu0 %v5176
        %v5178 = vpop.xlane.xlu0 %5177
        %v5179 = vadd.f32 %v5103, %v5104
        %v5180 = vadd.f32 %v5179, %v5105
        %v5181 = vadd.f32 %v5180, %v5106
        %5182 = vadd.xlane.f32.xlu0 %v5181
        %v5183 = vpop.xlane.xlu0 %5182
        %v5184 = vadd.f32 %v5107, %v5108
        %v5185 = vadd.f32 %v5184, %v5109
        %v5186 = vadd.f32 %v5185, %v5110
        %5187 = vadd.xlane.f32.xlu0 %v5186
        %v5188 = vpop.xlane.xlu0 %5187
        %v5189 = vadd.f32 %v5111, %v5112
        %v5190 = vadd.f32 %v5189, %v5113
        %v5191 = vadd.f32 %v5190, %v5114
        %5192 = vadd.xlane.f32.xlu0 %v5191
        %v5193 = vpop.xlane.xlu0 %5192
        %v5194 = vadd.f32 %v5115, %v5116
        %v5195 = vadd.f32 %v5194, %v5117
        %v5196 = vadd.f32 %v5195, %v5118
        %5197 = vadd.xlane.f32.xlu0 %v5196
        %v5198 = vpop.xlane.xlu0 %5197
        %v5199 = vld [vmem:[%s491 + $0x50] sm:$0xff]
        %v5200 = vld [vmem:[%s491 + $0x58] sm:$0xff]
        %v5201 = vld [vmem:[%s491 + $0xd0] sm:$0xff]
        %v5202 = vld [vmem:[%s491 + $0xd8] sm:$0xff]
        %v5203 = vld [vmem:[%s491 + $0x150] sm:$0xff]
        %v5204 = vld [vmem:[%s491 + $0x158] sm:$0xff]
        %v5205 = vld [vmem:[%s491 + $0x1d0] sm:$0xff]
        %v5206 = vld [vmem:[%s491 + $0x1d8] sm:$0xff]
        %v5207 = vld [vmem:[%s491 + $0x250] sm:$0xff]
        %v5208 = vld [vmem:[%s491 + $0x258] sm:$0xff]
        %v5209 = vld [vmem:[%s491 + $0x2d0] sm:$0xff]
        %v5210 = vld [vmem:[%s491 + $0x2d8] sm:$0xff]
        %v5211 = vld [vmem:[%s491 + $0x350] sm:$0xff]
        %v5212 = vld [vmem:[%s491 + $0x358] sm:$0xff]
        %v5213 = vld [vmem:[%s491 + $0x3d0] sm:$0xff]
        %v5214 = vld [vmem:[%s491 + $0x3d8] sm:$0xff]
        %v5215 = vld [vmem:[%s491 + $0x450] sm:$0xff]
        %v5216 = vld [vmem:[%s491 + $0x458] sm:$0xff]
        %v5217 = vld [vmem:[%s491 + $0x4d0] sm:$0xff]
        %v5218 = vld [vmem:[%s491 + $0x4d8] sm:$0xff]
        %v5219 = vld [vmem:[%s491 + $0x550] sm:$0xff]
        %v5220 = vld [vmem:[%s491 + $0x558] sm:$0xff]
        %v5221 = vld [vmem:[%s491 + $0x5d0] sm:$0xff]
        %v5222 = vld [vmem:[%s491 + $0x5d8] sm:$0xff]
        %v5223 = vld [vmem:[%s491 + $0x650] sm:$0xff]
        %v5224 = vld [vmem:[%s491 + $0x658] sm:$0xff]
        %v5225 = vld [vmem:[%s491 + $0x6d0] sm:$0xff]
        %v5226 = vld [vmem:[%s491 + $0x6d8] sm:$0xff]
        %v5227 = vld [vmem:[%s491 + $0x750] sm:$0xff]
        %v5228 = vld [vmem:[%s491 + $0x758] sm:$0xff]
        %v5229 = vld [vmem:[%s491 + $0x7d0] sm:$0xff]
        %v5230 = vld [vmem:[%s491 + $0x7d8] sm:$0xff]
        %v5231 = vunpack.c.l.bf16 %v5199
        %v5232 = vunpack.c.h.bf16 %v5199
        %v5233 = vunpack.c.l.bf16 %v5200
        %v5234 = vunpack.c.h.bf16 %v5200
        %v5235 = vunpack.c.l.bf16 %v5201
        %v5236 = vunpack.c.h.bf16 %v5201
        %v5237 = vunpack.c.l.bf16 %v5202
        %v5238 = vunpack.c.h.bf16 %v5202
        %v5239 = vunpack.c.l.bf16 %v5203
        %v5240 = vunpack.c.h.bf16 %v5203
        %v5241 = vunpack.c.l.bf16 %v5204
        %v5242 = vunpack.c.h.bf16 %v5204
        %v5243 = vunpack.c.l.bf16 %v5205
        %v5244 = vunpack.c.h.bf16 %v5205
        %v5245 = vunpack.c.l.bf16 %v5206
        %v5246 = vunpack.c.h.bf16 %v5206
        %v5247 = vunpack.c.l.bf16 %v5207
        %v5248 = vunpack.c.h.bf16 %v5207
        %v5249 = vunpack.c.l.bf16 %v5208
        %v5250 = vunpack.c.h.bf16 %v5208
        %v5251 = vunpack.c.l.bf16 %v5209
        %v5252 = vunpack.c.h.bf16 %v5209
        %v5253 = vunpack.c.l.bf16 %v5210
        %v5254 = vunpack.c.h.bf16 %v5210
        %v5255 = vunpack.c.l.bf16 %v5211
        %v5256 = vunpack.c.h.bf16 %v5211
        %v5257 = vunpack.c.l.bf16 %v5212
        %v5258 = vunpack.c.h.bf16 %v5212
        %v5259 = vunpack.c.l.bf16 %v5213
        %v5260 = vunpack.c.h.bf16 %v5213
        %v5261 = vunpack.c.l.bf16 %v5214
        %v5262 = vunpack.c.h.bf16 %v5214
        %v5263 = vunpack.c.l.bf16 %v5215
        %v5264 = vunpack.c.h.bf16 %v5215
        %v5265 = vunpack.c.l.bf16 %v5216
        %v5266 = vunpack.c.h.bf16 %v5216
        %v5267 = vunpack.c.l.bf16 %v5217
        %v5268 = vunpack.c.h.bf16 %v5217
        %v5269 = vunpack.c.l.bf16 %v5218
        %v5270 = vunpack.c.h.bf16 %v5218
        %v5271 = vunpack.c.l.bf16 %v5219
        %v5272 = vunpack.c.h.bf16 %v5219
        %v5273 = vunpack.c.l.bf16 %v5220
        %v5274 = vunpack.c.h.bf16 %v5220
        %v5275 = vunpack.c.l.bf16 %v5221
        %v5276 = vunpack.c.h.bf16 %v5221
        %v5277 = vunpack.c.l.bf16 %v5222
        %v5278 = vunpack.c.h.bf16 %v5222
        %v5279 = vunpack.c.l.bf16 %v5223
        %v5280 = vunpack.c.h.bf16 %v5223
        %v5281 = vunpack.c.l.bf16 %v5224
        %v5282 = vunpack.c.h.bf16 %v5224
        %v5283 = vunpack.c.l.bf16 %v5225
        %v5284 = vunpack.c.h.bf16 %v5225
        %v5285 = vunpack.c.l.bf16 %v5226
        %v5286 = vunpack.c.h.bf16 %v5226
        %v5287 = vunpack.c.l.bf16 %v5227
        %v5288 = vunpack.c.h.bf16 %v5227
        %v5289 = vunpack.c.l.bf16 %v5228
        %v5290 = vunpack.c.h.bf16 %v5228
        %v5291 = vunpack.c.l.bf16 %v5229
        %v5292 = vunpack.c.h.bf16 %v5229
        %v5293 = vunpack.c.l.bf16 %v5230
        %v5294 = vunpack.c.h.bf16 %v5230
        %v5295 = vmul.f32 %v1563, %v5231
        %v5296 = vmul.f32 %v1564, %v5232
        %v5297 = vmul.f32 %v1565, %v5233
        %v5298 = vmul.f32 %v1566, %v5234
        %v5299 = vmul.f32 %v1575, %v5235
        %v5300 = vmul.f32 %v1576, %v5236
        %v5301 = vmul.f32 %v1577, %v5237
        %v5302 = vmul.f32 %v1578, %v5238
        %v5303 = vmul.f32 %v1587, %v5239
        %v5304 = vmul.f32 %v1588, %v5240
        %v5305 = vmul.f32 %v1589, %v5241
        %v5306 = vmul.f32 %v1590, %v5242
        %v5307 = vmul.f32 %v1599, %v5243
        %v5308 = vmul.f32 %v1600, %v5244
        %v5309 = vmul.f32 %v1601, %v5245
        %v5310 = vmul.f32 %v1602, %v5246
        %v5311 = vmul.f32 %v1611, %v5247
        %v5312 = vmul.f32 %v1612, %v5248
        %v5313 = vmul.f32 %v1613, %v5249
        %v5314 = vmul.f32 %v1614, %v5250
        %v5315 = vmul.f32 %v1623, %v5251
        %v5316 = vmul.f32 %v1624, %v5252
        %v5317 = vmul.f32 %v1625, %v5253
        %v5318 = vmul.f32 %v1626, %v5254
        %v5319 = vmul.f32 %v1635, %v5255
        %v5320 = vmul.f32 %v1636, %v5256
        %v5321 = vmul.f32 %v1637, %v5257
        %v5322 = vmul.f32 %v1638, %v5258
        %v5323 = vmul.f32 %v1647, %v5259
        %v5324 = vmul.f32 %v1648, %v5260
        %v5325 = vmul.f32 %v1649, %v5261
        %v5326 = vmul.f32 %v1650, %v5262
        %v5327 = vmul.f32 %v1659, %v5263
        %v5328 = vmul.f32 %v1660, %v5264
        %v5329 = vmul.f32 %v1661, %v5265
        %v5330 = vmul.f32 %v1662, %v5266
        %v5331 = vmul.f32 %v1671, %v5267
        %v5332 = vmul.f32 %v1672, %v5268
        %v5333 = vmul.f32 %v1673, %v5269
        %v5334 = vmul.f32 %v1674, %v5270
        %v5335 = vmul.f32 %v1683, %v5271
        %v5336 = vmul.f32 %v1684, %v5272
        %v5337 = vmul.f32 %v1685, %v5273
        %v5338 = vmul.f32 %v1686, %v5274
        %v5339 = vmul.f32 %v1695, %v5275
        %v5340 = vmul.f32 %v1696, %v5276
        %v5341 = vmul.f32 %v1697, %v5277
        %v5342 = vmul.f32 %v1698, %v5278
        %v5343 = vmul.f32 %v1707, %v5279
        %v5344 = vmul.f32 %v1708, %v5280
        %v5345 = vmul.f32 %v1709, %v5281
        %v5346 = vmul.f32 %v1710, %v5282
        %v5347 = vmul.f32 %v1719, %v5283
        %v5348 = vmul.f32 %v1720, %v5284
        %v5349 = vmul.f32 %v1721, %v5285
        %v5350 = vmul.f32 %v1722, %v5286
        %v5351 = vmul.f32 %v1731, %v5287
        %v5352 = vmul.f32 %v1732, %v5288
        %v5353 = vmul.f32 %v1733, %v5289
        %v5354 = vmul.f32 %v1734, %v5290
        %v5355 = vmul.f32 %v1743, %v5291
        %v5356 = vmul.f32 %v1744, %v5292
        %v5357 = vmul.f32 %v1745, %v5293
        %v5358 = vmul.f32 %v1746, %v5294
        %v5359 = vadd.f32 %v5295, %v5296
        %v5360 = vadd.f32 %v5359, %v5297
        %v5361 = vadd.f32 %v5360, %v5298
        %5362 = vadd.xlane.f32.xlu0 %v5361
        %v5363 = vpop.xlane.xlu0 %5362
        %v5364 = vadd.f32 %v5299, %v5300
        %v5365 = vadd.f32 %v5364, %v5301
        %v5366 = vadd.f32 %v5365, %v5302
        %5367 = vadd.xlane.f32.xlu0 %v5366
        %v5368 = vpop.xlane.xlu0 %5367
        %v5369 = vadd.f32 %v5303, %v5304
        %v5370 = vadd.f32 %v5369, %v5305
        %v5371 = vadd.f32 %v5370, %v5306
        %5372 = vadd.xlane.f32.xlu0 %v5371
        %v5373 = vpop.xlane.xlu0 %5372
        %v5374 = vadd.f32 %v5307, %v5308
        %v5375 = vadd.f32 %v5374, %v5309
        %v5376 = vadd.f32 %v5375, %v5310
        %5377 = vadd.xlane.f32.xlu0 %v5376
        %v5378 = vpop.xlane.xlu0 %5377
        %v5379 = vadd.f32 %v5311, %v5312
        %v5380 = vadd.f32 %v5379, %v5313
        %v5381 = vadd.f32 %v5380, %v5314
        %5382 = vadd.xlane.f32.xlu0 %v5381
        %v5383 = vpop.xlane.xlu0 %5382
        %v5384 = vadd.f32 %v5315, %v5316
        %v5385 = vadd.f32 %v5384, %v5317
        %v5386 = vadd.f32 %v5385, %v5318
        %5387 = vadd.xlane.f32.xlu0 %v5386
        %v5388 = vpop.xlane.xlu0 %5387
        %v5389 = vadd.f32 %v5319, %v5320
        %v5390 = vadd.f32 %v5389, %v5321
        %v5391 = vadd.f32 %v5390, %v5322
        %5392 = vadd.xlane.f32.xlu0 %v5391
        %v5393 = vpop.xlane.xlu0 %5392
        %v5394 = vadd.f32 %v5323, %v5324
        %v5395 = vadd.f32 %v5394, %v5325
        %v5396 = vadd.f32 %v5395, %v5326
        %5397 = vadd.xlane.f32.xlu0 %v5396
        %v5398 = vpop.xlane.xlu0 %5397
        %v5399 = vadd.f32 %v5327, %v5328
        %v5400 = vadd.f32 %v5399, %v5329
        %v5401 = vadd.f32 %v5400, %v5330
        %5402 = vadd.xlane.f32.xlu0 %v5401
        %v5403 = vpop.xlane.xlu0 %5402
        %v5404 = vadd.f32 %v5331, %v5332
        %v5405 = vadd.f32 %v5404, %v5333
        %v5406 = vadd.f32 %v5405, %v5334
        %5407 = vadd.xlane.f32.xlu0 %v5406
        %v5408 = vpop.xlane.xlu0 %5407
        %v5409 = vadd.f32 %v5335, %v5336
        %v5410 = vadd.f32 %v5409, %v5337
        %v5411 = vadd.f32 %v5410, %v5338
        %5412 = vadd.xlane.f32.xlu0 %v5411
        %v5413 = vpop.xlane.xlu0 %5412
        %v5414 = vadd.f32 %v5339, %v5340
        %v5415 = vadd.f32 %v5414, %v5341
        %v5416 = vadd.f32 %v5415, %v5342
        %5417 = vadd.xlane.f32.xlu0 %v5416
        %v5418 = vpop.xlane.xlu0 %5417
        %v5419 = vadd.f32 %v5343, %v5344
        %v5420 = vadd.f32 %v5419, %v5345
        %v5421 = vadd.f32 %v5420, %v5346
        %5422 = vadd.xlane.f32.xlu0 %v5421
        %v5423 = vpop.xlane.xlu0 %5422
        %v5424 = vadd.f32 %v5347, %v5348
        %v5425 = vadd.f32 %v5424, %v5349
        %v5426 = vadd.f32 %v5425, %v5350
        %5427 = vadd.xlane.f32.xlu0 %v5426
        %v5428 = vpop.xlane.xlu0 %5427
        %v5429 = vadd.f32 %v5351, %v5352
        %v5430 = vadd.f32 %v5429, %v5353
        %v5431 = vadd.f32 %v5430, %v5354
        %5432 = vadd.xlane.f32.xlu0 %v5431
        %v5433 = vpop.xlane.xlu0 %5432
        %v5434 = vadd.f32 %v5355, %v5356
        %v5435 = vadd.f32 %v5434, %v5357
        %v5436 = vadd.f32 %v5435, %v5358
        %5437 = vadd.xlane.f32.xlu0 %v5436
        %v5438 = vpop.xlane.xlu0 %5437
        %v5439 = vld [vmem:[%s491 + $0x60] sm:$0xff]
        %v5440 = vld [vmem:[%s491 + $0x68] sm:$0xff]
        %v5441 = vld [vmem:[%s491 + $0xe0] sm:$0xff]
        %v5442 = vld [vmem:[%s491 + $0xe8] sm:$0xff]
        %v5443 = vld [vmem:[%s491 + $0x160] sm:$0xff]
        %v5444 = vld [vmem:[%s491 + $0x168] sm:$0xff]
        %v5445 = vld [vmem:[%s491 + $0x1e0] sm:$0xff]
        %v5446 = vld [vmem:[%s491 + $0x1e8] sm:$0xff]
        %v5447 = vld [vmem:[%s491 + $0x260] sm:$0xff]
        %v5448 = vld [vmem:[%s491 + $0x268] sm:$0xff]
        %v5449 = vld [vmem:[%s491 + $0x2e0] sm:$0xff]
        %v5450 = vld [vmem:[%s491 + $0x2e8] sm:$0xff]
        %v5451 = vld [vmem:[%s491 + $0x360] sm:$0xff]
        %v5452 = vld [vmem:[%s491 + $0x368] sm:$0xff]
        %v5453 = vld [vmem:[%s491 + $0x3e0] sm:$0xff]
        %v5454 = vld [vmem:[%s491 + $0x3e8] sm:$0xff]
        %v5455 = vld [vmem:[%s491 + $0x460] sm:$0xff]
        %v5456 = vld [vmem:[%s491 + $0x468] sm:$0xff]
        %v5457 = vld [vmem:[%s491 + $0x4e0] sm:$0xff]
        %v5458 = vld [vmem:[%s491 + $0x4e8] sm:$0xff]
        %v5459 = vld [vmem:[%s491 + $0x560] sm:$0xff]
        %v5460 = vld [vmem:[%s491 + $0x568] sm:$0xff]
        %v5461 = vld [vmem:[%s491 + $0x5e0] sm:$0xff]
        %v5462 = vld [vmem:[%s491 + $0x5e8] sm:$0xff]
        %v5463 = vld [vmem:[%s491 + $0x660] sm:$0xff]
        %v5464 = vld [vmem:[%s491 + $0x668] sm:$0xff]
        %v5465 = vld [vmem:[%s491 + $0x6e0] sm:$0xff]
        %v5466 = vld [vmem:[%s491 + $0x6e8] sm:$0xff]
        %v5467 = vld [vmem:[%s491 + $0x760] sm:$0xff]
        %v5468 = vld [vmem:[%s491 + $0x768] sm:$0xff]
        %v5469 = vld [vmem:[%s491 + $0x7e0] sm:$0xff]
        %v5470 = vld [vmem:[%s491 + $0x7e8] sm:$0xff]
        %v5471 = vunpack.c.l.bf16 %v5439
        %v5472 = vunpack.c.h.bf16 %v5439
        %v5473 = vunpack.c.l.bf16 %v5440
        %v5474 = vunpack.c.h.bf16 %v5440
        %v5475 = vunpack.c.l.bf16 %v5441
        %v5476 = vunpack.c.h.bf16 %v5441
        %v5477 = vunpack.c.l.bf16 %v5442
        %v5478 = vunpack.c.h.bf16 %v5442
        %v5479 = vunpack.c.l.bf16 %v5443
        %v5480 = vunpack.c.h.bf16 %v5443
        %v5481 = vunpack.c.l.bf16 %v5444
        %v5482 = vunpack.c.h.bf16 %v5444
        %v5483 = vunpack.c.l.bf16 %v5445
        %v5484 = vunpack.c.h.bf16 %v5445
        %v5485 = vunpack.c.l.bf16 %v5446
        %v5486 = vunpack.c.h.bf16 %v5446
        %v5487 = vunpack.c.l.bf16 %v5447
        %v5488 = vunpack.c.h.bf16 %v5447
        %v5489 = vunpack.c.l.bf16 %v5448
        %v5490 = vunpack.c.h.bf16 %v5448
        %v5491 = vunpack.c.l.bf16 %v5449
        %v5492 = vunpack.c.h.bf16 %v5449
        %v5493 = vunpack.c.l.bf16 %v5450
        %v5494 = vunpack.c.h.bf16 %v5450
        %v5495 = vunpack.c.l.bf16 %v5451
        %v5496 = vunpack.c.h.bf16 %v5451
        %v5497 = vunpack.c.l.bf16 %v5452
        %v5498 = vunpack.c.h.bf16 %v5452
        %v5499 = vunpack.c.l.bf16 %v5453
        %v5500 = vunpack.c.h.bf16 %v5453
        %v5501 = vunpack.c.l.bf16 %v5454
        %v5502 = vunpack.c.h.bf16 %v5454
        %v5503 = vunpack.c.l.bf16 %v5455
        %v5504 = vunpack.c.h.bf16 %v5455
        %v5505 = vunpack.c.l.bf16 %v5456
        %v5506 = vunpack.c.h.bf16 %v5456
        %v5507 = vunpack.c.l.bf16 %v5457
        %v5508 = vunpack.c.h.bf16 %v5457
        %v5509 = vunpack.c.l.bf16 %v5458
        %v5510 = vunpack.c.h.bf16 %v5458
        %v5511 = vunpack.c.l.bf16 %v5459
        %v5512 = vunpack.c.h.bf16 %v5459
        %v5513 = vunpack.c.l.bf16 %v5460
        %v5514 = vunpack.c.h.bf16 %v5460
        %v5515 = vunpack.c.l.bf16 %v5461
        %v5516 = vunpack.c.h.bf16 %v5461
        %v5517 = vunpack.c.l.bf16 %v5462
        %v5518 = vunpack.c.h.bf16 %v5462
        %v5519 = vunpack.c.l.bf16 %v5463
        %v5520 = vunpack.c.h.bf16 %v5463
        %v5521 = vunpack.c.l.bf16 %v5464
        %v5522 = vunpack.c.h.bf16 %v5464
        %v5523 = vunpack.c.l.bf16 %v5465
        %v5524 = vunpack.c.h.bf16 %v5465
        %v5525 = vunpack.c.l.bf16 %v5466
        %v5526 = vunpack.c.h.bf16 %v5466
        %v5527 = vunpack.c.l.bf16 %v5467
        %v5528 = vunpack.c.h.bf16 %v5467
        %v5529 = vunpack.c.l.bf16 %v5468
        %v5530 = vunpack.c.h.bf16 %v5468
        %v5531 = vunpack.c.l.bf16 %v5469
        %v5532 = vunpack.c.h.bf16 %v5469
        %v5533 = vunpack.c.l.bf16 %v5470
        %v5534 = vunpack.c.h.bf16 %v5470
        %v5535 = vmul.f32 %v1563, %v5471
        %v5536 = vmul.f32 %v1564, %v5472
        %v5537 = vmul.f32 %v1565, %v5473
        %v5538 = vmul.f32 %v1566, %v5474
        %v5539 = vmul.f32 %v1575, %v5475
        %v5540 = vmul.f32 %v1576, %v5476
        %v5541 = vmul.f32 %v1577, %v5477
        %v5542 = vmul.f32 %v1578, %v5478
        %v5543 = vmul.f32 %v1587, %v5479
        %v5544 = vmul.f32 %v1588, %v5480
        %v5545 = vmul.f32 %v1589, %v5481
        %v5546 = vmul.f32 %v1590, %v5482
        %v5547 = vmul.f32 %v1599, %v5483
        %v5548 = vmul.f32 %v1600, %v5484
        %v5549 = vmul.f32 %v1601, %v5485
        %v5550 = vmul.f32 %v1602, %v5486
        %v5551 = vmul.f32 %v1611, %v5487
        %v5552 = vmul.f32 %v1612, %v5488
        %v5553 = vmul.f32 %v1613, %v5489
        %v5554 = vmul.f32 %v1614, %v5490
        %v5555 = vmul.f32 %v1623, %v5491
        %v5556 = vmul.f32 %v1624, %v5492
        %v5557 = vmul.f32 %v1625, %v5493
        %v5558 = vmul.f32 %v1626, %v5494
        %v5559 = vmul.f32 %v1635, %v5495
        %v5560 = vmul.f32 %v1636, %v5496
        %v5561 = vmul.f32 %v1637, %v5497
        %v5562 = vmul.f32 %v1638, %v5498
        %v5563 = vmul.f32 %v1647, %v5499
        %v5564 = vmul.f32 %v1648, %v5500
        %v5565 = vmul.f32 %v1649, %v5501
        %v5566 = vmul.f32 %v1650, %v5502
        %v5567 = vmul.f32 %v1659, %v5503
        %v5568 = vmul.f32 %v1660, %v5504
        %v5569 = vmul.f32 %v1661, %v5505
        %v5570 = vmul.f32 %v1662, %v5506
        %v5571 = vmul.f32 %v1671, %v5507
        %v5572 = vmul.f32 %v1672, %v5508
        %v5573 = vmul.f32 %v1673, %v5509
        %v5574 = vmul.f32 %v1674, %v5510
        %v5575 = vmul.f32 %v1683, %v5511
        %v5576 = vmul.f32 %v1684, %v5512
        %v5577 = vmul.f32 %v1685, %v5513
        %v5578 = vmul.f32 %v1686, %v5514
        %v5579 = vmul.f32 %v1695, %v5515
        %v5580 = vmul.f32 %v1696, %v5516
        %v5581 = vmul.f32 %v1697, %v5517
        %v5582 = vmul.f32 %v1698, %v5518
        %v5583 = vmul.f32 %v1707, %v5519
        %v5584 = vmul.f32 %v1708, %v5520
        %v5585 = vmul.f32 %v1709, %v5521
        %v5586 = vmul.f32 %v1710, %v5522
        %v5587 = vmul.f32 %v1719, %v5523
        %v5588 = vmul.f32 %v1720, %v5524
        %v5589 = vmul.f32 %v1721, %v5525
        %v5590 = vmul.f32 %v1722, %v5526
        %v5591 = vmul.f32 %v1731, %v5527
        %v5592 = vmul.f32 %v1732, %v5528
        %v5593 = vmul.f32 %v1733, %v5529
        %v5594 = vmul.f32 %v1734, %v5530
        %v5595 = vmul.f32 %v1743, %v5531
        %v5596 = vmul.f32 %v1744, %v5532
        %v5597 = vmul.f32 %v1745, %v5533
        %v5598 = vmul.f32 %v1746, %v5534
        %v5599 = vadd.f32 %v5535, %v5536
        %v5600 = vadd.f32 %v5599, %v5537
        %v5601 = vadd.f32 %v5600, %v5538
        %5602 = vadd.xlane.f32.xlu0 %v5601
        %v5603 = vpop.xlane.xlu0 %5602
        %v5604 = vadd.f32 %v5539, %v5540
        %v5605 = vadd.f32 %v5604, %v5541
        %v5606 = vadd.f32 %v5605, %v5542
        %5607 = vadd.xlane.f32.xlu0 %v5606
        %v5608 = vpop.xlane.xlu0 %5607
        %v5609 = vadd.f32 %v5543, %v5544
        %v5610 = vadd.f32 %v5609, %v5545
        %v5611 = vadd.f32 %v5610, %v5546
        %5612 = vadd.xlane.f32.xlu0 %v5611
        %v5613 = vpop.xlane.xlu0 %5612
        %v5614 = vadd.f32 %v5547, %v5548
        %v5615 = vadd.f32 %v5614, %v5549
        %v5616 = vadd.f32 %v5615, %v5550
        %5617 = vadd.xlane.f32.xlu0 %v5616
        %v5618 = vpop.xlane.xlu0 %5617
        %v5619 = vadd.f32 %v5551, %v5552
        %v5620 = vadd.f32 %v5619, %v5553
        %v5621 = vadd.f32 %v5620, %v5554
        %5622 = vadd.xlane.f32.xlu0 %v5621
        %v5623 = vpop.xlane.xlu0 %5622
        %v5624 = vadd.f32 %v5555, %v5556
        %v5625 = vadd.f32 %v5624, %v5557
        %v5626 = vadd.f32 %v5625, %v5558
        %5627 = vadd.xlane.f32.xlu0 %v5626
        %v5628 = vpop.xlane.xlu0 %5627
        %v5629 = vadd.f32 %v5559, %v5560
        %v5630 = vadd.f32 %v5629, %v5561
        %v5631 = vadd.f32 %v5630, %v5562
        %5632 = vadd.xlane.f32.xlu0 %v5631
        %v5633 = vpop.xlane.xlu0 %5632
        %v5634 = vadd.f32 %v5563, %v5564
        %v5635 = vadd.f32 %v5634, %v5565
        %v5636 = vadd.f32 %v5635, %v5566
        %5637 = vadd.xlane.f32.xlu0 %v5636
        %v5638 = vpop.xlane.xlu0 %5637
        %v5639 = vadd.f32 %v5567, %v5568
        %v5640 = vadd.f32 %v5639, %v5569
        %v5641 = vadd.f32 %v5640, %v5570
        %5642 = vadd.xlane.f32.xlu0 %v5641
        %v5643 = vpop.xlane.xlu0 %5642
        %v5644 = vadd.f32 %v5571, %v5572
        %v5645 = vadd.f32 %v5644, %v5573
        %v5646 = vadd.f32 %v5645, %v5574
        %5647 = vadd.xlane.f32.xlu0 %v5646
        %v5648 = vpop.xlane.xlu0 %5647
        %v5649 = vadd.f32 %v5575, %v5576
        %v5650 = vadd.f32 %v5649, %v5577
        %v5651 = vadd.f32 %v5650, %v5578
        %5652 = vadd.xlane.f32.xlu0 %v5651
        %v5653 = vpop.xlane.xlu0 %5652
        %v5654 = vadd.f32 %v5579, %v5580
        %v5655 = vadd.f32 %v5654, %v5581
        %v5656 = vadd.f32 %v5655, %v5582
        %5657 = vadd.xlane.f32.xlu0 %v5656
        %v5658 = vpop.xlane.xlu0 %5657
        %v5659 = vadd.f32 %v5583, %v5584
        %v5660 = vadd.f32 %v5659, %v5585
        %v5661 = vadd.f32 %v5660, %v5586
        %5662 = vadd.xlane.f32.xlu0 %v5661
        %v5663 = vpop.xlane.xlu0 %5662
        %v5664 = vadd.f32 %v5587, %v5588
        %v5665 = vadd.f32 %v5664, %v5589
        %v5666 = vadd.f32 %v5665, %v5590
        %5667 = vadd.xlane.f32.xlu0 %v5666
        %v5668 = vpop.xlane.xlu0 %5667
        %v5669 = vadd.f32 %v5591, %v5592
        %v5670 = vadd.f32 %v5669, %v5593
        %v5671 = vadd.f32 %v5670, %v5594
        %5672 = vadd.xlane.f32.xlu0 %v5671
        %v5673 = vpop.xlane.xlu0 %5672
        %v5674 = vadd.f32 %v5595, %v5596
        %v5675 = vadd.f32 %v5674, %v5597
        %v5676 = vadd.f32 %v5675, %v5598
        %5677 = vadd.xlane.f32.xlu0 %v5676
        %v5678 = vpop.xlane.xlu0 %5677
        %v5679 = vld [vmem:[%s491 + $0x70] sm:$0xff]
        %v5680 = vld [vmem:[%s491 + $0x78] sm:$0xff]
        %v5681 = vld [vmem:[%s491 + $0xf0] sm:$0xff]
        %v5682 = vld [vmem:[%s491 + $0xf8] sm:$0xff]
        %v5683 = vld [vmem:[%s491 + $0x170] sm:$0xff]
        %v5684 = vld [vmem:[%s491 + $0x178] sm:$0xff]
        %v5685 = vld [vmem:[%s491 + $0x1f0] sm:$0xff]
        %v5686 = vld [vmem:[%s491 + $0x1f8] sm:$0xff]
        %v5687 = vld [vmem:[%s491 + $0x270] sm:$0xff]
        %v5688 = vld [vmem:[%s491 + $0x278] sm:$0xff]
        %v5689 = vld [vmem:[%s491 + $0x2f0] sm:$0xff]
        %v5690 = vld [vmem:[%s491 + $0x2f8] sm:$0xff]
        %v5691 = vld [vmem:[%s491 + $0x370] sm:$0xff]
        %v5692 = vld [vmem:[%s491 + $0x378] sm:$0xff]
        %v5693 = vld [vmem:[%s491 + $0x3f0] sm:$0xff]
        %v5694 = vld [vmem:[%s491 + $0x3f8] sm:$0xff]
        %v5695 = vld [vmem:[%s491 + $0x470] sm:$0xff]
        %v5696 = vld [vmem:[%s491 + $0x478] sm:$0xff]
        %v5697 = vld [vmem:[%s491 + $0x4f0] sm:$0xff]
        %v5698 = vld [vmem:[%s491 + $0x4f8] sm:$0xff]
        %v5699 = vld [vmem:[%s491 + $0x570] sm:$0xff]
        %v5700 = vld [vmem:[%s491 + $0x578] sm:$0xff]
        %v5701 = vld [vmem:[%s491 + $0x5f0] sm:$0xff]
        %v5702 = vld [vmem:[%s491 + $0x5f8] sm:$0xff]
        %v5703 = vld [vmem:[%s491 + $0x670] sm:$0xff]
        %v5704 = vld [vmem:[%s491 + $0x678] sm:$0xff]
        %v5705 = vld [vmem:[%s491 + $0x6f0] sm:$0xff]
        %v5706 = vld [vmem:[%s491 + $0x6f8] sm:$0xff]
        %v5707 = vld [vmem:[%s491 + $0x770] sm:$0xff]
        %v5708 = vld [vmem:[%s491 + $0x778] sm:$0xff]
        %v5709 = vld [vmem:[%s491 + $0x7f0] sm:$0xff]
        %v5710 = vld [vmem:[%s491 + $0x7f8] sm:$0xff]
        %v5711 = vunpack.c.l.bf16 %v5679
        %v5712 = vunpack.c.h.bf16 %v5679
        %v5713 = vunpack.c.l.bf16 %v5680
        %v5714 = vunpack.c.h.bf16 %v5680
        %v5715 = vunpack.c.l.bf16 %v5681
        %v5716 = vunpack.c.h.bf16 %v5681
        %v5717 = vunpack.c.l.bf16 %v5682
        %v5718 = vunpack.c.h.bf16 %v5682
        %v5719 = vunpack.c.l.bf16 %v5683
        %v5720 = vunpack.c.h.bf16 %v5683
        %v5721 = vunpack.c.l.bf16 %v5684
        %v5722 = vunpack.c.h.bf16 %v5684
        %v5723 = vunpack.c.l.bf16 %v5685
        %v5724 = vunpack.c.h.bf16 %v5685
        %v5725 = vunpack.c.l.bf16 %v5686
        %v5726 = vunpack.c.h.bf16 %v5686
        %v5727 = vunpack.c.l.bf16 %v5687
        %v5728 = vunpack.c.h.bf16 %v5687
        %v5729 = vunpack.c.l.bf16 %v5688
        %v5730 = vunpack.c.h.bf16 %v5688
        %v5731 = vunpack.c.l.bf16 %v5689
        %v5732 = vunpack.c.h.bf16 %v5689
        %v5733 = vunpack.c.l.bf16 %v5690
        %v5734 = vunpack.c.h.bf16 %v5690
        %v5735 = vunpack.c.l.bf16 %v5691
        %v5736 = vunpack.c.h.bf16 %v5691
        %v5737 = vunpack.c.l.bf16 %v5692
        %v5738 = vunpack.c.h.bf16 %v5692
        %v5739 = vunpack.c.l.bf16 %v5693
        %v5740 = vunpack.c.h.bf16 %v5693
        %v5741 = vunpack.c.l.bf16 %v5694
        %v5742 = vunpack.c.h.bf16 %v5694
        %v5743 = vunpack.c.l.bf16 %v5695
        %v5744 = vunpack.c.h.bf16 %v5695
        %v5745 = vunpack.c.l.bf16 %v5696
        %v5746 = vunpack.c.h.bf16 %v5696
        %v5747 = vunpack.c.l.bf16 %v5697
        %v5748 = vunpack.c.h.bf16 %v5697
        %v5749 = vunpack.c.l.bf16 %v5698
        %v5750 = vunpack.c.h.bf16 %v5698
        %v5751 = vunpack.c.l.bf16 %v5699
        %v5752 = vunpack.c.h.bf16 %v5699
        %v5753 = vunpack.c.l.bf16 %v5700
        %v5754 = vunpack.c.h.bf16 %v5700
        %v5755 = vunpack.c.l.bf16 %v5701
        %v5756 = vunpack.c.h.bf16 %v5701
        %v5757 = vunpack.c.l.bf16 %v5702
        %v5758 = vunpack.c.h.bf16 %v5702
        %v5759 = vunpack.c.l.bf16 %v5703
        %v5760 = vunpack.c.h.bf16 %v5703
        %v5761 = vunpack.c.l.bf16 %v5704
        %v5762 = vunpack.c.h.bf16 %v5704
        %v5763 = vunpack.c.l.bf16 %v5705
        %v5764 = vunpack.c.h.bf16 %v5705
        %v5765 = vunpack.c.l.bf16 %v5706
        %v5766 = vunpack.c.h.bf16 %v5706
        %v5767 = vunpack.c.l.bf16 %v5707
        %v5768 = vunpack.c.h.bf16 %v5707
        %v5769 = vunpack.c.l.bf16 %v5708
        %v5770 = vunpack.c.h.bf16 %v5708
        %v5771 = vunpack.c.l.bf16 %v5709
        %v5772 = vunpack.c.h.bf16 %v5709
        %v5773 = vunpack.c.l.bf16 %v5710
        %v5774 = vunpack.c.h.bf16 %v5710
        %v5775 = vmul.f32 %v1563, %v5711
        %v5776 = vmul.f32 %v1564, %v5712
        %v5777 = vmul.f32 %v1565, %v5713
        %v5778 = vmul.f32 %v1566, %v5714
        %v5779 = vmul.f32 %v1575, %v5715
        %v5780 = vmul.f32 %v1576, %v5716
        %v5781 = vmul.f32 %v1577, %v5717
        %v5782 = vmul.f32 %v1578, %v5718
        %v5783 = vmul.f32 %v1587, %v5719
        %v5784 = vmul.f32 %v1588, %v5720
        %v5785 = vmul.f32 %v1589, %v5721
        %v5786 = vmul.f32 %v1590, %v5722
        %v5787 = vmul.f32 %v1599, %v5723
        %v5788 = vmul.f32 %v1600, %v5724
        %v5789 = vmul.f32 %v1601, %v5725
        %v5790 = vmul.f32 %v1602, %v5726
        %v5791 = vmul.f32 %v1611, %v5727
        %v5792 = vmul.f32 %v1612, %v5728
        %v5793 = vmul.f32 %v1613, %v5729
        %v5794 = vmul.f32 %v1614, %v5730
        %v5795 = vmul.f32 %v1623, %v5731
        %v5796 = vmul.f32 %v1624, %v5732
        %v5797 = vmul.f32 %v1625, %v5733
        %v5798 = vmul.f32 %v1626, %v5734
        %v5799 = vmul.f32 %v1635, %v5735
        %v5800 = vmul.f32 %v1636, %v5736
        %v5801 = vmul.f32 %v1637, %v5737
        %v5802 = vmul.f32 %v1638, %v5738
        %v5803 = vmul.f32 %v1647, %v5739
        %v5804 = vmul.f32 %v1648, %v5740
        %v5805 = vmul.f32 %v1649, %v5741
        %v5806 = vmul.f32 %v1650, %v5742
        %v5807 = vmul.f32 %v1659, %v5743
        %v5808 = vmul.f32 %v1660, %v5744
        %v5809 = vmul.f32 %v1661, %v5745
        %v5810 = vmul.f32 %v1662, %v5746
        %v5811 = vmul.f32 %v1671, %v5747
        %v5812 = vmul.f32 %v1672, %v5748
        %v5813 = vmul.f32 %v1673, %v5749
        %v5814 = vmul.f32 %v1674, %v5750
        %v5815 = vmul.f32 %v1683, %v5751
        %v5816 = vmul.f32 %v1684, %v5752
        %v5817 = vmul.f32 %v1685, %v5753
        %v5818 = vmul.f32 %v1686, %v5754
        %v5819 = vmul.f32 %v1695, %v5755
        %v5820 = vmul.f32 %v1696, %v5756
        %v5821 = vmul.f32 %v1697, %v5757
        %v5822 = vmul.f32 %v1698, %v5758
        %v5823 = vmul.f32 %v1707, %v5759
        %v5824 = vmul.f32 %v1708, %v5760
        %v5825 = vmul.f32 %v1709, %v5761
        %v5826 = vmul.f32 %v1710, %v5762
        %v5827 = vmul.f32 %v1719, %v5763
        %v5828 = vmul.f32 %v1720, %v5764
        %v5829 = vmul.f32 %v1721, %v5765
        %v5830 = vmul.f32 %v1722, %v5766
        %v5831 = vmul.f32 %v1731, %v5767
        %v5832 = vmul.f32 %v1732, %v5768
        %v5833 = vmul.f32 %v1733, %v5769
        %v5834 = vmul.f32 %v1734, %v5770
        %v5835 = vmul.f32 %v1743, %v5771
        %v5836 = vmul.f32 %v1744, %v5772
        %v5837 = vmul.f32 %v1745, %v5773
        %v5838 = vmul.f32 %v1746, %v5774
        %v5839 = vadd.f32 %v5775, %v5776
        %v5840 = vadd.f32 %v5839, %v5777
        %v5841 = vadd.f32 %v5840, %v5778
        %5842 = vadd.xlane.f32.xlu0 %v5841
        %v5843 = vpop.xlane.xlu0 %5842
        %v5844 = vadd.f32 %v5779, %v5780
        %v5845 = vadd.f32 %v5844, %v5781
        %v5846 = vadd.f32 %v5845, %v5782
        %5847 = vadd.xlane.f32.xlu0 %v5846
        %v5848 = vpop.xlane.xlu0 %5847
        %v5849 = vadd.f32 %v5783, %v5784
        %v5850 = vadd.f32 %v5849, %v5785
        %v5851 = vadd.f32 %v5850, %v5786
        %5852 = vadd.xlane.f32.xlu0 %v5851
        %v5853 = vpop.xlane.xlu0 %5852
        %v5854 = vadd.f32 %v5787, %v5788
        %v5855 = vadd.f32 %v5854, %v5789
        %v5856 = vadd.f32 %v5855, %v5790
        %5857 = vadd.xlane.f32.xlu0 %v5856
        %v5858 = vpop.xlane.xlu0 %5857
        %v5859 = vadd.f32 %v5791, %v5792
        %v5860 = vadd.f32 %v5859, %v5793
        %v5861 = vadd.f32 %v5860, %v5794
        %5862 = vadd.xlane.f32.xlu0 %v5861
        %v5863 = vpop.xlane.xlu0 %5862
        %v5864 = vadd.f32 %v5795, %v5796
        %v5865 = vadd.f32 %v5864, %v5797
        %v5866 = vadd.f32 %v5865, %v5798
        %5867 = vadd.xlane.f32.xlu0 %v5866
        %v5868 = vpop.xlane.xlu0 %5867
        %v5869 = vadd.f32 %v5799, %v5800
        %v5870 = vadd.f32 %v5869, %v5801
        %v5871 = vadd.f32 %v5870, %v5802
        %5872 = vadd.xlane.f32.xlu0 %v5871
        %v5873 = vpop.xlane.xlu0 %5872
        %v5874 = vadd.f32 %v5803, %v5804
        %v5875 = vadd.f32 %v5874, %v5805
        %v5876 = vadd.f32 %v5875, %v5806
        %5877 = vadd.xlane.f32.xlu0 %v5876
        %v5878 = vpop.xlane.xlu0 %5877
        %v5879 = vadd.f32 %v5807, %v5808
        %v5880 = vadd.f32 %v5879, %v5809
        %v5881 = vadd.f32 %v5880, %v5810
        %5882 = vadd.xlane.f32.xlu0 %v5881
        %v5883 = vpop.xlane.xlu0 %5882
        %v5884 = vadd.f32 %v5811, %v5812
        %v5885 = vadd.f32 %v5884, %v5813
        %v5886 = vadd.f32 %v5885, %v5814
        %5887 = vadd.xlane.f32.xlu0 %v5886
        %v5888 = vpop.xlane.xlu0 %5887
        %v5889 = vadd.f32 %v5815, %v5816
        %v5890 = vadd.f32 %v5889, %v5817
        %v5891 = vadd.f32 %v5890, %v5818
        %5892 = vadd.xlane.f32.xlu0 %v5891
        %v5893 = vpop.xlane.xlu0 %5892
        %v5894 = vadd.f32 %v5819, %v5820
        %v5895 = vadd.f32 %v5894, %v5821
        %v5896 = vadd.f32 %v5895, %v5822
        %5897 = vadd.xlane.f32.xlu0 %v5896
        %v5898 = vpop.xlane.xlu0 %5897
        %v5899 = vadd.f32 %v5823, %v5824
        %v5900 = vadd.f32 %v5899, %v5825
        %v5901 = vadd.f32 %v5900, %v5826
        %5902 = vadd.xlane.f32.xlu0 %v5901
        %v5903 = vpop.xlane.xlu0 %5902
        %v5904 = vadd.f32 %v5827, %v5828
        %v5905 = vadd.f32 %v5904, %v5829
        %v5906 = vadd.f32 %v5905, %v5830
        %5907 = vadd.xlane.f32.xlu0 %v5906
        %v5908 = vpop.xlane.xlu0 %5907
        %v5909 = vadd.f32 %v5831, %v5832
        %v5910 = vadd.f32 %v5909, %v5833
        %v5911 = vadd.f32 %v5910, %v5834
        %5912 = vadd.xlane.f32.xlu0 %v5911
        %v5913 = vpop.xlane.xlu0 %5912
        %v5914 = vadd.f32 %v5835, %v5836
        %v5915 = vadd.f32 %v5914, %v5837
        %v5916 = vadd.f32 %v5915, %v5838
        %5917 = vadd.xlane.f32.xlu0 %v5916
        %v5918 = vpop.xlane.xlu0 %5917
        %vm5919 = vcmask 7168
        %v5920 = vsel %vm5919, %v4163, %v4403
        %v5921 = vsel %vm5919, %v4168, %v4408
        %v5922 = vsel %vm5919, %v4173, %v4413
        %v5923 = vsel %vm5919, %v4178, %v4418
        %v5924 = vsel %vm5919, %v4183, %v4423
        %v5925 = vsel %vm5919, %v4188, %v4428
        %v5926 = vsel %vm5919, %v4193, %v4433
        %v5927 = vsel %vm5919, %v4198, %v4438
        %v5928 = vsel %vm5919, %v4203, %v4443
        %v5929 = vsel %vm5919, %v4208, %v4448
        %v5930 = vsel %vm5919, %v4213, %v4453
        %v5931 = vsel %vm5919, %v4218, %v4458
        %v5932 = vsel %vm5919, %v4223, %v4463
        %v5933 = vsel %vm5919, %v4228, %v4468
        %v5934 = vsel %vm5919, %v4233, %v4473
        %v5935 = vsel %vm5919, %v4238, %v4478
        %vm5936 = vcmask 15360
        %v5937 = vsel %vm5936, %v5920, %v4643
        %v5938 = vsel %vm5936, %v5921, %v4648
        %v5939 = vsel %vm5936, %v5922, %v4653
        %v5940 = vsel %vm5936, %v5923, %v4658
        %v5941 = vsel %vm5936, %v5924, %v4663
        %v5942 = vsel %vm5936, %v5925, %v4668
        %v5943 = vsel %vm5936, %v5926, %v4673
        %v5944 = vsel %vm5936, %v5927, %v4678
        %v5945 = vsel %vm5936, %v5928, %v4683
        %v5946 = vsel %vm5936, %v5929, %v4688
        %v5947 = vsel %vm5936, %v5930, %v4693
        %v5948 = vsel %vm5936, %v5931, %v4698
        %v5949 = vsel %vm5936, %v5932, %v4703
        %v5950 = vsel %vm5936, %v5933, %v4708
        %v5951 = vsel %vm5936, %v5934, %v4713
        %v5952 = vsel %vm5936, %v5935, %v4718
        %vm5953 = vcmask 23552
        %v5954 = vsel %vm5953, %v5937, %v4883
        %v5955 = vsel %vm5953, %v5938, %v4888
        %v5956 = vsel %vm5953, %v5939, %v4893
        %v5957 = vsel %vm5953, %v5940, %v4898
        %v5958 = vsel %vm5953, %v5941, %v4903
        %v5959 = vsel %vm5953, %v5942, %v4908
        %v5960 = vsel %vm5953, %v5943, %v4913
        %v5961 = vsel %vm5953, %v5944, %v4918
        %v5962 = vsel %vm5953, %v5945, %v4923
        %v5963 = vsel %vm5953, %v5946, %v4928
        %v5964 = vsel %vm5953, %v5947, %v4933
        %v5965 = vsel %vm5953, %v5948, %v4938
        %v5966 = vsel %vm5953, %v5949, %v4943
        %v5967 = vsel %vm5953, %v5950, %v4948
        %v5968 = vsel %vm5953, %v5951, %v4953
        %v5969 = vsel %vm5953, %v5952, %v4958
        %vm5970 = vcmask 31744
        %v5971 = vsel %vm5970, %v5954, %v5123
        %v5972 = vsel %vm5970, %v5955, %v5128
        %v5973 = vsel %vm5970, %v5956, %v5133
        %v5974 = vsel %vm5970, %v5957, %v5138
        %v5975 = vsel %vm5970, %v5958, %v5143
        %v5976 = vsel %vm5970, %v5959, %v5148
        %v5977 = vsel %vm5970, %v5960, %v5153
        %v5978 = vsel %vm5970, %v5961, %v5158
        %v5979 = vsel %vm5970, %v5962, %v5163
        %v5980 = vsel %vm5970, %v5963, %v5168
        %v5981 = vsel %vm5970, %v5964, %v5173
        %v5982 = vsel %vm5970, %v5965, %v5178
        %v5983 = vsel %vm5970, %v5966, %v5183
        %v5984 = vsel %vm5970, %v5967, %v5188
        %v5985 = vsel %vm5970, %v5968, %v5193
        %v5986 = vsel %vm5970, %v5969, %v5198
        %vm5987 = vcmask 39936
        %v5988 = vsel %vm5987, %v5971, %v5363
        %v5989 = vsel %vm5987, %v5972, %v5368
        %v5990 = vsel %vm5987, %v5973, %v5373
        %v5991 = vsel %vm5987, %v5974, %v5378
        %v5992 = vsel %vm5987, %v5975, %v5383
        %v5993 = vsel %vm5987, %v5976, %v5388
        %v5994 = vsel %vm5987, %v5977, %v5393
        %v5995 = vsel %vm5987, %v5978, %v5398
        %v5996 = vsel %vm5987, %v5979, %v5403
        %v5997 = vsel %vm5987, %v5980, %v5408
        %v5998 = vsel %vm5987, %v5981, %v5413
        %v5999 = vsel %vm5987, %v5982, %v5418
        %v6000 = vsel %vm5987, %v5983, %v5423
        %v6001 = vsel %vm5987, %v5984, %v5428
        %v6002 = vsel %vm5987, %v5985, %v5433
        %v6003 = vsel %vm5987, %v5986, %v5438
        %vm6004 = vcmask 48128
        %v6005 = vsel %vm6004, %v5988, %v5603
        %v6006 = vsel %vm6004, %v5989, %v5608
        %v6007 = vsel %vm6004, %v5990, %v5613
        %v6008 = vsel %vm6004, %v5991, %v5618
        %v6009 = vsel %vm6004, %v5992, %v5623
        %v6010 = vsel %vm6004, %v5993, %v5628
        %v6011 = vsel %vm6004, %v5994, %v5633
        %v6012 = vsel %vm6004, %v5995, %v5638
        %v6013 = vsel %vm6004, %v5996, %v5643
        %v6014 = vsel %vm6004, %v5997, %v5648
        %v6015 = vsel %vm6004, %v5998, %v5653
        %v6016 = vsel %vm6004, %v5999, %v5658
        %v6017 = vsel %vm6004, %v6000, %v5663
        %v6018 = vsel %vm6004, %v6001, %v5668
        %v6019 = vsel %vm6004, %v6002, %v5673
        %v6020 = vsel %vm6004, %v6003, %v5678
        %vm6021 = vcmask 56320
        %v6022 = vsel %vm6021, %v6005, %v5843
        %v6023 = vsel %vm6021, %v6006, %v5848
        %v6024 = vsel %vm6021, %v6007, %v5853
        %v6025 = vsel %vm6021, %v6008, %v5858
        %v6026 = vsel %vm6021, %v6009, %v5863
        %v6027 = vsel %vm6021, %v6010, %v5868
        %v6028 = vsel %vm6021, %v6011, %v5873
        %v6029 = vsel %vm6021, %v6012, %v5878
        %v6030 = vsel %vm6021, %v6013, %v5883
        %v6031 = vsel %vm6021, %v6014, %v5888
        %v6032 = vsel %vm6021, %v6015, %v5893
        %v6033 = vsel %vm6021, %v6016, %v5898
        %v6034 = vsel %vm6021, %v6017, %v5903
        %v6035 = vsel %vm6021, %v6018, %v5908
        %v6036 = vsel %vm6021, %v6019, %v5913
        %v6037 = vsel %vm6021, %v6020, %v5918
        %v6038 = vld [vmem:[%s579] sm:$0xff]
        %v6039 = vld [vmem:[%s579 + $0x8] sm:$0xff]
        %v6040 = vld [vmem:[%s579 + $0x10] sm:$0xff]
        %v6041 = vld [vmem:[%s579 + $0x18] sm:$0xff]
        %v6042 = vld [vmem:[%s579 + $0x20] sm:$0xff]
        %v6043 = vld [vmem:[%s579 + $0x28] sm:$0xff]
        %v6044 = vld [vmem:[%s579 + $0x30] sm:$0xff]
        %v6045 = vld [vmem:[%s579 + $0x38] sm:$0xff]
        %v6046 = vld [vmem:[%s579 + $0x40] sm:$0xff]
        %v6047 = vld [vmem:[%s579 + $0x48] sm:$0xff]
        %v6048 = vld [vmem:[%s579 + $0x50] sm:$0xff]
        %v6049 = vld [vmem:[%s579 + $0x58] sm:$0xff]
        %v6050 = vld [vmem:[%s579 + $0x60] sm:$0xff]
        %v6051 = vld [vmem:[%s579 + $0x68] sm:$0xff]
        %v6052 = vld [vmem:[%s579 + $0x70] sm:$0xff]
        %v6053 = vld [vmem:[%s579 + $0x78] sm:$0xff]
        %v6054 = vadd.f32 %v6022, %v6038
        %v6055 = vadd.f32 %v6023, %v6039
        %v6056 = vadd.f32 %v6024, %v6040
        %v6057 = vadd.f32 %v6025, %v6041
        %v6058 = vadd.f32 %v6026, %v6042
        %v6059 = vadd.f32 %v6027, %v6043
        %v6060 = vadd.f32 %v6028, %v6044
        %v6061 = vadd.f32 %v6029, %v6045
        %v6062 = vadd.f32 %v6030, %v6046
        %v6063 = vadd.f32 %v6031, %v6047
        %v6064 = vadd.f32 %v6032, %v6048
        %v6065 = vadd.f32 %v6033, %v6049
        %v6066 = vadd.f32 %v6034, %v6050
        %v6067 = vadd.f32 %v6035, %v6051
        %v6068 = vadd.f32 %v6036, %v6052
        %v6069 = vadd.f32 %v6037, %v6053
        %6086 = vrot.lane.b32.xlu0 %v6054, 8
        %v6087 = vpop.permute.xlu0 %6086
        %6088 = vrot.lane.b32.xlu0 %v6055, 8
        %v6089 = vpop.permute.xlu0 %6088
        %6090 = vrot.lane.b32.xlu0 %v6056, 8
        %v6091 = vpop.permute.xlu0 %6090
        %6092 = vrot.lane.b32.xlu0 %v6057, 8
        %v6093 = vpop.permute.xlu0 %6092
        %6094 = vrot.lane.b32.xlu0 %v6058, 8
        %v6095 = vpop.permute.xlu0 %6094
        %6096 = vrot.lane.b32.xlu0 %v6059, 8
        %v6097 = vpop.permute.xlu0 %6096
        %6098 = vrot.lane.b32.xlu0 %v6060, 8
        %v6099 = vpop.permute.xlu0 %6098
        %6100 = vrot.lane.b32.xlu0 %v6061, 8
        %v6101 = vpop.permute.xlu0 %6100
        %6102 = vrot.lane.b32.xlu0 %v6062, 8
        %v6103 = vpop.permute.xlu0 %6102
        %6104 = vrot.lane.b32.xlu0 %v6063, 8
        %v6105 = vpop.permute.xlu0 %6104
        %6106 = vrot.lane.b32.xlu0 %v6064, 8
        %v6107 = vpop.permute.xlu0 %6106
        %6108 = vrot.lane.b32.xlu0 %v6065, 8
        %v6109 = vpop.permute.xlu0 %6108
        %6110 = vrot.lane.b32.xlu0 %v6066, 8
        %v6111 = vpop.permute.xlu0 %6110
        %6112 = vrot.lane.b32.xlu0 %v6067, 8
        %v6113 = vpop.permute.xlu0 %6112
        %6114 = vrot.lane.b32.xlu0 %v6068, 8
        %v6115 = vpop.permute.xlu0 %6114
        %6116 = vrot.lane.b32.xlu0 %v6069, 8
        %v6117 = vpop.permute.xlu0 %6116
        %6134 = vrot.lane.b32.xlu0 %v6054, 16
        %v6135 = vpop.permute.xlu0 %6134
        %6136 = vrot.lane.b32.xlu0 %v6055, 16
        %v6137 = vpop.permute.xlu0 %6136
        %6138 = vrot.lane.b32.xlu0 %v6056, 16
        %v6139 = vpop.permute.xlu0 %6138
        %6140 = vrot.lane.b32.xlu0 %v6057, 16
        %v6141 = vpop.permute.xlu0 %6140
        %6142 = vrot.lane.b32.xlu0 %v6058, 16
        %v6143 = vpop.permute.xlu0 %6142
        %6144 = vrot.lane.b32.xlu0 %v6059, 16
        %v6145 = vpop.permute.xlu0 %6144
        %6146 = vrot.lane.b32.xlu0 %v6060, 16
        %v6147 = vpop.permute.xlu0 %6146
        %6148 = vrot.lane.b32.xlu0 %v6061, 16
        %v6149 = vpop.permute.xlu0 %6148
        %6150 = vrot.lane.b32.xlu0 %v6062, 16
        %v6151 = vpop.permute.xlu0 %6150
        %6152 = vrot.lane.b32.xlu0 %v6063, 16
        %v6153 = vpop.permute.xlu0 %6152
        %6154 = vrot.lane.b32.xlu0 %v6064, 16
        %v6155 = vpop.permute.xlu0 %6154
        %6156 = vrot.lane.b32.xlu0 %v6065, 16
        %v6157 = vpop.permute.xlu0 %6156
        %6158 = vrot.lane.b32.xlu0 %v6066, 16
        %v6159 = vpop.permute.xlu0 %6158
        %6160 = vrot.lane.b32.xlu0 %v6067, 16
        %v6161 = vpop.permute.xlu0 %6160
        %6162 = vrot.lane.b32.xlu0 %v6068, 16
        %v6163 = vpop.permute.xlu0 %6162
        %6164 = vrot.lane.b32.xlu0 %v6069, 16
        %v6165 = vpop.permute.xlu0 %6164
        %6182 = vrot.lane.b32.xlu0 %v6054, 24
        %v6183 = vpop.permute.xlu0 %6182
        %6184 = vrot.lane.b32.xlu0 %v6055, 24
        %v6185 = vpop.permute.xlu0 %6184
        %6186 = vrot.lane.b32.xlu0 %v6056, 24
        %v6187 = vpop.permute.xlu0 %6186
        %6188 = vrot.lane.b32.xlu0 %v6057, 24
        %v6189 = vpop.permute.xlu0 %6188
        %6190 = vrot.lane.b32.xlu0 %v6058, 24
        %v6191 = vpop.permute.xlu0 %6190
        %6192 = vrot.lane.b32.xlu0 %v6059, 24
        %v6193 = vpop.permute.xlu0 %6192
        %6194 = vrot.lane.b32.xlu0 %v6060, 24
        %v6195 = vpop.permute.xlu0 %6194
        %6196 = vrot.lane.b32.xlu0 %v6061, 24
        %v6197 = vpop.permute.xlu0 %6196
        %6198 = vrot.lane.b32.xlu0 %v6062, 24
        %v6199 = vpop.permute.xlu0 %6198
        %6200 = vrot.lane.b32.xlu0 %v6063, 24
        %v6201 = vpop.permute.xlu0 %6200
        %6202 = vrot.lane.b32.xlu0 %v6064, 24
        %v6203 = vpop.permute.xlu0 %6202
        %6204 = vrot.lane.b32.xlu0 %v6065, 24
        %v6205 = vpop.permute.xlu0 %6204
        %6206 = vrot.lane.b32.xlu0 %v6066, 24
        %v6207 = vpop.permute.xlu0 %6206
        %6208 = vrot.lane.b32.xlu0 %v6067, 24
        %v6209 = vpop.permute.xlu0 %6208
        %6210 = vrot.lane.b32.xlu0 %v6068, 24
        %v6211 = vpop.permute.xlu0 %6210
        %6212 = vrot.lane.b32.xlu0 %v6069, 24
        %v6213 = vpop.permute.xlu0 %6212
        %6230 = vrot.lane.b32.xlu0 %v6054, 32
        %v6231 = vpop.permute.xlu0 %6230
        %6232 = vrot.lane.b32.xlu0 %v6055, 32
        %v6233 = vpop.permute.xlu0 %6232
        %6234 = vrot.lane.b32.xlu0 %v6056, 32
        %v6235 = vpop.permute.xlu0 %6234
        %6236 = vrot.lane.b32.xlu0 %v6057, 32
        %v6237 = vpop.permute.xlu0 %6236
        %6238 = vrot.lane.b32.xlu0 %v6058, 32
        %v6239 = vpop.permute.xlu0 %6238
        %6240 = vrot.lane.b32.xlu0 %v6059, 32
        %v6241 = vpop.permute.xlu0 %6240
        %6242 = vrot.lane.b32.xlu0 %v6060, 32
        %v6243 = vpop.permute.xlu0 %6242
        %6244 = vrot.lane.b32.xlu0 %v6061, 32
        %v6245 = vpop.permute.xlu0 %6244
        %6246 = vrot.lane.b32.xlu0 %v6062, 32
        %v6247 = vpop.permute.xlu0 %6246
        %6248 = vrot.lane.b32.xlu0 %v6063, 32
        %v6249 = vpop.permute.xlu0 %6248
        %6250 = vrot.lane.b32.xlu0 %v6064, 32
        %v6251 = vpop.permute.xlu0 %6250
        %6252 = vrot.lane.b32.xlu0 %v6065, 32
        %v6253 = vpop.permute.xlu0 %6252
        %6254 = vrot.lane.b32.xlu0 %v6066, 32
        %v6255 = vpop.permute.xlu0 %6254
        %6256 = vrot.lane.b32.xlu0 %v6067, 32
        %v6257 = vpop.permute.xlu0 %6256
        %6258 = vrot.lane.b32.xlu0 %v6068, 32
        %v6259 = vpop.permute.xlu0 %6258
        %6260 = vrot.lane.b32.xlu0 %v6069, 32
        %v6261 = vpop.permute.xlu0 %6260
        %6278 = vrot.lane.b32.xlu0 %v6054, 40
        %v6279 = vpop.permute.xlu0 %6278
        %6280 = vrot.lane.b32.xlu0 %v6055, 40
        %v6281 = vpop.permute.xlu0 %6280
        %6282 = vrot.lane.b32.xlu0 %v6056, 40
        %v6283 = vpop.permute.xlu0 %6282
        %6284 = vrot.lane.b32.xlu0 %v6057, 40
        %v6285 = vpop.permute.xlu0 %6284
        %6286 = vrot.lane.b32.xlu0 %v6058, 40
        %v6287 = vpop.permute.xlu0 %6286
        %6288 = vrot.lane.b32.xlu0 %v6059, 40
        %v6289 = vpop.permute.xlu0 %6288
        %6290 = vrot.lane.b32.xlu0 %v6060, 40
        %v6291 = vpop.permute.xlu0 %6290
        %6292 = vrot.lane.b32.xlu0 %v6061, 40
        %v6293 = vpop.permute.xlu0 %6292
        %6294 = vrot.lane.b32.xlu0 %v6062, 40
        %v6295 = vpop.permute.xlu0 %6294
        %6296 = vrot.lane.b32.xlu0 %v6063, 40
        %v6297 = vpop.permute.xlu0 %6296
        %6298 = vrot.lane.b32.xlu0 %v6064, 40
        %v6299 = vpop.permute.xlu0 %6298
        %6300 = vrot.lane.b32.xlu0 %v6065, 40
        %v6301 = vpop.permute.xlu0 %6300
        %6302 = vrot.lane.b32.xlu0 %v6066, 40
        %v6303 = vpop.permute.xlu0 %6302
        %6304 = vrot.lane.b32.xlu0 %v6067, 40
        %v6305 = vpop.permute.xlu0 %6304
        %6306 = vrot.lane.b32.xlu0 %v6068, 40
        %v6307 = vpop.permute.xlu0 %6306
        %6308 = vrot.lane.b32.xlu0 %v6069, 40
        %v6309 = vpop.permute.xlu0 %6308
        %6326 = vrot.lane.b32.xlu0 %v6054, 48
        %v6327 = vpop.permute.xlu0 %6326
        %6328 = vrot.lane.b32.xlu0 %v6055, 48
        %v6329 = vpop.permute.xlu0 %6328
        %6330 = vrot.lane.b32.xlu0 %v6056, 48
        %v6331 = vpop.permute.xlu0 %6330
        %6332 = vrot.lane.b32.xlu0 %v6057, 48
        %v6333 = vpop.permute.xlu0 %6332
        %6334 = vrot.lane.b32.xlu0 %v6058, 48
        %v6335 = vpop.permute.xlu0 %6334
        %6336 = vrot.lane.b32.xlu0 %v6059, 48
        %v6337 = vpop.permute.xlu0 %6336
        %6338 = vrot.lane.b32.xlu0 %v6060, 48
        %v6339 = vpop.permute.xlu0 %6338
        %6340 = vrot.lane.b32.xlu0 %v6061, 48
        %v6341 = vpop.permute.xlu0 %6340
        %6342 = vrot.lane.b32.xlu0 %v6062, 48
        %v6343 = vpop.permute.xlu0 %6342
        %6344 = vrot.lane.b32.xlu0 %v6063, 48
        %v6345 = vpop.permute.xlu0 %6344
        %6346 = vrot.lane.b32.xlu0 %v6064, 48
        %v6347 = vpop.permute.xlu0 %6346
        %6348 = vrot.lane.b32.xlu0 %v6065, 48
        %v6349 = vpop.permute.xlu0 %6348
        %6350 = vrot.lane.b32.xlu0 %v6066, 48
        %v6351 = vpop.permute.xlu0 %6350
        %6352 = vrot.lane.b32.xlu0 %v6067, 48
        %v6353 = vpop.permute.xlu0 %6352
        %6354 = vrot.lane.b32.xlu0 %v6068, 48
        %v6355 = vpop.permute.xlu0 %6354
        %6356 = vrot.lane.b32.xlu0 %v6069, 48
        %v6357 = vpop.permute.xlu0 %6356
        %6374 = vrot.lane.b32.xlu0 %v6054, 56
        %v6375 = vpop.permute.xlu0 %6374
        %6376 = vrot.lane.b32.xlu0 %v6055, 56
        %v6377 = vpop.permute.xlu0 %6376
        %6378 = vrot.lane.b32.xlu0 %v6056, 56
        %v6379 = vpop.permute.xlu0 %6378
        %6380 = vrot.lane.b32.xlu0 %v6057, 56
        %v6381 = vpop.permute.xlu0 %6380
        %6382 = vrot.lane.b32.xlu0 %v6058, 56
        %v6383 = vpop.permute.xlu0 %6382
        %6384 = vrot.lane.b32.xlu0 %v6059, 56
        %v6385 = vpop.permute.xlu0 %6384
        %6386 = vrot.lane.b32.xlu0 %v6060, 56
        %v6387 = vpop.permute.xlu0 %6386
        %6388 = vrot.lane.b32.xlu0 %v6061, 56
        %v6389 = vpop.permute.xlu0 %6388
        %6390 = vrot.lane.b32.xlu0 %v6062, 56
        %v6391 = vpop.permute.xlu0 %6390
        %6392 = vrot.lane.b32.xlu0 %v6063, 56
        %v6393 = vpop.permute.xlu0 %6392
        %6394 = vrot.lane.b32.xlu0 %v6064, 56
        %v6395 = vpop.permute.xlu0 %6394
        %6396 = vrot.lane.b32.xlu0 %v6065, 56
        %v6397 = vpop.permute.xlu0 %6396
        %6398 = vrot.lane.b32.xlu0 %v6066, 56
        %v6399 = vpop.permute.xlu0 %6398
        %6400 = vrot.lane.b32.xlu0 %v6067, 56
        %v6401 = vpop.permute.xlu0 %6400
        %6402 = vrot.lane.b32.xlu0 %v6068, 56
        %v6403 = vpop.permute.xlu0 %6402
        %6404 = vrot.lane.b32.xlu0 %v6069, 56
        %v6405 = vpop.permute.xlu0 %6404
        %6422 = vrot.lane.b32.xlu0 %v6054, 64
        %v6423 = vpop.permute.xlu0 %6422
        %6424 = vrot.lane.b32.xlu0 %v6055, 64
        %v6425 = vpop.permute.xlu0 %6424
        %6426 = vrot.lane.b32.xlu0 %v6056, 64
        %v6427 = vpop.permute.xlu0 %6426
        %6428 = vrot.lane.b32.xlu0 %v6057, 64
        %v6429 = vpop.permute.xlu0 %6428
        %6430 = vrot.lane.b32.xlu0 %v6058, 64
        %v6431 = vpop.permute.xlu0 %6430
        %6432 = vrot.lane.b32.xlu0 %v6059, 64
        %v6433 = vpop.permute.xlu0 %6432
        %6434 = vrot.lane.b32.xlu0 %v6060, 64
        %v6435 = vpop.permute.xlu0 %6434
        %6436 = vrot.lane.b32.xlu0 %v6061, 64
        %v6437 = vpop.permute.xlu0 %6436
        %6438 = vrot.lane.b32.xlu0 %v6062, 64
        %v6439 = vpop.permute.xlu0 %6438
        %6440 = vrot.lane.b32.xlu0 %v6063, 64
        %v6441 = vpop.permute.xlu0 %6440
        %6442 = vrot.lane.b32.xlu0 %v6064, 64
        %v6443 = vpop.permute.xlu0 %6442
        %6444 = vrot.lane.b32.xlu0 %v6065, 64
        %v6445 = vpop.permute.xlu0 %6444
        %6446 = vrot.lane.b32.xlu0 %v6066, 64
        %v6447 = vpop.permute.xlu0 %6446
        %6448 = vrot.lane.b32.xlu0 %v6067, 64
        %v6449 = vpop.permute.xlu0 %6448
        %6450 = vrot.lane.b32.xlu0 %v6068, 64
        %v6451 = vpop.permute.xlu0 %6450
        %6452 = vrot.lane.b32.xlu0 %v6069, 64
        %v6453 = vpop.permute.xlu0 %6452
        %6470 = vrot.lane.b32.xlu0 %v6054, 72
        %v6471 = vpop.permute.xlu0 %6470
        %6472 = vrot.lane.b32.xlu0 %v6055, 72
        %v6473 = vpop.permute.xlu0 %6472
        %6474 = vrot.lane.b32.xlu0 %v6056, 72
        %v6475 = vpop.permute.xlu0 %6474
        %6476 = vrot.lane.b32.xlu0 %v6057, 72
        %v6477 = vpop.permute.xlu0 %6476
        %6478 = vrot.lane.b32.xlu0 %v6058, 72
        %v6479 = vpop.permute.xlu0 %6478
        %6480 = vrot.lane.b32.xlu0 %v6059, 72
        %v6481 = vpop.permute.xlu0 %6480
        %6482 = vrot.lane.b32.xlu0 %v6060, 72
        %v6483 = vpop.permute.xlu0 %6482
        %6484 = vrot.lane.b32.xlu0 %v6061, 72
        %v6485 = vpop.permute.xlu0 %6484
        %6486 = vrot.lane.b32.xlu0 %v6062, 72
        %v6487 = vpop.permute.xlu0 %6486
        %6488 = vrot.lane.b32.xlu0 %v6063, 72
        %v6489 = vpop.permute.xlu0 %6488
        %6490 = vrot.lane.b32.xlu0 %v6064, 72
        %v6491 = vpop.permute.xlu0 %6490
        %6492 = vrot.lane.b32.xlu0 %v6065, 72
        %v6493 = vpop.permute.xlu0 %6492
        %6494 = vrot.lane.b32.xlu0 %v6066, 72
        %v6495 = vpop.permute.xlu0 %6494
        %6496 = vrot.lane.b32.xlu0 %v6067, 72
        %v6497 = vpop.permute.xlu0 %6496
        %6498 = vrot.lane.b32.xlu0 %v6068, 72
        %v6499 = vpop.permute.xlu0 %6498
        %6500 = vrot.lane.b32.xlu0 %v6069, 72
        %v6501 = vpop.permute.xlu0 %6500
        %6518 = vrot.lane.b32.xlu0 %v6054, 80
        %v6519 = vpop.permute.xlu0 %6518
        %6520 = vrot.lane.b32.xlu0 %v6055, 80
        %v6521 = vpop.permute.xlu0 %6520
        %6522 = vrot.lane.b32.xlu0 %v6056, 80
        %v6523 = vpop.permute.xlu0 %6522
        %6524 = vrot.lane.b32.xlu0 %v6057, 80
        %v6525 = vpop.permute.xlu0 %6524
        %6526 = vrot.lane.b32.xlu0 %v6058, 80
        %v6527 = vpop.permute.xlu0 %6526
        %6528 = vrot.lane.b32.xlu0 %v6059, 80
        %v6529 = vpop.permute.xlu0 %6528
        %6530 = vrot.lane.b32.xlu0 %v6060, 80
        %v6531 = vpop.permute.xlu0 %6530
        %6532 = vrot.lane.b32.xlu0 %v6061, 80
        %v6533 = vpop.permute.xlu0 %6532
        %6534 = vrot.lane.b32.xlu0 %v6062, 80
        %v6535 = vpop.permute.xlu0 %6534
        %6536 = vrot.lane.b32.xlu0 %v6063, 80
        %v6537 = vpop.permute.xlu0 %6536
        %6538 = vrot.lane.b32.xlu0 %v6064, 80
        %v6539 = vpop.permute.xlu0 %6538
        %6540 = vrot.lane.b32.xlu0 %v6065, 80
        %v6541 = vpop.permute.xlu0 %6540
        %6542 = vrot.lane.b32.xlu0 %v6066, 80
        %v6543 = vpop.permute.xlu0 %6542
        %6544 = vrot.lane.b32.xlu0 %v6067, 80
        %v6545 = vpop.permute.xlu0 %6544
        %6546 = vrot.lane.b32.xlu0 %v6068, 80
        %v6547 = vpop.permute.xlu0 %6546
        %6548 = vrot.lane.b32.xlu0 %v6069, 80
        %v6549 = vpop.permute.xlu0 %6548
        %6566 = vrot.lane.b32.xlu0 %v6054, 88
        %v6567 = vpop.permute.xlu0 %6566
        %6568 = vrot.lane.b32.xlu0 %v6055, 88
        %v6569 = vpop.permute.xlu0 %6568
        %6570 = vrot.lane.b32.xlu0 %v6056, 88
        %v6571 = vpop.permute.xlu0 %6570
        %6572 = vrot.lane.b32.xlu0 %v6057, 88
        %v6573 = vpop.permute.xlu0 %6572
        %6574 = vrot.lane.b32.xlu0 %v6058, 88
        %v6575 = vpop.permute.xlu0 %6574
        %6576 = vrot.lane.b32.xlu0 %v6059, 88
        %v6577 = vpop.permute.xlu0 %6576
        %6578 = vrot.lane.b32.xlu0 %v6060, 88
        %v6579 = vpop.permute.xlu0 %6578
        %6580 = vrot.lane.b32.xlu0 %v6061, 88
        %v6581 = vpop.permute.xlu0 %6580
        %6582 = vrot.lane.b32.xlu0 %v6062, 88
        %v6583 = vpop.permute.xlu0 %6582
        %6584 = vrot.lane.b32.xlu0 %v6063, 88
        %v6585 = vpop.permute.xlu0 %6584
        %6586 = vrot.lane.b32.xlu0 %v6064, 88
        %v6587 = vpop.permute.xlu0 %6586
        %6588 = vrot.lane.b32.xlu0 %v6065, 88
        %v6589 = vpop.permute.xlu0 %6588
        %6590 = vrot.lane.b32.xlu0 %v6066, 88
        %v6591 = vpop.permute.xlu0 %6590
        %6592 = vrot.lane.b32.xlu0 %v6067, 88
        %v6593 = vpop.permute.xlu0 %6592
        %6594 = vrot.lane.b32.xlu0 %v6068, 88
        %v6595 = vpop.permute.xlu0 %6594
        %6596 = vrot.lane.b32.xlu0 %v6069, 88
        %v6597 = vpop.permute.xlu0 %6596
        %6614 = vrot.lane.b32.xlu0 %v6054, 96
        %v6615 = vpop.permute.xlu0 %6614
        %6616 = vrot.lane.b32.xlu0 %v6055, 96
        %v6617 = vpop.permute.xlu0 %6616
        %6618 = vrot.lane.b32.xlu0 %v6056, 96
        %v6619 = vpop.permute.xlu0 %6618
        %6620 = vrot.lane.b32.xlu0 %v6057, 96
        %v6621 = vpop.permute.xlu0 %6620
        %6622 = vrot.lane.b32.xlu0 %v6058, 96
        %v6623 = vpop.permute.xlu0 %6622
        %6624 = vrot.lane.b32.xlu0 %v6059, 96
        %v6625 = vpop.permute.xlu0 %6624
        %6626 = vrot.lane.b32.xlu0 %v6060, 96
        %v6627 = vpop.permute.xlu0 %6626
        %6628 = vrot.lane.b32.xlu0 %v6061, 96
        %v6629 = vpop.permute.xlu0 %6628
        %6630 = vrot.lane.b32.xlu0 %v6062, 96
        %v6631 = vpop.permute.xlu0 %6630
        %6632 = vrot.lane.b32.xlu0 %v6063, 96
        %v6633 = vpop.permute.xlu0 %6632
        %6634 = vrot.lane.b32.xlu0 %v6064, 96
        %v6635 = vpop.permute.xlu0 %6634
        %6636 = vrot.lane.b32.xlu0 %v6065, 96
        %v6637 = vpop.permute.xlu0 %6636
        %6638 = vrot.lane.b32.xlu0 %v6066, 96
        %v6639 = vpop.permute.xlu0 %6638
        %6640 = vrot.lane.b32.xlu0 %v6067, 96
        %v6641 = vpop.permute.xlu0 %6640
        %6642 = vrot.lane.b32.xlu0 %v6068, 96
        %v6643 = vpop.permute.xlu0 %6642
        %6644 = vrot.lane.b32.xlu0 %v6069, 96
        %v6645 = vpop.permute.xlu0 %6644
        %6662 = vrot.lane.b32.xlu0 %v6054, 104
        %v6663 = vpop.permute.xlu0 %6662
        %6664 = vrot.lane.b32.xlu0 %v6055, 104
        %v6665 = vpop.permute.xlu0 %6664
        %6666 = vrot.lane.b32.xlu0 %v6056, 104
        %v6667 = vpop.permute.xlu0 %6666
        %6668 = vrot.lane.b32.xlu0 %v6057, 104
        %v6669 = vpop.permute.xlu0 %6668
        %6670 = vrot.lane.b32.xlu0 %v6058, 104
        %v6671 = vpop.permute.xlu0 %6670
        %6672 = vrot.lane.b32.xlu0 %v6059, 104
        %v6673 = vpop.permute.xlu0 %6672
        %6674 = vrot.lane.b32.xlu0 %v6060, 104
        %v6675 = vpop.permute.xlu0 %6674
        %6676 = vrot.lane.b32.xlu0 %v6061, 104
        %v6677 = vpop.permute.xlu0 %6676
        %6678 = vrot.lane.b32.xlu0 %v6062, 104
        %v6679 = vpop.permute.xlu0 %6678
        %6680 = vrot.lane.b32.xlu0 %v6063, 104
        %v6681 = vpop.permute.xlu0 %6680
        %6682 = vrot.lane.b32.xlu0 %v6064, 104
        %v6683 = vpop.permute.xlu0 %6682
        %6684 = vrot.lane.b32.xlu0 %v6065, 104
        %v6685 = vpop.permute.xlu0 %6684
        %6686 = vrot.lane.b32.xlu0 %v6066, 104
        %v6687 = vpop.permute.xlu0 %6686
        %6688 = vrot.lane.b32.xlu0 %v6067, 104
        %v6689 = vpop.permute.xlu0 %6688
        %6690 = vrot.lane.b32.xlu0 %v6068, 104
        %v6691 = vpop.permute.xlu0 %6690
        %6692 = vrot.lane.b32.xlu0 %v6069, 104
        %v6693 = vpop.permute.xlu0 %6692
        %6710 = vrot.lane.b32.xlu0 %v6054, 112
        %v6711 = vpop.permute.xlu0 %6710
        %6712 = vrot.lane.b32.xlu0 %v6055, 112
        %v6713 = vpop.permute.xlu0 %6712
        %6714 = vrot.lane.b32.xlu0 %v6056, 112
        %v6715 = vpop.permute.xlu0 %6714
        %6716 = vrot.lane.b32.xlu0 %v6057, 112
        %v6717 = vpop.permute.xlu0 %6716
        %6718 = vrot.lane.b32.xlu0 %v6058, 112
        %v6719 = vpop.permute.xlu0 %6718
        %6720 = vrot.lane.b32.xlu0 %v6059, 112
        %v6721 = vpop.permute.xlu0 %6720
        %6722 = vrot.lane.b32.xlu0 %v6060, 112
        %v6723 = vpop.permute.xlu0 %6722
        %6724 = vrot.lane.b32.xlu0 %v6061, 112
        %v6725 = vpop.permute.xlu0 %6724
        %6726 = vrot.lane.b32.xlu0 %v6062, 112
        %v6727 = vpop.permute.xlu0 %6726
        %6728 = vrot.lane.b32.xlu0 %v6063, 112
        %v6729 = vpop.permute.xlu0 %6728
        %6730 = vrot.lane.b32.xlu0 %v6064, 112
        %v6731 = vpop.permute.xlu0 %6730
        %6732 = vrot.lane.b32.xlu0 %v6065, 112
        %v6733 = vpop.permute.xlu0 %6732
        %6734 = vrot.lane.b32.xlu0 %v6066, 112
        %v6735 = vpop.permute.xlu0 %6734
        %6736 = vrot.lane.b32.xlu0 %v6067, 112
        %v6737 = vpop.permute.xlu0 %6736
        %6738 = vrot.lane.b32.xlu0 %v6068, 112
        %v6739 = vpop.permute.xlu0 %6738
        %6740 = vrot.lane.b32.xlu0 %v6069, 112
        %v6741 = vpop.permute.xlu0 %6740
        %6758 = vrot.lane.b32.xlu0 %v6054, 120
        %v6759 = vpop.permute.xlu0 %6758
        %6760 = vrot.lane.b32.xlu0 %v6055, 120
        %v6761 = vpop.permute.xlu0 %6760
        %6762 = vrot.lane.b32.xlu0 %v6056, 120
        %v6763 = vpop.permute.xlu0 %6762
        %6764 = vrot.lane.b32.xlu0 %v6057, 120
        %v6765 = vpop.permute.xlu0 %6764
        %6766 = vrot.lane.b32.xlu0 %v6058, 120
        %v6767 = vpop.permute.xlu0 %6766
        %6768 = vrot.lane.b32.xlu0 %v6059, 120
        %v6769 = vpop.permute.xlu0 %6768
        %6770 = vrot.lane.b32.xlu0 %v6060, 120
        %v6771 = vpop.permute.xlu0 %6770
        %6772 = vrot.lane.b32.xlu0 %v6061, 120
        %v6773 = vpop.permute.xlu0 %6772
        %6774 = vrot.lane.b32.xlu0 %v6062, 120
        %v6775 = vpop.permute.xlu0 %6774
        %6776 = vrot.lane.b32.xlu0 %v6063, 120
        %v6777 = vpop.permute.xlu0 %6776
        %6778 = vrot.lane.b32.xlu0 %v6064, 120
        %v6779 = vpop.permute.xlu0 %6778
        %6780 = vrot.lane.b32.xlu0 %v6065, 120
        %v6781 = vpop.permute.xlu0 %6780
        %6782 = vrot.lane.b32.xlu0 %v6066, 120
        %v6783 = vpop.permute.xlu0 %6782
        %6784 = vrot.lane.b32.xlu0 %v6067, 120
        %v6785 = vpop.permute.xlu0 %6784
        %6786 = vrot.lane.b32.xlu0 %v6068, 120
        %v6787 = vpop.permute.xlu0 %6786
        %6788 = vrot.lane.b32.xlu0 %v6069, 120
        %v6789 = vpop.permute.xlu0 %6788
        %vm6806 = vcmask 64512
        %v6807 = vsel %vm6806, %v6054, %v6087
        %v6808 = vsel %vm6806, %v6055, %v6089
        %v6809 = vsel %vm6806, %v6056, %v6091
        %v6810 = vsel %vm6806, %v6057, %v6093
        %v6811 = vsel %vm6806, %v6058, %v6095
        %v6812 = vsel %vm6806, %v6059, %v6097
        %v6813 = vsel %vm6806, %v6060, %v6099
        %v6814 = vsel %vm6806, %v6061, %v6101
        %v6815 = vsel %vm6806, %v6062, %v6103
        %v6816 = vsel %vm6806, %v6063, %v6105
        %v6817 = vsel %vm6806, %v6064, %v6107
        %v6818 = vsel %vm6806, %v6065, %v6109
        %v6819 = vsel %vm6806, %v6066, %v6111
        %v6820 = vsel %vm6806, %v6067, %v6113
        %v6821 = vsel %vm6806, %v6068, %v6115
        %v6822 = vsel %vm6806, %v6069, %v6117
        %vm6823 = vcmask 130048
        %v6824 = vsel %vm6823, %v6807, %v6135
        %v6825 = vsel %vm6823, %v6808, %v6137
        %v6826 = vsel %vm6823, %v6809, %v6139
        %v6827 = vsel %vm6823, %v6810, %v6141
        %v6828 = vsel %vm6823, %v6811, %v6143
        %v6829 = vsel %vm6823, %v6812, %v6145
        %v6830 = vsel %vm6823, %v6813, %v6147
        %v6831 = vsel %vm6823, %v6814, %v6149
        %v6832 = vsel %vm6823, %v6815, %v6151
        %v6833 = vsel %vm6823, %v6816, %v6153
        %v6834 = vsel %vm6823, %v6817, %v6155
        %v6835 = vsel %vm6823, %v6818, %v6157
        %v6836 = vsel %vm6823, %v6819, %v6159
        %v6837 = vsel %vm6823, %v6820, %v6161
        %v6838 = vsel %vm6823, %v6821, %v6163
        %v6839 = vsel %vm6823, %v6822, %v6165
        %vm6840 = vcmask 195584
        %v6841 = vsel %vm6840, %v6824, %v6183
        %v6842 = vsel %vm6840, %v6825, %v6185
        %v6843 = vsel %vm6840, %v6826, %v6187
        %v6844 = vsel %vm6840, %v6827, %v6189
        %v6845 = vsel %vm6840, %v6828, %v6191
        %v6846 = vsel %vm6840, %v6829, %v6193
        %v6847 = vsel %vm6840, %v6830, %v6195
        %v6848 = vsel %vm6840, %v6831, %v6197
        %v6849 = vsel %vm6840, %v6832, %v6199
        %v6850 = vsel %vm6840, %v6833, %v6201
        %v6851 = vsel %vm6840, %v6834, %v6203
        %v6852 = vsel %vm6840, %v6835, %v6205
        %v6853 = vsel %vm6840, %v6836, %v6207
        %v6854 = vsel %vm6840, %v6837, %v6209
        %v6855 = vsel %vm6840, %v6838, %v6211
        %v6856 = vsel %vm6840, %v6839, %v6213
        %v6857 = vsel %vm852, %v6841, %v6231
        %v6858 = vsel %vm852, %v6842, %v6233
        %v6859 = vsel %vm852, %v6843, %v6235
        %v6860 = vsel %vm852, %v6844, %v6237
        %v6861 = vsel %vm852, %v6845, %v6239
        %v6862 = vsel %vm852, %v6846, %v6241
        %v6863 = vsel %vm852, %v6847, %v6243
        %v6864 = vsel %vm852, %v6848, %v6245
        %v6865 = vsel %vm852, %v6849, %v6247
        %v6866 = vsel %vm852, %v6850, %v6249
        %v6867 = vsel %vm852, %v6851, %v6251
        %v6868 = vsel %vm852, %v6852, %v6253
        %v6869 = vsel %vm852, %v6853, %v6255
        %v6870 = vsel %vm852, %v6854, %v6257
        %v6871 = vsel %vm852, %v6855, %v6259
        %v6872 = vsel %vm852, %v6856, %v6261
        %vm6873 = vcmask 326656
        %v6874 = vsel %vm6873, %v6857, %v6279
        %v6875 = vsel %vm6873, %v6858, %v6281
        %v6876 = vsel %vm6873, %v6859, %v6283
        %v6877 = vsel %vm6873, %v6860, %v6285
        %v6878 = vsel %vm6873, %v6861, %v6287
        %v6879 = vsel %vm6873, %v6862, %v6289
        %v6880 = vsel %vm6873, %v6863, %v6291
        %v6881 = vsel %vm6873, %v6864, %v6293
        %v6882 = vsel %vm6873, %v6865, %v6295
        %v6883 = vsel %vm6873, %v6866, %v6297
        %v6884 = vsel %vm6873, %v6867, %v6299
        %v6885 = vsel %vm6873, %v6868, %v6301
        %v6886 = vsel %vm6873, %v6869, %v6303
        %v6887 = vsel %vm6873, %v6870, %v6305
        %v6888 = vsel %vm6873, %v6871, %v6307
        %v6889 = vsel %vm6873, %v6872, %v6309
        %vm6890 = vcmask 392192
        %v6891 = vsel %vm6890, %v6874, %v6327
        %v6892 = vsel %vm6890, %v6875, %v6329
        %v6893 = vsel %vm6890, %v6876, %v6331
        %v6894 = vsel %vm6890, %v6877, %v6333
        %v6895 = vsel %vm6890, %v6878, %v6335
        %v6896 = vsel %vm6890, %v6879, %v6337
        %v6897 = vsel %vm6890, %v6880, %v6339
        %v6898 = vsel %vm6890, %v6881, %v6341
        %v6899 = vsel %vm6890, %v6882, %v6343
        %v6900 = vsel %vm6890, %v6883, %v6345
        %v6901 = vsel %vm6890, %v6884, %v6347
        %v6902 = vsel %vm6890, %v6885, %v6349
        %v6903 = vsel %vm6890, %v6886, %v6351
        %v6904 = vsel %vm6890, %v6887, %v6353
        %v6905 = vsel %vm6890, %v6888, %v6355
        %v6906 = vsel %vm6890, %v6889, %v6357
        %vm6907 = vcmask 457728
        %v6908 = vsel %vm6907, %v6891, %v6375
        %v6909 = vsel %vm6907, %v6892, %v6377
        %v6910 = vsel %vm6907, %v6893, %v6379
        %v6911 = vsel %vm6907, %v6894, %v6381
        %v6912 = vsel %vm6907, %v6895, %v6383
        %v6913 = vsel %vm6907, %v6896, %v6385
        %v6914 = vsel %vm6907, %v6897, %v6387
        %v6915 = vsel %vm6907, %v6898, %v6389
        %v6916 = vsel %vm6907, %v6899, %v6391
        %v6917 = vsel %vm6907, %v6900, %v6393
        %v6918 = vsel %vm6907, %v6901, %v6395
        %v6919 = vsel %vm6907, %v6902, %v6397
        %v6920 = vsel %vm6907, %v6903, %v6399
        %v6921 = vsel %vm6907, %v6904, %v6401
        %v6922 = vsel %vm6907, %v6905, %v6403
        %v6923 = vsel %vm6907, %v6906, %v6405
        %vm6924 = vcmask 523264
        %v6925 = vsel %vm6924, %v6908, %v6423
        %v6926 = vsel %vm6924, %v6909, %v6425
        %v6927 = vsel %vm6924, %v6910, %v6427
        %v6928 = vsel %vm6924, %v6911, %v6429
        %v6929 = vsel %vm6924, %v6912, %v6431
        %v6930 = vsel %vm6924, %v6913, %v6433
        %v6931 = vsel %vm6924, %v6914, %v6435
        %v6932 = vsel %vm6924, %v6915, %v6437
        %v6933 = vsel %vm6924, %v6916, %v6439
        %v6934 = vsel %vm6924, %v6917, %v6441
        %v6935 = vsel %vm6924, %v6918, %v6443
        %v6936 = vsel %vm6924, %v6919, %v6445
        %v6937 = vsel %vm6924, %v6920, %v6447
        %v6938 = vsel %vm6924, %v6921, %v6449
        %v6939 = vsel %vm6924, %v6922, %v6451
        %v6940 = vsel %vm6924, %v6923, %v6453
        %vm6941 = vcmask 588800
        %v6942 = vsel %vm6941, %v6925, %v6471
        %v6943 = vsel %vm6941, %v6926, %v6473
        %v6944 = vsel %vm6941, %v6927, %v6475
        %v6945 = vsel %vm6941, %v6928, %v6477
        %v6946 = vsel %vm6941, %v6929, %v6479
        %v6947 = vsel %vm6941, %v6930, %v6481
        %v6948 = vsel %vm6941, %v6931, %v6483
        %v6949 = vsel %vm6941, %v6932, %v6485
        %v6950 = vsel %vm6941, %v6933, %v6487
        %v6951 = vsel %vm6941, %v6934, %v6489
        %v6952 = vsel %vm6941, %v6935, %v6491
        %v6953 = vsel %vm6941, %v6936, %v6493
        %v6954 = vsel %vm6941, %v6937, %v6495
        %v6955 = vsel %vm6941, %v6938, %v6497
        %v6956 = vsel %vm6941, %v6939, %v6499
        %v6957 = vsel %vm6941, %v6940, %v6501
        %vm6958 = vcmask 654336
        %v6959 = vsel %vm6958, %v6942, %v6519
        %v6960 = vsel %vm6958, %v6943, %v6521
        %v6961 = vsel %vm6958, %v6944, %v6523
        %v6962 = vsel %vm6958, %v6945, %v6525
        %v6963 = vsel %vm6958, %v6946, %v6527
        %v6964 = vsel %vm6958, %v6947, %v6529
        %v6965 = vsel %vm6958, %v6948, %v6531
        %v6966 = vsel %vm6958, %v6949, %v6533
        %v6967 = vsel %vm6958, %v6950, %v6535
        %v6968 = vsel %vm6958, %v6951, %v6537
        %v6969 = vsel %vm6958, %v6952, %v6539
        %v6970 = vsel %vm6958, %v6953, %v6541
        %v6971 = vsel %vm6958, %v6954, %v6543
        %v6972 = vsel %vm6958, %v6955, %v6545
        %v6973 = vsel %vm6958, %v6956, %v6547
        %v6974 = vsel %vm6958, %v6957, %v6549
        %vm6975 = vcmask 719872
        %v6976 = vsel %vm6975, %v6959, %v6567
        %v6977 = vsel %vm6975, %v6960, %v6569
        %v6978 = vsel %vm6975, %v6961, %v6571
        %v6979 = vsel %vm6975, %v6962, %v6573
        %v6980 = vsel %vm6975, %v6963, %v6575
        %v6981 = vsel %vm6975, %v6964, %v6577
        %v6982 = vsel %vm6975, %v6965, %v6579
        %v6983 = vsel %vm6975, %v6966, %v6581
        %v6984 = vsel %vm6975, %v6967, %v6583
        %v6985 = vsel %vm6975, %v6968, %v6585
        %v6986 = vsel %vm6975, %v6969, %v6587
        %v6987 = vsel %vm6975, %v6970, %v6589
        %v6988 = vsel %vm6975, %v6971, %v6591
        %v6989 = vsel %vm6975, %v6972, %v6593
        %v6990 = vsel %vm6975, %v6973, %v6595
        %v6991 = vsel %vm6975, %v6974, %v6597
        %vm6992 = vcmask 785408
        %v6993 = vsel %vm6992, %v6976, %v6615
        %v6994 = vsel %vm6992, %v6977, %v6617
        %v6995 = vsel %vm6992, %v6978, %v6619
        %v6996 = vsel %vm6992, %v6979, %v6621
        %v6997 = vsel %vm6992, %v6980, %v6623
        %v6998 = vsel %vm6992, %v6981, %v6625
        %v6999 = vsel %vm6992, %v6982, %v6627
        %v7000 = vsel %vm6992, %v6983, %v6629
        %v7001 = vsel %vm6992, %v6984, %v6631
        %v7002 = vsel %vm6992, %v6985, %v6633
        %v7003 = vsel %vm6992, %v6986, %v6635
        %v7004 = vsel %vm6992, %v6987, %v6637
        %v7005 = vsel %vm6992, %v6988, %v6639
        %v7006 = vsel %vm6992, %v6989, %v6641
        %v7007 = vsel %vm6992, %v6990, %v6643
        %v7008 = vsel %vm6992, %v6991, %v6645
        %vm7009 = vcmask 850944
        %v7010 = vsel %vm7009, %v6993, %v6663
        %v7011 = vsel %vm7009, %v6994, %v6665
        %v7012 = vsel %vm7009, %v6995, %v6667
        %v7013 = vsel %vm7009, %v6996, %v6669
        %v7014 = vsel %vm7009, %v6997, %v6671
        %v7015 = vsel %vm7009, %v6998, %v6673
        %v7016 = vsel %vm7009, %v6999, %v6675
        %v7017 = vsel %vm7009, %v7000, %v6677
        %v7018 = vsel %vm7009, %v7001, %v6679
        %v7019 = vsel %vm7009, %v7002, %v6681
        %v7020 = vsel %vm7009, %v7003, %v6683
        %v7021 = vsel %vm7009, %v7004, %v6685
        %v7022 = vsel %vm7009, %v7005, %v6687
        %v7023 = vsel %vm7009, %v7006, %v6689
        %v7024 = vsel %vm7009, %v7007, %v6691
        %v7025 = vsel %vm7009, %v7008, %v6693
        %vm7026 = vcmask 916480
        %v7027 = vsel %vm7026, %v7010, %v6711
        %v7028 = vsel %vm7026, %v7011, %v6713
        %v7029 = vsel %vm7026, %v7012, %v6715
        %v7030 = vsel %vm7026, %v7013, %v6717
        %v7031 = vsel %vm7026, %v7014, %v6719
        %v7032 = vsel %vm7026, %v7015, %v6721
        %v7033 = vsel %vm7026, %v7016, %v6723
        %v7034 = vsel %vm7026, %v7017, %v6725
        %v7035 = vsel %vm7026, %v7018, %v6727
        %v7036 = vsel %vm7026, %v7019, %v6729
        %v7037 = vsel %vm7026, %v7020, %v6731
        %v7038 = vsel %vm7026, %v7021, %v6733
        %v7039 = vsel %vm7026, %v7022, %v6735
        %v7040 = vsel %vm7026, %v7023, %v6737
        %v7041 = vsel %vm7026, %v7024, %v6739
        %v7042 = vsel %vm7026, %v7025, %v6741
        %vm7043 = vcmask 982016
        %v7044 = vsel %vm7043, %v7027, %v6759
        %v7045 = vsel %vm7043, %v7028, %v6761
        %v7046 = vsel %vm7043, %v7029, %v6763
        %v7047 = vsel %vm7043, %v7030, %v6765
        %v7048 = vsel %vm7043, %v7031, %v6767
        %v7049 = vsel %vm7043, %v7032, %v6769
        %v7050 = vsel %vm7043, %v7033, %v6771
        %v7051 = vsel %vm7043, %v7034, %v6773
        %v7052 = vsel %vm7043, %v7035, %v6775
        %v7053 = vsel %vm7043, %v7036, %v6777
        %v7054 = vsel %vm7043, %v7037, %v6779
        %v7055 = vsel %vm7043, %v7038, %v6781
        %v7056 = vsel %vm7043, %v7039, %v6783
        %v7057 = vsel %vm7043, %v7040, %v6785
        %v7058 = vsel %vm7043, %v7041, %v6787
        %v7059 = vsel %vm7043, %v7042, %v6789
        %v7060 = vmul.f32 %v7044, %v3921
        %v7061 = vmul.f32 %v7044, %v3923
        %v7062 = vmul.f32 %v7045, %v3925
        %v7063 = vmul.f32 %v7045, %v3927
        %v7064 = vmul.f32 %v7046, %v3931
        %v7065 = vmul.f32 %v7046, %v3933
        %v7066 = vmul.f32 %v7047, %v3935
        %v7067 = vmul.f32 %v7047, %v3937
        %v7068 = vmul.f32 %v7048, %v3941
        %v7069 = vmul.f32 %v7048, %v3943
        %v7070 = vmul.f32 %v7049, %v3945
        %v7071 = vmul.f32 %v7049, %v3947
        %v7072 = vmul.f32 %v7050, %v3951
        %v7073 = vmul.f32 %v7050, %v3953
        %v7074 = vmul.f32 %v7051, %v3955
        %v7075 = vmul.f32 %v7051, %v3957
        %v7076 = vmul.f32 %v7052, %v3961
        %v7077 = vmul.f32 %v7052, %v3963
        %v7078 = vmul.f32 %v7053, %v3965
        %v7079 = vmul.f32 %v7053, %v3967
        %v7080 = vmul.f32 %v7054, %v3971
        %v7081 = vmul.f32 %v7054, %v3973
        %v7082 = vmul.f32 %v7055, %v3975
        %v7083 = vmul.f32 %v7055, %v3977
        %v7084 = vmul.f32 %v7056, %v3981
        %v7085 = vmul.f32 %v7056, %v3983
        %v7086 = vmul.f32 %v7057, %v3985
        %v7087 = vmul.f32 %v7057, %v3987
        %v7088 = vmul.f32 %v7058, %v3991
        %v7089 = vmul.f32 %v7058, %v3993
        %v7090 = vmul.f32 %v7059, %v3995
        %v7091 = vmul.f32 %v7059, %v3997
        %v7092 = vpack.c.bf16 %v7062, %v7060
        %v7093 = vpack.c.bf16 %v7063, %v7061
        %v7094 = vpack.c.bf16 %v7066, %v7064
        %v7095 = vpack.c.bf16 %v7067, %v7065
        %v7096 = vpack.c.bf16 %v7070, %v7068
        %v7097 = vpack.c.bf16 %v7071, %v7069
        %v7098 = vpack.c.bf16 %v7074, %v7072
        %v7099 = vpack.c.bf16 %v7075, %v7073
        %v7100 = vpack.c.bf16 %v7078, %v7076
        %v7101 = vpack.c.bf16 %v7079, %v7077
        %v7102 = vpack.c.bf16 %v7082, %v7080
        %v7103 = vpack.c.bf16 %v7083, %v7081
        %v7104 = vpack.c.bf16 %v7086, %v7084
        %v7105 = vpack.c.bf16 %v7087, %v7085
        %v7106 = vpack.c.bf16 %v7090, %v7088
        %v7107 = vpack.c.bf16 %v7091, %v7089
        %v7108 = vld [vmem:[%s11] sm:$0xf]
        %v7109 = vld [vmem:[%s11 + $0x4] sm:$0xf]
        %v7110 = vld [vmem:[%s11 + $0x8] sm:$0xf]
        %v7111 = vld [vmem:[%s11 + $0xc] sm:$0xf]
        %v7112 = vld [vmem:[%s11 + $0x10] sm:$0xf]
        %v7113 = vld [vmem:[%s11 + $0x14] sm:$0xf]
        %v7114 = vld [vmem:[%s11 + $0x18] sm:$0xf]
        %v7115 = vld [vmem:[%s11 + $0x1c] sm:$0xf]
        %v7116 = vld [vmem:[%s11 + $0x20] sm:$0xf]
        %v7117 = vld [vmem:[%s11 + $0x24] sm:$0xf]
        %v7118 = vld [vmem:[%s11 + $0x28] sm:$0xf]
        %v7119 = vld [vmem:[%s11 + $0x2c] sm:$0xf]
        %v7120 = vld [vmem:[%s11 + $0x30] sm:$0xf]
        %v7121 = vld [vmem:[%s11 + $0x34] sm:$0xf]
        %v7122 = vld [vmem:[%s11 + $0x38] sm:$0xf]
        %v7123 = vld [vmem:[%s11 + $0x3c] sm:$0xf]
        %v7124 = vld [vmem:[%s11 + $0x40] sm:$0xf]
        %v7125 = vld [vmem:[%s11 + $0x44] sm:$0xf]
        %v7126 = vld [vmem:[%s11 + $0x48] sm:$0xf]
        %v7127 = vld [vmem:[%s11 + $0x4c] sm:$0xf]
        %v7128 = vld [vmem:[%s11 + $0x50] sm:$0xf]
        %v7129 = vld [vmem:[%s11 + $0x54] sm:$0xf]
        %v7130 = vld [vmem:[%s11 + $0x58] sm:$0xf]
        %v7131 = vld [vmem:[%s11 + $0x5c] sm:$0xf]
        %v7132 = vld [vmem:[%s11 + $0x60] sm:$0xf]
        %v7133 = vld [vmem:[%s11 + $0x64] sm:$0xf]
        %v7134 = vld [vmem:[%s11 + $0x68] sm:$0xf]
        %v7135 = vld [vmem:[%s11 + $0x6c] sm:$0xf]
        %v7136 = vld [vmem:[%s11 + $0x70] sm:$0xf]
        %v7137 = vld [vmem:[%s11 + $0x74] sm:$0xf]
        %v7138 = vld [vmem:[%s11 + $0x78] sm:$0xf]
        %v7139 = vld [vmem:[%s11 + $0x7c] sm:$0xf]
        %v7172 = vunpack.c.l.b16 %v7108
        %v7173 = vunpack.c.l.b16 %v7109
        %v7174 = vunpack.c.l.b16 %v7110
        %v7175 = vunpack.c.l.b16 %v7111
        %v7176 = vunpack.c.l.b16 %v7112
        %v7177 = vunpack.c.l.b16 %v7113
        %v7178 = vunpack.c.l.b16 %v7114
        %v7179 = vunpack.c.l.b16 %v7115
        %v7180 = vunpack.c.l.b16 %v7116
        %v7181 = vunpack.c.l.b16 %v7117
        %v7182 = vunpack.c.l.b16 %v7118
        %v7183 = vunpack.c.l.b16 %v7119
        %v7184 = vunpack.c.l.b16 %v7120
        %v7185 = vunpack.c.l.b16 %v7121
        %v7186 = vunpack.c.l.b16 %v7122
        %v7187 = vunpack.c.l.b16 %v7123
        %v7188 = vunpack.c.l.b16 %v7124
        %v7189 = vunpack.c.l.b16 %v7125
        %v7190 = vunpack.c.l.b16 %v7126
        %v7191 = vunpack.c.l.b16 %v7127
        %v7192 = vunpack.c.l.b16 %v7128
        %v7193 = vunpack.c.l.b16 %v7129
        %v7194 = vunpack.c.l.b16 %v7130
        %v7195 = vunpack.c.l.b16 %v7131
        %v7196 = vunpack.c.l.b16 %v7132
        %v7197 = vunpack.c.l.b16 %v7133
        %v7198 = vunpack.c.l.b16 %v7134
        %v7199 = vunpack.c.l.b16 %v7135
        %v7200 = vunpack.c.l.b16 %v7136
        %v7201 = vunpack.c.l.b16 %v7137
        %v7202 = vunpack.c.l.b16 %v7138
        %v7203 = vunpack.c.l.b16 %v7139
        %v7204 = vpack.c.b16 %v7173, %v7172
        %v7205 = vpack.c.b16 %v7175, %v7174
        %v7206 = vpack.c.b16 %v7177, %v7176
        %v7207 = vpack.c.b16 %v7179, %v7178
        %v7208 = vpack.c.b16 %v7181, %v7180
        %v7209 = vpack.c.b16 %v7183, %v7182
        %v7210 = vpack.c.b16 %v7185, %v7184
        %v7211 = vpack.c.b16 %v7187, %v7186
        %v7212 = vpack.c.b16 %v7189, %v7188
        %v7213 = vpack.c.b16 %v7191, %v7190
        %v7214 = vpack.c.b16 %v7193, %v7192
        %v7215 = vpack.c.b16 %v7195, %v7194
        %v7216 = vpack.c.b16 %v7197, %v7196
        %v7217 = vpack.c.b16 %v7199, %v7198
        %v7218 = vpack.c.b16 %v7201, %v7200
        %v7219 = vpack.c.b16 %v7203, %v7202
        %7236 = vmatprep.subr.bf16.mxu0 0
        %7237 = vmatpush1.bf16.msra.mxu0 %v7204
        %7238 = vmatprep.subr.bf16.mxu0 0
        %7239 = vmatpush1.bf16.msra.mxu0 %v7205
        %7240 = vmatprep.subr.bf16.mxu0 0
        %7241 = vmatpush1.bf16.msra.mxu0 %v7206
        %7242 = vmatprep.subr.bf16.mxu0 0
        %7243 = vmatpush1.bf16.msra.mxu0 %v7207
        %7244 = vmatprep.subr.bf16.mxu0 0
        %7245 = vmatpush1.bf16.msra.mxu0 %v7208
        %7246 = vmatprep.subr.bf16.mxu0 0
        %7247 = vmatpush1.bf16.msra.mxu0 %v7209
        %7248 = vmatprep.subr.bf16.mxu0 0
        %7249 = vmatpush1.bf16.msra.mxu0 %v7210
        %7250 = vmatprep.subr.bf16.mxu0 0
        %7251 = vmatpush1.bf16.msra.mxu0 %v7211
        %7252 = vmatprep.subr.bf16.mxu0 0
        %7253 = vmatpush1.bf16.msra.mxu0 %v7212
        %7254 = vmatprep.subr.bf16.mxu0 0
        %7255 = vmatpush1.bf16.msra.mxu0 %v7213
        %7256 = vmatprep.subr.bf16.mxu0 0
        %7257 = vmatpush1.bf16.msra.mxu0 %v7214
        %7258 = vmatprep.subr.bf16.mxu0 0
        %7259 = vmatpush1.bf16.msra.mxu0 %v7215
        %7260 = vmatprep.subr.bf16.mxu0 0
        %7261 = vmatpush1.bf16.msra.mxu0 %v7216
        %7262 = vmatprep.subr.bf16.mxu0 0
        %7263 = vmatpush1.bf16.msra.mxu0 %v7217
        %7264 = vmatprep.subr.bf16.mxu0 0
        %7265 = vmatpush1.bf16.msra.mxu0 %v7218
        %7266 = vmatprep.subr.bf16.mxu0 0
        %7267 = vmatpush1.bf16.msra.mxu0 %v7219
        %7268 = vmatprep.mubr.bf16.mxu0 %v7093
        %7269 = vmatmul.mubr.bf16.gmra.mrb[0].mxu0 %v7092
        %v7270 = vpop.f32.mrb[0].mxu0
        %v7271 = vadd.f32 0.0, %v7270
        %v7272 = vpop.f32.mrb[0].mxu0
        %v7273 = vpop.f32.mrb[0].mxu0
        %v7274 = vadd.f32 0.0, %v7273
        %v7275 = vpop.f32.mrb[0].mxu0
        %7276 = vmatprep.mubr.bf16.mxu0 %v7095
        %7277 = vmatmul.mubr.bf16.gmra.mrb[0].mxu0 %v7094
        %v7278 = vpop.f32.mrb[0].mxu0
        %v7279 = vadd.f32 0.0, %v7278
        %v7280 = vpop.f32.mrb[0].mxu0
        %v7281 = vpop.f32.mrb[0].mxu0
        %v7282 = vadd.f32 0.0, %v7281
        %v7283 = vpop.f32.mrb[0].mxu0
        %7284 = vmatprep.mubr.bf16.mxu0 %v7097
        %7285 = vmatmul.mubr.bf16.gmra.mrb[0].mxu0 %v7096
        %v7286 = vpop.f32.mrb[0].mxu0
        %v7287 = vadd.f32 0.0, %v7286
        %v7288 = vpop.f32.mrb[0].mxu0
        %v7289 = vpop.f32.mrb[0].mxu0
        %v7290 = vadd.f32 0.0, %v7289
        %v7291 = vpop.f32.mrb[0].mxu0
        %7292 = vmatprep.mubr.bf16.mxu0 %v7099
        %7293 = vmatmul.mubr.bf16.gmra.mrb[0].mxu0 %v7098
        %v7294 = vpop.f32.mrb[0].mxu0
        %v7295 = vadd.f32 0.0, %v7294
        %v7296 = vpop.f32.mrb[0].mxu0
        %v7297 = vpop.f32.mrb[0].mxu0
        %v7298 = vadd.f32 0.0, %v7297
        %v7299 = vpop.f32.mrb[0].mxu0
        %7300 = vmatprep.mubr.bf16.mxu0 %v7101
        %7301 = vmatmul.mubr.bf16.gmra.mrb[0].mxu0 %v7100
        %v7302 = vpop.f32.mrb[0].mxu0
        %v7303 = vadd.f32 0.0, %v7302
        %v7304 = vpop.f32.mrb[0].mxu0
        %v7305 = vpop.f32.mrb[0].mxu0
        %v7306 = vadd.f32 0.0, %v7305
        %v7307 = vpop.f32.mrb[0].mxu0
        %7308 = vmatprep.mubr.bf16.mxu0 %v7103
        %7309 = vmatmul.mubr.bf16.gmra.mrb[0].mxu0 %v7102
        %v7310 = vpop.f32.mrb[0].mxu0
        %v7311 = vadd.f32 0.0, %v7310
        %v7312 = vpop.f32.mrb[0].mxu0
        %v7313 = vpop.f32.mrb[0].mxu0
        %v7314 = vadd.f32 0.0, %v7313
        %v7315 = vpop.f32.mrb[0].mxu0
        %7316 = vmatprep.mubr.bf16.mxu0 %v7105
        %7317 = vmatmul.mubr.bf16.gmra.mrb[0].mxu0 %v7104
        %v7318 = vpop.f32.mrb[0].mxu0
        %v7319 = vadd.f32 0.0, %v7318
        %v7320 = vpop.f32.mrb[0].mxu0
        %v7321 = vpop.f32.mrb[0].mxu0
        %v7322 = vadd.f32 0.0, %v7321
        %v7323 = vpop.f32.mrb[0].mxu0
        %7324 = vmatprep.mubr.bf16.mxu0 %v7107
        %7325 = vmatmul.mubr.bf16.gmra.mrb[0].mxu0 %v7106
        %v7326 = vpop.f32.mrb[0].mxu0
        %v7327 = vadd.f32 0.0, %v7326
        %v7328 = vpop.f32.mrb[0].mxu0
        %v7329 = vpop.f32.mrb[0].mxu0
        %v7330 = vadd.f32 0.0, %v7329
        %v7331 = vpop.f32.mrb[0].mxu0
        %7332 = vdwg.mxu0
        %7349 = vrot.lane.b32.xlu0 %v7271, 32
        %v7350 = vpop.permute.xlu0 %7349
        %7351 = vrot.lane.b32.xlu0 %v7274, 32
        %v7352 = vpop.permute.xlu0 %7351
        %7353 = vrot.lane.b32.xlu0 %v7279, 32
        %v7354 = vpop.permute.xlu0 %7353
        %7355 = vrot.lane.b32.xlu0 %v7282, 32
        %v7356 = vpop.permute.xlu0 %7355
        %7357 = vrot.lane.b32.xlu0 %v7287, 32
        %v7358 = vpop.permute.xlu0 %7357
        %7359 = vrot.lane.b32.xlu0 %v7290, 32
        %v7360 = vpop.permute.xlu0 %7359
        %7361 = vrot.lane.b32.xlu0 %v7295, 32
        %v7362 = vpop.permute.xlu0 %7361
        %7363 = vrot.lane.b32.xlu0 %v7298, 32
        %v7364 = vpop.permute.xlu0 %7363
        %7365 = vrot.lane.b32.xlu0 %v7303, 32
        %v7366 = vpop.permute.xlu0 %7365
        %7367 = vrot.lane.b32.xlu0 %v7306, 32
        %v7368 = vpop.permute.xlu0 %7367
        %7369 = vrot.lane.b32.xlu0 %v7311, 32
        %v7370 = vpop.permute.xlu0 %7369
        %7371 = vrot.lane.b32.xlu0 %v7314, 32
        %v7372 = vpop.permute.xlu0 %7371
        %7373 = vrot.lane.b32.xlu0 %v7319, 32
        %v7374 = vpop.permute.xlu0 %7373
        %7375 = vrot.lane.b32.xlu0 %v7322, 32
        %v7376 = vpop.permute.xlu0 %7375
        %7377 = vrot.lane.b32.xlu0 %v7327, 32
        %v7378 = vpop.permute.xlu0 %7377
        %7379 = vrot.lane.b32.xlu0 %v7330, 32
        %v7380 = vpop.permute.xlu0 %7379
        %7397 = vrot.lane.b32.xlu0 %v7271, 64
        %v7398 = vpop.permute.xlu0 %7397
        %7399 = vrot.lane.b32.xlu0 %v7274, 64
        %v7400 = vpop.permute.xlu0 %7399
        %7401 = vrot.lane.b32.xlu0 %v7279, 64
        %v7402 = vpop.permute.xlu0 %7401
        %7403 = vrot.lane.b32.xlu0 %v7282, 64
        %v7404 = vpop.permute.xlu0 %7403
        %7405 = vrot.lane.b32.xlu0 %v7287, 64
        %v7406 = vpop.permute.xlu0 %7405
        %7407 = vrot.lane.b32.xlu0 %v7290, 64
        %v7408 = vpop.permute.xlu0 %7407
        %7409 = vrot.lane.b32.xlu0 %v7295, 64
        %v7410 = vpop.permute.xlu0 %7409
        %7411 = vrot.lane.b32.xlu0 %v7298, 64
        %v7412 = vpop.permute.xlu0 %7411
        %7413 = vrot.lane.b32.xlu0 %v7303, 64
        %v7414 = vpop.permute.xlu0 %7413
        %7415 = vrot.lane.b32.xlu0 %v7306, 64
        %v7416 = vpop.permute.xlu0 %7415
        %7417 = vrot.lane.b32.xlu0 %v7311, 64
        %v7418 = vpop.permute.xlu0 %7417
        %7419 = vrot.lane.b32.xlu0 %v7314, 64
        %v7420 = vpop.permute.xlu0 %7419
        %7421 = vrot.lane.b32.xlu0 %v7319, 64
        %v7422 = vpop.permute.xlu0 %7421
        %7423 = vrot.lane.b32.xlu0 %v7322, 64
        %v7424 = vpop.permute.xlu0 %7423
        %7425 = vrot.lane.b32.xlu0 %v7327, 64
        %v7426 = vpop.permute.xlu0 %7425
        %7427 = vrot.lane.b32.xlu0 %v7330, 64
        %v7428 = vpop.permute.xlu0 %7427
        %7445 = vrot.lane.b32.xlu0 %v7271, 96
        %v7446 = vpop.permute.xlu0 %7445
        %7447 = vrot.lane.b32.xlu0 %v7274, 96
        %v7448 = vpop.permute.xlu0 %7447
        %7449 = vrot.lane.b32.xlu0 %v7279, 96
        %v7450 = vpop.permute.xlu0 %7449
        %7451 = vrot.lane.b32.xlu0 %v7282, 96
        %v7452 = vpop.permute.xlu0 %7451
        %7453 = vrot.lane.b32.xlu0 %v7287, 96
        %v7454 = vpop.permute.xlu0 %7453
        %7455 = vrot.lane.b32.xlu0 %v7290, 96
        %v7456 = vpop.permute.xlu0 %7455
        %7457 = vrot.lane.b32.xlu0 %v7295, 96
        %v7458 = vpop.permute.xlu0 %7457
        %7459 = vrot.lane.b32.xlu0 %v7298, 96
        %v7460 = vpop.permute.xlu0 %7459
        %7461 = vrot.lane.b32.xlu0 %v7303, 96
        %v7462 = vpop.permute.xlu0 %7461
        %7463 = vrot.lane.b32.xlu0 %v7306, 96
        %v7464 = vpop.permute.xlu0 %7463
        %7465 = vrot.lane.b32.xlu0 %v7311, 96
        %v7466 = vpop.permute.xlu0 %7465
        %7467 = vrot.lane.b32.xlu0 %v7314, 96
        %v7468 = vpop.permute.xlu0 %7467
        %7469 = vrot.lane.b32.xlu0 %v7319, 96
        %v7470 = vpop.permute.xlu0 %7469
        %7471 = vrot.lane.b32.xlu0 %v7322, 96
        %v7472 = vpop.permute.xlu0 %7471
        %7473 = vrot.lane.b32.xlu0 %v7327, 96
        %v7474 = vpop.permute.xlu0 %7473
        %7475 = vrot.lane.b32.xlu0 %v7330, 96
        %v7476 = vpop.permute.xlu0 %7475
        %v7493 = vsel %vm852, %v7271, %v7350
        %v7494 = vsel %vm852, %v7274, %v7352
        %v7495 = vsel %vm852, %v7279, %v7354
        %v7496 = vsel %vm852, %v7282, %v7356
        %v7497 = vsel %vm852, %v7287, %v7358
        %v7498 = vsel %vm852, %v7290, %v7360
        %v7499 = vsel %vm852, %v7295, %v7362
        %v7500 = vsel %vm852, %v7298, %v7364
        %v7501 = vsel %vm852, %v7303, %v7366
        %v7502 = vsel %vm852, %v7306, %v7368
        %v7503 = vsel %vm852, %v7311, %v7370
        %v7504 = vsel %vm852, %v7314, %v7372
        %v7505 = vsel %vm852, %v7319, %v7374
        %v7506 = vsel %vm852, %v7322, %v7376
        %v7507 = vsel %vm852, %v7327, %v7378
        %v7508 = vsel %vm852, %v7330, %v7380
        %v7509 = vsel %vm6924, %v7493, %v7398
        %v7510 = vsel %vm6924, %v7494, %v7400
        %v7511 = vsel %vm6924, %v7495, %v7402
        %v7512 = vsel %vm6924, %v7496, %v7404
        %v7513 = vsel %vm6924, %v7497, %v7406
        %v7514 = vsel %vm6924, %v7498, %v7408
        %v7515 = vsel %vm6924, %v7499, %v7410
        %v7516 = vsel %vm6924, %v7500, %v7412
        %v7517 = vsel %vm6924, %v7501, %v7414
        %v7518 = vsel %vm6924, %v7502, %v7416
        %v7519 = vsel %vm6924, %v7503, %v7418
        %v7520 = vsel %vm6924, %v7504, %v7420
        %v7521 = vsel %vm6924, %v7505, %v7422
        %v7522 = vsel %vm6924, %v7506, %v7424
        %v7523 = vsel %vm6924, %v7507, %v7426
        %v7524 = vsel %vm6924, %v7508, %v7428
        %v7525 = vsel %vm6992, %v7509, %v7446
        %v7526 = vsel %vm6992, %v7510, %v7448
        %v7527 = vsel %vm6992, %v7511, %v7450
        %v7528 = vsel %vm6992, %v7512, %v7452
        %v7529 = vsel %vm6992, %v7513, %v7454
        %v7530 = vsel %vm6992, %v7514, %v7456
        %v7531 = vsel %vm6992, %v7515, %v7458
        %v7532 = vsel %vm6992, %v7516, %v7460
        %v7533 = vsel %vm6992, %v7517, %v7462
        %v7534 = vsel %vm6992, %v7518, %v7464
        %v7535 = vsel %vm6992, %v7519, %v7466
        %v7536 = vsel %vm6992, %v7520, %v7468
        %v7537 = vsel %vm6992, %v7521, %v7470
        %v7538 = vsel %vm6992, %v7522, %v7472
        %v7539 = vsel %vm6992, %v7523, %v7474
        %v7540 = vsel %vm6992, %v7524, %v7476
        %v7541 = vmul.f32 %v7525, %v2616
        %v7542 = vmul.f32 %v7525, %v2618
        %v7543 = vmul.f32 %v7526, %v2620
        %v7544 = vmul.f32 %v7526, %v2622
        %v7545 = vmul.f32 %v7527, %v2626
        %v7546 = vmul.f32 %v7527, %v2628
        %v7547 = vmul.f32 %v7528, %v2630
        %v7548 = vmul.f32 %v7528, %v2632
        %v7549 = vmul.f32 %v7529, %v2636
        %v7550 = vmul.f32 %v7529, %v2638
        %v7551 = vmul.f32 %v7530, %v2640
        %v7552 = vmul.f32 %v7530, %v2642
        %v7553 = vmul.f32 %v7531, %v2646
        %v7554 = vmul.f32 %v7531, %v2648
        %v7555 = vmul.f32 %v7532, %v2650
        %v7556 = vmul.f32 %v7532, %v2652
        %v7557 = vmul.f32 %v7533, %v2656
        %v7558 = vmul.f32 %v7533, %v2658
        %v7559 = vmul.f32 %v7534, %v2660
        %v7560 = vmul.f32 %v7534, %v2662
        %v7561 = vmul.f32 %v7535, %v2666
        %v7562 = vmul.f32 %v7535, %v2668
        %v7563 = vmul.f32 %v7536, %v2670
        %v7564 = vmul.f32 %v7536, %v2672
        %v7565 = vmul.f32 %v7537, %v2676
        %v7566 = vmul.f32 %v7537, %v2678
        %v7567 = vmul.f32 %v7538, %v2680
        %v7568 = vmul.f32 %v7538, %v2682
        %v7569 = vmul.f32 %v7539, %v2686
        %v7570 = vmul.f32 %v7539, %v2688
        %v7571 = vmul.f32 %v7540, %v2690
        %v7572 = vmul.f32 %v7540, %v2692
        %v7573 = vpack.c.bf16 %v7543, %v7541
        %v7574 = vpack.c.bf16 %v7544, %v7542
        %v7575 = vpack.c.bf16 %v7547, %v7545
        %v7576 = vpack.c.bf16 %v7548, %v7546
        %v7577 = vpack.c.bf16 %v7551, %v7549
        %v7578 = vpack.c.bf16 %v7552, %v7550
        %v7579 = vpack.c.bf16 %v7555, %v7553
        %v7580 = vpack.c.bf16 %v7556, %v7554
        %v7581 = vpack.c.bf16 %v7559, %v7557
        %v7582 = vpack.c.bf16 %v7560, %v7558
        %v7583 = vpack.c.bf16 %v7563, %v7561
        %v7584 = vpack.c.bf16 %v7564, %v7562
        %v7585 = vpack.c.bf16 %v7567, %v7565
        %v7586 = vpack.c.bf16 %v7568, %v7566
        %v7587 = vpack.c.bf16 %v7571, %v7569
        %v7588 = vpack.c.bf16 %v7572, %v7570
        %v7589 = vld [vmem:[%s12] sm:$0xf]
        %v7590 = vld [vmem:[%s12 + $0x4] sm:$0xf]
        %v7591 = vld [vmem:[%s12 + $0x8] sm:$0xf]
        %v7592 = vld [vmem:[%s12 + $0xc] sm:$0xf]
        %v7593 = vld [vmem:[%s12 + $0x10] sm:$0xf]
        %v7594 = vld [vmem:[%s12 + $0x14] sm:$0xf]
        %v7595 = vld [vmem:[%s12 + $0x18] sm:$0xf]
        %v7596 = vld [vmem:[%s12 + $0x1c] sm:$0xf]
        %v7597 = vld [vmem:[%s12 + $0x20] sm:$0xf]
        %v7598 = vld [vmem:[%s12 + $0x24] sm:$0xf]
        %v7599 = vld [vmem:[%s12 + $0x28] sm:$0xf]
        %v7600 = vld [vmem:[%s12 + $0x2c] sm:$0xf]
        %v7601 = vld [vmem:[%s12 + $0x30] sm:$0xf]
        %v7602 = vld [vmem:[%s12 + $0x34] sm:$0xf]
        %v7603 = vld [vmem:[%s12 + $0x38] sm:$0xf]
        %v7604 = vld [vmem:[%s12 + $0x3c] sm:$0xf]
        %v7605 = vld [vmem:[%s12 + $0x40] sm:$0xf]
        %v7606 = vld [vmem:[%s12 + $0x44] sm:$0xf]
        %v7607 = vld [vmem:[%s12 + $0x48] sm:$0xf]
        %v7608 = vld [vmem:[%s12 + $0x4c] sm:$0xf]
        %v7609 = vld [vmem:[%s12 + $0x50] sm:$0xf]
        %v7610 = vld [vmem:[%s12 + $0x54] sm:$0xf]
        %v7611 = vld [vmem:[%s12 + $0x58] sm:$0xf]
        %v7612 = vld [vmem:[%s12 + $0x5c] sm:$0xf]
        %v7613 = vld [vmem:[%s12 + $0x60] sm:$0xf]
        %v7614 = vld [vmem:[%s12 + $0x64] sm:$0xf]
        %v7615 = vld [vmem:[%s12 + $0x68] sm:$0xf]
        %v7616 = vld [vmem:[%s12 + $0x6c] sm:$0xf]
        %v7617 = vld [vmem:[%s12 + $0x70] sm:$0xf]
        %v7618 = vld [vmem:[%s12 + $0x74] sm:$0xf]
        %v7619 = vld [vmem:[%s12 + $0x78] sm:$0xf]
        %v7620 = vld [vmem:[%s12 + $0x7c] sm:$0xf]
        %v7653 = vunpack.c.l.b16 %v7589
        %v7654 = vunpack.c.l.b16 %v7590
        %v7655 = vunpack.c.l.b16 %v7591
        %v7656 = vunpack.c.l.b16 %v7592
        %v7657 = vunpack.c.l.b16 %v7593
        %v7658 = vunpack.c.l.b16 %v7594
        %v7659 = vunpack.c.l.b16 %v7595
        %v7660 = vunpack.c.l.b16 %v7596
        %v7661 = vunpack.c.l.b16 %v7597
        %v7662 = vunpack.c.l.b16 %v7598
        %v7663 = vunpack.c.l.b16 %v7599
        %v7664 = vunpack.c.l.b16 %v7600
        %v7665 = vunpack.c.l.b16 %v7601
        %v7666 = vunpack.c.l.b16 %v7602
        %v7667 = vunpack.c.l.b16 %v7603
        %v7668 = vunpack.c.l.b16 %v7604
        %v7669 = vunpack.c.l.b16 %v7605
        %v7670 = vunpack.c.l.b16 %v7606
        %v7671 = vunpack.c.l.b16 %v7607
        %v7672 = vunpack.c.l.b16 %v7608
        %v7673 = vunpack.c.l.b16 %v7609
        %v7674 = vunpack.c.l.b16 %v7610
        %v7675 = vunpack.c.l.b16 %v7611
        %v7676 = vunpack.c.l.b16 %v7612
        %v7677 = vunpack.c.l.b16 %v7613
        %v7678 = vunpack.c.l.b16 %v7614
        %v7679 = vunpack.c.l.b16 %v7615
        %v7680 = vunpack.c.l.b16 %v7616
        %v7681 = vunpack.c.l.b16 %v7617
        %v7682 = vunpack.c.l.b16 %v7618
        %v7683 = vunpack.c.l.b16 %v7619
        %v7684 = vunpack.c.l.b16 %v7620
        %v7685 = vpack.c.b16 %v7654, %v7653
        %v7686 = vpack.c.b16 %v7656, %v7655
        %v7687 = vpack.c.b16 %v7658, %v7657
        %v7688 = vpack.c.b16 %v7660, %v7659
        %v7689 = vpack.c.b16 %v7662, %v7661
        %v7690 = vpack.c.b16 %v7664, %v7663
        %v7691 = vpack.c.b16 %v7666, %v7665
        %v7692 = vpack.c.b16 %v7668, %v7667
        %v7693 = vpack.c.b16 %v7670, %v7669
        %v7694 = vpack.c.b16 %v7672, %v7671
        %v7695 = vpack.c.b16 %v7674, %v7673
        %v7696 = vpack.c.b16 %v7676, %v7675
        %v7697 = vpack.c.b16 %v7678, %v7677
        %v7698 = vpack.c.b16 %v7680, %v7679
        %v7699 = vpack.c.b16 %v7682, %v7681
        %v7700 = vpack.c.b16 %v7684, %v7683
        %7717 = vmatprep.subr.bf16.mxu0 0
        %7718 = vmatpush1.bf16.msra.mxu0 %v7685
        %7719 = vmatprep.subr.bf16.mxu0 0
        %7720 = vmatpush1.bf16.msra.mxu0 %v7686
        %7721 = vmatprep.subr.bf16.mxu0 0
        %7722 = vmatpush1.bf16.msra.mxu0 %v7687
        %7723 = vmatprep.subr.bf16.mxu0 0
        %7724 = vmatpush1.bf16.msra.mxu0 %v7688
        %7725 = vmatprep.subr.bf16.mxu0 0
        %7726 = vmatpush1.bf16.msra.mxu0 %v7689
        %7727 = vmatprep.subr.bf16.mxu0 0
        %7728 = vmatpush1.bf16.msra.mxu0 %v7690
        %7729 = vmatprep.subr.bf16.mxu0 0
        %7730 = vmatpush1.bf16.msra.mxu0 %v7691
        %7731 = vmatprep.subr.bf16.mxu0 0
        %7732 = vmatpush1.bf16.msra.mxu0 %v7692
        %7733 = vmatprep.subr.bf16.mxu0 0
        %7734 = vmatpush1.bf16.msra.mxu0 %v7693
        %7735 = vmatprep.subr.bf16.mxu0 0
        %7736 = vmatpush1.bf16.msra.mxu0 %v7694
        %7737 = vmatprep.subr.bf16.mxu0 0
        %7738 = vmatpush1.bf16.msra.mxu0 %v7695
        %7739 = vmatprep.subr.bf16.mxu0 0
        %7740 = vmatpush1.bf16.msra.mxu0 %v7696
        %7741 = vmatprep.subr.bf16.mxu0 0
        %7742 = vmatpush1.bf16.msra.mxu0 %v7697
        %7743 = vmatprep.subr.bf16.mxu0 0
        %7744 = vmatpush1.bf16.msra.mxu0 %v7698
        %7745 = vmatprep.subr.bf16.mxu0 0
        %7746 = vmatpush1.bf16.msra.mxu0 %v7699
        %7747 = vmatprep.subr.bf16.mxu0 0
        %7748 = vmatpush1.bf16.msra.mxu0 %v7700
        %7749 = vmatprep.mubr.bf16.mxu0 %v7574
        %7750 = vmatmul.mubr.bf16.gmra.mrb[0].mxu0 %v7573
        %v7751 = vpop.f32.mrb[0].mxu0
        %v7752 = vadd.f32 %v2826, %v7751
        %v7753 = vpop.f32.mrb[0].mxu0
        %v7754 = vpop.f32.mrb[0].mxu0
        %v7755 = vadd.f32 %v2829, %v7754
        %v7756 = vpop.f32.mrb[0].mxu0
        %7757 = vmatprep.mubr.bf16.mxu0 %v7576
        %7758 = vmatmul.mubr.bf16.gmra.mrb[0].mxu0 %v7575
        %v7759 = vpop.f32.mrb[0].mxu0
        %v7760 = vadd.f32 %v2834, %v7759
        %v7761 = vpop.f32.mrb[0].mxu0
        %v7762 = vpop.f32.mrb[0].mxu0
        %v7763 = vadd.f32 %v2837, %v7762
        %v7764 = vpop.f32.mrb[0].mxu0
        %7765 = vmatprep.mubr.bf16.mxu0 %v7578
        %7766 = vmatmul.mubr.bf16.gmra.mrb[0].mxu0 %v7577
        %v7767 = vpop.f32.mrb[0].mxu0
        %v7768 = vadd.f32 %v2842, %v7767
        %v7769 = vpop.f32.mrb[0].mxu0
        %v7770 = vpop.f32.mrb[0].mxu0
        %v7771 = vadd.f32 %v2845, %v7770
        %v7772 = vpop.f32.mrb[0].mxu0
        %7773 = vmatprep.mubr.bf16.mxu0 %v7580
        %7774 = vmatmul.mubr.bf16.gmra.mrb[0].mxu0 %v7579
        %v7775 = vpop.f32.mrb[0].mxu0
        %v7776 = vadd.f32 %v2850, %v7775
        %v7777 = vpop.f32.mrb[0].mxu0
        %v7778 = vpop.f32.mrb[0].mxu0
        %v7779 = vadd.f32 %v2853, %v7778
        %v7780 = vpop.f32.mrb[0].mxu0
        %7781 = vmatprep.mubr.bf16.mxu0 %v7582
        %7782 = vmatmul.mubr.bf16.gmra.mrb[0].mxu0 %v7581
        %v7783 = vpop.f32.mrb[0].mxu0
        %v7784 = vadd.f32 %v2858, %v7783
        %v7785 = vpop.f32.mrb[0].mxu0
        %v7786 = vpop.f32.mrb[0].mxu0
        %v7787 = vadd.f32 %v2861, %v7786
        %v7788 = vpop.f32.mrb[0].mxu0
        %7789 = vmatprep.mubr.bf16.mxu0 %v7584
        %7790 = vmatmul.mubr.bf16.gmra.mrb[0].mxu0 %v7583
        %v7791 = vpop.f32.mrb[0].mxu0
        %v7792 = vadd.f32 %v2866, %v7791
        %v7793 = vpop.f32.mrb[0].mxu0
        %v7794 = vpop.f32.mrb[0].mxu0
        %v7795 = vadd.f32 %v2869, %v7794
        %v7796 = vpop.f32.mrb[0].mxu0
        %7797 = vmatprep.mubr.bf16.mxu0 %v7586
        %7798 = vmatmul.mubr.bf16.gmra.mrb[0].mxu0 %v7585
        %v7799 = vpop.f32.mrb[0].mxu0
        %v7800 = vadd.f32 %v2874, %v7799
        %v7801 = vpop.f32.mrb[0].mxu0
        %v7802 = vpop.f32.mrb[0].mxu0
        %v7803 = vadd.f32 %v2877, %v7802
        %v7804 = vpop.f32.mrb[0].mxu0
        %7805 = vmatprep.mubr.bf16.mxu0 %v7588
        %7806 = vmatmul.mubr.bf16.gmra.mrb[0].mxu0 %v7587
        %v7807 = vpop.f32.mrb[0].mxu0
        %v7808 = vadd.f32 %v2882, %v7807
        %v7809 = vpop.f32.mrb[0].mxu0
        %v7810 = vpop.f32.mrb[0].mxu0
        %v7811 = vadd.f32 %v2885, %v7810
        %v7812 = vpop.f32.mrb[0].mxu0
        %7813 = vdwg.mxu0
        %v7814 = vmax.f32 %v7752, 0.0
        %v7815 = vmax.f32 %v7755, 0.0
        %v7816 = vmax.f32 %v7760, 0.0
        %v7817 = vmax.f32 %v7763, 0.0
        %v7818 = vmax.f32 %v7768, 0.0
        %v7819 = vmax.f32 %v7771, 0.0
        %v7820 = vmax.f32 %v7776, 0.0
        %v7821 = vmax.f32 %v7779, 0.0
        %v7822 = vmax.f32 %v7784, 0.0
        %v7823 = vmax.f32 %v7787, 0.0
        %v7824 = vmax.f32 %v7792, 0.0
        %v7825 = vmax.f32 %v7795, 0.0
        %v7826 = vmax.f32 %v7800, 0.0
        %v7827 = vmax.f32 %v7803, 0.0
        %v7828 = vmax.f32 %v7808, 0.0
        %v7829 = vmax.f32 %v7811, 0.0
        %v7830 = vmul.f32 %v7814, %v3283
        %v7831 = vmul.f32 %v7815, %v3286
        %v7832 = vmul.f32 %v7816, %v3291
        %v7833 = vmul.f32 %v7817, %v3294
        %v7834 = vmul.f32 %v7818, %v3299
        %v7835 = vmul.f32 %v7819, %v3302
        %v7836 = vmul.f32 %v7820, %v3307
        %v7837 = vmul.f32 %v7821, %v3310
        %v7838 = vmul.f32 %v7822, %v3315
        %v7839 = vmul.f32 %v7823, %v3318
        %v7840 = vmul.f32 %v7824, %v3323
        %v7841 = vmul.f32 %v7825, %v3326
        %v7842 = vmul.f32 %v7826, %v3331
        %v7843 = vmul.f32 %v7827, %v3334
        %v7844 = vmul.f32 %v7828, %v3339
        %v7845 = vmul.f32 %v7829, %v3342
        %v7846 = vsel %vm6806, %v7830, 0.0
        %7847 = vadd.xlane.f32.xlu0 %v7846
        %v7848 = vpop.xlane.xlu0 %7847
        %v7849 = vsel %vm6806, %v7831, 0.0
        %7850 = vadd.xlane.f32.xlu0 %v7849
        %v7851 = vpop.xlane.xlu0 %7850
        %v7852 = vsel %vm6806, %v7832, 0.0
        %7853 = vadd.xlane.f32.xlu0 %v7852
        %v7854 = vpop.xlane.xlu0 %7853
        %v7855 = vsel %vm6806, %v7833, 0.0
        %7856 = vadd.xlane.f32.xlu0 %v7855
        %v7857 = vpop.xlane.xlu0 %7856
        %v7858 = vsel %vm6806, %v7834, 0.0
        %7859 = vadd.xlane.f32.xlu0 %v7858
        %v7860 = vpop.xlane.xlu0 %7859
        %v7861 = vsel %vm6806, %v7835, 0.0
        %7862 = vadd.xlane.f32.xlu0 %v7861
        %v7863 = vpop.xlane.xlu0 %7862
        %v7864 = vsel %vm6806, %v7836, 0.0
        %7865 = vadd.xlane.f32.xlu0 %v7864
        %v7866 = vpop.xlane.xlu0 %7865
        %v7867 = vsel %vm6806, %v7837, 0.0
        %7868 = vadd.xlane.f32.xlu0 %v7867
        %v7869 = vpop.xlane.xlu0 %7868
        %v7870 = vsel %vm6806, %v7838, 0.0
        %7871 = vadd.xlane.f32.xlu0 %v7870
        %v7872 = vpop.xlane.xlu0 %7871
        %v7873 = vsel %vm6806, %v7839, 0.0
        %7874 = vadd.xlane.f32.xlu0 %v7873
        %v7875 = vpop.xlane.xlu0 %7874
        %v7876 = vsel %vm6806, %v7840, 0.0
        %7877 = vadd.xlane.f32.xlu0 %v7876
        %v7878 = vpop.xlane.xlu0 %7877
        %v7879 = vsel %vm6806, %v7841, 0.0
        %7880 = vadd.xlane.f32.xlu0 %v7879
        %v7881 = vpop.xlane.xlu0 %7880
        %v7882 = vsel %vm6806, %v7842, 0.0
        %7883 = vadd.xlane.f32.xlu0 %v7882
        %v7884 = vpop.xlane.xlu0 %7883
        %v7885 = vsel %vm6806, %v7843, 0.0
        %7886 = vadd.xlane.f32.xlu0 %v7885
        %v7887 = vpop.xlane.xlu0 %7886
        %v7888 = vsel %vm6806, %v7844, 0.0
        %7889 = vadd.xlane.f32.xlu0 %v7888
        %v7890 = vpop.xlane.xlu0 %7889
        %v7891 = vsel %vm6806, %v7845, 0.0
        %7892 = vadd.xlane.f32.xlu0 %v7891
        %v7893 = vpop.xlane.xlu0 %7892
        %v7894 = vadd.f32 %v7848, %v3283
        %v7895 = vadd.f32 %v7851, %v3286
        %v7896 = vadd.f32 %v7854, %v3291
        %v7897 = vadd.f32 %v7857, %v3294
        %v7898 = vadd.f32 %v7860, %v3299
        %v7899 = vadd.f32 %v7863, %v3302
        %v7900 = vadd.f32 %v7866, %v3307
        %v7901 = vadd.f32 %v7869, %v3310
        %v7902 = vadd.f32 %v7872, %v3315
        %v7903 = vadd.f32 %v7875, %v3318
        %v7904 = vadd.f32 %v7878, %v3323
        %v7905 = vadd.f32 %v7881, %v3326
        %v7906 = vadd.f32 %v7884, %v3331
        %v7907 = vadd.f32 %v7887, %v3334
        %v7908 = vadd.f32 %v7890, %v3339
        %v7909 = vadd.f32 %v7893, %v3342
        %7926 = vrot.lane.b32.xlu0 %v7894, 120
        %v7927 = vpop.permute.xlu0 %7926
        %7928 = vrot.lane.b32.xlu0 %v7895, 120
        %v7929 = vpop.permute.xlu0 %7928
        %7930 = vrot.lane.b32.xlu0 %v7896, 120
        %v7931 = vpop.permute.xlu0 %7930
        %7932 = vrot.lane.b32.xlu0 %v7897, 120
        %v7933 = vpop.permute.xlu0 %7932
        %7934 = vrot.lane.b32.xlu0 %v7898, 120
        %v7935 = vpop.permute.xlu0 %7934
        %7936 = vrot.lane.b32.xlu0 %v7899, 120
        %v7937 = vpop.permute.xlu0 %7936
        %7938 = vrot.lane.b32.xlu0 %v7900, 120
        %v7939 = vpop.permute.xlu0 %7938
        %7940 = vrot.lane.b32.xlu0 %v7901, 120
        %v7941 = vpop.permute.xlu0 %7940
        %7942 = vrot.lane.b32.xlu0 %v7902, 120
        %v7943 = vpop.permute.xlu0 %7942
        %7944 = vrot.lane.b32.xlu0 %v7903, 120
        %v7945 = vpop.permute.xlu0 %7944
        %7946 = vrot.lane.b32.xlu0 %v7904, 120
        %v7947 = vpop.permute.xlu0 %7946
        %7948 = vrot.lane.b32.xlu0 %v7905, 120
        %v7949 = vpop.permute.xlu0 %7948
        %7950 = vrot.lane.b32.xlu0 %v7906, 120
        %v7951 = vpop.permute.xlu0 %7950
        %7952 = vrot.lane.b32.xlu0 %v7907, 120
        %v7953 = vpop.permute.xlu0 %7952
        %7954 = vrot.lane.b32.xlu0 %v7908, 120
        %v7955 = vpop.permute.xlu0 %7954
        %7956 = vrot.lane.b32.xlu0 %v7909, 120
        %v7957 = vpop.permute.xlu0 %7956
        %7974 = vst.msk [vmem:[%s585] sm:$0xff] %vm5919, %v7927
        %7975 = vst.msk [vmem:[%s585 + $0x8] sm:$0xff] %vm5919, %v7929
        %7976 = vst.msk [vmem:[%s585 + $0x10] sm:$0xff] %vm5919, %v7931
        %7977 = vst.msk [vmem:[%s585 + $0x18] sm:$0xff] %vm5919, %v7933
        %7978 = vst.msk [vmem:[%s585 + $0x20] sm:$0xff] %vm5919, %v7935
        %7979 = vst.msk [vmem:[%s585 + $0x28] sm:$0xff] %vm5919, %v7937
        %7980 = vst.msk [vmem:[%s585 + $0x30] sm:$0xff] %vm5919, %v7939
        %7981 = vst.msk [vmem:[%s585 + $0x38] sm:$0xff] %vm5919, %v7941
        %7982 = vst.msk [vmem:[%s585 + $0x40] sm:$0xff] %vm5919, %v7943
        %7983 = vst.msk [vmem:[%s585 + $0x48] sm:$0xff] %vm5919, %v7945
        %7984 = vst.msk [vmem:[%s585 + $0x50] sm:$0xff] %vm5919, %v7947
        %7985 = vst.msk [vmem:[%s585 + $0x58] sm:$0xff] %vm5919, %v7949
        %7986 = vst.msk [vmem:[%s585 + $0x60] sm:$0xff] %vm5919, %v7951
        %7987 = vst.msk [vmem:[%s585 + $0x68] sm:$0xff] %vm5919, %v7953
        %7988 = vst.msk [vmem:[%s585 + $0x70] sm:$0xff] %vm5919, %v7955
        %7989 = vst.msk [vmem:[%s585 + $0x78] sm:$0xff] %vm5919, %v7957
        %s7990 = smul.u32 16, %s30
        %p7991 = scmp.lt.s32.totalorder %s7990, 31
        %s7992 = scalar_select %p7991, %s7990, 31
        %s7993 = smul.addr %s7992, 8
        %s7994 = scalar_lea.vmem %s13, %s7993
        // Predicated region
        $region101: #{tpu_custom_call.1} parent=71 // pred_check
          %p7995 = pneg %p336
        $region102: #{tpu_custom_call.1} parent=71 // pred_check_branch
          %7997 = sbr.rel (%p7995) target = $region104
        $region103: #{tpu_custom_call.1} parent=71 // pred_region
          %s7998 = smul.u32 16, %s30
        $region104: #{tpu_custom_call.1} parent=71 // pred_fallthru
          _
      $region72: #{tpu_custom_call.1} parent=5 // pred_fallthru
        _
      %p7999 = scmp.le.s32.totalorder 2, %s25
      // Predicated region
      $region105: #{tpu_custom_call.1} parent=5 // pred_check
        %p8000 = pneg %p7999
      $region106: #{tpu_custom_call.1} parent=5 // pred_check_branch
        %8002 = sbr.rel (%p8000) target = $region108
      $region107: #{tpu_custom_call.1} parent=5 // pred_region
        %s8003 = ssub.s32 %s25, 2
        // Predicated region
        $region109: #{tpu_custom_call.1} parent=107 // pred_check
          %p8004 = pneg %p342
        $region110: #{tpu_custom_call.1} parent=107 // pred_check_branch
          %8006 = sbr.rel (%p8004) target = $region112
        $region111: #{tpu_custom_call.1} parent=107 // pred_region
          %s8007 = smul.u32 16, %s31
          %p8008 = scmp.lt.s32.totalorder %s8007, 31
          %s8009 = scalar_select %p8008, %s8007, 31
          %s8010 = smul.addr %s8009, 8
          %s8011 = scalar_lea.vmem %s13, %s8010
        $region112: #{tpu_custom_call.1} parent=107 // pred_fallthru
          _
      $region108: #{tpu_custom_call.1} parent=5 // pred_fallthru
        _
    $region6: #{tpu_custom_call.1} parent=1 // loop_footer
      %s29 = sadd.s32 1, %s25
    $region7: #{tpu_custom_call.1} parent=1 // loop_footer_branch
      %24 = sbr.rel target = $region3
    $region8: #{tpu_custom_call.1} parent=1 // loop_exit
      _
    %8012 = vsyncpa [#allocation3], 1
    %s8013 = scalar_lea.sflag [#allocation3], 1
    %8014 = vsyncpa %s8013, 1
    %8015 = vsyncpa [#allocation5], 1
    %8016 = vsyncpa [#allocation8], 1
    %8017 = vsyncpa [#allocation11], 1

</llo_original>
